<compile_context>
chip_gen: v7x
topology: tpu7x:2x2x1
jax: 0.10.0
libtpu: 0.0.40
codegen_flags: <defaults>
</compile_context>

<pallas_src>
import jax
import jax.numpy as jnp
from jax.experimental import pallas as pl
from jax.experimental.pallas import tpu as pltpu

NEG_BIG = -1e30  # padding logit bias: never the max, exp() underflows to 0


def decoder_kernel(e_all_ref, ua_k_ref, e_h_ref, e_c_ref,
                   wa_wT_ref, va_w_ref, w_gates_ref,
                   lin_wT_ref, lin_b_ref,
                   out_ref, attn_ref):
    B, S, D = e_all_ref.shape
    _, T, VP = out_ref.shape
    V_emb = w_gates_ref.shape[0] - 2 * D     # fused lhs = [onehot | context | h]

    # Small step-invariant values kept vreg-resident (iotas hoisted: JAX does
    # not CSE broadcast_in_dim).
    va_w = va_w_ref[...]                      # (1, D)
    lin_b = lin_b_ref[...]                    # (1, VP)  NEG_BIG on padded lanes
    iota_vp = jax.lax.broadcasted_iota(jnp.int32, (B, VP), 1)
    iota_ve = jax.lax.broadcasted_iota(jnp.int32, (B, V_emb), 1)

    # Initial state: d_input = zeros(B,1,long) -> one-hot at index 0; (h,c)=(e_h,e_c).
    h = e_h_ref[...]                          # (B, D)
    c = e_c_ref[...]                          # (B, D)
    onehot = (iota_ve == 0).astype(jnp.float32)

    # Fully unrolled 16-step decode; step index t is a Python int, so every
    # output store is static.  Large weights are re-read from VMEM per step.
    for t in range(T):
        e_all = e_all_ref[...]                # (B, S, D) attention keys/values
        ua_k = ua_k_ref[...]                  # (B, S, D) Ua(keys)+ua_b+wa_b
        wa_wT = wa_wT_ref[...]                # (D, D)
        w_gates = w_gates_ref[...]            # (V_emb+2D, 4D) fused gate weights
        lin_wT = lin_wT_ref[...]              # (D, VP)

        # --- Bahdanau additive cross-attention ---
        query = h + c                                                   # (B, D)
        wa_q = jnp.dot(query, wa_wT, preferred_element_type=jnp.float32)
        th = jnp.tanh(wa_q[:, None, :] + ua_k)                          # (B, S, D)
        scores = jnp.sum(th * va_w, axis=-1)                            # (B, S); Va bias dropped
        m = jnp.max(scores, axis=-1, keepdims=True)
        ex = jnp.exp(scores - m)
        denom = jnp.sum(ex, axis=-1, keepdims=True)
        weights = ex * pl.reciprocal(denom, approx=True)                # (B, S)
        context = jnp.sum(weights[:, :, None] * e_all, axis=1)          # (B, D)

        # --- single fused LSTM-gate matmul (PyTorch gate order i, f, g, o) ---
        # lhs = [onehot | context | h]; embedding matmul + b_ih + b_hh folded
        # into the onehot rows of w_gates; g-gate columns pre-scaled by 2.
        lhs = jnp.concatenate([onehot, context, h], axis=-1)            # (B, V_emb+2D)
        gates = jnp.dot(lhs, w_gates, preferred_element_type=jnp.float32)  # (B, 4D)
        act = jax.nn.sigmoid(gates)                                     # one EUP pass
        i_g = act[:, 0 * D:1 * D]
        f_g = act[:, 1 * D:2 * D]
        g_g = 2.0 * act[:, 2 * D:3 * D] - 1.0    # tanh(x) = 2*sigmoid(2x) - 1
        o_g = act[:, 3 * D:4 * D]
        c = f_g * c + i_g * g_g
        h = o_g * jnp.tanh(c)

        # --- output projection (lane-padded to VP=128) ---
        logits = jnp.dot(h, lin_wT, preferred_element_type=jnp.float32) + lin_b

        # --- fused greedy argmax + log_softmax, sharing the max ---
        mx = jnp.max(logits, axis=-1, keepdims=True)
        lse = jnp.log(jnp.sum(jnp.exp(logits - mx), axis=-1, keepdims=True)) + mx
        out_ref[:, t, :] = logits - lse          # final layout, static index
        attn_ref[:, t, :] = weights

        # next token = first index attaining the max (matches torch.topk)
        cand = jnp.where(logits == mx, iota_vp, jnp.int32(VP))
        idx = jnp.min(cand, axis=-1, keepdims=True)                      # (B, 1)
        onehot = (iota_ve == idx).astype(jnp.float32)


def init_params(key, dim_model, output_size, longest_smi):
    """Deterministic synthetic parameters (PyTorch Linear weights pre-transposed)."""
    D, V_out, V_emb = dim_model, output_size, longest_smi
    ks = jax.random.split(key, 12)

    def u(k, shape, scale=0.1):
        return jax.random.uniform(k, shape, jnp.float32, -scale, scale)

    return dict(
        emb_w=u(ks[0], (V_emb, D)),
        wa_wT=u(ks[1], (D, D)), wa_b=u(ks[2], (1, D)),
        ua_wT=u(ks[3], (D, D)), ua_b=u(ks[4], (1, D)),
        va_w=u(ks[5], (1, D)), va_b=u(ks[6], (1, 1)),   # va_b dropped (softmax shift-invariant)
        w_ihT=u(ks[7], (2 * D, 4 * D)), w_hhT=u(ks[8], (D, 4 * D)),
        b_ih=u(ks[9], (1, 4 * D)), b_hh=u(ks[10], (1, 4 * D)),
        lin_wT=u(ks[11], (D, V_out)), lin_b=jnp.zeros((1, V_out), jnp.float32),
    )


def _round_up(x, m):
    return ((x + m - 1) // m) * m


@jax.jit
def decoder_forward(e_all, e_h, e_c, params):
    B, S, D = e_all.shape
    V_emb = params["emb_w"].shape[0]
    T = V_emb                                    # decoder runs longest_smi steps
    V_out = params["lin_wT"].shape[1]
    VP = max(128, _round_up(V_out, 128))         # lane-dense padded vocab

    # Greedy index (over V_out) is reused as an embedding index (over V_emb).
    assert V_out <= V_emb, "output_size must not exceed longest_smi for greedy feedback"

    e_h2 = e_h.reshape(B, D)
    e_c2 = e_c.reshape(B, D)

    # ---- step-invariant precomputation / algebraic folds (exact up to f32 reassoc) ----
    # Attention key projection, with both Ua and Wa biases folded in.
    ua_k = (jnp.dot(e_all.reshape(B * S, D), params["ua_wT"])
            + params["ua_b"] + params["wa_b"]).reshape(B, S, D)

    # Fused LSTM gate weights: lhs = [onehot(V_emb) | context(D) | h(D)].
    # PyTorch concat order is cat([embedded, context]) -> emb uses w_ihT[:D,:],
    # context uses w_ihT[D:,:].  Embedding matmul + b_ih + b_hh folded into the
    # one-hot rows.
    emb_gates = (jnp.dot(params["emb_w"], params["w_ihT"][:D, :])
                 + params["b_ih"] + params["b_hh"])                     # (V_emb, 4D)
    w_gates = jnp.concatenate(
        [emb_gates, params["w_ihT"][D:, :], params["w_hhT"]], axis=0)   # (V_emb+2D, 4D)
    # tanh(x) = 2*sigmoid(2x) - 1: pre-double the g-gate column block so the
    # kernel only needs one sigmoid over the full 4D gate vector.
    col = jnp.arange(4 * D)
    g_scale = jnp.where((col >= 2 * D) & (col < 3 * D), 2.0, 1.0)[None, :]
    w_gates = w_gates * g_scale

    # Lane-padded output projection; pad bias = NEG_BIG (never wins argmax/lse).
    lin_wT_pad = jnp.zeros((D, VP), jnp.float32).at[:, :V_out].set(params["lin_wT"])
    lin_b_pad = jnp.full((1, VP), NEG_BIG, jnp.float32).at[:, :V_out].set(params["lin_b"])

    vmem = pl.BlockSpec(memory_space=pltpu.MemorySpace.VMEM)
    args = (e_all, ua_k, e_h2, e_c2,
            params["wa_wT"], params["va_w"],
            w_gates, lin_wT_pad, lin_b_pad)

    out, attn = pl.pallas_call(
        decoder_kernel,
        out_shape=(jax.ShapeDtypeStruct((B, T, VP), jnp.float32),
                   jax.ShapeDtypeStruct((B, T, S), jnp.float32)),
        in_specs=[vmem] * len(args),
        out_specs=(vmem, vmem),
    )(*args)

    # Outputs already in PyTorch layout; just drop the padded vocab lanes.
    return out[:, :, :V_out], attn


if __name__ == "__main__":
    B, S, D = 2, 8, 32
    longest_smi, output_size = 16, 12          # dropout=0.1 (identity at eval)
    key = jax.random.PRNGKey(0)
    k_p, k_e, k_h, k_c = jax.random.split(key, 4)

    params = init_params(k_p, D, output_size, longest_smi)
    e_all = jax.random.normal(k_e, (B, S, D), jnp.float32)
    e_h = jax.random.normal(k_h, (1, B, D), jnp.float32)
    e_c = jax.random.normal(k_c, (1, B, D), jnp.float32)

    log_probs, cross_attn = decoder_forward(e_all, e_h, e_c, params)
    jax.block_until_ready((log_probs, cross_attn))

    assert log_probs.shape == (B, longest_smi, output_size)
    assert cross_attn.shape == (B, longest_smi, S)
    assert bool(jnp.isfinite(log_probs).all()) and bool(jnp.isfinite(cross_attn).all())
    print("KERNEL_OK")
</pallas_src>

<mosaic_0001>
module attributes {stable_mosaic.version = 11 : i64} {
  func.func @decoder_kernel(%arg0: memref<2x8x32xf32, #tpu.memory_space<vmem>>, %arg1: memref<2x8x32xf32, #tpu.memory_space<vmem>>, %arg2: memref<2x32xf32, #tpu.memory_space<vmem>>, %arg3: memref<2x32xf32, #tpu.memory_space<vmem>>, %arg4: memref<32x32xf32, #tpu.memory_space<vmem>>, %arg5: memref<1x32xf32, #tpu.memory_space<vmem>>, %arg6: memref<80x128xf32, #tpu.memory_space<vmem>>, %arg7: memref<32x128xf32, #tpu.memory_space<vmem>>, %arg8: memref<1x128xf32, #tpu.memory_space<vmem>>, %arg9: memref<2x16x128xf32, #tpu.memory_space<vmem>>, %arg10: memref<2x16x8xf32, #tpu.memory_space<vmem>>) attributes {dimension_semantics = [], scalar_prefetch = 0 : i64, scratch_operands = 0 : i64, tpu.core_type = #tpu.core_type<tc>} {
    %c0 = arith.constant 0 : index
    %c0_0 = arith.constant 0 : index
    %0 = vector.load %arg5[%c0, %c0_0] : memref<1x32xf32, #tpu.memory_space<vmem>>, vector<1x32xf32>
    %c0_1 = arith.constant 0 : index
    %c0_2 = arith.constant 0 : index
    %1 = vector.load %arg8[%c0_1, %c0_2] : memref<1x128xf32, #tpu.memory_space<vmem>>, vector<1x128xf32>
    %2 = tpu.iota {dimensions = array<i32: 1>} : vector<2x128xi32>
    %3 = tpu.iota {dimensions = array<i32: 1>} : vector<2x16xi32>
    %c0_3 = arith.constant 0 : index
    %c0_4 = arith.constant 0 : index
    %4 = vector.load %arg2[%c0_3, %c0_4] : memref<2x32xf32, #tpu.memory_space<vmem>>, vector<2x32xf32>
    %c0_5 = arith.constant 0 : index
    %c0_6 = arith.constant 0 : index
    %5 = vector.load %arg3[%c0_5, %c0_6] : memref<2x32xf32, #tpu.memory_space<vmem>>, vector<2x32xf32>
    %c0_i32 = arith.constant 0 : i32
    %6 = vector.broadcast %c0_i32 : i32 to vector<2x16xi32>
    %7 = arith.cmpi eq, %3, %6 : vector<2x16xi32>
    %8 = arith.extui %7 : vector<2x16xi1> to vector<2x16xi32>
    %9 = arith.sitofp %8 : vector<2x16xi32> to vector<2x16xf32>
    %c0_7 = arith.constant 0 : index
    %c0_8 = arith.constant 0 : index
    %c0_9 = arith.constant 0 : index
    %10 = vector.load %arg0[%c0_7, %c0_8, %c0_9] : memref<2x8x32xf32, #tpu.memory_space<vmem>>, vector<2x8x32xf32>
    %c0_10 = arith.constant 0 : index
    %c0_11 = arith.constant 0 : index
    %c0_12 = arith.constant 0 : index
    %11 = vector.load %arg1[%c0_10, %c0_11, %c0_12] : memref<2x8x32xf32, #tpu.memory_space<vmem>>, vector<2x8x32xf32>
    %c0_13 = arith.constant 0 : index
    %c0_14 = arith.constant 0 : index
    %12 = vector.load %arg4[%c0_13, %c0_14] : memref<32x32xf32, #tpu.memory_space<vmem>>, vector<32x32xf32>
    %c0_15 = arith.constant 0 : index
    %c0_16 = arith.constant 0 : index
    %13 = vector.load %arg6[%c0_15, %c0_16] : memref<80x128xf32, #tpu.memory_space<vmem>>, vector<80x128xf32>
    %c0_17 = arith.constant 0 : index
    %c0_18 = arith.constant 0 : index
    %14 = vector.load %arg7[%c0_17, %c0_18] : memref<32x128xf32, #tpu.memory_space<vmem>>, vector<32x128xf32>
    %15 = arith.addf %4, %5 : vector<2x32xf32>
    %cst = arith.constant dense<0.000000e+00> : vector<2x32xf32>
    %16 = tpu.matmul %15, %12, %cst {dimension_numbers = #tpu.dot_dimension_numbers<[1], [0], [0], [1], [0, 0, 1, 1], [], []>} : vector<2x32xf32>, vector<32x32xf32>, vector<2x32xf32> -> vector<2x32xf32>
    %17 = vector.shape_cast %16 : vector<2x32xf32> to vector<2x1x32xf32>
    %18 = vector.broadcast %17 : vector<2x1x32xf32> to vector<2x8x32xf32>
    %19 = arith.addf %18, %11 : vector<2x8x32xf32>
    %20 = math.tanh %19 : vector<2x8x32xf32>
    %21 = vector.shape_cast %0 : vector<1x32xf32> to vector<1x1x32xf32>
    %22 = vector.broadcast %21 : vector<1x1x32xf32> to vector<2x8x32xf32>
    %23 = arith.mulf %20, %22 : vector<2x8x32xf32>
    %cst_19 = arith.constant dense<0.000000e+00> : vector<2x8xf32>
    %24 = vector.multi_reduction <add>, %23, %cst_19 [2] : vector<2x8x32xf32> to vector<2x8xf32>
    %cst_20 = arith.constant dense<0xFF800000> : vector<2xf32>
    %25 = vector.multi_reduction <maximumf>, %24, %cst_20 [1] : vector<2x8xf32> to vector<2xf32>
    %26 = vector.shape_cast %25 : vector<2xf32> to vector<2x1xf32>
    %27 = vector.broadcast %26 : vector<2x1xf32> to vector<2x8xf32>
    %28 = arith.subf %24, %27 : vector<2x8xf32>
    %29 = math.exp %28 : vector<2x8xf32>
    %cst_21 = arith.constant dense<0.000000e+00> : vector<2xf32>
    %30 = vector.multi_reduction <add>, %29, %cst_21 [1] : vector<2x8xf32> to vector<2xf32>
    %31 = vector.shape_cast %30 : vector<2xf32> to vector<2x1xf32>
    %32 = tpu.reciprocal %31 {approx = true} : vector<2x1xf32> -> vector<2x1xf32>
    %33 = vector.broadcast %32 : vector<2x1xf32> to vector<2x8xf32>
    %34 = arith.mulf %29, %33 : vector<2x8xf32>
    %35 = vector.shape_cast %34 : vector<2x8xf32> to vector<2x8x1xf32>
    %36 = vector.broadcast %35 : vector<2x8x1xf32> to vector<2x8x32xf32>
    %37 = arith.mulf %36, %10 : vector<2x8x32xf32>
    %cst_22 = arith.constant dense<0.000000e+00> : vector<2x32xf32>
    %38 = vector.multi_reduction <add>, %37, %cst_22 [1] : vector<2x8x32xf32> to vector<2x32xf32>
    %39 = tpu.concatenate %9, %38, %4 in 1 : vector<2x16xf32>, vector<2x32xf32>, vector<2x32xf32> -> vector<2x80xf32>
    %cst_23 = arith.constant dense<0.000000e+00> : vector<2x128xf32>
    %40 = tpu.matmul %39, %13, %cst_23 {dimension_numbers = #tpu.dot_dimension_numbers<[1], [0], [0], [1], [0, 0, 1, 1], [], []>} : vector<2x80xf32>, vector<80x128xf32>, vector<2x128xf32> -> vector<2x128xf32>
    %41 = arith.negf %40 : vector<2x128xf32>
    %42 = math.exp %41 : vector<2x128xf32>
    %cst_24 = arith.constant 1.000000e+00 : f32
    %43 = vector.broadcast %cst_24 : f32 to vector<2x128xf32>
    %44 = arith.addf %43, %42 : vector<2x128xf32>
    %45 = arith.divf %43, %44 : vector<2x128xf32>
    %46 = vector.extract_strided_slice %45 {offsets = [0, 0], sizes = [2, 32], strides = [1, 1]} : vector<2x128xf32> to vector<2x32xf32>
    %47 = vector.extract_strided_slice %45 {offsets = [0, 32], sizes = [2, 32], strides = [1, 1]} : vector<2x128xf32> to vector<2x32xf32>
    %48 = vector.extract_strided_slice %45 {offsets = [0, 64], sizes = [2, 32], strides = [1, 1]} : vector<2x128xf32> to vector<2x32xf32>
    %cst_25 = arith.constant 2.000000e+00 : f32
    %49 = vector.broadcast %cst_25 : f32 to vector<2x32xf32>
    %50 = arith.mulf %49, %48 : vector<2x32xf32>
    %cst_26 = arith.constant 1.000000e+00 : f32
    %51 = vector.broadcast %cst_26 : f32 to vector<2x32xf32>
    %52 = arith.subf %50, %51 : vector<2x32xf32>
    %53 = vector.extract_strided_slice %45 {offsets = [0, 96], sizes = [2, 32], strides = [1, 1]} : vector<2x128xf32> to vector<2x32xf32>
    %54 = arith.mulf %47, %5 : vector<2x32xf32>
    %55 = arith.mulf %46, %52 : vector<2x32xf32>
    %56 = arith.addf %54, %55 : vector<2x32xf32>
    %57 = math.tanh %56 : vector<2x32xf32>
    %58 = arith.mulf %53, %57 : vector<2x32xf32>
    %cst_27 = arith.constant dense<0.000000e+00> : vector<2x128xf32>
    %59 = tpu.matmul %58, %14, %cst_27 {dimension_numbers = #tpu.dot_dimension_numbers<[1], [0], [0], [1], [0, 0, 1, 1], [], []>} : vector<2x32xf32>, vector<32x128xf32>, vector<2x128xf32> -> vector<2x128xf32>
    %60 = vector.broadcast %1 : vector<1x128xf32> to vector<2x128xf32>
    %61 = arith.addf %59, %60 : vector<2x128xf32>
    %cst_28 = arith.constant dense<0xFF800000> : vector<2xf32>
    %62 = vector.multi_reduction <maximumf>, %61, %cst_28 [1] : vector<2x128xf32> to vector<2xf32>
    %63 = vector.shape_cast %62 : vector<2xf32> to vector<2x1xf32>
    %64 = vector.broadcast %63 : vector<2x1xf32> to vector<2x128xf32>
    %65 = arith.subf %61, %64 : vector<2x128xf32>
    %66 = math.exp %65 : vector<2x128xf32>
    %cst_29 = arith.constant dense<0.000000e+00> : vector<2xf32>
    %67 = vector.multi_reduction <add>, %66, %cst_29 [1] : vector<2x128xf32> to vector<2xf32>
    %68 = vector.shape_cast %67 : vector<2xf32> to vector<2x1xf32>
    %69 = math.log %68 : vector<2x1xf32>
    %70 = arith.addf %69, %63 : vector<2x1xf32>
    %71 = vector.broadcast %70 : vector<2x1xf32> to vector<2x128xf32>
    %72 = arith.subf %61, %71 : vector<2x128xf32>
    %c0_30 = arith.constant 0 : index
    %c0_31 = arith.constant 0 : index
    %c0_32 = arith.constant 0 : index
    %73 = vector.load %arg9[%c0_30, %c0_31, %c0_32] : memref<2x16x128xf32, #tpu.memory_space<vmem>>, vector<2x1x128xf32>
    %74 = vector.shape_cast %73 : vector<2x1x128xf32> to vector<2x128xf32>
    %75 = vector.shape_cast %72 : vector<2x128xf32> to vector<2x1x128xf32>
    tpu.vector_store %arg9[%c0_30, %c0_31, %c0_32], %75 {strides = array<i32>} : memref<2x16x128xf32, #tpu.memory_space<vmem>>, vector<2x1x128xf32>,
    %c0_33 = arith.constant 0 : index
    %c0_34 = arith.constant 0 : index
    %c0_35 = arith.constant 0 : index
    %76 = vector.load %arg10[%c0_33, %c0_34, %c0_35] : memref<2x16x8xf32, #tpu.memory_space<vmem>>, vector<2x1x8xf32>
    %77 = vector.shape_cast %76 : vector<2x1x8xf32> to vector<2x8xf32>
    %78 = vector.shape_cast %34 : vector<2x8xf32> to vector<2x1x8xf32>
    tpu.vector_store %arg10[%c0_33, %c0_34, %c0_35], %78 {strides = array<i32>} : memref<2x16x8xf32, #tpu.memory_space<vmem>>, vector<2x1x8xf32>,
    %79 = vector.broadcast %63 : vector<2x1xf32> to vector<2x128xf32>
    %80 = arith.cmpf oeq, %61, %79 : vector<2x128xf32>
    %c128_i32 = arith.constant 128 : i32
    %81 = vector.broadcast %c128_i32 : i32 to vector<2x128xi32>
    %82 = arith.select %80, %2, %81 : vector<2x128xi1>, vector<2x128xi32>
    %cst_36 = arith.constant dense<2147483647> : vector<2xi32>
    %83 = vector.multi_reduction <minsi>, %82, %cst_36 [1] : vector<2x128xi32> to vector<2xi32>
    %84 = vector.shape_cast %83 : vector<2xi32> to vector<2x1xi32>
    %85 = vector.broadcast %84 : vector<2x1xi32> to vector<2x16xi32>
    %86 = arith.cmpi eq, %3, %85 : vector<2x16xi32>
    %87 = arith.extui %86 : vector<2x16xi1> to vector<2x16xi32>
    %88 = arith.sitofp %87 : vector<2x16xi32> to vector<2x16xf32>
    %c0_37 = arith.constant 0 : index
    %c0_38 = arith.constant 0 : index
    %c0_39 = arith.constant 0 : index
    %89 = vector.load %arg0[%c0_37, %c0_38, %c0_39] : memref<2x8x32xf32, #tpu.memory_space<vmem>>, vector<2x8x32xf32>
    %c0_40 = arith.constant 0 : index
    %c0_41 = arith.constant 0 : index
    %c0_42 = arith.constant 0 : index
    %90 = vector.load %arg1[%c0_40, %c0_41, %c0_42] : memref<2x8x32xf32, #tpu.memory_space<vmem>>, vector<2x8x32xf32>
    %c0_43 = arith.constant 0 : index
    %c0_44 = arith.constant 0 : index
    %91 = vector.load %arg4[%c0_43, %c0_44] : memref<32x32xf32, #tpu.memory_space<vmem>>, vector<32x32xf32>
    %c0_45 = arith.constant 0 : index
    %c0_46 = arith.constant 0 : index
    %92 = vector.load %arg6[%c0_45, %c0_46] : memref<80x128xf32, #tpu.memory_space<vmem>>, vector<80x128xf32>
    %c0_47 = arith.constant 0 : index
    %c0_48 = arith.constant 0 : index
    %93 = vector.load %arg7[%c0_47, %c0_48] : memref<32x128xf32, #tpu.memory_space<vmem>>, vector<32x128xf32>
    %94 = arith.addf %58, %56 : vector<2x32xf32>
    %cst_49 = arith.constant dense<0.000000e+00> : vector<2x32xf32>
    %95 = tpu.matmul %94, %91, %cst_49 {dimension_numbers = #tpu.dot_dimension_numbers<[1], [0], [0], [1], [0, 0, 1, 1], [], []>} : vector<2x32xf32>, vector<32x32xf32>, vector<2x32xf32> -> vector<2x32xf32>
    %96 = vector.shape_cast %95 : vector<2x32xf32> to vector<2x1x32xf32>
    %97 = vector.broadcast %96 : vector<2x1x32xf32> to vector<2x8x32xf32>
    %98 = arith.addf %97, %90 : vector<2x8x32xf32>
    %99 = math.tanh %98 : vector<2x8x32xf32>
    %100 = vector.shape_cast %0 : vector<1x32xf32> to vector<1x1x32xf32>
    %101 = vector.broadcast %100 : vector<1x1x32xf32> to vector<2x8x32xf32>
    %102 = arith.mulf %99, %101 : vector<2x8x32xf32>
    %cst_50 = arith.constant dense<0.000000e+00> : vector<2x8xf32>
    %103 = vector.multi_reduction <add>, %102, %cst_50 [2] : vector<2x8x32xf32> to vector<2x8xf32>
    %cst_51 = arith.constant dense<0xFF800000> : vector<2xf32>
    %104 = vector.multi_reduction <maximumf>, %103, %cst_51 [1] : vector<2x8xf32> to vector<2xf32>
    %105 = vector.shape_cast %104 : vector<2xf32> to vector<2x1xf32>
    %106 = vector.broadcast %105 : vector<2x1xf32> to vector<2x8xf32>
    %107 = arith.subf %103, %106 : vector<2x8xf32>
    %108 = math.exp %107 : vector<2x8xf32>
    %cst_52 = arith.constant dense<0.000000e+00> : vector<2xf32>
    %109 = vector.multi_reduction <add>, %108, %cst_52 [1] : vector<2x8xf32> to vector<2xf32>
    %110 = vector.shape_cast %109 : vector<2xf32> to vector<2x1xf32>
    %111 = tpu.reciprocal %110 {approx = true} : vector<2x1xf32> -> vector<2x1xf32>
    %112 = vector.broadcast %111 : vector<2x1xf32> to vector<2x8xf32>
    %113 = arith.mulf %108, %112 : vector<2x8xf32>
    %114 = vector.shape_cast %113 : vector<2x8xf32> to vector<2x8x1xf32>
    %115 = vector.broadcast %114 : vector<2x8x1xf32> to vector<2x8x32xf32>
    %116 = arith.mulf %115, %89 : vector<2x8x32xf32>
    %cst_53 = arith.constant dense<0.000000e+00> : vector<2x32xf32>
    %117 = vector.multi_reduction <add>, %116, %cst_53 [1] : vector<2x8x32xf32> to vector<2x32xf32>
    %118 = tpu.concatenate %88, %117, %58 in 1 : vector<2x16xf32>, vector<2x32xf32>, vector<2x32xf32> -> vector<2x80xf32>
    %cst_54 = arith.constant dense<0.000000e+00> : vector<2x128xf32>
    %119 = tpu.matmul %118, %92, %cst_54 {dimension_numbers = #tpu.dot_dimension_numbers<[1], [0], [0], [1], [0, 0, 1, 1], [], []>} : vector<2x80xf32>, vector<80x128xf32>, vector<2x128xf32> -> vector<2x128xf32>
    %120 = arith.negf %119 : vector<2x128xf32>
    %121 = math.exp %120 : vector<2x128xf32>
    %cst_55 = arith.constant 1.000000e+00 : f32
    %122 = vector.broadcast %cst_55 : f32 to vector<2x128xf32>
    %123 = arith.addf %122, %121 : vector<2x128xf32>
    %124 = arith.divf %122, %123 : vector<2x128xf32>
    %125 = vector.extract_strided_slice %124 {offsets = [0, 0], sizes = [2, 32], strides = [1, 1]} : vector<2x128xf32> to vector<2x32xf32>
    %126 = vector.extract_strided_slice %124 {offsets = [0, 32], sizes = [2, 32], strides = [1, 1]} : vector<2x128xf32> to vector<2x32xf32>
    %127 = vector.extract_strided_slice %124 {offsets = [0, 64], sizes = [2, 32], strides = [1, 1]} : vector<2x128xf32> to vector<2x32xf32>
    %cst_56 = arith.constant 2.000000e+00 : f32
    %128 = vector.broadcast %cst_56 : f32 to vector<2x32xf32>
    %129 = arith.mulf %128, %127 : vector<2x32xf32>
    %cst_57 = arith.constant 1.000000e+00 : f32
    %130 = vector.broadcast %cst_57 : f32 to vector<2x32xf32>
    %131 = arith.subf %129, %130 : vector<2x32xf32>
    %132 = vector.extract_strided_slice %124 {offsets = [0, 96], sizes = [2, 32], strides = [1, 1]} : vector<2x128xf32> to vector<2x32xf32>
    %133 = arith.mulf %126, %56 : vector<2x32xf32>
    %134 = arith.mulf %125, %131 : vector<2x32xf32>
    %135 = arith.addf %133, %134 : vector<2x32xf32>
    %136 = math.tanh %135 : vector<2x32xf32>
    %137 = arith.mulf %132, %136 : vector<2x32xf32>
    %cst_58 = arith.constant dense<0.000000e+00> : vector<2x128xf32>
    %138 = tpu.matmul %137, %93, %cst_58 {dimension_numbers = #tpu.dot_dimension_numbers<[1], [0], [0], [1], [0, 0, 1, 1], [], []>} : vector<2x32xf32>, vector<32x128xf32>, vector<2x128xf32> -> vector<2x128xf32>
    %139 = vector.broadcast %1 : vector<1x128xf32> to vector<2x128xf32>
    %140 = arith.addf %138, %139 : vector<2x128xf32>
    %cst_59 = arith.constant dense<0xFF800000> : vector<2xf32>
    %141 = vector.multi_reduction <maximumf>, %140, %cst_59 [1] : vector<2x128xf32> to vector<2xf32>
    %142 = vector.shape_cast %141 : vector<2xf32> to vector<2x1xf32>
    %143 = vector.broadcast %142 : vector<2x1xf32> to vector<2x128xf32>
    %144 = arith.subf %140, %143 : vector<2x128xf32>
    %145 = math.exp %144 : vector<2x128xf32>
    %cst_60 = arith.constant dense<0.000000e+00> : vector<2xf32>
    %146 = vector.multi_reduction <add>, %145, %cst_60 [1] : vector<2x128xf32> to vector<2xf32>
    %147 = vector.shape_cast %146 : vector<2xf32> to vector<2x1xf32>
    %148 = math.log %147 : vector<2x1xf32>
    %149 = arith.addf %148, %142 : vector<2x1xf32>
    %150 = vector.broadcast %149 : vector<2x1xf32> to vector<2x128xf32>
    %151 = arith.subf %140, %150 : vector<2x128xf32>
    %c0_61 = arith.constant 0 : index
    %c1 = arith.constant 1 : index
    %c0_62 = arith.constant 0 : index
    %152 = vector.load %arg9[%c0_61, %c1, %c0_62] : memref<2x16x128xf32, #tpu.memory_space<vmem>>, vector<2x1x128xf32>
    %153 = vector.shape_cast %152 : vector<2x1x128xf32> to vector<2x128xf32>
    %154 = vector.shape_cast %151 : vector<2x128xf32> to vector<2x1x128xf32>
    tpu.vector_store %arg9[%c0_61, %c1, %c0_62], %154 {strides = array<i32>} : memref<2x16x128xf32, #tpu.memory_space<vmem>>, vector<2x1x128xf32>,
    %c0_63 = arith.constant 0 : index
    %c1_64 = arith.constant 1 : index
    %c0_65 = arith.constant 0 : index
    %155 = vector.load %arg10[%c0_63, %c1_64, %c0_65] : memref<2x16x8xf32, #tpu.memory_space<vmem>>, vector<2x1x8xf32>
    %156 = vector.shape_cast %155 : vector<2x1x8xf32> to vector<2x8xf32>
    %157 = vector.shape_cast %113 : vector<2x8xf32> to vector<2x1x8xf32>
    tpu.vector_store %arg10[%c0_63, %c1_64, %c0_65], %157 {strides = array<i32>} : memref<2x16x8xf32, #tpu.memory_space<vmem>>, vector<2x1x8xf32>,
    %158 = vector.broadcast %142 : vector<2x1xf32> to vector<2x128xf32>
    %159 = arith.cmpf oeq, %140, %158 : vector<2x128xf32>
    %c128_i32_66 = arith.constant 128 : i32
    %160 = vector.broadcast %c128_i32_66 : i32 to vector<2x128xi32>
    %161 = arith.select %159, %2, %160 : vector<2x128xi1>, vector<2x128xi32>
    %cst_67 = arith.constant dense<2147483647> : vector<2xi32>
    %162 = vector.multi_reduction <minsi>, %161, %cst_67 [1] : vector<2x128xi32> to vector<2xi32>
    %163 = vector.shape_cast %162 : vector<2xi32> to vector<2x1xi32>
    %164 = vector.broadcast %163 : vector<2x1xi32> to vector<2x16xi32>
    %165 = arith.cmpi eq, %3, %164 : vector<2x16xi32>
    %166 = arith.extui %165 : vector<2x16xi1> to vector<2x16xi32>
    %167 = arith.sitofp %166 : vector<2x16xi32> to vector<2x16xf32>
    %c0_68 = arith.constant 0 : index
    %c0_69 = arith.constant 0 : index
    %c0_70 = arith.constant 0 : index
    %168 = vector.load %arg0[%c0_68, %c0_69, %c0_70] : memref<2x8x32xf32, #tpu.memory_space<vmem>>, vector<2x8x32xf32>
    %c0_71 = arith.constant 0 : index
    %c0_72 = arith.constant 0 : index
    %c0_73 = arith.constant 0 : index
    %169 = vector.load %arg1[%c0_71, %c0_72, %c0_73] : memref<2x8x32xf32, #tpu.memory_space<vmem>>, vector<2x8x32xf32>
    %c0_74 = arith.constant 0 : index
    %c0_75 = arith.constant 0 : index
    %170 = vector.load %arg4[%c0_74, %c0_75] : memref<32x32xf32, #tpu.memory_space<vmem>>, vector<32x32xf32>
    %c0_76 = arith.constant 0 : index
    %c0_77 = arith.constant 0 : index
    %171 = vector.load %arg6[%c0_76, %c0_77] : memref<80x128xf32, #tpu.memory_space<vmem>>, vector<80x128xf32>
    %c0_78 = arith.constant 0 : index
    %c0_79 = arith.constant 0 : index
    %172 = vector.load %arg7[%c0_78, %c0_79] : memref<32x128xf32, #tpu.memory_space<vmem>>, vector<32x128xf32>
    %173 = arith.addf %137, %135 : vector<2x32xf32>
    %cst_80 = arith.constant dense<0.000000e+00> : vector<2x32xf32>
    %174 = tpu.matmul %173, %170, %cst_80 {dimension_numbers = #tpu.dot_dimension_numbers<[1], [0], [0], [1], [0, 0, 1, 1], [], []>} : vector<2x32xf32>, vector<32x32xf32>, vector<2x32xf32> -> vector<2x32xf32>
    %175 = vector.shape_cast %174 : vector<2x32xf32> to vector<2x1x32xf32>
    %176 = vector.broadcast %175 : vector<2x1x32xf32> to vector<2x8x32xf32>
    %177 = arith.addf %176, %169 : vector<2x8x32xf32>
    %178 = math.tanh %177 : vector<2x8x32xf32>
    %179 = vector.shape_cast %0 : vector<1x32xf32> to vector<1x1x32xf32>
    %180 = vector.broadcast %179 : vector<1x1x32xf32> to vector<2x8x32xf32>
    %181 = arith.mulf %178, %180 : vector<2x8x32xf32>
    %cst_81 = arith.constant dense<0.000000e+00> : vector<2x8xf32>
    %182 = vector.multi_reduction <add>, %181, %cst_81 [2] : vector<2x8x32xf32> to vector<2x8xf32>
    %cst_82 = arith.constant dense<0xFF800000> : vector<2xf32>
    %183 = vector.multi_reduction <maximumf>, %182, %cst_82 [1] : vector<2x8xf32> to vector<2xf32>
    %184 = vector.shape_cast %183 : vector<2xf32> to vector<2x1xf32>
    %185 = vector.broadcast %184 : vector<2x1xf32> to vector<2x8xf32>
    %186 = arith.subf %182, %185 : vector<2x8xf32>
    %187 = math.exp %186 : vector<2x8xf32>
    %cst_83 = arith.constant dense<0.000000e+00> : vector<2xf32>
    %188 = vector.multi_reduction <add>, %187, %cst_83 [1] : vector<2x8xf32> to vector<2xf32>
    %189 = vector.shape_cast %188 : vector<2xf32> to vector<2x1xf32>
    %190 = tpu.reciprocal %189 {approx = true} : vector<2x1xf32> -> vector<2x1xf32>
    %191 = vector.broadcast %190 : vector<2x1xf32> to vector<2x8xf32>
    %192 = arith.mulf %187, %191 : vector<2x8xf32>
    %193 = vector.shape_cast %192 : vector<2x8xf32> to vector<2x8x1xf32>
    %194 = vector.broadcast %193 : vector<2x8x1xf32> to vector<2x8x32xf32>
    %195 = arith.mulf %194, %168 : vector<2x8x32xf32>
    %cst_84 = arith.constant dense<0.000000e+00> : vector<2x32xf32>
    %196 = vector.multi_reduction <add>, %195, %cst_84 [1] : vector<2x8x32xf32> to vector<2x32xf32>
    %197 = tpu.concatenate %167, %196, %137 in 1 : vector<2x16xf32>, vector<2x32xf32>, vector<2x32xf32> -> vector<2x80xf32>
    %cst_85 = arith.constant dense<0.000000e+00> : vector<2x128xf32>
    %198 = tpu.matmul %197, %171, %cst_85 {dimension_numbers = #tpu.dot_dimension_numbers<[1], [0], [0], [1], [0, 0, 1, 1], [], []>} : vector<2x80xf32>, vector<80x128xf32>, vector<2x128xf32> -> vector<2x128xf32>
    %199 = arith.negf %198 : vector<2x128xf32>
    %200 = math.exp %199 : vector<2x128xf32>
    %cst_86 = arith.constant 1.000000e+00 : f32
    %201 = vector.broadcast %cst_86 : f32 to vector<2x128xf32>
    %202 = arith.addf %201, %200 : vector<2x128xf32>
    %203 = arith.divf %201, %202 : vector<2x128xf32>
    %204 = vector.extract_strided_slice %203 {offsets = [0, 0], sizes = [2, 32], strides = [1, 1]} : vector<2x128xf32> to vector<2x32xf32>
    %205 = vector.extract_strided_slice %203 {offsets = [0, 32], sizes = [2, 32], strides = [1, 1]} : vector<2x128xf32> to vector<2x32xf32>
    %206 = vector.extract_strided_slice %203 {offsets = [0, 64], sizes = [2, 32], strides = [1, 1]} : vector<2x128xf32> to vector<2x32xf32>
    %cst_87 = arith.constant 2.000000e+00 : f32
    %207 = vector.broadcast %cst_87 : f32 to vector<2x32xf32>
    %208 = arith.mulf %207, %206 : vector<2x32xf32>
    %cst_88 = arith.constant 1.000000e+00 : f32
    %209 = vector.broadcast %cst_88 : f32 to vector<2x32xf32>
    %210 = arith.subf %208, %209 : vector<2x32xf32>
    %211 = vector.extract_strided_slice %203 {offsets = [0, 96], sizes = [2, 32], strides = [1, 1]} : vector<2x128xf32> to vector<2x32xf32>
    %212 = arith.mulf %205, %135 : vector<2x32xf32>
    %213 = arith.mulf %204, %210 : vector<2x32xf32>
    %214 = arith.addf %212, %213 : vector<2x32xf32>
    %215 = math.tanh %214 : vector<2x32xf32>
    %216 = arith.mulf %211, %215 : vector<2x32xf32>
    %cst_89 = arith.constant dense<0.000000e+00> : vector<2x128xf32>
    %217 = tpu.matmul %216, %172, %cst_89 {dimension_numbers = #tpu.dot_dimension_numbers<[1], [0], [0], [1], [0, 0, 1, 1], [], []>} : vector<2x32xf32>, vector<32x128xf32>, vector<2x128xf32> -> vector<2x128xf32>
    %218 = vector.broadcast %1 : vector<1x128xf32> to vector<2x128xf32>
    %219 = arith.addf %217, %218 : vector<2x128xf32>
    %cst_90 = arith.constant dense<0xFF800000> : vector<2xf32>
    %220 = vector.multi_reduction <maximumf>, %219, %cst_90 [1] : vector<2x128xf32> to vector<2xf32>
    %221 = vector.shape_cast %220 : vector<2xf32> to vector<2x1xf32>
    %222 = vector.broadcast %221 : vector<2x1xf32> to vector<2x128xf32>
    %223 = arith.subf %219, %222 : vector<2x128xf32>
    %224 = math.exp %223 : vector<2x128xf32>
    %cst_91 = arith.constant dense<0.000000e+00> : vector<2xf32>
    %225 = vector.multi_reduction <add>, %224, %cst_91 [1] : vector<2x128xf32> to vector<2xf32>
    %226 = vector.shape_cast %225 : vector<2xf32> to vector<2x1xf32>
    %227 = math.log %226 : vector<2x1xf32>
    %228 = arith.addf %227, %221 : vector<2x1xf32>
    %229 = vector.broadcast %228 : vector<2x1xf32> to vector<2x128xf32>
    %230 = arith.subf %219, %229 : vector<2x128xf32>
    %c0_92 = arith.constant 0 : index
    %c2 = arith.constant 2 : index
    %c0_93 = arith.constant 0 : index
    %231 = vector.load %arg9[%c0_92, %c2, %c0_93] : memref<2x16x128xf32, #tpu.memory_space<vmem>>, vector<2x1x128xf32>
    %232 = vector.shape_cast %231 : vector<2x1x128xf32> to vector<2x128xf32>
    %233 = vector.shape_cast %230 : vector<2x128xf32> to vector<2x1x128xf32>
    tpu.vector_store %arg9[%c0_92, %c2, %c0_93], %233 {strides = array<i32>} : memref<2x16x128xf32, #tpu.memory_space<vmem>>, vector<2x1x128xf32>,
    %c0_94 = arith.constant 0 : index
    %c2_95 = arith.constant 2 : index
    %c0_96 = arith.constant 0 : index
    %234 = vector.load %arg10[%c0_94, %c2_95, %c0_96] : memref<2x16x8xf32, #tpu.memory_space<vmem>>, vector<2x1x8xf32>
    %235 = vector.shape_cast %234 : vector<2x1x8xf32> to vector<2x8xf32>
    %236 = vector.shape_cast %192 : vector<2x8xf32> to vector<2x1x8xf32>
    tpu.vector_store %arg10[%c0_94, %c2_95, %c0_96], %236 {strides = array<i32>} : memref<2x16x8xf32, #tpu.memory_space<vmem>>, vector<2x1x8xf32>,
    %237 = vector.broadcast %221 : vector<2x1xf32> to vector<2x128xf32>
    %238 = arith.cmpf oeq, %219, %237 : vector<2x128xf32>
    %c128_i32_97 = arith.constant 128 : i32
    %239 = vector.broadcast %c128_i32_97 : i32 to vector<2x128xi32>
    %240 = arith.select %238, %2, %239 : vector<2x128xi1>, vector<2x128xi32>
    %cst_98 = arith.constant dense<2147483647> : vector<2xi32>
    %241 = vector.multi_reduction <minsi>, %240, %cst_98 [1] : vector<2x128xi32> to vector<2xi32>
    %242 = vector.shape_cast %241 : vector<2xi32> to vector<2x1xi32>
    %243 = vector.broadcast %242 : vector<2x1xi32> to vector<2x16xi32>
    %244 = arith.cmpi eq, %3, %243 : vector<2x16xi32>
    %245 = arith.extui %244 : vector<2x16xi1> to vector<2x16xi32>
    %246 = arith.sitofp %245 : vector<2x16xi32> to vector<2x16xf32>
    %c0_99 = arith.constant 0 : index
    %c0_100 = arith.constant 0 : index
    %c0_101 = arith.constant 0 : index
    %247 = vector.load %arg0[%c0_99, %c0_100, %c0_101] : memref<2x8x32xf32, #tpu.memory_space<vmem>>, vector<2x8x32xf32>
    %c0_102 = arith.constant 0 : index
    %c0_103 = arith.constant 0 : index
    %c0_104 = arith.constant 0 : index
    %248 = vector.load %arg1[%c0_102, %c0_103, %c0_104] : memref<2x8x32xf32, #tpu.memory_space<vmem>>, vector<2x8x32xf32>
    %c0_105 = arith.constant 0 : index
    %c0_106 = arith.constant 0 : index
    %249 = vector.load %arg4[%c0_105, %c0_106] : memref<32x32xf32, #tpu.memory_space<vmem>>, vector<32x32xf32>
    %c0_107 = arith.constant 0 : index
    %c0_108 = arith.constant 0 : index
    %250 = vector.load %arg6[%c0_107, %c0_108] : memref<80x128xf32, #tpu.memory_space<vmem>>, vector<80x128xf32>
    %c0_109 = arith.constant 0 : index
    %c0_110 = arith.constant 0 : index
    %251 = vector.load %arg7[%c0_109, %c0_110] : memref<32x128xf32, #tpu.memory_space<vmem>>, vector<32x128xf32>
    %252 = arith.addf %216, %214 : vector<2x32xf32>
    %cst_111 = arith.constant dense<0.000000e+00> : vector<2x32xf32>
    %253 = tpu.matmul %252, %249, %cst_111 {dimension_numbers = #tpu.dot_dimension_numbers<[1], [0], [0], [1], [0, 0, 1, 1], [], []>} : vector<2x32xf32>, vector<32x32xf32>, vector<2x32xf32> -> vector<2x32xf32>
    %254 = vector.shape_cast %253 : vector<2x32xf32> to vector<2x1x32xf32>
    %255 = vector.broadcast %254 : vector<2x1x32xf32> to vector<2x8x32xf32>
    %256 = arith.addf %255, %248 : vector<2x8x32xf32>
    %257 = math.tanh %256 : vector<2x8x32xf32>
    %258 = vector.shape_cast %0 : vector<1x32xf32> to vector<1x1x32xf32>
    %259 = vector.broadcast %258 : vector<1x1x32xf32> to vector<2x8x32xf32>
    %260 = arith.mulf %257, %259 : vector<2x8x32xf32>
    %cst_112 = arith.constant dense<0.000000e+00> : vector<2x8xf32>
    %261 = vector.multi_reduction <add>, %260, %cst_112 [2] : vector<2x8x32xf32> to vector<2x8xf32>
    %cst_113 = arith.constant dense<0xFF800000> : vector<2xf32>
    %262 = vector.multi_reduction <maximumf>, %261, %cst_113 [1] : vector<2x8xf32> to vector<2xf32>
    %263 = vector.shape_cast %262 : vector<2xf32> to vector<2x1xf32>
    %264 = vector.broadcast %263 : vector<2x1xf32> to vector<2x8xf32>
    %265 = arith.subf %261, %264 : vector<2x8xf32>
    %266 = math.exp %265 : vector<2x8xf32>
    %cst_114 = arith.constant dense<0.000000e+00> : vector<2xf32>
    %267 = vector.multi_reduction <add>, %266, %cst_114 [1] : vector<2x8xf32> to vector<2xf32>
    %268 = vector.shape_cast %267 : vector<2xf32> to vector<2x1xf32>
    %269 = tpu.reciprocal %268 {approx = true} : vector<2x1xf32> -> vector<2x1xf32>
    %270 = vector.broadcast %269 : vector<2x1xf32> to vector<2x8xf32>
    %271 = arith.mulf %266, %270 : vector<2x8xf32>
    %272 = vector.shape_cast %271 : vector<2x8xf32> to vector<2x8x1xf32>
    %273 = vector.broadcast %272 : vector<2x8x1xf32> to vector<2x8x32xf32>
    %274 = arith.mulf %273, %247 : vector<2x8x32xf32>
    %cst_115 = arith.constant dense<0.000000e+00> : vector<2x32xf32>
    %275 = vector.multi_reduction <add>, %274, %cst_115 [1] : vector<2x8x32xf32> to vector<2x32xf32>
    %276 = tpu.concatenate %246, %275, %216 in 1 : vector<2x16xf32>, vector<2x32xf32>, vector<2x32xf32> -> vector<2x80xf32>
    %cst_116 = arith.constant dense<0.000000e+00> : vector<2x128xf32>
    %277 = tpu.matmul %276, %250, %cst_116 {dimension_numbers = #tpu.dot_dimension_numbers<[1], [0], [0], [1], [0, 0, 1, 1], [], []>} : vector<2x80xf32>, vector<80x128xf32>, vector<2x128xf32> -> vector<2x128xf32>
    %278 = arith.negf %277 : vector<2x128xf32>
    %279 = math.exp %278 : vector<2x128xf32>
    %cst_117 = arith.constant 1.000000e+00 : f32
    %280 = vector.broadcast %cst_117 : f32 to vector<2x128xf32>
    %281 = arith.addf %280, %279 : vector<2x128xf32>
    %282 = arith.divf %280, %281 : vector<2x128xf32>
    %283 = vector.extract_strided_slice %282 {offsets = [0, 0], sizes = [2, 32], strides = [1, 1]} : vector<2x128xf32> to vector<2x32xf32>
    %284 = vector.extract_strided_slice %282 {offsets = [0, 32], sizes = [2, 32], strides = [1, 1]} : vector<2x128xf32> to vector<2x32xf32>
    %285 = vector.extract_strided_slice %282 {offsets = [0, 64], sizes = [2, 32], strides = [1, 1]} : vector<2x128xf32> to vector<2x32xf32>
    %cst_118 = arith.constant 2.000000e+00 : f32
    %286 = vector.broadcast %cst_118 : f32 to vector<2x32xf32>
    %287 = arith.mulf %286, %285 : vector<2x32xf32>
    %cst_119 = arith.constant 1.000000e+00 : f32
    %288 = vector.broadcast %cst_119 : f32 to vector<2x32xf32>
    %289 = arith.subf %287, %288 : vector<2x32xf32>
    %290 = vector.extract_strided_slice %282 {offsets = [0, 96], sizes = [2, 32], strides = [1, 1]} : vector<2x128xf32> to vector<2x32xf32>
    %291 = arith.mulf %284, %214 : vector<2x32xf32>
    %292 = arith.mulf %283, %289 : vector<2x32xf32>
    %293 = arith.addf %291, %292 : vector<2x32xf32>
    %294 = math.tanh %293 : vector<2x32xf32>
    %295 = arith.mulf %290, %294 : vector<2x32xf32>
    %cst_120 = arith.constant dense<0.000000e+00> : vector<2x128xf32>
    %296 = tpu.matmul %295, %251, %cst_120 {dimension_numbers = #tpu.dot_dimension_numbers<[1], [0], [0], [1], [0, 0, 1, 1], [], []>} : vector<2x32xf32>, vector<32x128xf32>, vector<2x128xf32> -> vector<2x128xf32>
    %297 = vector.broadcast %1 : vector<1x128xf32> to vector<2x128xf32>
    %298 = arith.addf %296, %297 : vector<2x128xf32>
    %cst_121 = arith.constant dense<0xFF800000> : vector<2xf32>
    %299 = vector.multi_reduction <maximumf>, %298, %cst_121 [1] : vector<2x128xf32> to vector<2xf32>
    %300 = vector.shape_cast %299 : vector<2xf32> to vector<2x1xf32>
    %301 = vector.broadcast %300 : vector<2x1xf32> to vector<2x128xf32>
    %302 = arith.subf %298, %301 : vector<2x128xf32>
    %303 = math.exp %302 : vector<2x128xf32>
    %cst_122 = arith.constant dense<0.000000e+00> : vector<2xf32>
    %304 = vector.multi_reduction <add>, %303, %cst_122 [1] : vector<2x128xf32> to vector<2xf32>
    %305 = vector.shape_cast %304 : vector<2xf32> to vector<2x1xf32>
    %306 = math.log %305 : vector<2x1xf32>
    %307 = arith.addf %306, %300 : vector<2x1xf32>
    %308 = vector.broadcast %307 : vector<2x1xf32> to vector<2x128xf32>
    %309 = arith.subf %298, %308 : vector<2x128xf32>
    %c0_123 = arith.constant 0 : index
    %c3 = arith.constant 3 : index
    %c0_124 = arith.constant 0 : index
    %310 = vector.load %arg9[%c0_123, %c3, %c0_124] : memref<2x16x128xf32, #tpu.memory_space<vmem>>, vector<2x1x128xf32>
    %311 = vector.shape_cast %310 : vector<2x1x128xf32> to vector<2x128xf32>
    %312 = vector.shape_cast %309 : vector<2x128xf32> to vector<2x1x128xf32>
    tpu.vector_store %arg9[%c0_123, %c3, %c0_124], %312 {strides = array<i32>} : memref<2x16x128xf32, #tpu.memory_space<vmem>>, vector<2x1x128xf32>,
    %c0_125 = arith.constant 0 : index
    %c3_126 = arith.constant 3 : index
    %c0_127 = arith.constant 0 : index
    %313 = vector.load %arg10[%c0_125, %c3_126, %c0_127] : memref<2x16x8xf32, #tpu.memory_space<vmem>>, vector<2x1x8xf32>
    %314 = vector.shape_cast %313 : vector<2x1x8xf32> to vector<2x8xf32>
    %315 = vector.shape_cast %271 : vector<2x8xf32> to vector<2x1x8xf32>
    tpu.vector_store %arg10[%c0_125, %c3_126, %c0_127], %315 {strides = array<i32>} : memref<2x16x8xf32, #tpu.memory_space<vmem>>, vector<2x1x8xf32>,
    %316 = vector.broadcast %300 : vector<2x1xf32> to vector<2x128xf32>
    %317 = arith.cmpf oeq, %298, %316 : vector<2x128xf32>
    %c128_i32_128 = arith.constant 128 : i32
    %318 = vector.broadcast %c128_i32_128 : i32 to vector<2x128xi32>
    %319 = arith.select %317, %2, %318 : vector<2x128xi1>, vector<2x128xi32>
    %cst_129 = arith.constant dense<2147483647> : vector<2xi32>
    %320 = vector.multi_reduction <minsi>, %319, %cst_129 [1] : vector<2x128xi32> to vector<2xi32>
    %321 = vector.shape_cast %320 : vector<2xi32> to vector<2x1xi32>
    %322 = vector.broadcast %321 : vector<2x1xi32> to vector<2x16xi32>
    %323 = arith.cmpi eq, %3, %322 : vector<2x16xi32>
    %324 = arith.extui %323 : vector<2x16xi1> to vector<2x16xi32>
    %325 = arith.sitofp %324 : vector<2x16xi32> to vector<2x16xf32>
    %c0_130 = arith.constant 0 : index
    %c0_131 = arith.constant 0 : index
    %c0_132 = arith.constant 0 : index
    %326 = vector.load %arg0[%c0_130, %c0_131, %c0_132] : memref<2x8x32xf32, #tpu.memory_space<vmem>>, vector<2x8x32xf32>
    %c0_133 = arith.constant 0 : index
    %c0_134 = arith.constant 0 : index
    %c0_135 = arith.constant 0 : index
    %327 = vector.load %arg1[%c0_133, %c0_134, %c0_135] : memref<2x8x32xf32, #tpu.memory_space<vmem>>, vector<2x8x32xf32>
    %c0_136 = arith.constant 0 : index
    %c0_137 = arith.constant 0 : index
    %328 = vector.load %arg4[%c0_136, %c0_137] : memref<32x32xf32, #tpu.memory_space<vmem>>, vector<32x32xf32>
    %c0_138 = arith.constant 0 : index
    %c0_139 = arith.constant 0 : index
    %329 = vector.load %arg6[%c0_138, %c0_139] : memref<80x128xf32, #tpu.memory_space<vmem>>, vector<80x128xf32>
    %c0_140 = arith.constant 0 : index
    %c0_141 = arith.constant 0 : index
    %330 = vector.load %arg7[%c0_140, %c0_141] : memref<32x128xf32, #tpu.memory_space<vmem>>, vector<32x128xf32>
    %331 = arith.addf %295, %293 : vector<2x32xf32>
    %cst_142 = arith.constant dense<0.000000e+00> : vector<2x32xf32>
    %332 = tpu.matmul %331, %328, %cst_142 {dimension_numbers = #tpu.dot_dimension_numbers<[1], [0], [0], [1], [0, 0, 1, 1], [], []>} : vector<2x32xf32>, vector<32x32xf32>, vector<2x32xf32> -> vector<2x32xf32>
    %333 = vector.shape_cast %332 : vector<2x32xf32> to vector<2x1x32xf32>
    %334 = vector.broadcast %333 : vector<2x1x32xf32> to vector<2x8x32xf32>
    %335 = arith.addf %334, %327 : vector<2x8x32xf32>
    %336 = math.tanh %335 : vector<2x8x32xf32>
    %337 = vector.shape_cast %0 : vector<1x32xf32> to vector<1x1x32xf32>
    %338 = vector.broadcast %337 : vector<1x1x32xf32> to vector<2x8x32xf32>
    %339 = arith.mulf %336, %338 : vector<2x8x32xf32>
    %cst_143 = arith.constant dense<0.000000e+00> : vector<2x8xf32>
    %340 = vector.multi_reduction <add>, %339, %cst_143 [2] : vector<2x8x32xf32> to vector<2x8xf32>
    %cst_144 = arith.constant dense<0xFF800000> : vector<2xf32>
    %341 = vector.multi_reduction <maximumf>, %340, %cst_144 [1] : vector<2x8xf32> to vector<2xf32>
    %342 = vector.shape_cast %341 : vector<2xf32> to vector<2x1xf32>
    %343 = vector.broadcast %342 : vector<2x1xf32> to vector<2x8xf32>
    %344 = arith.subf %340, %343 : vector<2x8xf32>
    %345 = math.exp %344 : vector<2x8xf32>
    %cst_145 = arith.constant dense<0.000000e+00> : vector<2xf32>
    %346 = vector.multi_reduction <add>, %345, %cst_145 [1] : vector<2x8xf32> to vector<2xf32>
    %347 = vector.shape_cast %346 : vector<2xf32> to vector<2x1xf32>
    %348 = tpu.reciprocal %347 {approx = true} : vector<2x1xf32> -> vector<2x1xf32>
    %349 = vector.broadcast %348 : vector<2x1xf32> to vector<2x8xf32>
    %350 = arith.mulf %345, %349 : vector<2x8xf32>
    %351 = vector.shape_cast %350 : vector<2x8xf32> to vector<2x8x1xf32>
    %352 = vector.broadcast %351 : vector<2x8x1xf32> to vector<2x8x32xf32>
    %353 = arith.mulf %352, %326 : vector<2x8x32xf32>
    %cst_146 = arith.constant dense<0.000000e+00> : vector<2x32xf32>
    %354 = vector.multi_reduction <add>, %353, %cst_146 [1] : vector<2x8x32xf32> to vector<2x32xf32>
    %355 = tpu.concatenate %325, %354, %295 in 1 : vector<2x16xf32>, vector<2x32xf32>, vector<2x32xf32> -> vector<2x80xf32>
    %cst_147 = arith.constant dense<0.000000e+00> : vector<2x128xf32>
    %356 = tpu.matmul %355, %329, %cst_147 {dimension_numbers = #tpu.dot_dimension_numbers<[1], [0], [0], [1], [0, 0, 1, 1], [], []>} : vector<2x80xf32>, vector<80x128xf32>, vector<2x128xf32> -> vector<2x128xf32>
    %357 = arith.negf %356 : vector<2x128xf32>
    %358 = math.exp %357 : vector<2x128xf32>
    %cst_148 = arith.constant 1.000000e+00 : f32
    %359 = vector.broadcast %cst_148 : f32 to vector<2x128xf32>
    %360 = arith.addf %359, %358 : vector<2x128xf32>
    %361 = arith.divf %359, %360 : vector<2x128xf32>
    %362 = vector.extract_strided_slice %361 {offsets = [0, 0], sizes = [2, 32], strides = [1, 1]} : vector<2x128xf32> to vector<2x32xf32>
    %363 = vector.extract_strided_slice %361 {offsets = [0, 32], sizes = [2, 32], strides = [1, 1]} : vector<2x128xf32> to vector<2x32xf32>
    %364 = vector.extract_strided_slice %361 {offsets = [0, 64], sizes = [2, 32], strides = [1, 1]} : vector<2x128xf32> to vector<2x32xf32>
    %cst_149 = arith.constant 2.000000e+00 : f32
    %365 = vector.broadcast %cst_149 : f32 to vector<2x32xf32>
    %366 = arith.mulf %365, %364 : vector<2x32xf32>
    %cst_150 = arith.constant 1.000000e+00 : f32
    %367 = vector.broadcast %cst_150 : f32 to vector<2x32xf32>
    %368 = arith.subf %366, %367 : vector<2x32xf32>
    %369 = vector.extract_strided_slice %361 {offsets = [0, 96], sizes = [2, 32], strides = [1, 1]} : vector<2x128xf32> to vector<2x32xf32>
    %370 = arith.mulf %363, %293 : vector<2x32xf32>
    %371 = arith.mulf %362, %368 : vector<2x32xf32>
    %372 = arith.addf %370, %371 : vector<2x32xf32>
    %373 = math.tanh %372 : vector<2x32xf32>
    %374 = arith.mulf %369, %373 : vector<2x32xf32>
    %cst_151 = arith.constant dense<0.000000e+00> : vector<2x128xf32>
    %375 = tpu.matmul %374, %330, %cst_151 {dimension_numbers = #tpu.dot_dimension_numbers<[1], [0], [0], [1], [0, 0, 1, 1], [], []>} : vector<2x32xf32>, vector<32x128xf32>, vector<2x128xf32> -> vector<2x128xf32>
    %376 = vector.broadcast %1 : vector<1x128xf32> to vector<2x128xf32>
    %377 = arith.addf %375, %376 : vector<2x128xf32>
    %cst_152 = arith.constant dense<0xFF800000> : vector<2xf32>
    %378 = vector.multi_reduction <maximumf>, %377, %cst_152 [1] : vector<2x128xf32> to vector<2xf32>
    %379 = vector.shape_cast %378 : vector<2xf32> to vector<2x1xf32>
    %380 = vector.broadcast %379 : vector<2x1xf32> to vector<2x128xf32>
    %381 = arith.subf %377, %380 : vector<2x128xf32>
    %382 = math.exp %381 : vector<2x128xf32>
    %cst_153 = arith.constant dense<0.000000e+00> : vector<2xf32>
    %383 = vector.multi_reduction <add>, %382, %cst_153 [1] : vector<2x128xf32> to vector<2xf32>
    %384 = vector.shape_cast %383 : vector<2xf32> to vector<2x1xf32>
    %385 = math.log %384 : vector<2x1xf32>
    %386 = arith.addf %385, %379 : vector<2x1xf32>
    %387 = vector.broadcast %386 : vector<2x1xf32> to vector<2x128xf32>
    %388 = arith.subf %377, %387 : vector<2x128xf32>
    %c0_154 = arith.constant 0 : index
    %c4 = arith.constant 4 : index
    %c0_155 = arith.constant 0 : index
    %389 = vector.load %arg9[%c0_154, %c4, %c0_155] : memref<2x16x128xf32, #tpu.memory_space<vmem>>, vector<2x1x128xf32>
    %390 = vector.shape_cast %389 : vector<2x1x128xf32> to vector<2x128xf32>
    %391 = vector.shape_cast %388 : vector<2x128xf32> to vector<2x1x128xf32>
    tpu.vector_store %arg9[%c0_154, %c4, %c0_155], %391 {strides = array<i32>} : memref<2x16x128xf32, #tpu.memory_space<vmem>>, vector<2x1x128xf32>,
    %c0_156 = arith.constant 0 : index
    %c4_157 = arith.constant 4 : index
    %c0_158 = arith.constant 0 : index
    %392 = vector.load %arg10[%c0_156, %c4_157, %c0_158] : memref<2x16x8xf32, #tpu.memory_space<vmem>>, vector<2x1x8xf32>
    %393 = vector.shape_cast %392 : vector<2x1x8xf32> to vector<2x8xf32>
    %394 = vector.shape_cast %350 : vector<2x8xf32> to vector<2x1x8xf32>
    tpu.vector_store %arg10[%c0_156, %c4_157, %c0_158], %394 {strides = array<i32>} : memref<2x16x8xf32, #tpu.memory_space<vmem>>, vector<2x1x8xf32>,
    %395 = vector.broadcast %379 : vector<2x1xf32> to vector<2x128xf32>
    %396 = arith.cmpf oeq, %377, %395 : vector<2x128xf32>
    %c128_i32_159 = arith.constant 128 : i32
    %397 = vector.broadcast %c128_i32_159 : i32 to vector<2x128xi32>
    %398 = arith.select %396, %2, %397 : vector<2x128xi1>, vector<2x128xi32>
    %cst_160 = arith.constant dense<2147483647> : vector<2xi32>
    %399 = vector.multi_reduction <minsi>, %398, %cst_160 [1] : vector<2x128xi32> to vector<2xi32>
    %400 = vector.shape_cast %399 : vector<2xi32> to vector<2x1xi32>
    %401 = vector.broadcast %400 : vector<2x1xi32> to vector<2x16xi32>
    %402 = arith.cmpi eq, %3, %401 : vector<2x16xi32>
    %403 = arith.extui %402 : vector<2x16xi1> to vector<2x16xi32>
    %404 = arith.sitofp %403 : vector<2x16xi32> to vector<2x16xf32>
    %c0_161 = arith.constant 0 : index
    %c0_162 = arith.constant 0 : index
    %c0_163 = arith.constant 0 : index
    %405 = vector.load %arg0[%c0_161, %c0_162, %c0_163] : memref<2x8x32xf32, #tpu.memory_space<vmem>>, vector<2x8x32xf32>
    %c0_164 = arith.constant 0 : index
    %c0_165 = arith.constant 0 : index
    %c0_166 = arith.constant 0 : index
    %406 = vector.load %arg1[%c0_164, %c0_165, %c0_166] : memref<2x8x32xf32, #tpu.memory_space<vmem>>, vector<2x8x32xf32>
    %c0_167 = arith.constant 0 : index
    %c0_168 = arith.constant 0 : index
    %407 = vector.load %arg4[%c0_167, %c0_168] : memref<32x32xf32, #tpu.memory_space<vmem>>, vector<32x32xf32>
    %c0_169 = arith.constant 0 : index
    %c0_170 = arith.constant 0 : index
    %408 = vector.load %arg6[%c0_169, %c0_170] : memref<80x128xf32, #tpu.memory_space<vmem>>, vector<80x128xf32>
    %c0_171 = arith.constant 0 : index
    %c0_172 = arith.constant 0 : index
    %409 = vector.load %arg7[%c0_171, %c0_172] : memref<32x128xf32, #tpu.memory_space<vmem>>, vector<32x128xf32>
    %410 = arith.addf %374, %372 : vector<2x32xf32>
    %cst_173 = arith.constant dense<0.000000e+00> : vector<2x32xf32>
    %411 = tpu.matmul %410, %407, %cst_173 {dimension_numbers = #tpu.dot_dimension_numbers<[1], [0], [0], [1], [0, 0, 1, 1], [], []>} : vector<2x32xf32>, vector<32x32xf32>, vector<2x32xf32> -> vector<2x32xf32>
    %412 = vector.shape_cast %411 : vector<2x32xf32> to vector<2x1x32xf32>
    %413 = vector.broadcast %412 : vector<2x1x32xf32> to vector<2x8x32xf32>
    %414 = arith.addf %413, %406 : vector<2x8x32xf32>
    %415 = math.tanh %414 : vector<2x8x32xf32>
    %416 = vector.shape_cast %0 : vector<1x32xf32> to vector<1x1x32xf32>
    %417 = vector.broadcast %416 : vector<1x1x32xf32> to vector<2x8x32xf32>
    %418 = arith.mulf %415, %417 : vector<2x8x32xf32>
    %cst_174 = arith.constant dense<0.000000e+00> : vector<2x8xf32>
    %419 = vector.multi_reduction <add>, %418, %cst_174 [2] : vector<2x8x32xf32> to vector<2x8xf32>
    %cst_175 = arith.constant dense<0xFF800000> : vector<2xf32>
    %420 = vector.multi_reduction <maximumf>, %419, %cst_175 [1] : vector<2x8xf32> to vector<2xf32>
    %421 = vector.shape_cast %420 : vector<2xf32> to vector<2x1xf32>
    %422 = vector.broadcast %421 : vector<2x1xf32> to vector<2x8xf32>
    %423 = arith.subf %419, %422 : vector<2x8xf32>
    %424 = math.exp %423 : vector<2x8xf32>
    %cst_176 = arith.constant dense<0.000000e+00> : vector<2xf32>
    %425 = vector.multi_reduction <add>, %424, %cst_176 [1] : vector<2x8xf32> to vector<2xf32>
    %426 = vector.shape_cast %425 : vector<2xf32> to vector<2x1xf32>
    %427 = tpu.reciprocal %426 {approx = true} : vector<2x1xf32> -> vector<2x1xf32>
    %428 = vector.broadcast %427 : vector<2x1xf32> to vector<2x8xf32>
    %429 = arith.mulf %424, %428 : vector<2x8xf32>
    %430 = vector.shape_cast %429 : vector<2x8xf32> to vector<2x8x1xf32>
    %431 = vector.broadcast %430 : vector<2x8x1xf32> to vector<2x8x32xf32>
    %432 = arith.mulf %431, %405 : vector<2x8x32xf32>
    %cst_177 = arith.constant dense<0.000000e+00> : vector<2x32xf32>
    %433 = vector.multi_reduction <add>, %432, %cst_177 [1] : vector<2x8x32xf32> to vector<2x32xf32>
    %434 = tpu.concatenate %404, %433, %374 in 1 : vector<2x16xf32>, vector<2x32xf32>, vector<2x32xf32> -> vector<2x80xf32>
    %cst_178 = arith.constant dense<0.000000e+00> : vector<2x128xf32>
    %435 = tpu.matmul %434, %408, %cst_178 {dimension_numbers = #tpu.dot_dimension_numbers<[1], [0], [0], [1], [0, 0, 1, 1], [], []>} : vector<2x80xf32>, vector<80x128xf32>, vector<2x128xf32> -> vector<2x128xf32>
    %436 = arith.negf %435 : vector<2x128xf32>
    %437 = math.exp %436 : vector<2x128xf32>
    %cst_179 = arith.constant 1.000000e+00 : f32
    %438 = vector.broadcast %cst_179 : f32 to vector<2x128xf32>
    %439 = arith.addf %438, %437 : vector<2x128xf32>
    %440 = arith.divf %438, %439 : vector<2x128xf32>
    %441 = vector.extract_strided_slice %440 {offsets = [0, 0], sizes = [2, 32], strides = [1, 1]} : vector<2x128xf32> to vector<2x32xf32>
    %442 = vector.extract_strided_slice %440 {offsets = [0, 32], sizes = [2, 32], strides = [1, 1]} : vector<2x128xf32> to vector<2x32xf32>
    %443 = vector.extract_strided_slice %440 {offsets = [0, 64], sizes = [2, 32], strides = [1, 1]} : vector<2x128xf32> to vector<2x32xf32>
    %cst_180 = arith.constant 2.000000e+00 : f32
    %444 = vector.broadcast %cst_180 : f32 to vector<2x32xf32>
    %445 = arith.mulf %444, %443 : vector<2x32xf32>
    %cst_181 = arith.constant 1.000000e+00 : f32
    %446 = vector.broadcast %cst_181 : f32 to vector<2x32xf32>
    %447 = arith.subf %445, %446 : vector<2x32xf32>
    %448 = vector.extract_strided_slice %440 {offsets = [0, 96], sizes = [2, 32], strides = [1, 1]} : vector<2x128xf32> to vector<2x32xf32>
    %449 = arith.mulf %442, %372 : vector<2x32xf32>
    %450 = arith.mulf %441, %447 : vector<2x32xf32>
    %451 = arith.addf %449, %450 : vector<2x32xf32>
    %452 = math.tanh %451 : vector<2x32xf32>
    %453 = arith.mulf %448, %452 : vector<2x32xf32>
    %cst_182 = arith.constant dense<0.000000e+00> : vector<2x128xf32>
    %454 = tpu.matmul %453, %409, %cst_182 {dimension_numbers = #tpu.dot_dimension_numbers<[1], [0], [0], [1], [0, 0, 1, 1], [], []>} : vector<2x32xf32>, vector<32x128xf32>, vector<2x128xf32> -> vector<2x128xf32>
    %455 = vector.broadcast %1 : vector<1x128xf32> to vector<2x128xf32>
    %456 = arith.addf %454, %455 : vector<2x128xf32>
    %cst_183 = arith.constant dense<0xFF800000> : vector<2xf32>
    %457 = vector.multi_reduction <maximumf>, %456, %cst_183 [1] : vector<2x128xf32> to vector<2xf32>
    %458 = vector.shape_cast %457 : vector<2xf32> to vector<2x1xf32>
    %459 = vector.broadcast %458 : vector<2x1xf32> to vector<2x128xf32>
    %460 = arith.subf %456, %459 : vector<2x128xf32>
    %461 = math.exp %460 : vector<2x128xf32>
    %cst_184 = arith.constant dense<0.000000e+00> : vector<2xf32>
    %462 = vector.multi_reduction <add>, %461, %cst_184 [1] : vector<2x128xf32> to vector<2xf32>
    %463 = vector.shape_cast %462 : vector<2xf32> to vector<2x1xf32>
    %464 = math.log %463 : vector<2x1xf32>
    %465 = arith.addf %464, %458 : vector<2x1xf32>
    %466 = vector.broadcast %465 : vector<2x1xf32> to vector<2x128xf32>
    %467 = arith.subf %456, %466 : vector<2x128xf32>
    %c0_185 = arith.constant 0 : index
    %c5 = arith.constant 5 : index
    %c0_186 = arith.constant 0 : index
    %468 = vector.load %arg9[%c0_185, %c5, %c0_186] : memref<2x16x128xf32, #tpu.memory_space<vmem>>, vector<2x1x128xf32>
    %469 = vector.shape_cast %468 : vector<2x1x128xf32> to vector<2x128xf32>
    %470 = vector.shape_cast %467 : vector<2x128xf32> to vector<2x1x128xf32>
    tpu.vector_store %arg9[%c0_185, %c5, %c0_186], %470 {strides = array<i32>} : memref<2x16x128xf32, #tpu.memory_space<vmem>>, vector<2x1x128xf32>,
    %c0_187 = arith.constant 0 : index
    %c5_188 = arith.constant 5 : index
    %c0_189 = arith.constant 0 : index
    %471 = vector.load %arg10[%c0_187, %c5_188, %c0_189] : memref<2x16x8xf32, #tpu.memory_space<vmem>>, vector<2x1x8xf32>
    %472 = vector.shape_cast %471 : vector<2x1x8xf32> to vector<2x8xf32>
    %473 = vector.shape_cast %429 : vector<2x8xf32> to vector<2x1x8xf32>
    tpu.vector_store %arg10[%c0_187, %c5_188, %c0_189], %473 {strides = array<i32>} : memref<2x16x8xf32, #tpu.memory_space<vmem>>, vector<2x1x8xf32>,
    %474 = vector.broadcast %458 : vector<2x1xf32> to vector<2x128xf32>
    %475 = arith.cmpf oeq, %456, %474 : vector<2x128xf32>
    %c128_i32_190 = arith.constant 128 : i32
    %476 = vector.broadcast %c128_i32_190 : i32 to vector<2x128xi32>
    %477 = arith.select %475, %2, %476 : vector<2x128xi1>, vector<2x128xi32>
    %cst_191 = arith.constant dense<2147483647> : vector<2xi32>
    %478 = vector.multi_reduction <minsi>, %477, %cst_191 [1] : vector<2x128xi32> to vector<2xi32>
    %479 = vector.shape_cast %478 : vector<2xi32> to vector<2x1xi32>
    %480 = vector.broadcast %479 : vector<2x1xi32> to vector<2x16xi32>
    %481 = arith.cmpi eq, %3, %480 : vector<2x16xi32>
    %482 = arith.extui %481 : vector<2x16xi1> to vector<2x16xi32>
    %483 = arith.sitofp %482 : vector<2x16xi32> to vector<2x16xf32>
    %c0_192 = arith.constant 0 : index
    %c0_193 = arith.constant 0 : index
    %c0_194 = arith.constant 0 : index
    %484 = vector.load %arg0[%c0_192, %c0_193, %c0_194] : memref<2x8x32xf32, #tpu.memory_space<vmem>>, vector<2x8x32xf32>
    %c0_195 = arith.constant 0 : index
    %c0_196 = arith.constant 0 : index
    %c0_197 = arith.constant 0 : index
    %485 = vector.load %arg1[%c0_195, %c0_196, %c0_197] : memref<2x8x32xf32, #tpu.memory_space<vmem>>, vector<2x8x32xf32>
    %c0_198 = arith.constant 0 : index
    %c0_199 = arith.constant 0 : index
    %486 = vector.load %arg4[%c0_198, %c0_199] : memref<32x32xf32, #tpu.memory_space<vmem>>, vector<32x32xf32>
    %c0_200 = arith.constant 0 : index
    %c0_201 = arith.constant 0 : index
    %487 = vector.load %arg6[%c0_200, %c0_201] : memref<80x128xf32, #tpu.memory_space<vmem>>, vector<80x128xf32>
    %c0_202 = arith.constant 0 : index
    %c0_203 = arith.constant 0 : index
    %488 = vector.load %arg7[%c0_202, %c0_203] : memref<32x128xf32, #tpu.memory_space<vmem>>, vector<32x128xf32>
    %489 = arith.addf %453, %451 : vector<2x32xf32>
    %cst_204 = arith.constant dense<0.000000e+00> : vector<2x32xf32>
    %490 = tpu.matmul %489, %486, %cst_204 {dimension_numbers = #tpu.dot_dimension_numbers<[1], [0], [0], [1], [0, 0, 1, 1], [], []>} : vector<2x32xf32>, vector<32x32xf32>, vector<2x32xf32> -> vector<2x32xf32>
    %491 = vector.shape_cast %490 : vector<2x32xf32> to vector<2x1x32xf32>
    %492 = vector.broadcast %491 : vector<2x1x32xf32> to vector<2x8x32xf32>
    %493 = arith.addf %492, %485 : vector<2x8x32xf32>
    %494 = math.tanh %493 : vector<2x8x32xf32>
    %495 = vector.shape_cast %0 : vector<1x32xf32> to vector<1x1x32xf32>
    %496 = vector.broadcast %495 : vector<1x1x32xf32> to vector<2x8x32xf32>
    %497 = arith.mulf %494, %496 : vector<2x8x32xf32>
    %cst_205 = arith.constant dense<0.000000e+00> : vector<2x8xf32>
    %498 = vector.multi_reduction <add>, %497, %cst_205 [2] : vector<2x8x32xf32> to vector<2x8xf32>
    %cst_206 = arith.constant dense<0xFF800000> : vector<2xf32>
    %499 = vector.multi_reduction <maximumf>, %498, %cst_206 [1] : vector<2x8xf32> to vector<2xf32>
    %500 = vector.shape_cast %499 : vector<2xf32> to vector<2x1xf32>
    %501 = vector.broadcast %500 : vector<2x1xf32> to vector<2x8xf32>
    %502 = arith.subf %498, %501 : vector<2x8xf32>
    %503 = math.exp %502 : vector<2x8xf32>
    %cst_207 = arith.constant dense<0.000000e+00> : vector<2xf32>
    %504 = vector.multi_reduction <add>, %503, %cst_207 [1] : vector<2x8xf32> to vector<2xf32>
    %505 = vector.shape_cast %504 : vector<2xf32> to vector<2x1xf32>
    %506 = tpu.reciprocal %505 {approx = true} : vector<2x1xf32> -> vector<2x1xf32>
    %507 = vector.broadcast %506 : vector<2x1xf32> to vector<2x8xf32>
    %508 = arith.mulf %503, %507 : vector<2x8xf32>
    %509 = vector.shape_cast %508 : vector<2x8xf32> to vector<2x8x1xf32>
    %510 = vector.broadcast %509 : vector<2x8x1xf32> to vector<2x8x32xf32>
    %511 = arith.mulf %510, %484 : vector<2x8x32xf32>
    %cst_208 = arith.constant dense<0.000000e+00> : vector<2x32xf32>
    %512 = vector.multi_reduction <add>, %511, %cst_208 [1] : vector<2x8x32xf32> to vector<2x32xf32>
    %513 = tpu.concatenate %483, %512, %453 in 1 : vector<2x16xf32>, vector<2x32xf32>, vector<2x32xf32> -> vector<2x80xf32>
    %cst_209 = arith.constant dense<0.000000e+00> : vector<2x128xf32>
    %514 = tpu.matmul %513, %487, %cst_209 {dimension_numbers = #tpu.dot_dimension_numbers<[1], [0], [0], [1], [0, 0, 1, 1], [], []>} : vector<2x80xf32>, vector<80x128xf32>, vector<2x128xf32> -> vector<2x128xf32>
    %515 = arith.negf %514 : vector<2x128xf32>
    %516 = math.exp %515 : vector<2x128xf32>
    %cst_210 = arith.constant 1.000000e+00 : f32
    %517 = vector.broadcast %cst_210 : f32 to vector<2x128xf32>
    %518 = arith.addf %517, %516 : vector<2x128xf32>
    %519 = arith.divf %517, %518 : vector<2x128xf32>
    %520 = vector.extract_strided_slice %519 {offsets = [0, 0], sizes = [2, 32], strides = [1, 1]} : vector<2x128xf32> to vector<2x32xf32>
    %521 = vector.extract_strided_slice %519 {offsets = [0, 32], sizes = [2, 32], strides = [1, 1]} : vector<2x128xf32> to vector<2x32xf32>
    %522 = vector.extract_strided_slice %519 {offsets = [0, 64], sizes = [2, 32], strides = [1, 1]} : vector<2x128xf32> to vector<2x32xf32>
    %cst_211 = arith.constant 2.000000e+00 : f32
    %523 = vector.broadcast %cst_211 : f32 to vector<2x32xf32>
    %524 = arith.mulf %523, %522 : vector<2x32xf32>
    %cst_212 = arith.constant 1.000000e+00 : f32
    %525 = vector.broadcast %cst_212 : f32 to vector<2x32xf32>
    %526 = arith.subf %524, %525 : vector<2x32xf32>
    %527 = vector.extract_strided_slice %519 {offsets = [0, 96], sizes = [2, 32], strides = [1, 1]} : vector<2x128xf32> to vector<2x32xf32>
    %528 = arith.mulf %521, %451 : vector<2x32xf32>
    %529 = arith.mulf %520, %526 : vector<2x32xf32>
    %530 = arith.addf %528, %529 : vector<2x32xf32>
    %531 = math.tanh %530 : vector<2x32xf32>
    %532 = arith.mulf %527, %531 : vector<2x32xf32>
    %cst_213 = arith.constant dense<0.000000e+00> : vector<2x128xf32>
    %533 = tpu.matmul %532, %488, %cst_213 {dimension_numbers = #tpu.dot_dimension_numbers<[1], [0], [0], [1], [0, 0, 1, 1], [], []>} : vector<2x32xf32>, vector<32x128xf32>, vector<2x128xf32> -> vector<2x128xf32>
    %534 = vector.broadcast %1 : vector<1x128xf32> to vector<2x128xf32>
    %535 = arith.addf %533, %534 : vector<2x128xf32>
    %cst_214 = arith.constant dense<0xFF800000> : vector<2xf32>
    %536 = vector.multi_reduction <maximumf>, %535, %cst_214 [1] : vector<2x128xf32> to vector<2xf32>
    %537 = vector.shape_cast %536 : vector<2xf32> to vector<2x1xf32>
    %538 = vector.broadcast %537 : vector<2x1xf32> to vector<2x128xf32>
    %539 = arith.subf %535, %538 : vector<2x128xf32>
    %540 = math.exp %539 : vector<2x128xf32>
    %cst_215 = arith.constant dense<0.000000e+00> : vector<2xf32>
    %541 = vector.multi_reduction <add>, %540, %cst_215 [1] : vector<2x128xf32> to vector<2xf32>
    %542 = vector.shape_cast %541 : vector<2xf32> to vector<2x1xf32>
    %543 = math.log %542 : vector<2x1xf32>
    %544 = arith.addf %543, %537 : vector<2x1xf32>
    %545 = vector.broadcast %544 : vector<2x1xf32> to vector<2x128xf32>
    %546 = arith.subf %535, %545 : vector<2x128xf32>
    %c0_216 = arith.constant 0 : index
    %c6 = arith.constant 6 : index
    %c0_217 = arith.constant 0 : index
    %547 = vector.load %arg9[%c0_216, %c6, %c0_217] : memref<2x16x128xf32, #tpu.memory_space<vmem>>, vector<2x1x128xf32>
    %548 = vector.shape_cast %547 : vector<2x1x128xf32> to vector<2x128xf32>
    %549 = vector.shape_cast %546 : vector<2x128xf32> to vector<2x1x128xf32>
    tpu.vector_store %arg9[%c0_216, %c6, %c0_217], %549 {strides = array<i32>} : memref<2x16x128xf32, #tpu.memory_space<vmem>>, vector<2x1x128xf32>,
    %c0_218 = arith.constant 0 : index
    %c6_219 = arith.constant 6 : index
    %c0_220 = arith.constant 0 : index
    %550 = vector.load %arg10[%c0_218, %c6_219, %c0_220] : memref<2x16x8xf32, #tpu.memory_space<vmem>>, vector<2x1x8xf32>
    %551 = vector.shape_cast %550 : vector<2x1x8xf32> to vector<2x8xf32>
    %552 = vector.shape_cast %508 : vector<2x8xf32> to vector<2x1x8xf32>
    tpu.vector_store %arg10[%c0_218, %c6_219, %c0_220], %552 {strides = array<i32>} : memref<2x16x8xf32, #tpu.memory_space<vmem>>, vector<2x1x8xf32>,
    %553 = vector.broadcast %537 : vector<2x1xf32> to vector<2x128xf32>
    %554 = arith.cmpf oeq, %535, %553 : vector<2x128xf32>
    %c128_i32_221 = arith.constant 128 : i32
    %555 = vector.broadcast %c128_i32_221 : i32 to vector<2x128xi32>
    %556 = arith.select %554, %2, %555 : vector<2x128xi1>, vector<2x128xi32>
    %cst_222 = arith.constant dense<2147483647> : vector<2xi32>
    %557 = vector.multi_reduction <minsi>, %556, %cst_222 [1] : vector<2x128xi32> to vector<2xi32>
    %558 = vector.shape_cast %557 : vector<2xi32> to vector<2x1xi32>
    %559 = vector.broadcast %558 : vector<2x1xi32> to vector<2x16xi32>
    %560 = arith.cmpi eq, %3, %559 : vector<2x16xi32>
    %561 = arith.extui %560 : vector<2x16xi1> to vector<2x16xi32>
    %562 = arith.sitofp %561 : vector<2x16xi32> to vector<2x16xf32>
    %c0_223 = arith.constant 0 : index
    %c0_224 = arith.constant 0 : index
    %c0_225 = arith.constant 0 : index
    %563 = vector.load %arg0[%c0_223, %c0_224, %c0_225] : memref<2x8x32xf32, #tpu.memory_space<vmem>>, vector<2x8x32xf32>
    %c0_226 = arith.constant 0 : index
    %c0_227 = arith.constant 0 : index
    %c0_228 = arith.constant 0 : index
    %564 = vector.load %arg1[%c0_226, %c0_227, %c0_228] : memref<2x8x32xf32, #tpu.memory_space<vmem>>, vector<2x8x32xf32>
    %c0_229 = arith.constant 0 : index
    %c0_230 = arith.constant 0 : index
    %565 = vector.load %arg4[%c0_229, %c0_230] : memref<32x32xf32, #tpu.memory_space<vmem>>, vector<32x32xf32>
    %c0_231 = arith.constant 0 : index
    %c0_232 = arith.constant 0 : index
    %566 = vector.load %arg6[%c0_231, %c0_232] : memref<80x128xf32, #tpu.memory_space<vmem>>, vector<80x128xf32>
    %c0_233 = arith.constant 0 : index
    %c0_234 = arith.constant 0 : index
    %567 = vector.load %arg7[%c0_233, %c0_234] : memref<32x128xf32, #tpu.memory_space<vmem>>, vector<32x128xf32>
    %568 = arith.addf %532, %530 : vector<2x32xf32>
    %cst_235 = arith.constant dense<0.000000e+00> : vector<2x32xf32>
    %569 = tpu.matmul %568, %565, %cst_235 {dimension_numbers = #tpu.dot_dimension_numbers<[1], [0], [0], [1], [0, 0, 1, 1], [], []>} : vector<2x32xf32>, vector<32x32xf32>, vector<2x32xf32> -> vector<2x32xf32>
    %570 = vector.shape_cast %569 : vector<2x32xf32> to vector<2x1x32xf32>
    %571 = vector.broadcast %570 : vector<2x1x32xf32> to vector<2x8x32xf32>
    %572 = arith.addf %571, %564 : vector<2x8x32xf32>
    %573 = math.tanh %572 : vector<2x8x32xf32>
    %574 = vector.shape_cast %0 : vector<1x32xf32> to vector<1x1x32xf32>
    %575 = vector.broadcast %574 : vector<1x1x32xf32> to vector<2x8x32xf32>
    %576 = arith.mulf %573, %575 : vector<2x8x32xf32>
    %cst_236 = arith.constant dense<0.000000e+00> : vector<2x8xf32>
    %577 = vector.multi_reduction <add>, %576, %cst_236 [2] : vector<2x8x32xf32> to vector<2x8xf32>
    %cst_237 = arith.constant dense<0xFF800000> : vector<2xf32>
    %578 = vector.multi_reduction <maximumf>, %577, %cst_237 [1] : vector<2x8xf32> to vector<2xf32>
    %579 = vector.shape_cast %578 : vector<2xf32> to vector<2x1xf32>
    %580 = vector.broadcast %579 : vector<2x1xf32> to vector<2x8xf32>
    %581 = arith.subf %577, %580 : vector<2x8xf32>
    %582 = math.exp %581 : vector<2x8xf32>
    %cst_238 = arith.constant dense<0.000000e+00> : vector<2xf32>
    %583 = vector.multi_reduction <add>, %582, %cst_238 [1] : vector<2x8xf32> to vector<2xf32>
    %584 = vector.shape_cast %583 : vector<2xf32> to vector<2x1xf32>
    %585 = tpu.reciprocal %584 {approx = true} : vector<2x1xf32> -> vector<2x1xf32>
    %586 = vector.broadcast %585 : vector<2x1xf32> to vector<2x8xf32>
    %587 = arith.mulf %582, %586 : vector<2x8xf32>
    %588 = vector.shape_cast %587 : vector<2x8xf32> to vector<2x8x1xf32>
    %589 = vector.broadcast %588 : vector<2x8x1xf32> to vector<2x8x32xf32>
    %590 = arith.mulf %589, %563 : vector<2x8x32xf32>
    %cst_239 = arith.constant dense<0.000000e+00> : vector<2x32xf32>
    %591 = vector.multi_reduction <add>, %590, %cst_239 [1] : vector<2x8x32xf32> to vector<2x32xf32>
    %592 = tpu.concatenate %562, %591, %532 in 1 : vector<2x16xf32>, vector<2x32xf32>, vector<2x32xf32> -> vector<2x80xf32>
    %cst_240 = arith.constant dense<0.000000e+00> : vector<2x128xf32>
    %593 = tpu.matmul %592, %566, %cst_240 {dimension_numbers = #tpu.dot_dimension_numbers<[1], [0], [0], [1], [0, 0, 1, 1], [], []>} : vector<2x80xf32>, vector<80x128xf32>, vector<2x128xf32> -> vector<2x128xf32>
    %594 = arith.negf %593 : vector<2x128xf32>
    %595 = math.exp %594 : vector<2x128xf32>
    %cst_241 = arith.constant 1.000000e+00 : f32
    %596 = vector.broadcast %cst_241 : f32 to vector<2x128xf32>
    %597 = arith.addf %596, %595 : vector<2x128xf32>
    %598 = arith.divf %596, %597 : vector<2x128xf32>
    %599 = vector.extract_strided_slice %598 {offsets = [0, 0], sizes = [2, 32], strides = [1, 1]} : vector<2x128xf32> to vector<2x32xf32>
    %600 = vector.extract_strided_slice %598 {offsets = [0, 32], sizes = [2, 32], strides = [1, 1]} : vector<2x128xf32> to vector<2x32xf32>
    %601 = vector.extract_strided_slice %598 {offsets = [0, 64], sizes = [2, 32], strides = [1, 1]} : vector<2x128xf32> to vector<2x32xf32>
    %cst_242 = arith.constant 2.000000e+00 : f32
    %602 = vector.broadcast %cst_242 : f32 to vector<2x32xf32>
    %603 = arith.mulf %602, %601 : vector<2x32xf32>
    %cst_243 = arith.constant 1.000000e+00 : f32
    %604 = vector.broadcast %cst_243 : f32 to vector<2x32xf32>
    %605 = arith.subf %603, %604 : vector<2x32xf32>
    %606 = vector.extract_strided_slice %598 {offsets = [0, 96], sizes = [2, 32], strides = [1, 1]} : vector<2x128xf32> to vector<2x32xf32>
    %607 = arith.mulf %600, %530 : vector<2x32xf32>
    %608 = arith.mulf %599, %605 : vector<2x32xf32>
    %609 = arith.addf %607, %608 : vector<2x32xf32>
    %610 = math.tanh %609 : vector<2x32xf32>
    %611 = arith.mulf %606, %610 : vector<2x32xf32>
    %cst_244 = arith.constant dense<0.000000e+00> : vector<2x128xf32>
    %612 = tpu.matmul %611, %567, %cst_244 {dimension_numbers = #tpu.dot_dimension_numbers<[1], [0], [0], [1], [0, 0, 1, 1], [], []>} : vector<2x32xf32>, vector<32x128xf32>, vector<2x128xf32> -> vector<2x128xf32>
    %613 = vector.broadcast %1 : vector<1x128xf32> to vector<2x128xf32>
    %614 = arith.addf %612, %613 : vector<2x128xf32>
    %cst_245 = arith.constant dense<0xFF800000> : vector<2xf32>
    %615 = vector.multi_reduction <maximumf>, %614, %cst_245 [1] : vector<2x128xf32> to vector<2xf32>
    %616 = vector.shape_cast %615 : vector<2xf32> to vector<2x1xf32>
    %617 = vector.broadcast %616 : vector<2x1xf32> to vector<2x128xf32>
    %618 = arith.subf %614, %617 : vector<2x128xf32>
    %619 = math.exp %618 : vector<2x128xf32>
    %cst_246 = arith.constant dense<0.000000e+00> : vector<2xf32>
    %620 = vector.multi_reduction <add>, %619, %cst_246 [1] : vector<2x128xf32> to vector<2xf32>
    %621 = vector.shape_cast %620 : vector<2xf32> to vector<2x1xf32>
    %622 = math.log %621 : vector<2x1xf32>
    %623 = arith.addf %622, %616 : vector<2x1xf32>
    %624 = vector.broadcast %623 : vector<2x1xf32> to vector<2x128xf32>
    %625 = arith.subf %614, %624 : vector<2x128xf32>
    %c0_247 = arith.constant 0 : index
    %c7 = arith.constant 7 : index
    %c0_248 = arith.constant 0 : index
    %626 = vector.load %arg9[%c0_247, %c7, %c0_248] : memref<2x16x128xf32, #tpu.memory_space<vmem>>, vector<2x1x128xf32>
    %627 = vector.shape_cast %626 : vector<2x1x128xf32> to vector<2x128xf32>
    %628 = vector.shape_cast %625 : vector<2x128xf32> to vector<2x1x128xf32>
    tpu.vector_store %arg9[%c0_247, %c7, %c0_248], %628 {strides = array<i32>} : memref<2x16x128xf32, #tpu.memory_space<vmem>>, vector<2x1x128xf32>,
    %c0_249 = arith.constant 0 : index
    %c7_250 = arith.constant 7 : index
    %c0_251 = arith.constant 0 : index
    %629 = vector.load %arg10[%c0_249, %c7_250, %c0_251] : memref<2x16x8xf32, #tpu.memory_space<vmem>>, vector<2x1x8xf32>
    %630 = vector.shape_cast %629 : vector<2x1x8xf32> to vector<2x8xf32>
    %631 = vector.shape_cast %587 : vector<2x8xf32> to vector<2x1x8xf32>
    tpu.vector_store %arg10[%c0_249, %c7_250, %c0_251], %631 {strides = array<i32>} : memref<2x16x8xf32, #tpu.memory_space<vmem>>, vector<2x1x8xf32>,
    %632 = vector.broadcast %616 : vector<2x1xf32> to vector<2x128xf32>
    %633 = arith.cmpf oeq, %614, %632 : vector<2x128xf32>
    %c128_i32_252 = arith.constant 128 : i32
    %634 = vector.broadcast %c128_i32_252 : i32 to vector<2x128xi32>
    %635 = arith.select %633, %2, %634 : vector<2x128xi1>, vector<2x128xi32>
    %cst_253 = arith.constant dense<2147483647> : vector<2xi32>
    %636 = vector.multi_reduction <minsi>, %635, %cst_253 [1] : vector<2x128xi32> to vector<2xi32>
    %637 = vector.shape_cast %636 : vector<2xi32> to vector<2x1xi32>
    %638 = vector.broadcast %637 : vector<2x1xi32> to vector<2x16xi32>
    %639 = arith.cmpi eq, %3, %638 : vector<2x16xi32>
    %640 = arith.extui %639 : vector<2x16xi1> to vector<2x16xi32>
    %641 = arith.sitofp %640 : vector<2x16xi32> to vector<2x16xf32>
    %c0_254 = arith.constant 0 : index
    %c0_255 = arith.constant 0 : index
    %c0_256 = arith.constant 0 : index
    %642 = vector.load %arg0[%c0_254, %c0_255, %c0_256] : memref<2x8x32xf32, #tpu.memory_space<vmem>>, vector<2x8x32xf32>
    %c0_257 = arith.constant 0 : index
    %c0_258 = arith.constant 0 : index
    %c0_259 = arith.constant 0 : index
    %643 = vector.load %arg1[%c0_257, %c0_258, %c0_259] : memref<2x8x32xf32, #tpu.memory_space<vmem>>, vector<2x8x32xf32>
    %c0_260 = arith.constant 0 : index
    %c0_261 = arith.constant 0 : index
    %644 = vector.load %arg4[%c0_260, %c0_261] : memref<32x32xf32, #tpu.memory_space<vmem>>, vector<32x32xf32>
    %c0_262 = arith.constant 0 : index
    %c0_263 = arith.constant 0 : index
    %645 = vector.load %arg6[%c0_262, %c0_263] : memref<80x128xf32, #tpu.memory_space<vmem>>, vector<80x128xf32>
    %c0_264 = arith.constant 0 : index
    %c0_265 = arith.constant 0 : index
    %646 = vector.load %arg7[%c0_264, %c0_265] : memref<32x128xf32, #tpu.memory_space<vmem>>, vector<32x128xf32>
    %647 = arith.addf %611, %609 : vector<2x32xf32>
    %cst_266 = arith.constant dense<0.000000e+00> : vector<2x32xf32>
    %648 = tpu.matmul %647, %644, %cst_266 {dimension_numbers = #tpu.dot_dimension_numbers<[1], [0], [0], [1], [0, 0, 1, 1], [], []>} : vector<2x32xf32>, vector<32x32xf32>, vector<2x32xf32> -> vector<2x32xf32>
    %649 = vector.shape_cast %648 : vector<2x32xf32> to vector<2x1x32xf32>
    %650 = vector.broadcast %649 : vector<2x1x32xf32> to vector<2x8x32xf32>
    %651 = arith.addf %650, %643 : vector<2x8x32xf32>
    %652 = math.tanh %651 : vector<2x8x32xf32>
    %653 = vector.shape_cast %0 : vector<1x32xf32> to vector<1x1x32xf32>
    %654 = vector.broadcast %653 : vector<1x1x32xf32> to vector<2x8x32xf32>
    %655 = arith.mulf %652, %654 : vector<2x8x32xf32>
    %cst_267 = arith.constant dense<0.000000e+00> : vector<2x8xf32>
    %656 = vector.multi_reduction <add>, %655, %cst_267 [2] : vector<2x8x32xf32> to vector<2x8xf32>
    %cst_268 = arith.constant dense<0xFF800000> : vector<2xf32>
    %657 = vector.multi_reduction <maximumf>, %656, %cst_268 [1] : vector<2x8xf32> to vector<2xf32>
    %658 = vector.shape_cast %657 : vector<2xf32> to vector<2x1xf32>
    %659 = vector.broadcast %658 : vector<2x1xf32> to vector<2x8xf32>
    %660 = arith.subf %656, %659 : vector<2x8xf32>
    %661 = math.exp %660 : vector<2x8xf32>
    %cst_269 = arith.constant dense<0.000000e+00> : vector<2xf32>
    %662 = vector.multi_reduction <add>, %661, %cst_269 [1] : vector<2x8xf32> to vector<2xf32>
    %663 = vector.shape_cast %662 : vector<2xf32> to vector<2x1xf32>
    %664 = tpu.reciprocal %663 {approx = true} : vector<2x1xf32> -> vector<2x1xf32>
    %665 = vector.broadcast %664 : vector<2x1xf32> to vector<2x8xf32>
    %666 = arith.mulf %661, %665 : vector<2x8xf32>
    %667 = vector.shape_cast %666 : vector<2x8xf32> to vector<2x8x1xf32>
    %668 = vector.broadcast %667 : vector<2x8x1xf32> to vector<2x8x32xf32>
    %669 = arith.mulf %668, %642 : vector<2x8x32xf32>
    %cst_270 = arith.constant dense<0.000000e+00> : vector<2x32xf32>
    %670 = vector.multi_reduction <add>, %669, %cst_270 [1] : vector<2x8x32xf32> to vector<2x32xf32>
    %671 = tpu.concatenate %641, %670, %611 in 1 : vector<2x16xf32>, vector<2x32xf32>, vector<2x32xf32> -> vector<2x80xf32>
    %cst_271 = arith.constant dense<0.000000e+00> : vector<2x128xf32>
    %672 = tpu.matmul %671, %645, %cst_271 {dimension_numbers = #tpu.dot_dimension_numbers<[1], [0], [0], [1], [0, 0, 1, 1], [], []>} : vector<2x80xf32>, vector<80x128xf32>, vector<2x128xf32> -> vector<2x128xf32>
    %673 = arith.negf %672 : vector<2x128xf32>
    %674 = math.exp %673 : vector<2x128xf32>
    %cst_272 = arith.constant 1.000000e+00 : f32
    %675 = vector.broadcast %cst_272 : f32 to vector<2x128xf32>
    %676 = arith.addf %675, %674 : vector<2x128xf32>
    %677 = arith.divf %675, %676 : vector<2x128xf32>
    %678 = vector.extract_strided_slice %677 {offsets = [0, 0], sizes = [2, 32], strides = [1, 1]} : vector<2x128xf32> to vector<2x32xf32>
    %679 = vector.extract_strided_slice %677 {offsets = [0, 32], sizes = [2, 32], strides = [1, 1]} : vector<2x128xf32> to vector<2x32xf32>
    %680 = vector.extract_strided_slice %677 {offsets = [0, 64], sizes = [2, 32], strides = [1, 1]} : vector<2x128xf32> to vector<2x32xf32>
    %cst_273 = arith.constant 2.000000e+00 : f32
    %681 = vector.broadcast %cst_273 : f32 to vector<2x32xf32>
    %682 = arith.mulf %681, %680 : vector<2x32xf32>
    %cst_274 = arith.constant 1.000000e+00 : f32
    %683 = vector.broadcast %cst_274 : f32 to vector<2x32xf32>
    %684 = arith.subf %682, %683 : vector<2x32xf32>
    %685 = vector.extract_strided_slice %677 {offsets = [0, 96], sizes = [2, 32], strides = [1, 1]} : vector<2x128xf32> to vector<2x32xf32>
    %686 = arith.mulf %679, %609 : vector<2x32xf32>
    %687 = arith.mulf %678, %684 : vector<2x32xf32>
    %688 = arith.addf %686, %687 : vector<2x32xf32>
    %689 = math.tanh %688 : vector<2x32xf32>
    %690 = arith.mulf %685, %689 : vector<2x32xf32>
    %cst_275 = arith.constant dense<0.000000e+00> : vector<2x128xf32>
    %691 = tpu.matmul %690, %646, %cst_275 {dimension_numbers = #tpu.dot_dimension_numbers<[1], [0], [0], [1], [0, 0, 1, 1], [], []>} : vector<2x32xf32>, vector<32x128xf32>, vector<2x128xf32> -> vector<2x128xf32>
    %692 = vector.broadcast %1 : vector<1x128xf32> to vector<2x128xf32>
    %693 = arith.addf %691, %692 : vector<2x128xf32>
    %cst_276 = arith.constant dense<0xFF800000> : vector<2xf32>
    %694 = vector.multi_reduction <maximumf>, %693, %cst_276 [1] : vector<2x128xf32> to vector<2xf32>
    %695 = vector.shape_cast %694 : vector<2xf32> to vector<2x1xf32>
    %696 = vector.broadcast %695 : vector<2x1xf32> to vector<2x128xf32>
    %697 = arith.subf %693, %696 : vector<2x128xf32>
    %698 = math.exp %697 : vector<2x128xf32>
    %cst_277 = arith.constant dense<0.000000e+00> : vector<2xf32>
    %699 = vector.multi_reduction <add>, %698, %cst_277 [1] : vector<2x128xf32> to vector<2xf32>
    %700 = vector.shape_cast %699 : vector<2xf32> to vector<2x1xf32>
    %701 = math.log %700 : vector<2x1xf32>
    %702 = arith.addf %701, %695 : vector<2x1xf32>
    %703 = vector.broadcast %702 : vector<2x1xf32> to vector<2x128xf32>
    %704 = arith.subf %693, %703 : vector<2x128xf32>
    %c0_278 = arith.constant 0 : index
    %c8 = arith.constant 8 : index
    %c0_279 = arith.constant 0 : index
    %705 = vector.load %arg9[%c0_278, %c8, %c0_279] : memref<2x16x128xf32, #tpu.memory_space<vmem>>, vector<2x1x128xf32>
    %706 = vector.shape_cast %705 : vector<2x1x128xf32> to vector<2x128xf32>
    %707 = vector.shape_cast %704 : vector<2x128xf32> to vector<2x1x128xf32>
    tpu.vector_store %arg9[%c0_278, %c8, %c0_279], %707 {strides = array<i32>} : memref<2x16x128xf32, #tpu.memory_space<vmem>>, vector<2x1x128xf32>,
    %c0_280 = arith.constant 0 : index
    %c8_281 = arith.constant 8 : index
    %c0_282 = arith.constant 0 : index
    %708 = vector.load %arg10[%c0_280, %c8_281, %c0_282] : memref<2x16x8xf32, #tpu.memory_space<vmem>>, vector<2x1x8xf32>
    %709 = vector.shape_cast %708 : vector<2x1x8xf32> to vector<2x8xf32>
    %710 = vector.shape_cast %666 : vector<2x8xf32> to vector<2x1x8xf32>
    tpu.vector_store %arg10[%c0_280, %c8_281, %c0_282], %710 {strides = array<i32>} : memref<2x16x8xf32, #tpu.memory_space<vmem>>, vector<2x1x8xf32>,
    %711 = vector.broadcast %695 : vector<2x1xf32> to vector<2x128xf32>
    %712 = arith.cmpf oeq, %693, %711 : vector<2x128xf32>
    %c128_i32_283 = arith.constant 128 : i32
    %713 = vector.broadcast %c128_i32_283 : i32 to vector<2x128xi32>
    %714 = arith.select %712, %2, %713 : vector<2x128xi1>, vector<2x128xi32>
    %cst_284 = arith.constant dense<2147483647> : vector<2xi32>
    %715 = vector.multi_reduction <minsi>, %714, %cst_284 [1] : vector<2x128xi32> to vector<2xi32>
    %716 = vector.shape_cast %715 : vector<2xi32> to vector<2x1xi32>
    %717 = vector.broadcast %716 : vector<2x1xi32> to vector<2x16xi32>
    %718 = arith.cmpi eq, %3, %717 : vector<2x16xi32>
    %719 = arith.extui %718 : vector<2x16xi1> to vector<2x16xi32>
    %720 = arith.sitofp %719 : vector<2x16xi32> to vector<2x16xf32>
    %c0_285 = arith.constant 0 : index
    %c0_286 = arith.constant 0 : index
    %c0_287 = arith.constant 0 : index
    %721 = vector.load %arg0[%c0_285, %c0_286, %c0_287] : memref<2x8x32xf32, #tpu.memory_space<vmem>>, vector<2x8x32xf32>
    %c0_288 = arith.constant 0 : index
    %c0_289 = arith.constant 0 : index
    %c0_290 = arith.constant 0 : index
    %722 = vector.load %arg1[%c0_288, %c0_289, %c0_290] : memref<2x8x32xf32, #tpu.memory_space<vmem>>, vector<2x8x32xf32>
    %c0_291 = arith.constant 0 : index
    %c0_292 = arith.constant 0 : index
    %723 = vector.load %arg4[%c0_291, %c0_292] : memref<32x32xf32, #tpu.memory_space<vmem>>, vector<32x32xf32>
    %c0_293 = arith.constant 0 : index
    %c0_294 = arith.constant 0 : index
    %724 = vector.load %arg6[%c0_293, %c0_294] : memref<80x128xf32, #tpu.memory_space<vmem>>, vector<80x128xf32>
    %c0_295 = arith.constant 0 : index
    %c0_296 = arith.constant 0 : index
    %725 = vector.load %arg7[%c0_295, %c0_296] : memref<32x128xf32, #tpu.memory_space<vmem>>, vector<32x128xf32>
    %726 = arith.addf %690, %688 : vector<2x32xf32>
    %cst_297 = arith.constant dense<0.000000e+00> : vector<2x32xf32>
    %727 = tpu.matmul %726, %723, %cst_297 {dimension_numbers = #tpu.dot_dimension_numbers<[1], [0], [0], [1], [0, 0, 1, 1], [], []>} : vector<2x32xf32>, vector<32x32xf32>, vector<2x32xf32> -> vector<2x32xf32>
    %728 = vector.shape_cast %727 : vector<2x32xf32> to vector<2x1x32xf32>
    %729 = vector.broadcast %728 : vector<2x1x32xf32> to vector<2x8x32xf32>
    %730 = arith.addf %729, %722 : vector<2x8x32xf32>
    %731 = math.tanh %730 : vector<2x8x32xf32>
    %732 = vector.shape_cast %0 : vector<1x32xf32> to vector<1x1x32xf32>
    %733 = vector.broadcast %732 : vector<1x1x32xf32> to vector<2x8x32xf32>
    %734 = arith.mulf %731, %733 : vector<2x8x32xf32>
    %cst_298 = arith.constant dense<0.000000e+00> : vector<2x8xf32>
    %735 = vector.multi_reduction <add>, %734, %cst_298 [2] : vector<2x8x32xf32> to vector<2x8xf32>
    %cst_299 = arith.constant dense<0xFF800000> : vector<2xf32>
    %736 = vector.multi_reduction <maximumf>, %735, %cst_299 [1] : vector<2x8xf32> to vector<2xf32>
    %737 = vector.shape_cast %736 : vector<2xf32> to vector<2x1xf32>
    %738 = vector.broadcast %737 : vector<2x1xf32> to vector<2x8xf32>
    %739 = arith.subf %735, %738 : vector<2x8xf32>
    %740 = math.exp %739 : vector<2x8xf32>
    %cst_300 = arith.constant dense<0.000000e+00> : vector<2xf32>
    %741 = vector.multi_reduction <add>, %740, %cst_300 [1] : vector<2x8xf32> to vector<2xf32>
    %742 = vector.shape_cast %741 : vector<2xf32> to vector<2x1xf32>
    %743 = tpu.reciprocal %742 {approx = true} : vector<2x1xf32> -> vector<2x1xf32>
    %744 = vector.broadcast %743 : vector<2x1xf32> to vector<2x8xf32>
    %745 = arith.mulf %740, %744 : vector<2x8xf32>
    %746 = vector.shape_cast %745 : vector<2x8xf32> to vector<2x8x1xf32>
    %747 = vector.broadcast %746 : vector<2x8x1xf32> to vector<2x8x32xf32>
    %748 = arith.mulf %747, %721 : vector<2x8x32xf32>
    %cst_301 = arith.constant dense<0.000000e+00> : vector<2x32xf32>
    %749 = vector.multi_reduction <add>, %748, %cst_301 [1] : vector<2x8x32xf32> to vector<2x32xf32>
    %750 = tpu.concatenate %720, %749, %690 in 1 : vector<2x16xf32>, vector<2x32xf32>, vector<2x32xf32> -> vector<2x80xf32>
    %cst_302 = arith.constant dense<0.000000e+00> : vector<2x128xf32>
    %751 = tpu.matmul %750, %724, %cst_302 {dimension_numbers = #tpu.dot_dimension_numbers<[1], [0], [0], [1], [0, 0, 1, 1], [], []>} : vector<2x80xf32>, vector<80x128xf32>, vector<2x128xf32> -> vector<2x128xf32>
    %752 = arith.negf %751 : vector<2x128xf32>
    %753 = math.exp %752 : vector<2x128xf32>
    %cst_303 = arith.constant 1.000000e+00 : f32
    %754 = vector.broadcast %cst_303 : f32 to vector<2x128xf32>
    %755 = arith.addf %754, %753 : vector<2x128xf32>
    %756 = arith.divf %754, %755 : vector<2x128xf32>
    %757 = vector.extract_strided_slice %756 {offsets = [0, 0], sizes = [2, 32], strides = [1, 1]} : vector<2x128xf32> to vector<2x32xf32>
    %758 = vector.extract_strided_slice %756 {offsets = [0, 32], sizes = [2, 32], strides = [1, 1]} : vector<2x128xf32> to vector<2x32xf32>
    %759 = vector.extract_strided_slice %756 {offsets = [0, 64], sizes = [2, 32], strides = [1, 1]} : vector<2x128xf32> to vector<2x32xf32>
    %cst_304 = arith.constant 2.000000e+00 : f32
    %760 = vector.broadcast %cst_304 : f32 to vector<2x32xf32>
    %761 = arith.mulf %760, %759 : vector<2x32xf32>
    %cst_305 = arith.constant 1.000000e+00 : f32
    %762 = vector.broadcast %cst_305 : f32 to vector<2x32xf32>
    %763 = arith.subf %761, %762 : vector<2x32xf32>
    %764 = vector.extract_strided_slice %756 {offsets = [0, 96], sizes = [2, 32], strides = [1, 1]} : vector<2x128xf32> to vector<2x32xf32>
    %765 = arith.mulf %758, %688 : vector<2x32xf32>
    %766 = arith.mulf %757, %763 : vector<2x32xf32>
    %767 = arith.addf %765, %766 : vector<2x32xf32>
    %768 = math.tanh %767 : vector<2x32xf32>
    %769 = arith.mulf %764, %768 : vector<2x32xf32>
    %cst_306 = arith.constant dense<0.000000e+00> : vector<2x128xf32>
    %770 = tpu.matmul %769, %725, %cst_306 {dimension_numbers = #tpu.dot_dimension_numbers<[1], [0], [0], [1], [0, 0, 1, 1], [], []>} : vector<2x32xf32>, vector<32x128xf32>, vector<2x128xf32> -> vector<2x128xf32>
    %771 = vector.broadcast %1 : vector<1x128xf32> to vector<2x128xf32>
    %772 = arith.addf %770, %771 : vector<2x128xf32>
    %cst_307 = arith.constant dense<0xFF800000> : vector<2xf32>
    %773 = vector.multi_reduction <maximumf>, %772, %cst_307 [1] : vector<2x128xf32> to vector<2xf32>
    %774 = vector.shape_cast %773 : vector<2xf32> to vector<2x1xf32>
    %775 = vector.broadcast %774 : vector<2x1xf32> to vector<2x128xf32>
    %776 = arith.subf %772, %775 : vector<2x128xf32>
    %777 = math.exp %776 : vector<2x128xf32>
    %cst_308 = arith.constant dense<0.000000e+00> : vector<2xf32>
    %778 = vector.multi_reduction <add>, %777, %cst_308 [1] : vector<2x128xf32> to vector<2xf32>
    %779 = vector.shape_cast %778 : vector<2xf32> to vector<2x1xf32>
    %780 = math.log %779 : vector<2x1xf32>
    %781 = arith.addf %780, %774 : vector<2x1xf32>
    %782 = vector.broadcast %781 : vector<2x1xf32> to vector<2x128xf32>
    %783 = arith.subf %772, %782 : vector<2x128xf32>
    %c0_309 = arith.constant 0 : index
    %c9 = arith.constant 9 : index
    %c0_310 = arith.constant 0 : index
    %784 = vector.load %arg9[%c0_309, %c9, %c0_310] : memref<2x16x128xf32, #tpu.memory_space<vmem>>, vector<2x1x128xf32>
    %785 = vector.shape_cast %784 : vector<2x1x128xf32> to vector<2x128xf32>
    %786 = vector.shape_cast %783 : vector<2x128xf32> to vector<2x1x128xf32>
    tpu.vector_store %arg9[%c0_309, %c9, %c0_310], %786 {strides = array<i32>} : memref<2x16x128xf32, #tpu.memory_space<vmem>>, vector<2x1x128xf32>,
    %c0_311 = arith.constant 0 : index
    %c9_312 = arith.constant 9 : index
    %c0_313 = arith.constant 0 : index
    %787 = vector.load %arg10[%c0_311, %c9_312, %c0_313] : memref<2x16x8xf32, #tpu.memory_space<vmem>>, vector<2x1x8xf32>
    %788 = vector.shape_cast %787 : vector<2x1x8xf32> to vector<2x8xf32>
    %789 = vector.shape_cast %745 : vector<2x8xf32> to vector<2x1x8xf32>
    tpu.vector_store %arg10[%c0_311, %c9_312, %c0_313], %789 {strides = array<i32>} : memref<2x16x8xf32, #tpu.memory_space<vmem>>, vector<2x1x8xf32>,
    %790 = vector.broadcast %774 : vector<2x1xf32> to vector<2x128xf32>
    %791 = arith.cmpf oeq, %772, %790 : vector<2x128xf32>
    %c128_i32_314 = arith.constant 128 : i32
    %792 = vector.broadcast %c128_i32_314 : i32 to vector<2x128xi32>
    %793 = arith.select %791, %2, %792 : vector<2x128xi1>, vector<2x128xi32>
    %cst_315 = arith.constant dense<2147483647> : vector<2xi32>
    %794 = vector.multi_reduction <minsi>, %793, %cst_315 [1] : vector<2x128xi32> to vector<2xi32>
    %795 = vector.shape_cast %794 : vector<2xi32> to vector<2x1xi32>
    %796 = vector.broadcast %795 : vector<2x1xi32> to vector<2x16xi32>
    %797 = arith.cmpi eq, %3, %796 : vector<2x16xi32>
    %798 = arith.extui %797 : vector<2x16xi1> to vector<2x16xi32>
    %799 = arith.sitofp %798 : vector<2x16xi32> to vector<2x16xf32>
    %c0_316 = arith.constant 0 : index
    %c0_317 = arith.constant 0 : index
    %c0_318 = arith.constant 0 : index
    %800 = vector.load %arg0[%c0_316, %c0_317, %c0_318] : memref<2x8x32xf32, #tpu.memory_space<vmem>>, vector<2x8x32xf32>
    %c0_319 = arith.constant 0 : index
    %c0_320 = arith.constant 0 : index
    %c0_321 = arith.constant 0 : index
    %801 = vector.load %arg1[%c0_319, %c0_320, %c0_321] : memref<2x8x32xf32, #tpu.memory_space<vmem>>, vector<2x8x32xf32>
    %c0_322 = arith.constant 0 : index
    %c0_323 = arith.constant 0 : index
    %802 = vector.load %arg4[%c0_322, %c0_323] : memref<32x32xf32, #tpu.memory_space<vmem>>, vector<32x32xf32>
    %c0_324 = arith.constant 0 : index
    %c0_325 = arith.constant 0 : index
    %803 = vector.load %arg6[%c0_324, %c0_325] : memref<80x128xf32, #tpu.memory_space<vmem>>, vector<80x128xf32>
    %c0_326 = arith.constant 0 : index
    %c0_327 = arith.constant 0 : index
    %804 = vector.load %arg7[%c0_326, %c0_327] : memref<32x128xf32, #tpu.memory_space<vmem>>, vector<32x128xf32>
    %805 = arith.addf %769, %767 : vector<2x32xf32>
    %cst_328 = arith.constant dense<0.000000e+00> : vector<2x32xf32>
    %806 = tpu.matmul %805, %802, %cst_328 {dimension_numbers = #tpu.dot_dimension_numbers<[1], [0], [0], [1], [0, 0, 1, 1], [], []>} : vector<2x32xf32>, vector<32x32xf32>, vector<2x32xf32> -> vector<2x32xf32>
    %807 = vector.shape_cast %806 : vector<2x32xf32> to vector<2x1x32xf32>
    %808 = vector.broadcast %807 : vector<2x1x32xf32> to vector<2x8x32xf32>
    %809 = arith.addf %808, %801 : vector<2x8x32xf32>
    %810 = math.tanh %809 : vector<2x8x32xf32>
    %811 = vector.shape_cast %0 : vector<1x32xf32> to vector<1x1x32xf32>
    %812 = vector.broadcast %811 : vector<1x1x32xf32> to vector<2x8x32xf32>
    %813 = arith.mulf %810, %812 : vector<2x8x32xf32>
    %cst_329 = arith.constant dense<0.000000e+00> : vector<2x8xf32>
    %814 = vector.multi_reduction <add>, %813, %cst_329 [2] : vector<2x8x32xf32> to vector<2x8xf32>
    %cst_330 = arith.constant dense<0xFF800000> : vector<2xf32>
    %815 = vector.multi_reduction <maximumf>, %814, %cst_330 [1] : vector<2x8xf32> to vector<2xf32>
    %816 = vector.shape_cast %815 : vector<2xf32> to vector<2x1xf32>
    %817 = vector.broadcast %816 : vector<2x1xf32> to vector<2x8xf32>
    %818 = arith.subf %814, %817 : vector<2x8xf32>
    %819 = math.exp %818 : vector<2x8xf32>
    %cst_331 = arith.constant dense<0.000000e+00> : vector<2xf32>
    %820 = vector.multi_reduction <add>, %819, %cst_331 [1] : vector<2x8xf32> to vector<2xf32>
    %821 = vector.shape_cast %820 : vector<2xf32> to vector<2x1xf32>
    %822 = tpu.reciprocal %821 {approx = true} : vector<2x1xf32> -> vector<2x1xf32>
    %823 = vector.broadcast %822 : vector<2x1xf32> to vector<2x8xf32>
    %824 = arith.mulf %819, %823 : vector<2x8xf32>
    %825 = vector.shape_cast %824 : vector<2x8xf32> to vector<2x8x1xf32>
    %826 = vector.broadcast %825 : vector<2x8x1xf32> to vector<2x8x32xf32>
    %827 = arith.mulf %826, %800 : vector<2x8x32xf32>
    %cst_332 = arith.constant dense<0.000000e+00> : vector<2x32xf32>
    %828 = vector.multi_reduction <add>, %827, %cst_332 [1] : vector<2x8x32xf32> to vector<2x32xf32>
    %829 = tpu.concatenate %799, %828, %769 in 1 : vector<2x16xf32>, vector<2x32xf32>, vector<2x32xf32> -> vector<2x80xf32>
    %cst_333 = arith.constant dense<0.000000e+00> : vector<2x128xf32>
    %830 = tpu.matmul %829, %803, %cst_333 {dimension_numbers = #tpu.dot_dimension_numbers<[1], [0], [0], [1], [0, 0, 1, 1], [], []>} : vector<2x80xf32>, vector<80x128xf32>, vector<2x128xf32> -> vector<2x128xf32>
    %831 = arith.negf %830 : vector<2x128xf32>
    %832 = math.exp %831 : vector<2x128xf32>
    %cst_334 = arith.constant 1.000000e+00 : f32
    %833 = vector.broadcast %cst_334 : f32 to vector<2x128xf32>
    %834 = arith.addf %833, %832 : vector<2x128xf32>
    %835 = arith.divf %833, %834 : vector<2x128xf32>
    %836 = vector.extract_strided_slice %835 {offsets = [0, 0], sizes = [2, 32], strides = [1, 1]} : vector<2x128xf32> to vector<2x32xf32>
    %837 = vector.extract_strided_slice %835 {offsets = [0, 32], sizes = [2, 32], strides = [1, 1]} : vector<2x128xf32> to vector<2x32xf32>
    %838 = vector.extract_strided_slice %835 {offsets = [0, 64], sizes = [2, 32], strides = [1, 1]} : vector<2x128xf32> to vector<2x32xf32>
    %cst_335 = arith.constant 2.000000e+00 : f32
    %839 = vector.broadcast %cst_335 : f32 to vector<2x32xf32>
    %840 = arith.mulf %839, %838 : vector<2x32xf32>
    %cst_336 = arith.constant 1.000000e+00 : f32
    %841 = vector.broadcast %cst_336 : f32 to vector<2x32xf32>
    %842 = arith.subf %840, %841 : vector<2x32xf32>
    %843 = vector.extract_strided_slice %835 {offsets = [0, 96], sizes = [2, 32], strides = [1, 1]} : vector<2x128xf32> to vector<2x32xf32>
    %844 = arith.mulf %837, %767 : vector<2x32xf32>
    %845 = arith.mulf %836, %842 : vector<2x32xf32>
    %846 = arith.addf %844, %845 : vector<2x32xf32>
    %847 = math.tanh %846 : vector<2x32xf32>
    %848 = arith.mulf %843, %847 : vector<2x32xf32>
    %cst_337 = arith.constant dense<0.000000e+00> : vector<2x128xf32>
    %849 = tpu.matmul %848, %804, %cst_337 {dimension_numbers = #tpu.dot_dimension_numbers<[1], [0], [0], [1], [0, 0, 1, 1], [], []>} : vector<2x32xf32>, vector<32x128xf32>, vector<2x128xf32> -> vector<2x128xf32>
    %850 = vector.broadcast %1 : vector<1x128xf32> to vector<2x128xf32>
    %851 = arith.addf %849, %850 : vector<2x128xf32>
    %cst_338 = arith.constant dense<0xFF800000> : vector<2xf32>
    %852 = vector.multi_reduction <maximumf>, %851, %cst_338 [1] : vector<2x128xf32> to vector<2xf32>
    %853 = vector.shape_cast %852 : vector<2xf32> to vector<2x1xf32>
    %854 = vector.broadcast %853 : vector<2x1xf32> to vector<2x128xf32>
    %855 = arith.subf %851, %854 : vector<2x128xf32>
    %856 = math.exp %855 : vector<2x128xf32>
    %cst_339 = arith.constant dense<0.000000e+00> : vector<2xf32>
    %857 = vector.multi_reduction <add>, %856, %cst_339 [1] : vector<2x128xf32> to vector<2xf32>
    %858 = vector.shape_cast %857 : vector<2xf32> to vector<2x1xf32>
    %859 = math.log %858 : vector<2x1xf32>
    %860 = arith.addf %859, %853 : vector<2x1xf32>
    %861 = vector.broadcast %860 : vector<2x1xf32> to vector<2x128xf32>
    %862 = arith.subf %851, %861 : vector<2x128xf32>
    %c0_340 = arith.constant 0 : index
    %c10 = arith.constant 10 : index
    %c0_341 = arith.constant 0 : index
    %863 = vector.load %arg9[%c0_340, %c10, %c0_341] : memref<2x16x128xf32, #tpu.memory_space<vmem>>, vector<2x1x128xf32>
    %864 = vector.shape_cast %863 : vector<2x1x128xf32> to vector<2x128xf32>
    %865 = vector.shape_cast %862 : vector<2x128xf32> to vector<2x1x128xf32>
    tpu.vector_store %arg9[%c0_340, %c10, %c0_341], %865 {strides = array<i32>} : memref<2x16x128xf32, #tpu.memory_space<vmem>>, vector<2x1x128xf32>,
    %c0_342 = arith.constant 0 : index
    %c10_343 = arith.constant 10 : index
    %c0_344 = arith.constant 0 : index
    %866 = vector.load %arg10[%c0_342, %c10_343, %c0_344] : memref<2x16x8xf32, #tpu.memory_space<vmem>>, vector<2x1x8xf32>
    %867 = vector.shape_cast %866 : vector<2x1x8xf32> to vector<2x8xf32>
    %868 = vector.shape_cast %824 : vector<2x8xf32> to vector<2x1x8xf32>
    tpu.vector_store %arg10[%c0_342, %c10_343, %c0_344], %868 {strides = array<i32>} : memref<2x16x8xf32, #tpu.memory_space<vmem>>, vector<2x1x8xf32>,
    %869 = vector.broadcast %853 : vector<2x1xf32> to vector<2x128xf32>
    %870 = arith.cmpf oeq, %851, %869 : vector<2x128xf32>
    %c128_i32_345 = arith.constant 128 : i32
    %871 = vector.broadcast %c128_i32_345 : i32 to vector<2x128xi32>
    %872 = arith.select %870, %2, %871 : vector<2x128xi1>, vector<2x128xi32>
    %cst_346 = arith.constant dense<2147483647> : vector<2xi32>
    %873 = vector.multi_reduction <minsi>, %872, %cst_346 [1] : vector<2x128xi32> to vector<2xi32>
    %874 = vector.shape_cast %873 : vector<2xi32> to vector<2x1xi32>
    %875 = vector.broadcast %874 : vector<2x1xi32> to vector<2x16xi32>
    %876 = arith.cmpi eq, %3, %875 : vector<2x16xi32>
    %877 = arith.extui %876 : vector<2x16xi1> to vector<2x16xi32>
    %878 = arith.sitofp %877 : vector<2x16xi32> to vector<2x16xf32>
    %c0_347 = arith.constant 0 : index
    %c0_348 = arith.constant 0 : index
    %c0_349 = arith.constant 0 : index
    %879 = vector.load %arg0[%c0_347, %c0_348, %c0_349] : memref<2x8x32xf32, #tpu.memory_space<vmem>>, vector<2x8x32xf32>
    %c0_350 = arith.constant 0 : index
    %c0_351 = arith.constant 0 : index
    %c0_352 = arith.constant 0 : index
    %880 = vector.load %arg1[%c0_350, %c0_351, %c0_352] : memref<2x8x32xf32, #tpu.memory_space<vmem>>, vector<2x8x32xf32>
    %c0_353 = arith.constant 0 : index
    %c0_354 = arith.constant 0 : index
    %881 = vector.load %arg4[%c0_353, %c0_354] : memref<32x32xf32, #tpu.memory_space<vmem>>, vector<32x32xf32>
    %c0_355 = arith.constant 0 : index
    %c0_356 = arith.constant 0 : index
    %882 = vector.load %arg6[%c0_355, %c0_356] : memref<80x128xf32, #tpu.memory_space<vmem>>, vector<80x128xf32>
    %c0_357 = arith.constant 0 : index
    %c0_358 = arith.constant 0 : index
    %883 = vector.load %arg7[%c0_357, %c0_358] : memref<32x128xf32, #tpu.memory_space<vmem>>, vector<32x128xf32>
    %884 = arith.addf %848, %846 : vector<2x32xf32>
    %cst_359 = arith.constant dense<0.000000e+00> : vector<2x32xf32>
    %885 = tpu.matmul %884, %881, %cst_359 {dimension_numbers = #tpu.dot_dimension_numbers<[1], [0], [0], [1], [0, 0, 1, 1], [], []>} : vector<2x32xf32>, vector<32x32xf32>, vector<2x32xf32> -> vector<2x32xf32>
    %886 = vector.shape_cast %885 : vector<2x32xf32> to vector<2x1x32xf32>
    %887 = vector.broadcast %886 : vector<2x1x32xf32> to vector<2x8x32xf32>
    %888 = arith.addf %887, %880 : vector<2x8x32xf32>
    %889 = math.tanh %888 : vector<2x8x32xf32>
    %890 = vector.shape_cast %0 : vector<1x32xf32> to vector<1x1x32xf32>
    %891 = vector.broadcast %890 : vector<1x1x32xf32> to vector<2x8x32xf32>
    %892 = arith.mulf %889, %891 : vector<2x8x32xf32>
    %cst_360 = arith.constant dense<0.000000e+00> : vector<2x8xf32>
    %893 = vector.multi_reduction <add>, %892, %cst_360 [2] : vector<2x8x32xf32> to vector<2x8xf32>
    %cst_361 = arith.constant dense<0xFF800000> : vector<2xf32>
    %894 = vector.multi_reduction <maximumf>, %893, %cst_361 [1] : vector<2x8xf32> to vector<2xf32>
    %895 = vector.shape_cast %894 : vector<2xf32> to vector<2x1xf32>
    %896 = vector.broadcast %895 : vector<2x1xf32> to vector<2x8xf32>
    %897 = arith.subf %893, %896 : vector<2x8xf32>
    %898 = math.exp %897 : vector<2x8xf32>
    %cst_362 = arith.constant dense<0.000000e+00> : vector<2xf32>
    %899 = vector.multi_reduction <add>, %898, %cst_362 [1] : vector<2x8xf32> to vector<2xf32>
    %900 = vector.shape_cast %899 : vector<2xf32> to vector<2x1xf32>
    %901 = tpu.reciprocal %900 {approx = true} : vector<2x1xf32> -> vector<2x1xf32>
    %902 = vector.broadcast %901 : vector<2x1xf32> to vector<2x8xf32>
    %903 = arith.mulf %898, %902 : vector<2x8xf32>
    %904 = vector.shape_cast %903 : vector<2x8xf32> to vector<2x8x1xf32>
    %905 = vector.broadcast %904 : vector<2x8x1xf32> to vector<2x8x32xf32>
    %906 = arith.mulf %905, %879 : vector<2x8x32xf32>
    %cst_363 = arith.constant dense<0.000000e+00> : vector<2x32xf32>
    %907 = vector.multi_reduction <add>, %906, %cst_363 [1] : vector<2x8x32xf32> to vector<2x32xf32>
    %908 = tpu.concatenate %878, %907, %848 in 1 : vector<2x16xf32>, vector<2x32xf32>, vector<2x32xf32> -> vector<2x80xf32>
    %cst_364 = arith.constant dense<0.000000e+00> : vector<2x128xf32>
    %909 = tpu.matmul %908, %882, %cst_364 {dimension_numbers = #tpu.dot_dimension_numbers<[1], [0], [0], [1], [0, 0, 1, 1], [], []>} : vector<2x80xf32>, vector<80x128xf32>, vector<2x128xf32> -> vector<2x128xf32>
    %910 = arith.negf %909 : vector<2x128xf32>
    %911 = math.exp %910 : vector<2x128xf32>
    %cst_365 = arith.constant 1.000000e+00 : f32
    %912 = vector.broadcast %cst_365 : f32 to vector<2x128xf32>
    %913 = arith.addf %912, %911 : vector<2x128xf32>
    %914 = arith.divf %912, %913 : vector<2x128xf32>
    %915 = vector.extract_strided_slice %914 {offsets = [0, 0], sizes = [2, 32], strides = [1, 1]} : vector<2x128xf32> to vector<2x32xf32>
    %916 = vector.extract_strided_slice %914 {offsets = [0, 32], sizes = [2, 32], strides = [1, 1]} : vector<2x128xf32> to vector<2x32xf32>
    %917 = vector.extract_strided_slice %914 {offsets = [0, 64], sizes = [2, 32], strides = [1, 1]} : vector<2x128xf32> to vector<2x32xf32>
    %cst_366 = arith.constant 2.000000e+00 : f32
    %918 = vector.broadcast %cst_366 : f32 to vector<2x32xf32>
    %919 = arith.mulf %918, %917 : vector<2x32xf32>
    %cst_367 = arith.constant 1.000000e+00 : f32
    %920 = vector.broadcast %cst_367 : f32 to vector<2x32xf32>
    %921 = arith.subf %919, %920 : vector<2x32xf32>
    %922 = vector.extract_strided_slice %914 {offsets = [0, 96], sizes = [2, 32], strides = [1, 1]} : vector<2x128xf32> to vector<2x32xf32>
    %923 = arith.mulf %916, %846 : vector<2x32xf32>
    %924 = arith.mulf %915, %921 : vector<2x32xf32>
    %925 = arith.addf %923, %924 : vector<2x32xf32>
    %926 = math.tanh %925 : vector<2x32xf32>
    %927 = arith.mulf %922, %926 : vector<2x32xf32>
    %cst_368 = arith.constant dense<0.000000e+00> : vector<2x128xf32>
    %928 = tpu.matmul %927, %883, %cst_368 {dimension_numbers = #tpu.dot_dimension_numbers<[1], [0], [0], [1], [0, 0, 1, 1], [], []>} : vector<2x32xf32>, vector<32x128xf32>, vector<2x128xf32> -> vector<2x128xf32>
    %929 = vector.broadcast %1 : vector<1x128xf32> to vector<2x128xf32>
    %930 = arith.addf %928, %929 : vector<2x128xf32>
    %cst_369 = arith.constant dense<0xFF800000> : vector<2xf32>
    %931 = vector.multi_reduction <maximumf>, %930, %cst_369 [1] : vector<2x128xf32> to vector<2xf32>
    %932 = vector.shape_cast %931 : vector<2xf32> to vector<2x1xf32>
    %933 = vector.broadcast %932 : vector<2x1xf32> to vector<2x128xf32>
    %934 = arith.subf %930, %933 : vector<2x128xf32>
    %935 = math.exp %934 : vector<2x128xf32>
    %cst_370 = arith.constant dense<0.000000e+00> : vector<2xf32>
    %936 = vector.multi_reduction <add>, %935, %cst_370 [1] : vector<2x128xf32> to vector<2xf32>
    %937 = vector.shape_cast %936 : vector<2xf32> to vector<2x1xf32>
    %938 = math.log %937 : vector<2x1xf32>
    %939 = arith.addf %938, %932 : vector<2x1xf32>
    %940 = vector.broadcast %939 : vector<2x1xf32> to vector<2x128xf32>
    %941 = arith.subf %930, %940 : vector<2x128xf32>
    %c0_371 = arith.constant 0 : index
    %c11 = arith.constant 11 : index
    %c0_372 = arith.constant 0 : index
    %942 = vector.load %arg9[%c0_371, %c11, %c0_372] : memref<2x16x128xf32, #tpu.memory_space<vmem>>, vector<2x1x128xf32>
    %943 = vector.shape_cast %942 : vector<2x1x128xf32> to vector<2x128xf32>
    %944 = vector.shape_cast %941 : vector<2x128xf32> to vector<2x1x128xf32>
    tpu.vector_store %arg9[%c0_371, %c11, %c0_372], %944 {strides = array<i32>} : memref<2x16x128xf32, #tpu.memory_space<vmem>>, vector<2x1x128xf32>,
    %c0_373 = arith.constant 0 : index
    %c11_374 = arith.constant 11 : index
    %c0_375 = arith.constant 0 : index
    %945 = vector.load %arg10[%c0_373, %c11_374, %c0_375] : memref<2x16x8xf32, #tpu.memory_space<vmem>>, vector<2x1x8xf32>
    %946 = vector.shape_cast %945 : vector<2x1x8xf32> to vector<2x8xf32>
    %947 = vector.shape_cast %903 : vector<2x8xf32> to vector<2x1x8xf32>
    tpu.vector_store %arg10[%c0_373, %c11_374, %c0_375], %947 {strides = array<i32>} : memref<2x16x8xf32, #tpu.memory_space<vmem>>, vector<2x1x8xf32>,
    %948 = vector.broadcast %932 : vector<2x1xf32> to vector<2x128xf32>
    %949 = arith.cmpf oeq, %930, %948 : vector<2x128xf32>
    %c128_i32_376 = arith.constant 128 : i32
    %950 = vector.broadcast %c128_i32_376 : i32 to vector<2x128xi32>
    %951 = arith.select %949, %2, %950 : vector<2x128xi1>, vector<2x128xi32>
    %cst_377 = arith.constant dense<2147483647> : vector<2xi32>
    %952 = vector.multi_reduction <minsi>, %951, %cst_377 [1] : vector<2x128xi32> to vector<2xi32>
    %953 = vector.shape_cast %952 : vector<2xi32> to vector<2x1xi32>
    %954 = vector.broadcast %953 : vector<2x1xi32> to vector<2x16xi32>
    %955 = arith.cmpi eq, %3, %954 : vector<2x16xi32>
    %956 = arith.extui %955 : vector<2x16xi1> to vector<2x16xi32>
    %957 = arith.sitofp %956 : vector<2x16xi32> to vector<2x16xf32>
    %c0_378 = arith.constant 0 : index
    %c0_379 = arith.constant 0 : index
    %c0_380 = arith.constant 0 : index
    %958 = vector.load %arg0[%c0_378, %c0_379, %c0_380] : memref<2x8x32xf32, #tpu.memory_space<vmem>>, vector<2x8x32xf32>
    %c0_381 = arith.constant 0 : index
    %c0_382 = arith.constant 0 : index
    %c0_383 = arith.constant 0 : index
    %959 = vector.load %arg1[%c0_381, %c0_382, %c0_383] : memref<2x8x32xf32, #tpu.memory_space<vmem>>, vector<2x8x32xf32>
    %c0_384 = arith.constant 0 : index
    %c0_385 = arith.constant 0 : index
    %960 = vector.load %arg4[%c0_384, %c0_385] : memref<32x32xf32, #tpu.memory_space<vmem>>, vector<32x32xf32>
    %c0_386 = arith.constant 0 : index
    %c0_387 = arith.constant 0 : index
    %961 = vector.load %arg6[%c0_386, %c0_387] : memref<80x128xf32, #tpu.memory_space<vmem>>, vector<80x128xf32>
    %c0_388 = arith.constant 0 : index
    %c0_389 = arith.constant 0 : index
    %962 = vector.load %arg7[%c0_388, %c0_389] : memref<32x128xf32, #tpu.memory_space<vmem>>, vector<32x128xf32>
    %963 = arith.addf %927, %925 : vector<2x32xf32>
    %cst_390 = arith.constant dense<0.000000e+00> : vector<2x32xf32>
    %964 = tpu.matmul %963, %960, %cst_390 {dimension_numbers = #tpu.dot_dimension_numbers<[1], [0], [0], [1], [0, 0, 1, 1], [], []>} : vector<2x32xf32>, vector<32x32xf32>, vector<2x32xf32> -> vector<2x32xf32>
    %965 = vector.shape_cast %964 : vector<2x32xf32> to vector<2x1x32xf32>
    %966 = vector.broadcast %965 : vector<2x1x32xf32> to vector<2x8x32xf32>
    %967 = arith.addf %966, %959 : vector<2x8x32xf32>
    %968 = math.tanh %967 : vector<2x8x32xf32>
    %969 = vector.shape_cast %0 : vector<1x32xf32> to vector<1x1x32xf32>
    %970 = vector.broadcast %969 : vector<1x1x32xf32> to vector<2x8x32xf32>
    %971 = arith.mulf %968, %970 : vector<2x8x32xf32>
    %cst_391 = arith.constant dense<0.000000e+00> : vector<2x8xf32>
    %972 = vector.multi_reduction <add>, %971, %cst_391 [2] : vector<2x8x32xf32> to vector<2x8xf32>
    %cst_392 = arith.constant dense<0xFF800000> : vector<2xf32>
    %973 = vector.multi_reduction <maximumf>, %972, %cst_392 [1] : vector<2x8xf32> to vector<2xf32>
    %974 = vector.shape_cast %973 : vector<2xf32> to vector<2x1xf32>
    %975 = vector.broadcast %974 : vector<2x1xf32> to vector<2x8xf32>
    %976 = arith.subf %972, %975 : vector<2x8xf32>
    %977 = math.exp %976 : vector<2x8xf32>
    %cst_393 = arith.constant dense<0.000000e+00> : vector<2xf32>
    %978 = vector.multi_reduction <add>, %977, %cst_393 [1] : vector<2x8xf32> to vector<2xf32>
    %979 = vector.shape_cast %978 : vector<2xf32> to vector<2x1xf32>
    %980 = tpu.reciprocal %979 {approx = true} : vector<2x1xf32> -> vector<2x1xf32>
    %981 = vector.broadcast %980 : vector<2x1xf32> to vector<2x8xf32>
    %982 = arith.mulf %977, %981 : vector<2x8xf32>
    %983 = vector.shape_cast %982 : vector<2x8xf32> to vector<2x8x1xf32>
    %984 = vector.broadcast %983 : vector<2x8x1xf32> to vector<2x8x32xf32>
    %985 = arith.mulf %984, %958 : vector<2x8x32xf32>
    %cst_394 = arith.constant dense<0.000000e+00> : vector<2x32xf32>
    %986 = vector.multi_reduction <add>, %985, %cst_394 [1] : vector<2x8x32xf32> to vector<2x32xf32>
    %987 = tpu.concatenate %957, %986, %927 in 1 : vector<2x16xf32>, vector<2x32xf32>, vector<2x32xf32> -> vector<2x80xf32>
    %cst_395 = arith.constant dense<0.000000e+00> : vector<2x128xf32>
    %988 = tpu.matmul %987, %961, %cst_395 {dimension_numbers = #tpu.dot_dimension_numbers<[1], [0], [0], [1], [0, 0, 1, 1], [], []>} : vector<2x80xf32>, vector<80x128xf32>, vector<2x128xf32> -> vector<2x128xf32>
    %989 = arith.negf %988 : vector<2x128xf32>
    %990 = math.exp %989 : vector<2x128xf32>
    %cst_396 = arith.constant 1.000000e+00 : f32
    %991 = vector.broadcast %cst_396 : f32 to vector<2x128xf32>
    %992 = arith.addf %991, %990 : vector<2x128xf32>
    %993 = arith.divf %991, %992 : vector<2x128xf32>
    %994 = vector.extract_strided_slice %993 {offsets = [0, 0], sizes = [2, 32], strides = [1, 1]} : vector<2x128xf32> to vector<2x32xf32>
    %995 = vector.extract_strided_slice %993 {offsets = [0, 32], sizes = [2, 32], strides = [1, 1]} : vector<2x128xf32> to vector<2x32xf32>
    %996 = vector.extract_strided_slice %993 {offsets = [0, 64], sizes = [2, 32], strides = [1, 1]} : vector<2x128xf32> to vector<2x32xf32>
    %cst_397 = arith.constant 2.000000e+00 : f32
    %997 = vector.broadcast %cst_397 : f32 to vector<2x32xf32>
    %998 = arith.mulf %997, %996 : vector<2x32xf32>
    %cst_398 = arith.constant 1.000000e+00 : f32
    %999 = vector.broadcast %cst_398 : f32 to vector<2x32xf32>
    %1000 = arith.subf %998, %999 : vector<2x32xf32>
    %1001 = vector.extract_strided_slice %993 {offsets = [0, 96], sizes = [2, 32], strides = [1, 1]} : vector<2x128xf32> to vector<2x32xf32>
    %1002 = arith.mulf %995, %925 : vector<2x32xf32>
    %1003 = arith.mulf %994, %1000 : vector<2x32xf32>
    %1004 = arith.addf %1002, %1003 : vector<2x32xf32>
    %1005 = math.tanh %1004 : vector<2x32xf32>
    %1006 = arith.mulf %1001, %1005 : vector<2x32xf32>
    %cst_399 = arith.constant dense<0.000000e+00> : vector<2x128xf32>
    %1007 = tpu.matmul %1006, %962, %cst_399 {dimension_numbers = #tpu.dot_dimension_numbers<[1], [0], [0], [1], [0, 0, 1, 1], [], []>} : vector<2x32xf32>, vector<32x128xf32>, vector<2x128xf32> -> vector<2x128xf32>
    %1008 = vector.broadcast %1 : vector<1x128xf32> to vector<2x128xf32>
    %1009 = arith.addf %1007, %1008 : vector<2x128xf32>
    %cst_400 = arith.constant dense<0xFF800000> : vector<2xf32>
    %1010 = vector.multi_reduction <maximumf>, %1009, %cst_400 [1] : vector<2x128xf32> to vector<2xf32>
    %1011 = vector.shape_cast %1010 : vector<2xf32> to vector<2x1xf32>
    %1012 = vector.broadcast %1011 : vector<2x1xf32> to vector<2x128xf32>
    %1013 = arith.subf %1009, %1012 : vector<2x128xf32>
    %1014 = math.exp %1013 : vector<2x128xf32>
    %cst_401 = arith.constant dense<0.000000e+00> : vector<2xf32>
    %1015 = vector.multi_reduction <add>, %1014, %cst_401 [1] : vector<2x128xf32> to vector<2xf32>
    %1016 = vector.shape_cast %1015 : vector<2xf32> to vector<2x1xf32>
    %1017 = math.log %1016 : vector<2x1xf32>
    %1018 = arith.addf %1017, %1011 : vector<2x1xf32>
    %1019 = vector.broadcast %1018 : vector<2x1xf32> to vector<2x128xf32>
    %1020 = arith.subf %1009, %1019 : vector<2x128xf32>
    %c0_402 = arith.constant 0 : index
    %c12 = arith.constant 12 : index
    %c0_403 = arith.constant 0 : index
    %1021 = vector.load %arg9[%c0_402, %c12, %c0_403] : memref<2x16x128xf32, #tpu.memory_space<vmem>>, vector<2x1x128xf32>
    %1022 = vector.shape_cast %1021 : vector<2x1x128xf32> to vector<2x128xf32>
    %1023 = vector.shape_cast %1020 : vector<2x128xf32> to vector<2x1x128xf32>
    tpu.vector_store %arg9[%c0_402, %c12, %c0_403], %1023 {strides = array<i32>} : memref<2x16x128xf32, #tpu.memory_space<vmem>>, vector<2x1x128xf32>,
    %c0_404 = arith.constant 0 : index
    %c12_405 = arith.constant 12 : index
    %c0_406 = arith.constant 0 : index
    %1024 = vector.load %arg10[%c0_404, %c12_405, %c0_406] : memref<2x16x8xf32, #tpu.memory_space<vmem>>, vector<2x1x8xf32>
    %1025 = vector.shape_cast %1024 : vector<2x1x8xf32> to vector<2x8xf32>
    %1026 = vector.shape_cast %982 : vector<2x8xf32> to vector<2x1x8xf32>
    tpu.vector_store %arg10[%c0_404, %c12_405, %c0_406], %1026 {strides = array<i32>} : memref<2x16x8xf32, #tpu.memory_space<vmem>>, vector<2x1x8xf32>,
    %1027 = vector.broadcast %1011 : vector<2x1xf32> to vector<2x128xf32>
    %1028 = arith.cmpf oeq, %1009, %1027 : vector<2x128xf32>
    %c128_i32_407 = arith.constant 128 : i32
    %1029 = vector.broadcast %c128_i32_407 : i32 to vector<2x128xi32>
    %1030 = arith.select %1028, %2, %1029 : vector<2x128xi1>, vector<2x128xi32>
    %cst_408 = arith.constant dense<2147483647> : vector<2xi32>
    %1031 = vector.multi_reduction <minsi>, %1030, %cst_408 [1] : vector<2x128xi32> to vector<2xi32>
    %1032 = vector.shape_cast %1031 : vector<2xi32> to vector<2x1xi32>
    %1033 = vector.broadcast %1032 : vector<2x1xi32> to vector<2x16xi32>
    %1034 = arith.cmpi eq, %3, %1033 : vector<2x16xi32>
    %1035 = arith.extui %1034 : vector<2x16xi1> to vector<2x16xi32>
    %1036 = arith.sitofp %1035 : vector<2x16xi32> to vector<2x16xf32>
    %c0_409 = arith.constant 0 : index
    %c0_410 = arith.constant 0 : index
    %c0_411 = arith.constant 0 : index
    %1037 = vector.load %arg0[%c0_409, %c0_410, %c0_411] : memref<2x8x32xf32, #tpu.memory_space<vmem>>, vector<2x8x32xf32>
    %c0_412 = arith.constant 0 : index
    %c0_413 = arith.constant 0 : index
    %c0_414 = arith.constant 0 : index
    %1038 = vector.load %arg1[%c0_412, %c0_413, %c0_414] : memref<2x8x32xf32, #tpu.memory_space<vmem>>, vector<2x8x32xf32>
    %c0_415 = arith.constant 0 : index
    %c0_416 = arith.constant 0 : index
    %1039 = vector.load %arg4[%c0_415, %c0_416] : memref<32x32xf32, #tpu.memory_space<vmem>>, vector<32x32xf32>
    %c0_417 = arith.constant 0 : index
    %c0_418 = arith.constant 0 : index
    %1040 = vector.load %arg6[%c0_417, %c0_418] : memref<80x128xf32, #tpu.memory_space<vmem>>, vector<80x128xf32>
    %c0_419 = arith.constant 0 : index
    %c0_420 = arith.constant 0 : index
    %1041 = vector.load %arg7[%c0_419, %c0_420] : memref<32x128xf32, #tpu.memory_space<vmem>>, vector<32x128xf32>
    %1042 = arith.addf %1006, %1004 : vector<2x32xf32>
    %cst_421 = arith.constant dense<0.000000e+00> : vector<2x32xf32>
    %1043 = tpu.matmul %1042, %1039, %cst_421 {dimension_numbers = #tpu.dot_dimension_numbers<[1], [0], [0], [1], [0, 0, 1, 1], [], []>} : vector<2x32xf32>, vector<32x32xf32>, vector<2x32xf32> -> vector<2x32xf32>
    %1044 = vector.shape_cast %1043 : vector<2x32xf32> to vector<2x1x32xf32>
    %1045 = vector.broadcast %1044 : vector<2x1x32xf32> to vector<2x8x32xf32>
    %1046 = arith.addf %1045, %1038 : vector<2x8x32xf32>
    %1047 = math.tanh %1046 : vector<2x8x32xf32>
    %1048 = vector.shape_cast %0 : vector<1x32xf32> to vector<1x1x32xf32>
    %1049 = vector.broadcast %1048 : vector<1x1x32xf32> to vector<2x8x32xf32>
    %1050 = arith.mulf %1047, %1049 : vector<2x8x32xf32>
    %cst_422 = arith.constant dense<0.000000e+00> : vector<2x8xf32>
    %1051 = vector.multi_reduction <add>, %1050, %cst_422 [2] : vector<2x8x32xf32> to vector<2x8xf32>
    %cst_423 = arith.constant dense<0xFF800000> : vector<2xf32>
    %1052 = vector.multi_reduction <maximumf>, %1051, %cst_423 [1] : vector<2x8xf32> to vector<2xf32>
    %1053 = vector.shape_cast %1052 : vector<2xf32> to vector<2x1xf32>
    %1054 = vector.broadcast %1053 : vector<2x1xf32> to vector<2x8xf32>
    %1055 = arith.subf %1051, %1054 : vector<2x8xf32>
    %1056 = math.exp %1055 : vector<2x8xf32>
    %cst_424 = arith.constant dense<0.000000e+00> : vector<2xf32>
    %1057 = vector.multi_reduction <add>, %1056, %cst_424 [1] : vector<2x8xf32> to vector<2xf32>
    %1058 = vector.shape_cast %1057 : vector<2xf32> to vector<2x1xf32>
    %1059 = tpu.reciprocal %1058 {approx = true} : vector<2x1xf32> -> vector<2x1xf32>
    %1060 = vector.broadcast %1059 : vector<2x1xf32> to vector<2x8xf32>
    %1061 = arith.mulf %1056, %1060 : vector<2x8xf32>
    %1062 = vector.shape_cast %1061 : vector<2x8xf32> to vector<2x8x1xf32>
    %1063 = vector.broadcast %1062 : vector<2x8x1xf32> to vector<2x8x32xf32>
    %1064 = arith.mulf %1063, %1037 : vector<2x8x32xf32>
    %cst_425 = arith.constant dense<0.000000e+00> : vector<2x32xf32>
    %1065 = vector.multi_reduction <add>, %1064, %cst_425 [1] : vector<2x8x32xf32> to vector<2x32xf32>
    %1066 = tpu.concatenate %1036, %1065, %1006 in 1 : vector<2x16xf32>, vector<2x32xf32>, vector<2x32xf32> -> vector<2x80xf32>
    %cst_426 = arith.constant dense<0.000000e+00> : vector<2x128xf32>
    %1067 = tpu.matmul %1066, %1040, %cst_426 {dimension_numbers = #tpu.dot_dimension_numbers<[1], [0], [0], [1], [0, 0, 1, 1], [], []>} : vector<2x80xf32>, vector<80x128xf32>, vector<2x128xf32> -> vector<2x128xf32>
    %1068 = arith.negf %1067 : vector<2x128xf32>
    %1069 = math.exp %1068 : vector<2x128xf32>
    %cst_427 = arith.constant 1.000000e+00 : f32
    %1070 = vector.broadcast %cst_427 : f32 to vector<2x128xf32>
    %1071 = arith.addf %1070, %1069 : vector<2x128xf32>
    %1072 = arith.divf %1070, %1071 : vector<2x128xf32>
    %1073 = vector.extract_strided_slice %1072 {offsets = [0, 0], sizes = [2, 32], strides = [1, 1]} : vector<2x128xf32> to vector<2x32xf32>
    %1074 = vector.extract_strided_slice %1072 {offsets = [0, 32], sizes = [2, 32], strides = [1, 1]} : vector<2x128xf32> to vector<2x32xf32>
    %1075 = vector.extract_strided_slice %1072 {offsets = [0, 64], sizes = [2, 32], strides = [1, 1]} : vector<2x128xf32> to vector<2x32xf32>
    %cst_428 = arith.constant 2.000000e+00 : f32
    %1076 = vector.broadcast %cst_428 : f32 to vector<2x32xf32>
    %1077 = arith.mulf %1076, %1075 : vector<2x32xf32>
    %cst_429 = arith.constant 1.000000e+00 : f32
    %1078 = vector.broadcast %cst_429 : f32 to vector<2x32xf32>
    %1079 = arith.subf %1077, %1078 : vector<2x32xf32>
    %1080 = vector.extract_strided_slice %1072 {offsets = [0, 96], sizes = [2, 32], strides = [1, 1]} : vector<2x128xf32> to vector<2x32xf32>
    %1081 = arith.mulf %1074, %1004 : vector<2x32xf32>
    %1082 = arith.mulf %1073, %1079 : vector<2x32xf32>
    %1083 = arith.addf %1081, %1082 : vector<2x32xf32>
    %1084 = math.tanh %1083 : vector<2x32xf32>
    %1085 = arith.mulf %1080, %1084 : vector<2x32xf32>
    %cst_430 = arith.constant dense<0.000000e+00> : vector<2x128xf32>
    %1086 = tpu.matmul %1085, %1041, %cst_430 {dimension_numbers = #tpu.dot_dimension_numbers<[1], [0], [0], [1], [0, 0, 1, 1], [], []>} : vector<2x32xf32>, vector<32x128xf32>, vector<2x128xf32> -> vector<2x128xf32>
    %1087 = vector.broadcast %1 : vector<1x128xf32> to vector<2x128xf32>
    %1088 = arith.addf %1086, %1087 : vector<2x128xf32>
    %cst_431 = arith.constant dense<0xFF800000> : vector<2xf32>
    %1089 = vector.multi_reduction <maximumf>, %1088, %cst_431 [1] : vector<2x128xf32> to vector<2xf32>
    %1090 = vector.shape_cast %1089 : vector<2xf32> to vector<2x1xf32>
    %1091 = vector.broadcast %1090 : vector<2x1xf32> to vector<2x128xf32>
    %1092 = arith.subf %1088, %1091 : vector<2x128xf32>
    %1093 = math.exp %1092 : vector<2x128xf32>
    %cst_432 = arith.constant dense<0.000000e+00> : vector<2xf32>
    %1094 = vector.multi_reduction <add>, %1093, %cst_432 [1] : vector<2x128xf32> to vector<2xf32>
    %1095 = vector.shape_cast %1094 : vector<2xf32> to vector<2x1xf32>
    %1096 = math.log %1095 : vector<2x1xf32>
    %1097 = arith.addf %1096, %1090 : vector<2x1xf32>
    %1098 = vector.broadcast %1097 : vector<2x1xf32> to vector<2x128xf32>
    %1099 = arith.subf %1088, %1098 : vector<2x128xf32>
    %c0_433 = arith.constant 0 : index
    %c13 = arith.constant 13 : index
    %c0_434 = arith.constant 0 : index
    %1100 = vector.load %arg9[%c0_433, %c13, %c0_434] : memref<2x16x128xf32, #tpu.memory_space<vmem>>, vector<2x1x128xf32>
    %1101 = vector.shape_cast %1100 : vector<2x1x128xf32> to vector<2x128xf32>
    %1102 = vector.shape_cast %1099 : vector<2x128xf32> to vector<2x1x128xf32>
    tpu.vector_store %arg9[%c0_433, %c13, %c0_434], %1102 {strides = array<i32>} : memref<2x16x128xf32, #tpu.memory_space<vmem>>, vector<2x1x128xf32>,
    %c0_435 = arith.constant 0 : index
    %c13_436 = arith.constant 13 : index
    %c0_437 = arith.constant 0 : index
    %1103 = vector.load %arg10[%c0_435, %c13_436, %c0_437] : memref<2x16x8xf32, #tpu.memory_space<vmem>>, vector<2x1x8xf32>
    %1104 = vector.shape_cast %1103 : vector<2x1x8xf32> to vector<2x8xf32>
    %1105 = vector.shape_cast %1061 : vector<2x8xf32> to vector<2x1x8xf32>
    tpu.vector_store %arg10[%c0_435, %c13_436, %c0_437], %1105 {strides = array<i32>} : memref<2x16x8xf32, #tpu.memory_space<vmem>>, vector<2x1x8xf32>,
    %1106 = vector.broadcast %1090 : vector<2x1xf32> to vector<2x128xf32>
    %1107 = arith.cmpf oeq, %1088, %1106 : vector<2x128xf32>
    %c128_i32_438 = arith.constant 128 : i32
    %1108 = vector.broadcast %c128_i32_438 : i32 to vector<2x128xi32>
    %1109 = arith.select %1107, %2, %1108 : vector<2x128xi1>, vector<2x128xi32>
    %cst_439 = arith.constant dense<2147483647> : vector<2xi32>
    %1110 = vector.multi_reduction <minsi>, %1109, %cst_439 [1] : vector<2x128xi32> to vector<2xi32>
    %1111 = vector.shape_cast %1110 : vector<2xi32> to vector<2x1xi32>
    %1112 = vector.broadcast %1111 : vector<2x1xi32> to vector<2x16xi32>
    %1113 = arith.cmpi eq, %3, %1112 : vector<2x16xi32>
    %1114 = arith.extui %1113 : vector<2x16xi1> to vector<2x16xi32>
    %1115 = arith.sitofp %1114 : vector<2x16xi32> to vector<2x16xf32>
    %c0_440 = arith.constant 0 : index
    %c0_441 = arith.constant 0 : index
    %c0_442 = arith.constant 0 : index
    %1116 = vector.load %arg0[%c0_440, %c0_441, %c0_442] : memref<2x8x32xf32, #tpu.memory_space<vmem>>, vector<2x8x32xf32>
    %c0_443 = arith.constant 0 : index
    %c0_444 = arith.constant 0 : index
    %c0_445 = arith.constant 0 : index
    %1117 = vector.load %arg1[%c0_443, %c0_444, %c0_445] : memref<2x8x32xf32, #tpu.memory_space<vmem>>, vector<2x8x32xf32>
    %c0_446 = arith.constant 0 : index
    %c0_447 = arith.constant 0 : index
    %1118 = vector.load %arg4[%c0_446, %c0_447] : memref<32x32xf32, #tpu.memory_space<vmem>>, vector<32x32xf32>
    %c0_448 = arith.constant 0 : index
    %c0_449 = arith.constant 0 : index
    %1119 = vector.load %arg6[%c0_448, %c0_449] : memref<80x128xf32, #tpu.memory_space<vmem>>, vector<80x128xf32>
    %c0_450 = arith.constant 0 : index
    %c0_451 = arith.constant 0 : index
    %1120 = vector.load %arg7[%c0_450, %c0_451] : memref<32x128xf32, #tpu.memory_space<vmem>>, vector<32x128xf32>
    %1121 = arith.addf %1085, %1083 : vector<2x32xf32>
    %cst_452 = arith.constant dense<0.000000e+00> : vector<2x32xf32>
    %1122 = tpu.matmul %1121, %1118, %cst_452 {dimension_numbers = #tpu.dot_dimension_numbers<[1], [0], [0], [1], [0, 0, 1, 1], [], []>} : vector<2x32xf32>, vector<32x32xf32>, vector<2x32xf32> -> vector<2x32xf32>
    %1123 = vector.shape_cast %1122 : vector<2x32xf32> to vector<2x1x32xf32>
    %1124 = vector.broadcast %1123 : vector<2x1x32xf32> to vector<2x8x32xf32>
    %1125 = arith.addf %1124, %1117 : vector<2x8x32xf32>
    %1126 = math.tanh %1125 : vector<2x8x32xf32>
    %1127 = vector.shape_cast %0 : vector<1x32xf32> to vector<1x1x32xf32>
    %1128 = vector.broadcast %1127 : vector<1x1x32xf32> to vector<2x8x32xf32>
    %1129 = arith.mulf %1126, %1128 : vector<2x8x32xf32>
    %cst_453 = arith.constant dense<0.000000e+00> : vector<2x8xf32>
    %1130 = vector.multi_reduction <add>, %1129, %cst_453 [2] : vector<2x8x32xf32> to vector<2x8xf32>
    %cst_454 = arith.constant dense<0xFF800000> : vector<2xf32>
    %1131 = vector.multi_reduction <maximumf>, %1130, %cst_454 [1] : vector<2x8xf32> to vector<2xf32>
    %1132 = vector.shape_cast %1131 : vector<2xf32> to vector<2x1xf32>
    %1133 = vector.broadcast %1132 : vector<2x1xf32> to vector<2x8xf32>
    %1134 = arith.subf %1130, %1133 : vector<2x8xf32>
    %1135 = math.exp %1134 : vector<2x8xf32>
    %cst_455 = arith.constant dense<0.000000e+00> : vector<2xf32>
    %1136 = vector.multi_reduction <add>, %1135, %cst_455 [1] : vector<2x8xf32> to vector<2xf32>
    %1137 = vector.shape_cast %1136 : vector<2xf32> to vector<2x1xf32>
    %1138 = tpu.reciprocal %1137 {approx = true} : vector<2x1xf32> -> vector<2x1xf32>
    %1139 = vector.broadcast %1138 : vector<2x1xf32> to vector<2x8xf32>
    %1140 = arith.mulf %1135, %1139 : vector<2x8xf32>
    %1141 = vector.shape_cast %1140 : vector<2x8xf32> to vector<2x8x1xf32>
    %1142 = vector.broadcast %1141 : vector<2x8x1xf32> to vector<2x8x32xf32>
    %1143 = arith.mulf %1142, %1116 : vector<2x8x32xf32>
    %cst_456 = arith.constant dense<0.000000e+00> : vector<2x32xf32>
    %1144 = vector.multi_reduction <add>, %1143, %cst_456 [1] : vector<2x8x32xf32> to vector<2x32xf32>
    %1145 = tpu.concatenate %1115, %1144, %1085 in 1 : vector<2x16xf32>, vector<2x32xf32>, vector<2x32xf32> -> vector<2x80xf32>
    %cst_457 = arith.constant dense<0.000000e+00> : vector<2x128xf32>
    %1146 = tpu.matmul %1145, %1119, %cst_457 {dimension_numbers = #tpu.dot_dimension_numbers<[1], [0], [0], [1], [0, 0, 1, 1], [], []>} : vector<2x80xf32>, vector<80x128xf32>, vector<2x128xf32> -> vector<2x128xf32>
    %1147 = arith.negf %1146 : vector<2x128xf32>
    %1148 = math.exp %1147 : vector<2x128xf32>
    %cst_458 = arith.constant 1.000000e+00 : f32
    %1149 = vector.broadcast %cst_458 : f32 to vector<2x128xf32>
    %1150 = arith.addf %1149, %1148 : vector<2x128xf32>
    %1151 = arith.divf %1149, %1150 : vector<2x128xf32>
    %1152 = vector.extract_strided_slice %1151 {offsets = [0, 0], sizes = [2, 32], strides = [1, 1]} : vector<2x128xf32> to vector<2x32xf32>
    %1153 = vector.extract_strided_slice %1151 {offsets = [0, 32], sizes = [2, 32], strides = [1, 1]} : vector<2x128xf32> to vector<2x32xf32>
    %1154 = vector.extract_strided_slice %1151 {offsets = [0, 64], sizes = [2, 32], strides = [1, 1]} : vector<2x128xf32> to vector<2x32xf32>
    %cst_459 = arith.constant 2.000000e+00 : f32
    %1155 = vector.broadcast %cst_459 : f32 to vector<2x32xf32>
    %1156 = arith.mulf %1155, %1154 : vector<2x32xf32>
    %cst_460 = arith.constant 1.000000e+00 : f32
    %1157 = vector.broadcast %cst_460 : f32 to vector<2x32xf32>
    %1158 = arith.subf %1156, %1157 : vector<2x32xf32>
    %1159 = vector.extract_strided_slice %1151 {offsets = [0, 96], sizes = [2, 32], strides = [1, 1]} : vector<2x128xf32> to vector<2x32xf32>
    %1160 = arith.mulf %1153, %1083 : vector<2x32xf32>
    %1161 = arith.mulf %1152, %1158 : vector<2x32xf32>
    %1162 = arith.addf %1160, %1161 : vector<2x32xf32>
    %1163 = math.tanh %1162 : vector<2x32xf32>
    %1164 = arith.mulf %1159, %1163 : vector<2x32xf32>
    %cst_461 = arith.constant dense<0.000000e+00> : vector<2x128xf32>
    %1165 = tpu.matmul %1164, %1120, %cst_461 {dimension_numbers = #tpu.dot_dimension_numbers<[1], [0], [0], [1], [0, 0, 1, 1], [], []>} : vector<2x32xf32>, vector<32x128xf32>, vector<2x128xf32> -> vector<2x128xf32>
    %1166 = vector.broadcast %1 : vector<1x128xf32> to vector<2x128xf32>
    %1167 = arith.addf %1165, %1166 : vector<2x128xf32>
    %cst_462 = arith.constant dense<0xFF800000> : vector<2xf32>
    %1168 = vector.multi_reduction <maximumf>, %1167, %cst_462 [1] : vector<2x128xf32> to vector<2xf32>
    %1169 = vector.shape_cast %1168 : vector<2xf32> to vector<2x1xf32>
    %1170 = vector.broadcast %1169 : vector<2x1xf32> to vector<2x128xf32>
    %1171 = arith.subf %1167, %1170 : vector<2x128xf32>
    %1172 = math.exp %1171 : vector<2x128xf32>
    %cst_463 = arith.constant dense<0.000000e+00> : vector<2xf32>
    %1173 = vector.multi_reduction <add>, %1172, %cst_463 [1] : vector<2x128xf32> to vector<2xf32>
    %1174 = vector.shape_cast %1173 : vector<2xf32> to vector<2x1xf32>
    %1175 = math.log %1174 : vector<2x1xf32>
    %1176 = arith.addf %1175, %1169 : vector<2x1xf32>
    %1177 = vector.broadcast %1176 : vector<2x1xf32> to vector<2x128xf32>
    %1178 = arith.subf %1167, %1177 : vector<2x128xf32>
    %c0_464 = arith.constant 0 : index
    %c14 = arith.constant 14 : index
    %c0_465 = arith.constant 0 : index
    %1179 = vector.load %arg9[%c0_464, %c14, %c0_465] : memref<2x16x128xf32, #tpu.memory_space<vmem>>, vector<2x1x128xf32>
    %1180 = vector.shape_cast %1179 : vector<2x1x128xf32> to vector<2x128xf32>
    %1181 = vector.shape_cast %1178 : vector<2x128xf32> to vector<2x1x128xf32>
    tpu.vector_store %arg9[%c0_464, %c14, %c0_465], %1181 {strides = array<i32>} : memref<2x16x128xf32, #tpu.memory_space<vmem>>, vector<2x1x128xf32>,
    %c0_466 = arith.constant 0 : index
    %c14_467 = arith.constant 14 : index
    %c0_468 = arith.constant 0 : index
    %1182 = vector.load %arg10[%c0_466, %c14_467, %c0_468] : memref<2x16x8xf32, #tpu.memory_space<vmem>>, vector<2x1x8xf32>
    %1183 = vector.shape_cast %1182 : vector<2x1x8xf32> to vector<2x8xf32>
    %1184 = vector.shape_cast %1140 : vector<2x8xf32> to vector<2x1x8xf32>
    tpu.vector_store %arg10[%c0_466, %c14_467, %c0_468], %1184 {strides = array<i32>} : memref<2x16x8xf32, #tpu.memory_space<vmem>>, vector<2x1x8xf32>,
    %1185 = vector.broadcast %1169 : vector<2x1xf32> to vector<2x128xf32>
    %1186 = arith.cmpf oeq, %1167, %1185 : vector<2x128xf32>
    %c128_i32_469 = arith.constant 128 : i32
    %1187 = vector.broadcast %c128_i32_469 : i32 to vector<2x128xi32>
    %1188 = arith.select %1186, %2, %1187 : vector<2x128xi1>, vector<2x128xi32>
    %cst_470 = arith.constant dense<2147483647> : vector<2xi32>
    %1189 = vector.multi_reduction <minsi>, %1188, %cst_470 [1] : vector<2x128xi32> to vector<2xi32>
    %1190 = vector.shape_cast %1189 : vector<2xi32> to vector<2x1xi32>
    %1191 = vector.broadcast %1190 : vector<2x1xi32> to vector<2x16xi32>
    %1192 = arith.cmpi eq, %3, %1191 : vector<2x16xi32>
    %1193 = arith.extui %1192 : vector<2x16xi1> to vector<2x16xi32>
    %1194 = arith.sitofp %1193 : vector<2x16xi32> to vector<2x16xf32>
    %c0_471 = arith.constant 0 : index
    %c0_472 = arith.constant 0 : index
    %c0_473 = arith.constant 0 : index
    %1195 = vector.load %arg0[%c0_471, %c0_472, %c0_473] : memref<2x8x32xf32, #tpu.memory_space<vmem>>, vector<2x8x32xf32>
    %c0_474 = arith.constant 0 : index
    %c0_475 = arith.constant 0 : index
    %c0_476 = arith.constant 0 : index
    %1196 = vector.load %arg1[%c0_474, %c0_475, %c0_476] : memref<2x8x32xf32, #tpu.memory_space<vmem>>, vector<2x8x32xf32>
    %c0_477 = arith.constant 0 : index
    %c0_478 = arith.constant 0 : index
    %1197 = vector.load %arg4[%c0_477, %c0_478] : memref<32x32xf32, #tpu.memory_space<vmem>>, vector<32x32xf32>
    %c0_479 = arith.constant 0 : index
    %c0_480 = arith.constant 0 : index
    %1198 = vector.load %arg6[%c0_479, %c0_480] : memref<80x128xf32, #tpu.memory_space<vmem>>, vector<80x128xf32>
    %c0_481 = arith.constant 0 : index
    %c0_482 = arith.constant 0 : index
    %1199 = vector.load %arg7[%c0_481, %c0_482] : memref<32x128xf32, #tpu.memory_space<vmem>>, vector<32x128xf32>
    %1200 = arith.addf %1164, %1162 : vector<2x32xf32>
    %cst_483 = arith.constant dense<0.000000e+00> : vector<2x32xf32>
    %1201 = tpu.matmul %1200, %1197, %cst_483 {dimension_numbers = #tpu.dot_dimension_numbers<[1], [0], [0], [1], [0, 0, 1, 1], [], []>} : vector<2x32xf32>, vector<32x32xf32>, vector<2x32xf32> -> vector<2x32xf32>
    %1202 = vector.shape_cast %1201 : vector<2x32xf32> to vector<2x1x32xf32>
    %1203 = vector.broadcast %1202 : vector<2x1x32xf32> to vector<2x8x32xf32>
    %1204 = arith.addf %1203, %1196 : vector<2x8x32xf32>
    %1205 = math.tanh %1204 : vector<2x8x32xf32>
    %1206 = vector.shape_cast %0 : vector<1x32xf32> to vector<1x1x32xf32>
    %1207 = vector.broadcast %1206 : vector<1x1x32xf32> to vector<2x8x32xf32>
    %1208 = arith.mulf %1205, %1207 : vector<2x8x32xf32>
    %cst_484 = arith.constant dense<0.000000e+00> : vector<2x8xf32>
    %1209 = vector.multi_reduction <add>, %1208, %cst_484 [2] : vector<2x8x32xf32> to vector<2x8xf32>
    %cst_485 = arith.constant dense<0xFF800000> : vector<2xf32>
    %1210 = vector.multi_reduction <maximumf>, %1209, %cst_485 [1] : vector<2x8xf32> to vector<2xf32>
    %1211 = vector.shape_cast %1210 : vector<2xf32> to vector<2x1xf32>
    %1212 = vector.broadcast %1211 : vector<2x1xf32> to vector<2x8xf32>
    %1213 = arith.subf %1209, %1212 : vector<2x8xf32>
    %1214 = math.exp %1213 : vector<2x8xf32>
    %cst_486 = arith.constant dense<0.000000e+00> : vector<2xf32>
    %1215 = vector.multi_reduction <add>, %1214, %cst_486 [1] : vector<2x8xf32> to vector<2xf32>
    %1216 = vector.shape_cast %1215 : vector<2xf32> to vector<2x1xf32>
    %1217 = tpu.reciprocal %1216 {approx = true} : vector<2x1xf32> -> vector<2x1xf32>
    %1218 = vector.broadcast %1217 : vector<2x1xf32> to vector<2x8xf32>
    %1219 = arith.mulf %1214, %1218 : vector<2x8xf32>
    %1220 = vector.shape_cast %1219 : vector<2x8xf32> to vector<2x8x1xf32>
    %1221 = vector.broadcast %1220 : vector<2x8x1xf32> to vector<2x8x32xf32>
    %1222 = arith.mulf %1221, %1195 : vector<2x8x32xf32>
    %cst_487 = arith.constant dense<0.000000e+00> : vector<2x32xf32>
    %1223 = vector.multi_reduction <add>, %1222, %cst_487 [1] : vector<2x8x32xf32> to vector<2x32xf32>
    %1224 = tpu.concatenate %1194, %1223, %1164 in 1 : vector<2x16xf32>, vector<2x32xf32>, vector<2x32xf32> -> vector<2x80xf32>
    %cst_488 = arith.constant dense<0.000000e+00> : vector<2x128xf32>
    %1225 = tpu.matmul %1224, %1198, %cst_488 {dimension_numbers = #tpu.dot_dimension_numbers<[1], [0], [0], [1], [0, 0, 1, 1], [], []>} : vector<2x80xf32>, vector<80x128xf32>, vector<2x128xf32> -> vector<2x128xf32>
    %1226 = arith.negf %1225 : vector<2x128xf32>
    %1227 = math.exp %1226 : vector<2x128xf32>
    %cst_489 = arith.constant 1.000000e+00 : f32
    %1228 = vector.broadcast %cst_489 : f32 to vector<2x128xf32>
    %1229 = arith.addf %1228, %1227 : vector<2x128xf32>
    %1230 = arith.divf %1228, %1229 : vector<2x128xf32>
    %1231 = vector.extract_strided_slice %1230 {offsets = [0, 0], sizes = [2, 32], strides = [1, 1]} : vector<2x128xf32> to vector<2x32xf32>
    %1232 = vector.extract_strided_slice %1230 {offsets = [0, 32], sizes = [2, 32], strides = [1, 1]} : vector<2x128xf32> to vector<2x32xf32>
    %1233 = vector.extract_strided_slice %1230 {offsets = [0, 64], sizes = [2, 32], strides = [1, 1]} : vector<2x128xf32> to vector<2x32xf32>
    %cst_490 = arith.constant 2.000000e+00 : f32
    %1234 = vector.broadcast %cst_490 : f32 to vector<2x32xf32>
    %1235 = arith.mulf %1234, %1233 : vector<2x32xf32>
    %cst_491 = arith.constant 1.000000e+00 : f32
    %1236 = vector.broadcast %cst_491 : f32 to vector<2x32xf32>
    %1237 = arith.subf %1235, %1236 : vector<2x32xf32>
    %1238 = vector.extract_strided_slice %1230 {offsets = [0, 96], sizes = [2, 32], strides = [1, 1]} : vector<2x128xf32> to vector<2x32xf32>
    %1239 = arith.mulf %1232, %1162 : vector<2x32xf32>
    %1240 = arith.mulf %1231, %1237 : vector<2x32xf32>
    %1241 = arith.addf %1239, %1240 : vector<2x32xf32>
    %1242 = math.tanh %1241 : vector<2x32xf32>
    %1243 = arith.mulf %1238, %1242 : vector<2x32xf32>
    %cst_492 = arith.constant dense<0.000000e+00> : vector<2x128xf32>
    %1244 = tpu.matmul %1243, %1199, %cst_492 {dimension_numbers = #tpu.dot_dimension_numbers<[1], [0], [0], [1], [0, 0, 1, 1], [], []>} : vector<2x32xf32>, vector<32x128xf32>, vector<2x128xf32> -> vector<2x128xf32>
    %1245 = vector.broadcast %1 : vector<1x128xf32> to vector<2x128xf32>
    %1246 = arith.addf %1244, %1245 : vector<2x128xf32>
    %cst_493 = arith.constant dense<0xFF800000> : vector<2xf32>
    %1247 = vector.multi_reduction <maximumf>, %1246, %cst_493 [1] : vector<2x128xf32> to vector<2xf32>
    %1248 = vector.shape_cast %1247 : vector<2xf32> to vector<2x1xf32>
    %1249 = vector.broadcast %1248 : vector<2x1xf32> to vector<2x128xf32>
    %1250 = arith.subf %1246, %1249 : vector<2x128xf32>
    %1251 = math.exp %1250 : vector<2x128xf32>
    %cst_494 = arith.constant dense<0.000000e+00> : vector<2xf32>
    %1252 = vector.multi_reduction <add>, %1251, %cst_494 [1] : vector<2x128xf32> to vector<2xf32>
    %1253 = vector.shape_cast %1252 : vector<2xf32> to vector<2x1xf32>
    %1254 = math.log %1253 : vector<2x1xf32>
    %1255 = arith.addf %1254, %1248 : vector<2x1xf32>
    %1256 = vector.broadcast %1255 : vector<2x1xf32> to vector<2x128xf32>
    %1257 = arith.subf %1246, %1256 : vector<2x128xf32>
    %c0_495 = arith.constant 0 : index
    %c15 = arith.constant 15 : index
    %c0_496 = arith.constant 0 : index
    %1258 = vector.load %arg9[%c0_495, %c15, %c0_496] : memref<2x16x128xf32, #tpu.memory_space<vmem>>, vector<2x1x128xf32>
    %1259 = vector.shape_cast %1258 : vector<2x1x128xf32> to vector<2x128xf32>
    %1260 = vector.shape_cast %1257 : vector<2x128xf32> to vector<2x1x128xf32>
    tpu.vector_store %arg9[%c0_495, %c15, %c0_496], %1260 {strides = array<i32>} : memref<2x16x128xf32, #tpu.memory_space<vmem>>, vector<2x1x128xf32>,
    %c0_497 = arith.constant 0 : index
    %c15_498 = arith.constant 15 : index
    %c0_499 = arith.constant 0 : index
    %1261 = vector.load %arg10[%c0_497, %c15_498, %c0_499] : memref<2x16x8xf32, #tpu.memory_space<vmem>>, vector<2x1x8xf32>
    %1262 = vector.shape_cast %1261 : vector<2x1x8xf32> to vector<2x8xf32>
    %1263 = vector.shape_cast %1219 : vector<2x8xf32> to vector<2x1x8xf32>
    tpu.vector_store %arg10[%c0_497, %c15_498, %c0_499], %1263 {strides = array<i32>} : memref<2x16x8xf32, #tpu.memory_space<vmem>>, vector<2x1x8xf32>,
    return
  }
}

</mosaic_0001>

<llo_original>
// kernel: decoder_forward.1
$region0: #{decoder_forward.1}
  #allocation0 [shape = 'u32[]', space=smem, size = 0x4, offset = 0x4, fixed_abs, tag = 'smem constant byte address 0x4 - core index']
  #allocation1 [shape = 'u32[144,128]{1,0:T(1,128)}', space=vmem, size = 0x12000, scoped, tag = 'internal scratch']
  %s0 = inlined_call_operand.vmem [shape: f32[2,8,32], index: 0, kind: input, shape index: {}]
  %s1 = inlined_call_operand.vmem [shape: f32[2,8,32], index: 1, kind: input, shape index: {}]
  %s2 = inlined_call_operand.vmem [shape: f32[2,32], index: 2, kind: input, shape index: {}]
  %s3 = inlined_call_operand.vmem [shape: f32[2,32], index: 3, kind: input, shape index: {}]
  %s4 = inlined_call_operand.vmem [shape: f32[32,32], index: 4, kind: input, shape index: {}]
  %s5 = inlined_call_operand.vmem [shape: f32[1,32], index: 5, kind: input, shape index: {}]
  %s6 = inlined_call_operand.vmem [shape: f32[80,128], index: 6, kind: input, shape index: {}]
  %s7 = inlined_call_operand.vmem [shape: f32[32,128], index: 7, kind: input, shape index: {}]
  %s8 = inlined_call_operand.vmem [shape: f32[1,128], index: 8, kind: input, shape index: {}]
  %s9 = inlined_call_operand.vmem [shape: f32[2,16,128], index: 9, kind: output, shape index: {0}]
  %s10 = inlined_call_operand.vmem [shape: f32[2,16,8], index: 10, kind: output, shape index: {1}]
  %11 = xla_tuple %s9, %s10
  %s12 = sld [smem:[#allocation0]]
  $region54: #{decoder_forward.1} parent=0
    _
  %s14 = ssub.s32 1, %s12
  %s15 = scalar_select 0, %s14, %s12
  // Predicated region
  $region2: #{decoder_forward.1} parent=0 // pred_check
    _
  $region3: #{decoder_forward.1} parent=0 // pred_check_branch
    %17 = sbr.rel (0) target = $region5
  $region4: #{decoder_forward.1} parent=0 // pred_region
    _
  $region5: #{decoder_forward.1} parent=0 // pred_fallthru
    _
  // Predicated region
  $region6: #{decoder_forward.1} parent=0 // pred_check
    _
  $region7: #{decoder_forward.1} parent=0 // pred_check_branch
    %19 = sbr.rel (0) target = $region9
  $region8: #{decoder_forward.1} parent=0 // pred_region
    _
  $region9: #{decoder_forward.1} parent=0 // pred_fallthru
    _
  // Predicated region
  $region10: #{decoder_forward.1} parent=0 // pred_check
    _
  $region11: #{decoder_forward.1} parent=0 // pred_check_branch
    %21 = sbr.rel (0) target = $region13
  $region12: #{decoder_forward.1} parent=0 // pred_region
    _
  $region13: #{decoder_forward.1} parent=0 // pred_fallthru
    _
  // Predicated region
  $region14: #{decoder_forward.1} parent=0 // pred_check
    _
  $region15: #{decoder_forward.1} parent=0 // pred_check_branch
    %23 = sbr.rel (0) target = $region17
  $region16: #{decoder_forward.1} parent=0 // pred_region
    _
  $region17: #{decoder_forward.1} parent=0 // pred_fallthru
    _
  // Predicated region
  $region18: #{decoder_forward.1} parent=0 // pred_check
    _
  $region19: #{decoder_forward.1} parent=0 // pred_check_branch
    %25 = sbr.rel (0) target = $region21
  $region20: #{decoder_forward.1} parent=0 // pred_region
    _
  $region21: #{decoder_forward.1} parent=0 // pred_fallthru
    _
  // Predicated region
  $region22: #{decoder_forward.1} parent=0 // pred_check
    _
  $region23: #{decoder_forward.1} parent=0 // pred_check_branch
    %27 = sbr.rel (0) target = $region25
  $region24: #{decoder_forward.1} parent=0 // pred_region
    _
  $region25: #{decoder_forward.1} parent=0 // pred_fallthru
    _
  // Predicated region
  $region26: #{decoder_forward.1} parent=0 // pred_check
    _
  $region27: #{decoder_forward.1} parent=0 // pred_check_branch
    %29 = sbr.rel (0) target = $region29
  $region28: #{decoder_forward.1} parent=0 // pred_region
    _
  $region29: #{decoder_forward.1} parent=0 // pred_fallthru
    _
  // Predicated region
  $region30: #{decoder_forward.1} parent=0 // pred_check
    _
  $region31: #{decoder_forward.1} parent=0 // pred_check_branch
    %31 = sbr.rel (0) target = $region33
  $region32: #{decoder_forward.1} parent=0 // pred_region
    _
  $region33: #{decoder_forward.1} parent=0 // pred_fallthru
    _
  // Predicated region
  $region34: #{decoder_forward.1} parent=0 // pred_check
    _
  $region35: #{decoder_forward.1} parent=0 // pred_check_branch
    %33 = sbr.rel (0) target = $region37
  $region36: #{decoder_forward.1} parent=0 // pred_region
    _
  $region37: #{decoder_forward.1} parent=0 // pred_fallthru
    _
  %v34 = vld [vmem:[%s5] sm:$0x1]
  %v35 = vld [vmem:[%s8] sm:$0x1]
  %v36 = vlaneseq
  %v37 = vand.u32 %v36, 127
  %v38 = vld [vmem:[%s2] sm:$0x3]
  %v39 = vld [vmem:[%s3] sm:$0x3]
  %vm40 = vcmp.eq.s32.totalorder %v37, 0
  %v41 = vsel %vm40, 1, 0
  %v42 = vcvt.s32.f32 %v41
  %v43 = vld [vmem:[%s0] sm:$0xff]
  %v44 = vld [vmem:[%s0 + $0x8] sm:$0xff]
  %v45 = vld [vmem:[%s1] sm:$0xff]
  %v46 = vld [vmem:[%s1 + $0x8] sm:$0xff]
  %v47 = vld [vmem:[%s4] sm:$0xff]
  %v48 = vld [vmem:[%s4 + $0x8] sm:$0xff]
  %v49 = vld [vmem:[%s4 + $0x10] sm:$0xff]
  %v50 = vld [vmem:[%s4 + $0x18] sm:$0xff]
  %v51 = vld [vmem:[%s6] sm:$0xff]
  %v52 = vld [vmem:[%s6 + $0x8] sm:$0xff]
  %v53 = vld [vmem:[%s6 + $0x10] sm:$0xff]
  %v54 = vld [vmem:[%s6 + $0x18] sm:$0xff]
  %v55 = vld [vmem:[%s6 + $0x20] sm:$0xff]
  %v56 = vld [vmem:[%s6 + $0x28] sm:$0xff]
  %v57 = vld [vmem:[%s6 + $0x30] sm:$0xff]
  %v58 = vld [vmem:[%s6 + $0x38] sm:$0xff]
  %v59 = vld [vmem:[%s6 + $0x40] sm:$0xff]
  %v60 = vld [vmem:[%s6 + $0x48] sm:$0xff]
  %v61 = vld [vmem:[%s7] sm:$0xff]
  %v62 = vld [vmem:[%s7 + $0x8] sm:$0xff]
  %v63 = vld [vmem:[%s7 + $0x10] sm:$0xff]
  %v64 = vld [vmem:[%s7 + $0x18] sm:$0xff]
  %v65 = vadd.f32 %v38, %v39
  %vm66 = vcmask 261120
  %v68 = vsel %vm66, %v65, 0
  %70 = vmatprep.subr.mxu0 0.0
  %71 = vmatpush1.msra.mxu0 %v47
  %72 = vmatprep.subr.mxu0 0.0
  %73 = vmatpush1.msra.mxu0 %v48
  %74 = vmatprep.subr.mxu0 0.0
  %75 = vmatpush1.msra.mxu0 %v49
  %76 = vmatprep.subr.mxu0 0.0
  %77 = vmatpush1.msra.mxu0 %v50
  %78 = vmatprep.subr.mxu0 0.0
  %79 = vmatpush1.msra.mxu0 0.0
  %80 = vmatprep.subr.mxu0 0.0
  %81 = vmatpush1.msra.mxu0 0.0
  %82 = vmatprep.subr.mxu0 0.0
  %83 = vmatpush1.msra.mxu0 0.0
  %84 = vmatprep.subr.mxu0 0.0
  %85 = vmatpush1.msra.mxu0 0.0
  %86 = vmatprep.subr.mxu0 0.0
  %87 = vmatpush1.msra.mxu0 0.0
  %88 = vmatprep.subr.mxu0 0.0
  %89 = vmatpush1.msra.mxu0 0.0
  %90 = vmatprep.subr.mxu0 0.0
  %91 = vmatpush1.msra.mxu0 0.0
  %92 = vmatprep.subr.mxu0 0.0
  %93 = vmatpush1.msra.mxu0 0.0
  %94 = vmatprep.subr.mxu0 0.0
  %95 = vmatpush1.msra.mxu0 0.0
  %96 = vmatprep.subr.mxu0 0.0
  %97 = vmatpush1.msra.mxu0 0.0
  %98 = vmatprep.subr.mxu0 0.0
  %99 = vmatpush1.msra.mxu0 0.0
  %100 = vmatprep.subr.mxu0 0.0
  %101 = vmatpush1.msra.mxu0 0.0
  %102 = vmatprep.subr.mxu0 0.0
  %103 = vmatpush1.msra.mxu0 0.0
  %104 = vmatprep.subr.mxu0 0.0
  %105 = vmatpush1.msra.mxu0 0.0
  %106 = vmatprep.subr.mxu0 0.0
  %107 = vmatpush1.msra.mxu0 0.0
  %108 = vmatprep.subr.mxu0 0.0
  %109 = vmatpush1.msra.mxu0 0.0
  %110 = vmatprep.subr.mxu0 0.0
  %111 = vmatpush1.msra.mxu0 0.0
  %112 = vmatprep.subr.mxu0 0.0
  %113 = vmatpush1.msra.mxu0 0.0
  %114 = vmatprep.subr.mxu0 0.0
  %115 = vmatpush1.msra.mxu0 0.0
  %116 = vmatprep.subr.mxu0 0.0
  %117 = vmatpush1.msra.mxu0 0.0
  %118 = vmatprep.subr.mxu0 0.0
  %119 = vmatpush1.msra.mxu0 0.0
  %120 = vmatprep.subr.mxu0 0.0
  %121 = vmatpush1.msra.mxu0 0.0
  %122 = vmatprep.subr.mxu0 0.0
  %123 = vmatpush1.msra.mxu0 0.0
  %124 = vmatprep.subr.mxu0 0.0
  %125 = vmatpush1.msra.mxu0 0.0
  %126 = vmatprep.subr.mxu0 0.0
  %127 = vmatpush1.msra.mxu0 0.0
  %128 = vmatprep.subr.mxu0 0.0
  %129 = vmatpush1.msra.mxu0 0.0
  %130 = vmatprep.subr.mxu0 0.0
  %131 = vmatpush1.msra.mxu0 0.0
  %132 = vmatprep.subr.mxu0 0.0
  %133 = vmatpush1.msra.mxu0 0.0
  %134 = vmatprep.mubr.f32.mxu0 0.0
  %135 = vmatmul.mubr.f32.gmra.mrb[0].mxu0 %v68
  %v136 = vpop.f32.mrb[0].mxu0
  %v137 = vadd.f32 0.0, %v136
  %v138 = vpop.f32.mrb[0].mxu0
  %139 = vdwg.mxu0
  %v142 = vunpack.c.l.s4 1966171168
  %v143 = vunpack.c.0.s8 %v142
  %v144 = vlaneseq
  %v145 = vshrl.u32 %v144, 7
  %v146 = vsub.s32 %v143, %v145
  %v147 = vrot.slane %v137, %v146
  %v148 = vcombine.high %v147, %v147
  %v150 = vunpack.c.l.s4 1966171168
  %v151 = vunpack.c.0.s8 %v150
  %v152 = vlaneseq
  %v153 = vshrl.u32 %v152, 7
  %v154 = vsub.s32 %v151, %v153
  %v155 = vrot.slane %v147, %v154
  %v157 = vunpack.c.l.s4 1966171168
  %v158 = vunpack.c.0.s8 %v157
  %v159 = vlaneseq
  %v160 = vshrl.u32 %v159, 7
  %v161 = vsub.s32 %v158, %v160
  %v162 = vrot.slane %v148, %v161
  %v163 = vlaneseq
  %v164 = vshrl.u32 %v163, 7
  %v165 = vsub.s32 0, %v164
  %v166 = vrot.slane %v155, %v165
  %v167 = vlaneseq
  %v168 = vshrl.u32 %v167, 7
  %v169 = vsub.s32 0, %v168
  %v170 = vrot.slane %v162, %v169
  %v173 = vadd.f32 %v166, %v45
  %v174 = vadd.f32 %v170, %v46
  %v175 = vtanh.pop %v173
  %v176 = vtanh.pop %v174
  %v178 = vlaneseq
  %v179 = vshrl.u32 %v178, 7
  %v180 = vsub.s32 0, %v179
  %v181 = vrot.slane %v34, %v180
  %v183 = vmul.f32 %v175, %v181
  %v184 = vmul.f32 %v176, %v181
  %v185 = vsel %vm66, %v183, 0.0
  %186 = vadd.xlane.f32.xlu0 %v185
  %v187 = vpop.xlane.xlu0 %186
  %v188 = vsel %vm66, %v184, 0.0
  %189 = vadd.xlane.f32.xlu0 %v188
  %v190 = vpop.xlane.xlu0 %189
  %v193 = vlaneseq
  %v194 = vshrl.u32 %v193, 7
  %v195 = vsub.s32 %v37, %v194
  %v196 = vrot.slane %v187, %v195
  %v197 = vlaneseq
  %v198 = vshrl.u32 %v197, 7
  %v199 = vsub.s32 %v37, %v198
  %v200 = vrot.slane %v190, %v199
  %vm201 = vcmask 1041409
  %v202 = vsel %vm201, %v200, %v196
  %vm204 = vcmask 58368
  %v205 = vsel %vm204, %v202, -inf
  %206 = vmax.xlane.f32.xlu0 %v205
  %v207 = vpop.xlane.xlu0 %206
  %v209 = vlaneseq
  %v210 = vshrl.u32 %v209, 7
  %v211 = vsub.s32 0, %v210
  %v212 = vrot.slane %v207, %v211
  %v213 = vlaneseq
  %v214 = vshrl.u32 %v213, 7
  %v215 = vsub.s32 1, %v214
  %v216 = vrot.slane %v207, %v215
  %v219 = vsub.f32 %v187, %v212
  %v220 = vsub.f32 %v190, %v216
  %v221 = vmul.f32 %v219, 1.442695
  %v222 = vpow.pop %v221
  %v223 = vmul.f32 %v220, 1.442695
  %v224 = vpow.pop %v223
  %227 = vset.pattern.permute.xlu0 0
  %228 = vperm.xlu0 %227, %v222
  %v229 = vpop.permute.xlu0 %228
  %230 = vset.pattern.permute.xlu0 0
  %231 = vperm.xlu0 %230, %v224
  %v232 = vpop.permute.xlu0 %231
  %v233 = vlaneseq
  %v234 = vshrl.u32 %v233, 7
  %v235 = vsub.s32 %v37, %v234
  %v236 = vrot.slane %v229, %v235
  %v237 = vlaneseq
  %v238 = vshrl.u32 %v237, 7
  %v239 = vsub.s32 %v37, %v238
  %v240 = vrot.slane %v232, %v239
  %v241 = vsel %vm201, %v240, %v236
  %v243 = vsel %vm204, %v241, 0.0
  %244 = vadd.xlane.f32.xlu0 %v243
  %v245 = vpop.xlane.xlu0 %244
  %v246 = vrcp.pop %v245
  %v248 = vlaneseq
  %v249 = vshrl.u32 %v248, 7
  %v250 = vsub.s32 0, %v249
  %v251 = vrot.slane %v246, %v250
  %v252 = vlaneseq
  %v253 = vshrl.u32 %v252, 7
  %v254 = vsub.s32 1, %v253
  %v255 = vrot.slane %v246, %v254
  %v258 = vmul.f32 %v222, %v251
  %v259 = vmul.f32 %v224, %v255
  %261 = vset.pattern.permute.xlu0 0
  %262 = vperm.xlu0 %261, %v258
  %v263 = vpop.permute.xlu0 %262
  %266 = vset.pattern.permute.xlu0 0
  %267 = vperm.xlu0 %266, %v259
  %v268 = vpop.permute.xlu0 %267
  %v270 = vmul.f32 %v263, %v43
  %v271 = vmul.f32 %v268, %v44
  %v272 = vsel %vm66, %v270, 0.0
  %v273 = vrot.slane %v272, 4
  %v274 = vadd.f32 %v272, %v273
  %v275 = vrot.slane %v274, 2
  %v276 = vadd.f32 %v274, %v275
  %v277 = vrot.slane %v276, 1
  %v278 = vadd.f32 %v276, %v277
  %v279 = vsel %vm66, %v271, 0.0
  %v280 = vrot.slane %v279, 4
  %v281 = vadd.f32 %v279, %v280
  %v282 = vrot.slane %v281, 2
  %v283 = vadd.f32 %v281, %v282
  %v284 = vrot.slane %v283, 1
  %v285 = vadd.f32 %v283, %v284
  %v288 = vsel %vm201, %v285, %v278
  %289 = vrot.lane.b32.xlu0 %v288, 16
  %v290 = vpop.permute.xlu0 %289
  %293 = vrot.lane.b32.xlu0 %v38, 48
  %v294 = vpop.permute.xlu0 %293
  %vm296 = vcmask 130048
  %v297 = vsel %vm296, %v42, %v290
  %vm298 = vcmask 392192
  %v299 = vsel %vm298, %v297, %v294
  %vm300 = vcmask 654336
  %v302 = vsel %vm300, %v299, 0
  %304 = vmatprep.subr.mxu0 0.0
  %305 = vmatpush1.msra.mxu0 %v51
  %306 = vmatprep.subr.mxu0 0.0
  %307 = vmatpush1.msra.mxu0 %v52
  %308 = vmatprep.subr.mxu0 0.0
  %309 = vmatpush1.msra.mxu0 %v53
  %310 = vmatprep.subr.mxu0 0.0
  %311 = vmatpush1.msra.mxu0 %v54
  %312 = vmatprep.subr.mxu0 0.0
  %313 = vmatpush1.msra.mxu0 %v55
  %314 = vmatprep.subr.mxu0 0.0
  %315 = vmatpush1.msra.mxu0 %v56
  %316 = vmatprep.subr.mxu0 0.0
  %317 = vmatpush1.msra.mxu0 %v57
  %318 = vmatprep.subr.mxu0 0.0
  %319 = vmatpush1.msra.mxu0 %v58
  %320 = vmatprep.subr.mxu0 0.0
  %321 = vmatpush1.msra.mxu0 %v59
  %322 = vmatprep.subr.mxu0 0.0
  %323 = vmatpush1.msra.mxu0 %v60
  %324 = vmatprep.subr.mxu0 0.0
  %325 = vmatpush1.msra.mxu0 0.0
  %326 = vmatprep.subr.mxu0 0.0
  %327 = vmatpush1.msra.mxu0 0.0
  %328 = vmatprep.subr.mxu0 0.0
  %329 = vmatpush1.msra.mxu0 0.0
  %330 = vmatprep.subr.mxu0 0.0
  %331 = vmatpush1.msra.mxu0 0.0
  %332 = vmatprep.subr.mxu0 0.0
  %333 = vmatpush1.msra.mxu0 0.0
  %334 = vmatprep.subr.mxu0 0.0
  %335 = vmatpush1.msra.mxu0 0.0
  %336 = vmatprep.subr.mxu0 0.0
  %337 = vmatpush1.msra.mxu0 0.0
  %338 = vmatprep.subr.mxu0 0.0
  %339 = vmatpush1.msra.mxu0 0.0
  %340 = vmatprep.subr.mxu0 0.0
  %341 = vmatpush1.msra.mxu0 0.0
  %342 = vmatprep.subr.mxu0 0.0
  %343 = vmatpush1.msra.mxu0 0.0
  %344 = vmatprep.subr.mxu0 0.0
  %345 = vmatpush1.msra.mxu0 0.0
  %346 = vmatprep.subr.mxu0 0.0
  %347 = vmatpush1.msra.mxu0 0.0
  %348 = vmatprep.subr.mxu0 0.0
  %349 = vmatpush1.msra.mxu0 0.0
  %350 = vmatprep.subr.mxu0 0.0
  %351 = vmatpush1.msra.mxu0 0.0
  %352 = vmatprep.subr.mxu0 0.0
  %353 = vmatpush1.msra.mxu0 0.0
  %354 = vmatprep.subr.mxu0 0.0
  %355 = vmatpush1.msra.mxu0 0.0
  %356 = vmatprep.subr.mxu0 0.0
  %357 = vmatpush1.msra.mxu0 0.0
  %358 = vmatprep.subr.mxu0 0.0
  %359 = vmatpush1.msra.mxu0 0.0
  %360 = vmatprep.subr.mxu0 0.0
  %361 = vmatpush1.msra.mxu0 0.0
  %362 = vmatprep.subr.mxu0 0.0
  %363 = vmatpush1.msra.mxu0 0.0
  %364 = vmatprep.subr.mxu0 0.0
  %365 = vmatpush1.msra.mxu0 0.0
  %366 = vmatprep.subr.mxu0 0.0
  %367 = vmatpush1.msra.mxu0 0.0
  %368 = vmatprep.mubr.f32.mxu0 0.0
  %369 = vmatmul.mubr.f32.gmra.mrb[0].mxu0 %v302
  %v370 = vpop.f32.mrb[0].mxu0
  %v371 = vadd.f32 0.0, %v370
  %v372 = vpop.f32.mrb[0].mxu0
  %373 = vdwg.mxu0
  %v374 = vxor.u32 %v371, 2147483648
  %v375 = vmul.f32 %v374, 1.442695
  %v376 = vpow.pop %v375
  %v377 = vadd.f32 %v376, 1.0
  %v378 = vrcp.pop %v377
  %v379 = vmul.f32 1.0, %v378
  %v380 = vmul.f32 %v379, 2.0
  %v381 = vsub.f32 %v380, 1.0
  %383 = vrot.lane.b32.xlu0 %v39, 32
  %v384 = vpop.permute.xlu0 %383
  %v386 = vmul.f32 %v379, %v384
  %388 = vrot.lane.b32.xlu0 %v381, 64
  %v389 = vpop.permute.xlu0 %388
  %v391 = vmul.f32 %v379, %v389
  %393 = vrot.lane.b32.xlu0 %v391, 32
  %v394 = vpop.permute.xlu0 %393
  %v396 = vadd.f32 %v386, %v394
  %v397 = vtanh.pop %v396
  %399 = vrot.lane.b32.xlu0 %v397, 64
  %v400 = vpop.permute.xlu0 %399
  %v402 = vmul.f32 %v379, %v400
  %v404 = vlaneseq
  %v405 = vshrl.u32 %v404, 7
  %v406 = vsub.s32 0, %v405
  %v407 = vrot.slane %v35, %v406
  %410 = vrot.lane.b32.xlu0 %v402, 32
  %v411 = vpop.permute.xlu0 %410
  %v412 = vsel %vm66, %v411, 0
  %414 = vmatprep.subr.mxu0 0.0
  %415 = vmatpush1.msra.mxu0 %v61
  %416 = vmatprep.subr.mxu0 0.0
  %417 = vmatpush1.msra.mxu0 %v62
  %418 = vmatprep.subr.mxu0 0.0
  %419 = vmatpush1.msra.mxu0 %v63
  %420 = vmatprep.subr.mxu0 0.0
  %421 = vmatpush1.msra.mxu0 %v64
  %422 = vmatprep.subr.mxu0 0.0
  %423 = vmatpush1.msra.mxu0 0.0
  %424 = vmatprep.subr.mxu0 0.0
  %425 = vmatpush1.msra.mxu0 0.0
  %426 = vmatprep.subr.mxu0 0.0
  %427 = vmatpush1.msra.mxu0 0.0
  %428 = vmatprep.subr.mxu0 0.0
  %429 = vmatpush1.msra.mxu0 0.0
  %430 = vmatprep.subr.mxu0 0.0
  %431 = vmatpush1.msra.mxu0 0.0
  %432 = vmatprep.subr.mxu0 0.0
  %433 = vmatpush1.msra.mxu0 0.0
  %434 = vmatprep.subr.mxu0 0.0
  %435 = vmatpush1.msra.mxu0 0.0
  %436 = vmatprep.subr.mxu0 0.0
  %437 = vmatpush1.msra.mxu0 0.0
  %438 = vmatprep.subr.mxu0 0.0
  %439 = vmatpush1.msra.mxu0 0.0
  %440 = vmatprep.subr.mxu0 0.0
  %441 = vmatpush1.msra.mxu0 0.0
  %442 = vmatprep.subr.mxu0 0.0
  %443 = vmatpush1.msra.mxu0 0.0
  %444 = vmatprep.subr.mxu0 0.0
  %445 = vmatpush1.msra.mxu0 0.0
  %446 = vmatprep.subr.mxu0 0.0
  %447 = vmatpush1.msra.mxu0 0.0
  %448 = vmatprep.subr.mxu0 0.0
  %449 = vmatpush1.msra.mxu0 0.0
  %450 = vmatprep.subr.mxu0 0.0
  %451 = vmatpush1.msra.mxu0 0.0
  %452 = vmatprep.subr.mxu0 0.0
  %453 = vmatpush1.msra.mxu0 0.0
  %454 = vmatprep.subr.mxu0 0.0
  %455 = vmatpush1.msra.mxu0 0.0
  %456 = vmatprep.subr.mxu0 0.0
  %457 = vmatpush1.msra.mxu0 0.0
  %458 = vmatprep.subr.mxu0 0.0
  %459 = vmatpush1.msra.mxu0 0.0
  %460 = vmatprep.subr.mxu0 0.0
  %461 = vmatpush1.msra.mxu0 0.0
  %462 = vmatprep.subr.mxu0 0.0
  %463 = vmatpush1.msra.mxu0 0.0
  %464 = vmatprep.subr.mxu0 0.0
  %465 = vmatpush1.msra.mxu0 0.0
  %466 = vmatprep.subr.mxu0 0.0
  %467 = vmatpush1.msra.mxu0 0.0
  %468 = vmatprep.subr.mxu0 0.0
  %469 = vmatpush1.msra.mxu0 0.0
  %470 = vmatprep.subr.mxu0 0.0
  %471 = vmatpush1.msra.mxu0 0.0
  %472 = vmatprep.subr.mxu0 0.0
  %473 = vmatpush1.msra.mxu0 0.0
  %474 = vmatprep.subr.mxu0 0.0
  %475 = vmatpush1.msra.mxu0 0.0
  %476 = vmatprep.subr.mxu0 0.0
  %477 = vmatpush1.msra.mxu0 0.0
  %478 = vmatprep.mubr.f32.mxu0 0.0
  %479 = vmatmul.mubr.f32.gmra.mrb[0].mxu0 %v412
  %v480 = vpop.f32.mrb[0].mxu0
  %v481 = vadd.f32 %v407, %v480
  %v482 = vpop.f32.mrb[0].mxu0
  %483 = vdwg.mxu0
  %vm484 = vcmask 1041408
  %v485 = vsel %vm484, %v481, -inf
  %486 = vmax.xlane.f32.xlu0 %v485
  %v487 = vpop.xlane.xlu0 %486
  %v488 = vsub.f32 %v481, %v487
  %v489 = vmul.f32 %v488, 1.442695
  %v490 = vpow.pop %v489
  %v491 = vsel %vm484, %v490, 0.0
  %492 = vadd.xlane.f32.xlu0 %v491
  %v493 = vpop.xlane.xlu0 %492
  %v494 = vlog2.pop %v493
  %v495 = vmul.f32 %v494, 0.6931472
  %v496 = vadd.f32 %v495, %v487
  %v497 = vsub.f32 %v481, %v496
  %v500 = vunpack.c.l.s4 1966171168
  %v501 = vunpack.c.0.s8 %v500
  %v502 = vlaneseq
  %v503 = vshrl.u32 %v502, 7
  %v504 = vsub.s32 %v501, %v503
  %v505 = vrot.slane %v497, %v504
  %v506 = vcombine.high %v505, %v505
  %v508 = vunpack.c.l.s4 1966171168
  %v509 = vunpack.c.0.s8 %v508
  %v510 = vlaneseq
  %v511 = vshrl.u32 %v510, 7
  %v512 = vsub.s32 %v509, %v511
  %v513 = vrot.slane %v505, %v512
  %v515 = vunpack.c.l.s4 1966171168
  %v516 = vunpack.c.0.s8 %v515
  %v517 = vlaneseq
  %v518 = vshrl.u32 %v517, 7
  %v519 = vsub.s32 %v516, %v518
  %v520 = vrot.slane %v506, %v519
  %523 = vst [vmem:[%s9] sm:$0x1] %v513
  %524 = vst [vmem:[%s9 + $0x10] sm:$0x1] %v520
  %v525 = vlaneseq
  %v526 = vshrl.u32 %v525, 7
  %v527 = vsub.s32 %v37, %v526
  %v528 = vrot.slane %v263, %v527
  %v529 = vlaneseq
  %v530 = vshrl.u32 %v529, 7
  %v531 = vsub.s32 %v37, %v530
  %v532 = vrot.slane %v268, %v531
  %vm535 = vcmask 57344
  %536 = vst.msk [vmem:[%s10] sm:$0x1] %vm535, %v528
  %537 = vst.msk [vmem:[%s10 + $0x10] sm:$0x1] %vm535, %v532
  %vm538 = vcmp.eq.f32.partialorder %v481, %v487
  %v539 = vsel %vm538, %v37, 128
  %v540 = vsel %vm484, %v539, 2147483647
  %v541 = vand.u32 %v540, 65535
  %v542 = vshra.s32 %v540, 16
  %v543 = vcvt.s32.f32 %v541
  %v544 = vcvt.s32.f32 %v542
  %545 = vmin.xlane.f32.xlu0 %v544
  %v546 = vpop.xlane.xlu0 %545
  %vm547 = vcmp.eq.f32.partialorder %v544, %v546
  %v548 = vsel %vm547, %v543, inf
  %549 = vmin.xlane.f32.xlu0 %v548
  %v550 = vpop.xlane.xlu0 %549
  %v551 = vcvt.f32.s32 %v550
  %v552 = vcvt.f32.s32 %v546
  %v553 = vshll.u32 %v552, 16
  %v554 = vadd.s32 %v553, %v551
  %vm555 = vcmp.eq.s32.totalorder %v37, %v554
  %v556 = vsel %vm555, 1, 0
  %v557 = vcvt.s32.f32 %v556
  %v558 = vld [vmem:[%s0] sm:$0xff]
  %v559 = vld [vmem:[%s0 + $0x8] sm:$0xff]
  %v560 = vld [vmem:[%s1] sm:$0xff]
  %v561 = vld [vmem:[%s1 + $0x8] sm:$0xff]
  %v562 = vld [vmem:[%s4] sm:$0xff]
  %v563 = vld [vmem:[%s4 + $0x8] sm:$0xff]
  %v564 = vld [vmem:[%s4 + $0x10] sm:$0xff]
  %v565 = vld [vmem:[%s4 + $0x18] sm:$0xff]
  %v566 = vld [vmem:[%s6] sm:$0xff]
  %v567 = vld [vmem:[%s6 + $0x8] sm:$0xff]
  %v568 = vld [vmem:[%s6 + $0x10] sm:$0xff]
  %v569 = vld [vmem:[%s6 + $0x18] sm:$0xff]
  %v570 = vld [vmem:[%s6 + $0x20] sm:$0xff]
  %v571 = vld [vmem:[%s6 + $0x28] sm:$0xff]
  %v572 = vld [vmem:[%s6 + $0x30] sm:$0xff]
  %v573 = vld [vmem:[%s6 + $0x38] sm:$0xff]
  %v574 = vld [vmem:[%s6 + $0x40] sm:$0xff]
  %v575 = vld [vmem:[%s6 + $0x48] sm:$0xff]
  %v576 = vld [vmem:[%s7] sm:$0xff]
  %v577 = vld [vmem:[%s7 + $0x8] sm:$0xff]
  %v578 = vld [vmem:[%s7 + $0x10] sm:$0xff]
  %v579 = vld [vmem:[%s7 + $0x18] sm:$0xff]
  %581 = vrot.lane.b32.xlu0 %v396, 64
  %v582 = vpop.permute.xlu0 %581
  %v584 = vadd.f32 %v402, %v582
  %586 = vrot.lane.b32.xlu0 %v584, 32
  %v587 = vpop.permute.xlu0 %586
  %v588 = vsel %vm66, %v587, 0
  %590 = vmatprep.subr.mxu0 0.0
  %591 = vmatpush1.msra.mxu0 %v562
  %592 = vmatprep.subr.mxu0 0.0
  %593 = vmatpush1.msra.mxu0 %v563
  %594 = vmatprep.subr.mxu0 0.0
  %595 = vmatpush1.msra.mxu0 %v564
  %596 = vmatprep.subr.mxu0 0.0
  %597 = vmatpush1.msra.mxu0 %v565
  %598 = vmatprep.subr.mxu0 0.0
  %599 = vmatpush1.msra.mxu0 0.0
  %600 = vmatprep.subr.mxu0 0.0
  %601 = vmatpush1.msra.mxu0 0.0
  %602 = vmatprep.subr.mxu0 0.0
  %603 = vmatpush1.msra.mxu0 0.0
  %604 = vmatprep.subr.mxu0 0.0
  %605 = vmatpush1.msra.mxu0 0.0
  %606 = vmatprep.subr.mxu0 0.0
  %607 = vmatpush1.msra.mxu0 0.0
  %608 = vmatprep.subr.mxu0 0.0
  %609 = vmatpush1.msra.mxu0 0.0
  %610 = vmatprep.subr.mxu0 0.0
  %611 = vmatpush1.msra.mxu0 0.0
  %612 = vmatprep.subr.mxu0 0.0
  %613 = vmatpush1.msra.mxu0 0.0
  %614 = vmatprep.subr.mxu0 0.0
  %615 = vmatpush1.msra.mxu0 0.0
  %616 = vmatprep.subr.mxu0 0.0
  %617 = vmatpush1.msra.mxu0 0.0
  %618 = vmatprep.subr.mxu0 0.0
  %619 = vmatpush1.msra.mxu0 0.0
  %620 = vmatprep.subr.mxu0 0.0
  %621 = vmatpush1.msra.mxu0 0.0
  %622 = vmatprep.subr.mxu0 0.0
  %623 = vmatpush1.msra.mxu0 0.0
  %624 = vmatprep.subr.mxu0 0.0
  %625 = vmatpush1.msra.mxu0 0.0
  %626 = vmatprep.subr.mxu0 0.0
  %627 = vmatpush1.msra.mxu0 0.0
  %628 = vmatprep.subr.mxu0 0.0
  %629 = vmatpush1.msra.mxu0 0.0
  %630 = vmatprep.subr.mxu0 0.0
  %631 = vmatpush1.msra.mxu0 0.0
  %632 = vmatprep.subr.mxu0 0.0
  %633 = vmatpush1.msra.mxu0 0.0
  %634 = vmatprep.subr.mxu0 0.0
  %635 = vmatpush1.msra.mxu0 0.0
  %636 = vmatprep.subr.mxu0 0.0
  %637 = vmatpush1.msra.mxu0 0.0
  %638 = vmatprep.subr.mxu0 0.0
  %639 = vmatpush1.msra.mxu0 0.0
  %640 = vmatprep.subr.mxu0 0.0
  %641 = vmatpush1.msra.mxu0 0.0
  %642 = vmatprep.subr.mxu0 0.0
  %643 = vmatpush1.msra.mxu0 0.0
  %644 = vmatprep.subr.mxu0 0.0
  %645 = vmatpush1.msra.mxu0 0.0
  %646 = vmatprep.subr.mxu0 0.0
  %647 = vmatpush1.msra.mxu0 0.0
  %648 = vmatprep.subr.mxu0 0.0
  %649 = vmatpush1.msra.mxu0 0.0
  %650 = vmatprep.subr.mxu0 0.0
  %651 = vmatpush1.msra.mxu0 0.0
  %652 = vmatprep.subr.mxu0 0.0
  %653 = vmatpush1.msra.mxu0 0.0
  %654 = vmatprep.mubr.f32.mxu0 0.0
  %655 = vmatmul.mubr.f32.gmra.mrb[0].mxu0 %v588
  %v656 = vpop.f32.mrb[0].mxu0
  %v657 = vadd.f32 0.0, %v656
  %v658 = vpop.f32.mrb[0].mxu0
  %659 = vdwg.mxu0
  %v662 = vunpack.c.l.s4 1966171168
  %v663 = vunpack.c.0.s8 %v662
  %v664 = vlaneseq
  %v665 = vshrl.u32 %v664, 7
  %v666 = vsub.s32 %v663, %v665
  %v667 = vrot.slane %v657, %v666
  %v668 = vcombine.high %v667, %v667
  %v670 = vunpack.c.l.s4 1966171168
  %v671 = vunpack.c.0.s8 %v670
  %v672 = vlaneseq
  %v673 = vshrl.u32 %v672, 7
  %v674 = vsub.s32 %v671, %v673
  %v675 = vrot.slane %v667, %v674
  %v677 = vunpack.c.l.s4 1966171168
  %v678 = vunpack.c.0.s8 %v677
  %v679 = vlaneseq
  %v680 = vshrl.u32 %v679, 7
  %v681 = vsub.s32 %v678, %v680
  %v682 = vrot.slane %v668, %v681
  %v683 = vlaneseq
  %v684 = vshrl.u32 %v683, 7
  %v685 = vsub.s32 0, %v684
  %v686 = vrot.slane %v675, %v685
  %v687 = vlaneseq
  %v688 = vshrl.u32 %v687, 7
  %v689 = vsub.s32 0, %v688
  %v690 = vrot.slane %v682, %v689
  %v693 = vadd.f32 %v686, %v560
  %v694 = vadd.f32 %v690, %v561
  %v695 = vtanh.pop %v693
  %v696 = vtanh.pop %v694
  %v697 = vmul.f32 %v695, %v181
  %v698 = vmul.f32 %v696, %v181
  %v699 = vsel %vm66, %v697, 0.0
  %700 = vadd.xlane.f32.xlu0 %v699
  %v701 = vpop.xlane.xlu0 %700
  %v702 = vsel %vm66, %v698, 0.0
  %703 = vadd.xlane.f32.xlu0 %v702
  %v704 = vpop.xlane.xlu0 %703
  %v707 = vlaneseq
  %v708 = vshrl.u32 %v707, 7
  %v709 = vsub.s32 %v37, %v708
  %v710 = vrot.slane %v701, %v709
  %v711 = vlaneseq
  %v712 = vshrl.u32 %v711, 7
  %v713 = vsub.s32 %v37, %v712
  %v714 = vrot.slane %v704, %v713
  %v715 = vsel %vm201, %v714, %v710
  %v717 = vsel %vm204, %v715, -inf
  %718 = vmax.xlane.f32.xlu0 %v717
  %v719 = vpop.xlane.xlu0 %718
  %v721 = vlaneseq
  %v722 = vshrl.u32 %v721, 7
  %v723 = vsub.s32 0, %v722
  %v724 = vrot.slane %v719, %v723
  %v725 = vlaneseq
  %v726 = vshrl.u32 %v725, 7
  %v727 = vsub.s32 1, %v726
  %v728 = vrot.slane %v719, %v727
  %v731 = vsub.f32 %v701, %v724
  %v732 = vsub.f32 %v704, %v728
  %v733 = vmul.f32 %v731, 1.442695
  %v734 = vpow.pop %v733
  %v735 = vmul.f32 %v732, 1.442695
  %v736 = vpow.pop %v735
  %739 = vset.pattern.permute.xlu0 0
  %740 = vperm.xlu0 %739, %v734
  %v741 = vpop.permute.xlu0 %740
  %742 = vset.pattern.permute.xlu0 0
  %743 = vperm.xlu0 %742, %v736
  %v744 = vpop.permute.xlu0 %743
  %v745 = vlaneseq
  %v746 = vshrl.u32 %v745, 7
  %v747 = vsub.s32 %v37, %v746
  %v748 = vrot.slane %v741, %v747
  %v749 = vlaneseq
  %v750 = vshrl.u32 %v749, 7
  %v751 = vsub.s32 %v37, %v750
  %v752 = vrot.slane %v744, %v751
  %v753 = vsel %vm201, %v752, %v748
  %v755 = vsel %vm204, %v753, 0.0
  %756 = vadd.xlane.f32.xlu0 %v755
  %v757 = vpop.xlane.xlu0 %756
  %v758 = vrcp.pop %v757
  %v760 = vlaneseq
  %v761 = vshrl.u32 %v760, 7
  %v762 = vsub.s32 0, %v761
  %v763 = vrot.slane %v758, %v762
  %v764 = vlaneseq
  %v765 = vshrl.u32 %v764, 7
  %v766 = vsub.s32 1, %v765
  %v767 = vrot.slane %v758, %v766
  %v770 = vmul.f32 %v734, %v763
  %v771 = vmul.f32 %v736, %v767
  %773 = vset.pattern.permute.xlu0 0
  %774 = vperm.xlu0 %773, %v770
  %v775 = vpop.permute.xlu0 %774
  %778 = vset.pattern.permute.xlu0 0
  %779 = vperm.xlu0 %778, %v771
  %v780 = vpop.permute.xlu0 %779
  %v782 = vmul.f32 %v775, %v558
  %v783 = vmul.f32 %v780, %v559
  %v784 = vsel %vm66, %v782, 0.0
  %v785 = vrot.slane %v784, 4
  %v786 = vadd.f32 %v784, %v785
  %v787 = vrot.slane %v786, 2
  %v788 = vadd.f32 %v786, %v787
  %v789 = vrot.slane %v788, 1
  %v790 = vadd.f32 %v788, %v789
  %v791 = vsel %vm66, %v783, 0.0
  %v792 = vrot.slane %v791, 4
  %v793 = vadd.f32 %v791, %v792
  %v794 = vrot.slane %v793, 2
  %v795 = vadd.f32 %v793, %v794
  %v796 = vrot.slane %v795, 1
  %v797 = vadd.f32 %v795, %v796
  %v800 = vsel %vm201, %v797, %v790
  %801 = vrot.lane.b32.xlu0 %v800, 16
  %v802 = vpop.permute.xlu0 %801
  %804 = vrot.lane.b32.xlu0 %v402, 80
  %v805 = vpop.permute.xlu0 %804
  %v807 = vsel %vm296, %v557, %v802
  %v808 = vsel %vm298, %v807, %v805
  %v810 = vsel %vm300, %v808, 0
  %812 = vmatprep.subr.mxu0 0.0
  %813 = vmatpush1.msra.mxu0 %v566
  %814 = vmatprep.subr.mxu0 0.0
  %815 = vmatpush1.msra.mxu0 %v567
  %816 = vmatprep.subr.mxu0 0.0
  %817 = vmatpush1.msra.mxu0 %v568
  %818 = vmatprep.subr.mxu0 0.0
  %819 = vmatpush1.msra.mxu0 %v569
  %820 = vmatprep.subr.mxu0 0.0
  %821 = vmatpush1.msra.mxu0 %v570
  %822 = vmatprep.subr.mxu0 0.0
  %823 = vmatpush1.msra.mxu0 %v571
  %824 = vmatprep.subr.mxu0 0.0
  %825 = vmatpush1.msra.mxu0 %v572
  %826 = vmatprep.subr.mxu0 0.0
  %827 = vmatpush1.msra.mxu0 %v573
  %828 = vmatprep.subr.mxu0 0.0
  %829 = vmatpush1.msra.mxu0 %v574
  %830 = vmatprep.subr.mxu0 0.0
  %831 = vmatpush1.msra.mxu0 %v575
  %832 = vmatprep.subr.mxu0 0.0
  %833 = vmatpush1.msra.mxu0 0.0
  %834 = vmatprep.subr.mxu0 0.0
  %835 = vmatpush1.msra.mxu0 0.0
  %836 = vmatprep.subr.mxu0 0.0
  %837 = vmatpush1.msra.mxu0 0.0
  %838 = vmatprep.subr.mxu0 0.0
  %839 = vmatpush1.msra.mxu0 0.0
  %840 = vmatprep.subr.mxu0 0.0
  %841 = vmatpush1.msra.mxu0 0.0
  %842 = vmatprep.subr.mxu0 0.0
  %843 = vmatpush1.msra.mxu0 0.0
  %844 = vmatprep.subr.mxu0 0.0
  %845 = vmatpush1.msra.mxu0 0.0
  %846 = vmatprep.subr.mxu0 0.0
  %847 = vmatpush1.msra.mxu0 0.0
  %848 = vmatprep.subr.mxu0 0.0
  %849 = vmatpush1.msra.mxu0 0.0
  %850 = vmatprep.subr.mxu0 0.0
  %851 = vmatpush1.msra.mxu0 0.0
  %852 = vmatprep.subr.mxu0 0.0
  %853 = vmatpush1.msra.mxu0 0.0
  %854 = vmatprep.subr.mxu0 0.0
  %855 = vmatpush1.msra.mxu0 0.0
  %856 = vmatprep.subr.mxu0 0.0
  %857 = vmatpush1.msra.mxu0 0.0
  %858 = vmatprep.subr.mxu0 0.0
  %859 = vmatpush1.msra.mxu0 0.0
  %860 = vmatprep.subr.mxu0 0.0
  %861 = vmatpush1.msra.mxu0 0.0
  %862 = vmatprep.subr.mxu0 0.0
  %863 = vmatpush1.msra.mxu0 0.0
  %864 = vmatprep.subr.mxu0 0.0
  %865 = vmatpush1.msra.mxu0 0.0
  %866 = vmatprep.subr.mxu0 0.0
  %867 = vmatpush1.msra.mxu0 0.0
  %868 = vmatprep.subr.mxu0 0.0
  %869 = vmatpush1.msra.mxu0 0.0
  %870 = vmatprep.subr.mxu0 0.0
  %871 = vmatpush1.msra.mxu0 0.0
  %872 = vmatprep.subr.mxu0 0.0
  %873 = vmatpush1.msra.mxu0 0.0
  %874 = vmatprep.subr.mxu0 0.0
  %875 = vmatpush1.msra.mxu0 0.0
  %876 = vmatprep.mubr.f32.mxu0 0.0
  %877 = vmatmul.mubr.f32.gmra.mrb[0].mxu0 %v810
  %v878 = vpop.f32.mrb[0].mxu0
  %v879 = vadd.f32 0.0, %v878
  %v880 = vpop.f32.mrb[0].mxu0
  %881 = vdwg.mxu0
  %v882 = vxor.u32 %v879, 2147483648
  %v883 = vmul.f32 %v882, 1.442695
  %v884 = vpow.pop %v883
  %v885 = vadd.f32 %v884, 1.0
  %v886 = vrcp.pop %v885
  %v887 = vmul.f32 1.0, %v886
  %v888 = vmul.f32 %v887, 2.0
  %v889 = vsub.f32 %v888, 1.0
  %v890 = vmul.f32 %v887, %v396
  %892 = vrot.lane.b32.xlu0 %v889, 64
  %v893 = vpop.permute.xlu0 %892
  %v895 = vmul.f32 %v887, %v893
  %897 = vrot.lane.b32.xlu0 %v895, 32
  %v898 = vpop.permute.xlu0 %897
  %v900 = vadd.f32 %v890, %v898
  %v901 = vtanh.pop %v900
  %903 = vrot.lane.b32.xlu0 %v901, 64
  %v904 = vpop.permute.xlu0 %903
  %v906 = vmul.f32 %v887, %v904
  %908 = vrot.lane.b32.xlu0 %v906, 32
  %v909 = vpop.permute.xlu0 %908
  %v910 = vsel %vm66, %v909, 0
  %912 = vmatprep.subr.mxu0 0.0
  %913 = vmatpush1.msra.mxu0 %v576
  %914 = vmatprep.subr.mxu0 0.0
  %915 = vmatpush1.msra.mxu0 %v577
  %916 = vmatprep.subr.mxu0 0.0
  %917 = vmatpush1.msra.mxu0 %v578
  %918 = vmatprep.subr.mxu0 0.0
  %919 = vmatpush1.msra.mxu0 %v579
  %920 = vmatprep.subr.mxu0 0.0
  %921 = vmatpush1.msra.mxu0 0.0
  %922 = vmatprep.subr.mxu0 0.0
  %923 = vmatpush1.msra.mxu0 0.0
  %924 = vmatprep.subr.mxu0 0.0
  %925 = vmatpush1.msra.mxu0 0.0
  %926 = vmatprep.subr.mxu0 0.0
  %927 = vmatpush1.msra.mxu0 0.0
  %928 = vmatprep.subr.mxu0 0.0
  %929 = vmatpush1.msra.mxu0 0.0
  %930 = vmatprep.subr.mxu0 0.0
  %931 = vmatpush1.msra.mxu0 0.0
  %932 = vmatprep.subr.mxu0 0.0
  %933 = vmatpush1.msra.mxu0 0.0
  %934 = vmatprep.subr.mxu0 0.0
  %935 = vmatpush1.msra.mxu0 0.0
  %936 = vmatprep.subr.mxu0 0.0
  %937 = vmatpush1.msra.mxu0 0.0
  %938 = vmatprep.subr.mxu0 0.0
  %939 = vmatpush1.msra.mxu0 0.0
  %940 = vmatprep.subr.mxu0 0.0
  %941 = vmatpush1.msra.mxu0 0.0
  %942 = vmatprep.subr.mxu0 0.0
  %943 = vmatpush1.msra.mxu0 0.0
  %944 = vmatprep.subr.mxu0 0.0
  %945 = vmatpush1.msra.mxu0 0.0
  %946 = vmatprep.subr.mxu0 0.0
  %947 = vmatpush1.msra.mxu0 0.0
  %948 = vmatprep.subr.mxu0 0.0
  %949 = vmatpush1.msra.mxu0 0.0
  %950 = vmatprep.subr.mxu0 0.0
  %951 = vmatpush1.msra.mxu0 0.0
  %952 = vmatprep.subr.mxu0 0.0
  %953 = vmatpush1.msra.mxu0 0.0
  %954 = vmatprep.subr.mxu0 0.0
  %955 = vmatpush1.msra.mxu0 0.0
  %956 = vmatprep.subr.mxu0 0.0
  %957 = vmatpush1.msra.mxu0 0.0
  %958 = vmatprep.subr.mxu0 0.0
  %959 = vmatpush1.msra.mxu0 0.0
  %960 = vmatprep.subr.mxu0 0.0
  %961 = vmatpush1.msra.mxu0 0.0
  %962 = vmatprep.subr.mxu0 0.0
  %963 = vmatpush1.msra.mxu0 0.0
  %964 = vmatprep.subr.mxu0 0.0
  %965 = vmatpush1.msra.mxu0 0.0
  %966 = vmatprep.subr.mxu0 0.0
  %967 = vmatpush1.msra.mxu0 0.0
  %968 = vmatprep.subr.mxu0 0.0
  %969 = vmatpush1.msra.mxu0 0.0
  %970 = vmatprep.subr.mxu0 0.0
  %971 = vmatpush1.msra.mxu0 0.0
  %972 = vmatprep.subr.mxu0 0.0
  %973 = vmatpush1.msra.mxu0 0.0
  %974 = vmatprep.subr.mxu0 0.0
  %975 = vmatpush1.msra.mxu0 0.0
  %976 = vmatprep.mubr.f32.mxu0 0.0
  %977 = vmatmul.mubr.f32.gmra.mrb[0].mxu0 %v910
  %v978 = vpop.f32.mrb[0].mxu0
  %v979 = vadd.f32 %v407, %v978
  %v980 = vpop.f32.mrb[0].mxu0
  %981 = vdwg.mxu0
  %v982 = vsel %vm484, %v979, -inf
  %983 = vmax.xlane.f32.xlu0 %v982
  %v984 = vpop.xlane.xlu0 %983
  %v985 = vsub.f32 %v979, %v984
  %v986 = vmul.f32 %v985, 1.442695
  %v987 = vpow.pop %v986
  %v988 = vsel %vm484, %v987, 0.0
  %989 = vadd.xlane.f32.xlu0 %v988
  %v990 = vpop.xlane.xlu0 %989
  %v991 = vlog2.pop %v990
  %v992 = vmul.f32 %v991, 0.6931472
  %v993 = vadd.f32 %v992, %v984
  %v994 = vsub.f32 %v979, %v993
  %v997 = vunpack.c.l.s4 1966171168
  %v998 = vunpack.c.0.s8 %v997
  %v999 = vlaneseq
  %v1000 = vshrl.u32 %v999, 7
  %v1001 = vsub.s32 %v998, %v1000
  %v1002 = vrot.slane %v994, %v1001
  %v1003 = vcombine.high %v1002, %v1002
  %v1005 = vunpack.c.l.s4 1966171168
  %v1006 = vunpack.c.0.s8 %v1005
  %v1007 = vlaneseq
  %v1008 = vshrl.u32 %v1007, 7
  %v1009 = vsub.s32 %v1006, %v1008
  %v1010 = vrot.slane %v1002, %v1009
  %v1012 = vunpack.c.l.s4 1966171168
  %v1013 = vunpack.c.0.s8 %v1012
  %v1014 = vlaneseq
  %v1015 = vshrl.u32 %v1014, 7
  %v1016 = vsub.s32 %v1013, %v1015
  %v1017 = vrot.slane %v1003, %v1016
  %1020 = vst [vmem:[%s9 + $0x1] sm:$0x1] %v1010
  %1021 = vst [vmem:[%s9 + $0x11] sm:$0x1] %v1017
  %v1022 = vlaneseq
  %v1023 = vshrl.u32 %v1022, 7
  %v1024 = vsub.s32 %v37, %v1023
  %v1025 = vrot.slane %v775, %v1024
  %v1026 = vlaneseq
  %v1027 = vshrl.u32 %v1026, 7
  %v1028 = vsub.s32 %v37, %v1027
  %v1029 = vrot.slane %v780, %v1028
  %1032 = vst.msk [vmem:[%s10 + $0x1] sm:$0x1] %vm535, %v1025
  %1033 = vst.msk [vmem:[%s10 + $0x11] sm:$0x1] %vm535, %v1029
  %vm1034 = vcmp.eq.f32.partialorder %v979, %v984
  %v1035 = vsel %vm1034, %v37, 128
  %v1036 = vsel %vm484, %v1035, 2147483647
  %v1037 = vand.u32 %v1036, 65535
  %v1038 = vshra.s32 %v1036, 16
  %v1039 = vcvt.s32.f32 %v1037
  %v1040 = vcvt.s32.f32 %v1038
  %1041 = vmin.xlane.f32.xlu0 %v1040
  %v1042 = vpop.xlane.xlu0 %1041
  %vm1043 = vcmp.eq.f32.partialorder %v1040, %v1042
  %v1044 = vsel %vm1043, %v1039, inf
  %1045 = vmin.xlane.f32.xlu0 %v1044
  %v1046 = vpop.xlane.xlu0 %1045
  %v1047 = vcvt.f32.s32 %v1046
  %v1048 = vcvt.f32.s32 %v1042
  %v1049 = vshll.u32 %v1048, 16
  %v1050 = vadd.s32 %v1049, %v1047
  %vm1051 = vcmp.eq.s32.totalorder %v37, %v1050
  %v1052 = vsel %vm1051, 1, 0
  %v1053 = vcvt.s32.f32 %v1052
  %v1054 = vld [vmem:[%s0] sm:$0xff]
  %v1055 = vld [vmem:[%s0 + $0x8] sm:$0xff]
  %v1056 = vld [vmem:[%s1] sm:$0xff]
  %v1057 = vld [vmem:[%s1 + $0x8] sm:$0xff]
  %v1058 = vld [vmem:[%s4] sm:$0xff]
  %v1059 = vld [vmem:[%s4 + $0x8] sm:$0xff]
  %v1060 = vld [vmem:[%s4 + $0x10] sm:$0xff]
  %v1061 = vld [vmem:[%s4 + $0x18] sm:$0xff]
  %v1062 = vld [vmem:[%s6] sm:$0xff]
  %v1063 = vld [vmem:[%s6 + $0x8] sm:$0xff]
  %v1064 = vld [vmem:[%s6 + $0x10] sm:$0xff]
  %v1065 = vld [vmem:[%s6 + $0x18] sm:$0xff]
  %v1066 = vld [vmem:[%s6 + $0x20] sm:$0xff]
  %v1067 = vld [vmem:[%s6 + $0x28] sm:$0xff]
  %v1068 = vld [vmem:[%s6 + $0x30] sm:$0xff]
  %v1069 = vld [vmem:[%s6 + $0x38] sm:$0xff]
  %v1070 = vld [vmem:[%s6 + $0x40] sm:$0xff]
  %v1071 = vld [vmem:[%s6 + $0x48] sm:$0xff]
  %v1072 = vld [vmem:[%s7] sm:$0xff]
  %v1073 = vld [vmem:[%s7 + $0x8] sm:$0xff]
  %v1074 = vld [vmem:[%s7 + $0x10] sm:$0xff]
  %v1075 = vld [vmem:[%s7 + $0x18] sm:$0xff]
  %1077 = vrot.lane.b32.xlu0 %v900, 64
  %v1078 = vpop.permute.xlu0 %1077
  %v1080 = vadd.f32 %v906, %v1078
  %1082 = vrot.lane.b32.xlu0 %v1080, 32
  %v1083 = vpop.permute.xlu0 %1082
  %v1084 = vsel %vm66, %v1083, 0
  %1086 = vmatprep.subr.mxu0 0.0
  %1087 = vmatpush1.msra.mxu0 %v1058
  %1088 = vmatprep.subr.mxu0 0.0
  %1089 = vmatpush1.msra.mxu0 %v1059
  %1090 = vmatprep.subr.mxu0 0.0
  %1091 = vmatpush1.msra.mxu0 %v1060
  %1092 = vmatprep.subr.mxu0 0.0
  %1093 = vmatpush1.msra.mxu0 %v1061
  %1094 = vmatprep.subr.mxu0 0.0
  %1095 = vmatpush1.msra.mxu0 0.0
  %1096 = vmatprep.subr.mxu0 0.0
  %1097 = vmatpush1.msra.mxu0 0.0
  %1098 = vmatprep.subr.mxu0 0.0
  %1099 = vmatpush1.msra.mxu0 0.0
  %1100 = vmatprep.subr.mxu0 0.0
  %1101 = vmatpush1.msra.mxu0 0.0
  %1102 = vmatprep.subr.mxu0 0.0
  %1103 = vmatpush1.msra.mxu0 0.0
  %1104 = vmatprep.subr.mxu0 0.0
  %1105 = vmatpush1.msra.mxu0 0.0
  %1106 = vmatprep.subr.mxu0 0.0
  %1107 = vmatpush1.msra.mxu0 0.0
  %1108 = vmatprep.subr.mxu0 0.0
  %1109 = vmatpush1.msra.mxu0 0.0
  %1110 = vmatprep.subr.mxu0 0.0
  %1111 = vmatpush1.msra.mxu0 0.0
  %1112 = vmatprep.subr.mxu0 0.0
  %1113 = vmatpush1.msra.mxu0 0.0
  %1114 = vmatprep.subr.mxu0 0.0
  %1115 = vmatpush1.msra.mxu0 0.0
  %1116 = vmatprep.subr.mxu0 0.0
  %1117 = vmatpush1.msra.mxu0 0.0
  %1118 = vmatprep.subr.mxu0 0.0
  %1119 = vmatpush1.msra.mxu0 0.0
  %1120 = vmatprep.subr.mxu0 0.0
  %1121 = vmatpush1.msra.mxu0 0.0
  %1122 = vmatprep.subr.mxu0 0.0
  %1123 = vmatpush1.msra.mxu0 0.0
  %1124 = vmatprep.subr.mxu0 0.0
  %1125 = vmatpush1.msra.mxu0 0.0
  %1126 = vmatprep.subr.mxu0 0.0
  %1127 = vmatpush1.msra.mxu0 0.0
  %1128 = vmatprep.subr.mxu0 0.0
  %1129 = vmatpush1.msra.mxu0 0.0
  %1130 = vmatprep.subr.mxu0 0.0
  %1131 = vmatpush1.msra.mxu0 0.0
  %1132 = vmatprep.subr.mxu0 0.0
  %1133 = vmatpush1.msra.mxu0 0.0
  %1134 = vmatprep.subr.mxu0 0.0
  %1135 = vmatpush1.msra.mxu0 0.0
  %1136 = vmatprep.subr.mxu0 0.0
  %1137 = vmatpush1.msra.mxu0 0.0
  %1138 = vmatprep.subr.mxu0 0.0
  %1139 = vmatpush1.msra.mxu0 0.0
  %1140 = vmatprep.subr.mxu0 0.0
  %1141 = vmatpush1.msra.mxu0 0.0
  %1142 = vmatprep.subr.mxu0 0.0
  %1143 = vmatpush1.msra.mxu0 0.0
  %1144 = vmatprep.subr.mxu0 0.0
  %1145 = vmatpush1.msra.mxu0 0.0
  %1146 = vmatprep.subr.mxu0 0.0
  %1147 = vmatpush1.msra.mxu0 0.0
  %1148 = vmatprep.subr.mxu0 0.0
  %1149 = vmatpush1.msra.mxu0 0.0
  %1150 = vmatprep.mubr.f32.mxu0 0.0
  %1151 = vmatmul.mubr.f32.gmra.mrb[0].mxu0 %v1084
  %v1152 = vpop.f32.mrb[0].mxu0
  %v1153 = vadd.f32 0.0, %v1152
  %v1154 = vpop.f32.mrb[0].mxu0
  %1155 = vdwg.mxu0
  %v1158 = vunpack.c.l.s4 1966171168
  %v1159 = vunpack.c.0.s8 %v1158
  %v1160 = vlaneseq
  %v1161 = vshrl.u32 %v1160, 7
  %v1162 = vsub.s32 %v1159, %v1161
  %v1163 = vrot.slane %v1153, %v1162
  %v1164 = vcombine.high %v1163, %v1163
  %v1166 = vunpack.c.l.s4 1966171168
  %v1167 = vunpack.c.0.s8 %v1166
  %v1168 = vlaneseq
  %v1169 = vshrl.u32 %v1168, 7
  %v1170 = vsub.s32 %v1167, %v1169
  %v1171 = vrot.slane %v1163, %v1170
  %v1173 = vunpack.c.l.s4 1966171168
  %v1174 = vunpack.c.0.s8 %v1173
  %v1175 = vlaneseq
  %v1176 = vshrl.u32 %v1175, 7
  %v1177 = vsub.s32 %v1174, %v1176
  %v1178 = vrot.slane %v1164, %v1177
  %v1179 = vlaneseq
  %v1180 = vshrl.u32 %v1179, 7
  %v1181 = vsub.s32 0, %v1180
  %v1182 = vrot.slane %v1171, %v1181
  %v1183 = vlaneseq
  %v1184 = vshrl.u32 %v1183, 7
  %v1185 = vsub.s32 0, %v1184
  %v1186 = vrot.slane %v1178, %v1185
  %v1189 = vadd.f32 %v1182, %v1056
  %v1190 = vadd.f32 %v1186, %v1057
  %v1191 = vtanh.pop %v1189
  %v1192 = vtanh.pop %v1190
  %v1193 = vmul.f32 %v1191, %v181
  %v1194 = vmul.f32 %v1192, %v181
  %v1195 = vsel %vm66, %v1193, 0.0
  %1196 = vadd.xlane.f32.xlu0 %v1195
  %v1197 = vpop.xlane.xlu0 %1196
  %v1198 = vsel %vm66, %v1194, 0.0
  %1199 = vadd.xlane.f32.xlu0 %v1198
  %v1200 = vpop.xlane.xlu0 %1199
  %v1203 = vlaneseq
  %v1204 = vshrl.u32 %v1203, 7
  %v1205 = vsub.s32 %v37, %v1204
  %v1206 = vrot.slane %v1197, %v1205
  %v1207 = vlaneseq
  %v1208 = vshrl.u32 %v1207, 7
  %v1209 = vsub.s32 %v37, %v1208
  %v1210 = vrot.slane %v1200, %v1209
  %v1211 = vsel %vm201, %v1210, %v1206
  %v1213 = vsel %vm204, %v1211, -inf
  %1214 = vmax.xlane.f32.xlu0 %v1213
  %v1215 = vpop.xlane.xlu0 %1214
  %v1217 = vlaneseq
  %v1218 = vshrl.u32 %v1217, 7
  %v1219 = vsub.s32 0, %v1218
  %v1220 = vrot.slane %v1215, %v1219
  %v1221 = vlaneseq
  %v1222 = vshrl.u32 %v1221, 7
  %v1223 = vsub.s32 1, %v1222
  %v1224 = vrot.slane %v1215, %v1223
  %v1227 = vsub.f32 %v1197, %v1220
  %v1228 = vsub.f32 %v1200, %v1224
  %v1229 = vmul.f32 %v1227, 1.442695
  %v1230 = vpow.pop %v1229
  %v1231 = vmul.f32 %v1228, 1.442695
  %v1232 = vpow.pop %v1231
  %1235 = vset.pattern.permute.xlu0 0
  %1236 = vperm.xlu0 %1235, %v1230
  %v1237 = vpop.permute.xlu0 %1236
  %1238 = vset.pattern.permute.xlu0 0
  %1239 = vperm.xlu0 %1238, %v1232
  %v1240 = vpop.permute.xlu0 %1239
  %v1241 = vlaneseq
  %v1242 = vshrl.u32 %v1241, 7
  %v1243 = vsub.s32 %v37, %v1242
  %v1244 = vrot.slane %v1237, %v1243
  %v1245 = vlaneseq
  %v1246 = vshrl.u32 %v1245, 7
  %v1247 = vsub.s32 %v37, %v1246
  %v1248 = vrot.slane %v1240, %v1247
  %v1249 = vsel %vm201, %v1248, %v1244
  %v1251 = vsel %vm204, %v1249, 0.0
  %1252 = vadd.xlane.f32.xlu0 %v1251
  %v1253 = vpop.xlane.xlu0 %1252
  %v1254 = vrcp.pop %v1253
  %v1256 = vlaneseq
  %v1257 = vshrl.u32 %v1256, 7
  %v1258 = vsub.s32 0, %v1257
  %v1259 = vrot.slane %v1254, %v1258
  %v1260 = vlaneseq
  %v1261 = vshrl.u32 %v1260, 7
  %v1262 = vsub.s32 1, %v1261
  %v1263 = vrot.slane %v1254, %v1262
  %v1266 = vmul.f32 %v1230, %v1259
  %v1267 = vmul.f32 %v1232, %v1263
  %1269 = vset.pattern.permute.xlu0 0
  %1270 = vperm.xlu0 %1269, %v1266
  %v1271 = vpop.permute.xlu0 %1270
  %1274 = vset.pattern.permute.xlu0 0
  %1275 = vperm.xlu0 %1274, %v1267
  %v1276 = vpop.permute.xlu0 %1275
  %v1278 = vmul.f32 %v1271, %v1054
  %v1279 = vmul.f32 %v1276, %v1055
  %v1280 = vsel %vm66, %v1278, 0.0
  %v1281 = vrot.slane %v1280, 4
  %v1282 = vadd.f32 %v1280, %v1281
  %v1283 = vrot.slane %v1282, 2
  %v1284 = vadd.f32 %v1282, %v1283
  %v1285 = vrot.slane %v1284, 1
  %v1286 = vadd.f32 %v1284, %v1285
  %v1287 = vsel %vm66, %v1279, 0.0
  %v1288 = vrot.slane %v1287, 4
  %v1289 = vadd.f32 %v1287, %v1288
  %v1290 = vrot.slane %v1289, 2
  %v1291 = vadd.f32 %v1289, %v1290
  %v1292 = vrot.slane %v1291, 1
  %v1293 = vadd.f32 %v1291, %v1292
  %v1296 = vsel %vm201, %v1293, %v1286
  %1297 = vrot.lane.b32.xlu0 %v1296, 16
  %v1298 = vpop.permute.xlu0 %1297
  %1300 = vrot.lane.b32.xlu0 %v906, 80
  %v1301 = vpop.permute.xlu0 %1300
  %v1303 = vsel %vm296, %v1053, %v1298
  %v1304 = vsel %vm298, %v1303, %v1301
  %v1306 = vsel %vm300, %v1304, 0
  %1308 = vmatprep.subr.mxu0 0.0
  %1309 = vmatpush1.msra.mxu0 %v1062
  %1310 = vmatprep.subr.mxu0 0.0
  %1311 = vmatpush1.msra.mxu0 %v1063
  %1312 = vmatprep.subr.mxu0 0.0
  %1313 = vmatpush1.msra.mxu0 %v1064
  %1314 = vmatprep.subr.mxu0 0.0
  %1315 = vmatpush1.msra.mxu0 %v1065
  %1316 = vmatprep.subr.mxu0 0.0
  %1317 = vmatpush1.msra.mxu0 %v1066
  %1318 = vmatprep.subr.mxu0 0.0
  %1319 = vmatpush1.msra.mxu0 %v1067
  %1320 = vmatprep.subr.mxu0 0.0
  %1321 = vmatpush1.msra.mxu0 %v1068
  %1322 = vmatprep.subr.mxu0 0.0
  %1323 = vmatpush1.msra.mxu0 %v1069
  %1324 = vmatprep.subr.mxu0 0.0
  %1325 = vmatpush1.msra.mxu0 %v1070
  %1326 = vmatprep.subr.mxu0 0.0
  %1327 = vmatpush1.msra.mxu0 %v1071
  %1328 = vmatprep.subr.mxu0 0.0
  %1329 = vmatpush1.msra.mxu0 0.0
  %1330 = vmatprep.subr.mxu0 0.0
  %1331 = vmatpush1.msra.mxu0 0.0
  %1332 = vmatprep.subr.mxu0 0.0
  %1333 = vmatpush1.msra.mxu0 0.0
  %1334 = vmatprep.subr.mxu0 0.0
  %1335 = vmatpush1.msra.mxu0 0.0
  %1336 = vmatprep.subr.mxu0 0.0
  %1337 = vmatpush1.msra.mxu0 0.0
  %1338 = vmatprep.subr.mxu0 0.0
  %1339 = vmatpush1.msra.mxu0 0.0
  %1340 = vmatprep.subr.mxu0 0.0
  %1341 = vmatpush1.msra.mxu0 0.0
  %1342 = vmatprep.subr.mxu0 0.0
  %1343 = vmatpush1.msra.mxu0 0.0
  %1344 = vmatprep.subr.mxu0 0.0
  %1345 = vmatpush1.msra.mxu0 0.0
  %1346 = vmatprep.subr.mxu0 0.0
  %1347 = vmatpush1.msra.mxu0 0.0
  %1348 = vmatprep.subr.mxu0 0.0
  %1349 = vmatpush1.msra.mxu0 0.0
  %1350 = vmatprep.subr.mxu0 0.0
  %1351 = vmatpush1.msra.mxu0 0.0
  %1352 = vmatprep.subr.mxu0 0.0
  %1353 = vmatpush1.msra.mxu0 0.0
  %1354 = vmatprep.subr.mxu0 0.0
  %1355 = vmatpush1.msra.mxu0 0.0
  %1356 = vmatprep.subr.mxu0 0.0
  %1357 = vmatpush1.msra.mxu0 0.0
  %1358 = vmatprep.subr.mxu0 0.0
  %1359 = vmatpush1.msra.mxu0 0.0
  %1360 = vmatprep.subr.mxu0 0.0
  %1361 = vmatpush1.msra.mxu0 0.0
  %1362 = vmatprep.subr.mxu0 0.0
  %1363 = vmatpush1.msra.mxu0 0.0
  %1364 = vmatprep.subr.mxu0 0.0
  %1365 = vmatpush1.msra.mxu0 0.0
  %1366 = vmatprep.subr.mxu0 0.0
  %1367 = vmatpush1.msra.mxu0 0.0
  %1368 = vmatprep.subr.mxu0 0.0
  %1369 = vmatpush1.msra.mxu0 0.0
  %1370 = vmatprep.subr.mxu0 0.0
  %1371 = vmatpush1.msra.mxu0 0.0
  %1372 = vmatprep.mubr.f32.mxu0 0.0
  %1373 = vmatmul.mubr.f32.gmra.mrb[0].mxu0 %v1306
  %v1374 = vpop.f32.mrb[0].mxu0
  %v1375 = vadd.f32 0.0, %v1374
  %v1376 = vpop.f32.mrb[0].mxu0
  %1377 = vdwg.mxu0
  %v1378 = vxor.u32 %v1375, 2147483648
  %v1379 = vmul.f32 %v1378, 1.442695
  %v1380 = vpow.pop %v1379
  %v1381 = vadd.f32 %v1380, 1.0
  %v1382 = vrcp.pop %v1381
  %v1383 = vmul.f32 1.0, %v1382
  %v1384 = vmul.f32 %v1383, 2.0
  %v1385 = vsub.f32 %v1384, 1.0
  %v1386 = vmul.f32 %v1383, %v900
  %1388 = vrot.lane.b32.xlu0 %v1385, 64
  %v1389 = vpop.permute.xlu0 %1388
  %v1391 = vmul.f32 %v1383, %v1389
  %1393 = vrot.lane.b32.xlu0 %v1391, 32
  %v1394 = vpop.permute.xlu0 %1393
  %v1396 = vadd.f32 %v1386, %v1394
  %v1397 = vtanh.pop %v1396
  %1399 = vrot.lane.b32.xlu0 %v1397, 64
  %v1400 = vpop.permute.xlu0 %1399
  %v1402 = vmul.f32 %v1383, %v1400
  %1404 = vrot.lane.b32.xlu0 %v1402, 32
  %v1405 = vpop.permute.xlu0 %1404
  %v1406 = vsel %vm66, %v1405, 0
  %1408 = vmatprep.subr.mxu0 0.0
  %1409 = vmatpush1.msra.mxu0 %v1072
  %1410 = vmatprep.subr.mxu0 0.0
  %1411 = vmatpush1.msra.mxu0 %v1073
  %1412 = vmatprep.subr.mxu0 0.0
  %1413 = vmatpush1.msra.mxu0 %v1074
  %1414 = vmatprep.subr.mxu0 0.0
  %1415 = vmatpush1.msra.mxu0 %v1075
  %1416 = vmatprep.subr.mxu0 0.0
  %1417 = vmatpush1.msra.mxu0 0.0
  %1418 = vmatprep.subr.mxu0 0.0
  %1419 = vmatpush1.msra.mxu0 0.0
  %1420 = vmatprep.subr.mxu0 0.0
  %1421 = vmatpush1.msra.mxu0 0.0
  %1422 = vmatprep.subr.mxu0 0.0
  %1423 = vmatpush1.msra.mxu0 0.0
  %1424 = vmatprep.subr.mxu0 0.0
  %1425 = vmatpush1.msra.mxu0 0.0
  %1426 = vmatprep.subr.mxu0 0.0
  %1427 = vmatpush1.msra.mxu0 0.0
  %1428 = vmatprep.subr.mxu0 0.0
  %1429 = vmatpush1.msra.mxu0 0.0
  %1430 = vmatprep.subr.mxu0 0.0
  %1431 = vmatpush1.msra.mxu0 0.0
  %1432 = vmatprep.subr.mxu0 0.0
  %1433 = vmatpush1.msra.mxu0 0.0
  %1434 = vmatprep.subr.mxu0 0.0
  %1435 = vmatpush1.msra.mxu0 0.0
  %1436 = vmatprep.subr.mxu0 0.0
  %1437 = vmatpush1.msra.mxu0 0.0
  %1438 = vmatprep.subr.mxu0 0.0
  %1439 = vmatpush1.msra.mxu0 0.0
  %1440 = vmatprep.subr.mxu0 0.0
  %1441 = vmatpush1.msra.mxu0 0.0
  %1442 = vmatprep.subr.mxu0 0.0
  %1443 = vmatpush1.msra.mxu0 0.0
  %1444 = vmatprep.subr.mxu0 0.0
  %1445 = vmatpush1.msra.mxu0 0.0
  %1446 = vmatprep.subr.mxu0 0.0
  %1447 = vmatpush1.msra.mxu0 0.0
  %1448 = vmatprep.subr.mxu0 0.0
  %1449 = vmatpush1.msra.mxu0 0.0
  %1450 = vmatprep.subr.mxu0 0.0
  %1451 = vmatpush1.msra.mxu0 0.0
  %1452 = vmatprep.subr.mxu0 0.0
  %1453 = vmatpush1.msra.mxu0 0.0
  %1454 = vmatprep.subr.mxu0 0.0
  %1455 = vmatpush1.msra.mxu0 0.0
  %1456 = vmatprep.subr.mxu0 0.0
  %1457 = vmatpush1.msra.mxu0 0.0
  %1458 = vmatprep.subr.mxu0 0.0
  %1459 = vmatpush1.msra.mxu0 0.0
  %1460 = vmatprep.subr.mxu0 0.0
  %1461 = vmatpush1.msra.mxu0 0.0
  %1462 = vmatprep.subr.mxu0 0.0
  %1463 = vmatpush1.msra.mxu0 0.0
  %1464 = vmatprep.subr.mxu0 0.0
  %1465 = vmatpush1.msra.mxu0 0.0
  %1466 = vmatprep.subr.mxu0 0.0
  %1467 = vmatpush1.msra.mxu0 0.0
  %1468 = vmatprep.subr.mxu0 0.0
  %1469 = vmatpush1.msra.mxu0 0.0
  %1470 = vmatprep.subr.mxu0 0.0
  %1471 = vmatpush1.msra.mxu0 0.0
  %1472 = vmatprep.mubr.f32.mxu0 0.0
  %1473 = vmatmul.mubr.f32.gmra.mrb[0].mxu0 %v1406
  %v1474 = vpop.f32.mrb[0].mxu0
  %v1475 = vadd.f32 %v407, %v1474
  %v1476 = vpop.f32.mrb[0].mxu0
  %1477 = vdwg.mxu0
  %v1478 = vsel %vm484, %v1475, -inf
  %1479 = vmax.xlane.f32.xlu0 %v1478
  %v1480 = vpop.xlane.xlu0 %1479
  %v1481 = vsub.f32 %v1475, %v1480
  %v1482 = vmul.f32 %v1481, 1.442695
  %v1483 = vpow.pop %v1482
  %v1484 = vsel %vm484, %v1483, 0.0
  %1485 = vadd.xlane.f32.xlu0 %v1484
  %v1486 = vpop.xlane.xlu0 %1485
  %v1487 = vlog2.pop %v1486
  %v1488 = vmul.f32 %v1487, 0.6931472
  %v1489 = vadd.f32 %v1488, %v1480
  %v1490 = vsub.f32 %v1475, %v1489
  %v1493 = vunpack.c.l.s4 1966171168
  %v1494 = vunpack.c.0.s8 %v1493
  %v1495 = vlaneseq
  %v1496 = vshrl.u32 %v1495, 7
  %v1497 = vsub.s32 %v1494, %v1496
  %v1498 = vrot.slane %v1490, %v1497
  %v1499 = vcombine.high %v1498, %v1498
  %v1501 = vunpack.c.l.s4 1966171168
  %v1502 = vunpack.c.0.s8 %v1501
  %v1503 = vlaneseq
  %v1504 = vshrl.u32 %v1503, 7
  %v1505 = vsub.s32 %v1502, %v1504
  %v1506 = vrot.slane %v1498, %v1505
  %v1508 = vunpack.c.l.s4 1966171168
  %v1509 = vunpack.c.0.s8 %v1508
  %v1510 = vlaneseq
  %v1511 = vshrl.u32 %v1510, 7
  %v1512 = vsub.s32 %v1509, %v1511
  %v1513 = vrot.slane %v1499, %v1512
  %1516 = vst [vmem:[%s9 + $0x2] sm:$0x1] %v1506
  %1517 = vst [vmem:[%s9 + $0x12] sm:$0x1] %v1513
  %v1518 = vlaneseq
  %v1519 = vshrl.u32 %v1518, 7
  %v1520 = vsub.s32 %v37, %v1519
  %v1521 = vrot.slane %v1271, %v1520
  %v1522 = vlaneseq
  %v1523 = vshrl.u32 %v1522, 7
  %v1524 = vsub.s32 %v37, %v1523
  %v1525 = vrot.slane %v1276, %v1524
  %1528 = vst.msk [vmem:[%s10 + $0x2] sm:$0x1] %vm535, %v1521
  %1529 = vst.msk [vmem:[%s10 + $0x12] sm:$0x1] %vm535, %v1525
  %vm1530 = vcmp.eq.f32.partialorder %v1475, %v1480
  %v1531 = vsel %vm1530, %v37, 128
  %v1532 = vsel %vm484, %v1531, 2147483647
  %v1533 = vand.u32 %v1532, 65535
  %v1534 = vshra.s32 %v1532, 16
  %v1535 = vcvt.s32.f32 %v1533
  %v1536 = vcvt.s32.f32 %v1534
  %1537 = vmin.xlane.f32.xlu0 %v1536
  %v1538 = vpop.xlane.xlu0 %1537
  %vm1539 = vcmp.eq.f32.partialorder %v1536, %v1538
  %v1540 = vsel %vm1539, %v1535, inf
  %1541 = vmin.xlane.f32.xlu0 %v1540
  %v1542 = vpop.xlane.xlu0 %1541
  %v1543 = vcvt.f32.s32 %v1542
  %v1544 = vcvt.f32.s32 %v1538
  %v1545 = vshll.u32 %v1544, 16
  %v1546 = vadd.s32 %v1545, %v1543
  %vm1547 = vcmp.eq.s32.totalorder %v37, %v1546
  %v1548 = vsel %vm1547, 1, 0
  %v1549 = vcvt.s32.f32 %v1548
  %v1550 = vld [vmem:[%s0] sm:$0xff]
  %v1551 = vld [vmem:[%s0 + $0x8] sm:$0xff]
  %v1552 = vld [vmem:[%s1] sm:$0xff]
  %v1553 = vld [vmem:[%s1 + $0x8] sm:$0xff]
  %v1554 = vld [vmem:[%s4] sm:$0xff]
  %v1555 = vld [vmem:[%s4 + $0x8] sm:$0xff]
  %v1556 = vld [vmem:[%s4 + $0x10] sm:$0xff]
  %v1557 = vld [vmem:[%s4 + $0x18] sm:$0xff]
  %v1558 = vld [vmem:[%s6] sm:$0xff]
  %v1559 = vld [vmem:[%s6 + $0x8] sm:$0xff]
  %v1560 = vld [vmem:[%s6 + $0x10] sm:$0xff]
  %v1561 = vld [vmem:[%s6 + $0x18] sm:$0xff]
  %v1562 = vld [vmem:[%s6 + $0x20] sm:$0xff]
  %v1563 = vld [vmem:[%s6 + $0x28] sm:$0xff]
  %v1564 = vld [vmem:[%s6 + $0x30] sm:$0xff]
  %v1565 = vld [vmem:[%s6 + $0x38] sm:$0xff]
  %v1566 = vld [vmem:[%s6 + $0x40] sm:$0xff]
  %v1567 = vld [vmem:[%s6 + $0x48] sm:$0xff]
  %v1568 = vld [vmem:[%s7] sm:$0xff]
  %v1569 = vld [vmem:[%s7 + $0x8] sm:$0xff]
  %v1570 = vld [vmem:[%s7 + $0x10] sm:$0xff]
  %v1571 = vld [vmem:[%s7 + $0x18] sm:$0xff]
  %1573 = vrot.lane.b32.xlu0 %v1396, 64
  %v1574 = vpop.permute.xlu0 %1573
  %v1576 = vadd.f32 %v1402, %v1574
  %1578 = vrot.lane.b32.xlu0 %v1576, 32
  %v1579 = vpop.permute.xlu0 %1578
  %v1580 = vsel %vm66, %v1579, 0
  %1582 = vmatprep.subr.mxu0 0.0
  %1583 = vmatpush1.msra.mxu0 %v1554
  %1584 = vmatprep.subr.mxu0 0.0
  %1585 = vmatpush1.msra.mxu0 %v1555
  %1586 = vmatprep.subr.mxu0 0.0
  %1587 = vmatpush1.msra.mxu0 %v1556
  %1588 = vmatprep.subr.mxu0 0.0
  %1589 = vmatpush1.msra.mxu0 %v1557
  %1590 = vmatprep.subr.mxu0 0.0
  %1591 = vmatpush1.msra.mxu0 0.0
  %1592 = vmatprep.subr.mxu0 0.0
  %1593 = vmatpush1.msra.mxu0 0.0
  %1594 = vmatprep.subr.mxu0 0.0
  %1595 = vmatpush1.msra.mxu0 0.0
  %1596 = vmatprep.subr.mxu0 0.0
  %1597 = vmatpush1.msra.mxu0 0.0
  %1598 = vmatprep.subr.mxu0 0.0
  %1599 = vmatpush1.msra.mxu0 0.0
  %1600 = vmatprep.subr.mxu0 0.0
  %1601 = vmatpush1.msra.mxu0 0.0
  %1602 = vmatprep.subr.mxu0 0.0
  %1603 = vmatpush1.msra.mxu0 0.0
  %1604 = vmatprep.subr.mxu0 0.0
  %1605 = vmatpush1.msra.mxu0 0.0
  %1606 = vmatprep.subr.mxu0 0.0
  %1607 = vmatpush1.msra.mxu0 0.0
  %1608 = vmatprep.subr.mxu0 0.0
  %1609 = vmatpush1.msra.mxu0 0.0
  %1610 = vmatprep.subr.mxu0 0.0
  %1611 = vmatpush1.msra.mxu0 0.0
  %1612 = vmatprep.subr.mxu0 0.0
  %1613 = vmatpush1.msra.mxu0 0.0
  %1614 = vmatprep.subr.mxu0 0.0
  %1615 = vmatpush1.msra.mxu0 0.0
  %1616 = vmatprep.subr.mxu0 0.0
  %1617 = vmatpush1.msra.mxu0 0.0
  %1618 = vmatprep.subr.mxu0 0.0
  %1619 = vmatpush1.msra.mxu0 0.0
  %1620 = vmatprep.subr.mxu0 0.0
  %1621 = vmatpush1.msra.mxu0 0.0
  %1622 = vmatprep.subr.mxu0 0.0
  %1623 = vmatpush1.msra.mxu0 0.0
  %1624 = vmatprep.subr.mxu0 0.0
  %1625 = vmatpush1.msra.mxu0 0.0
  %1626 = vmatprep.subr.mxu0 0.0
  %1627 = vmatpush1.msra.mxu0 0.0
  %1628 = vmatprep.subr.mxu0 0.0
  %1629 = vmatpush1.msra.mxu0 0.0
  %1630 = vmatprep.subr.mxu0 0.0
  %1631 = vmatpush1.msra.mxu0 0.0
  %1632 = vmatprep.subr.mxu0 0.0
  %1633 = vmatpush1.msra.mxu0 0.0
  %1634 = vmatprep.subr.mxu0 0.0
  %1635 = vmatpush1.msra.mxu0 0.0
  %1636 = vmatprep.subr.mxu0 0.0
  %1637 = vmatpush1.msra.mxu0 0.0
  %1638 = vmatprep.subr.mxu0 0.0
  %1639 = vmatpush1.msra.mxu0 0.0
  %1640 = vmatprep.subr.mxu0 0.0
  %1641 = vmatpush1.msra.mxu0 0.0
  %1642 = vmatprep.subr.mxu0 0.0
  %1643 = vmatpush1.msra.mxu0 0.0
  %1644 = vmatprep.subr.mxu0 0.0
  %1645 = vmatpush1.msra.mxu0 0.0
  %1646 = vmatprep.mubr.f32.mxu0 0.0
  %1647 = vmatmul.mubr.f32.gmra.mrb[0].mxu0 %v1580
  %v1648 = vpop.f32.mrb[0].mxu0
  %v1649 = vadd.f32 0.0, %v1648
  %v1650 = vpop.f32.mrb[0].mxu0
  %1651 = vdwg.mxu0
  %v1654 = vunpack.c.l.s4 1966171168
  %v1655 = vunpack.c.0.s8 %v1654
  %v1656 = vlaneseq
  %v1657 = vshrl.u32 %v1656, 7
  %v1658 = vsub.s32 %v1655, %v1657
  %v1659 = vrot.slane %v1649, %v1658
  %v1660 = vcombine.high %v1659, %v1659
  %v1662 = vunpack.c.l.s4 1966171168
  %v1663 = vunpack.c.0.s8 %v1662
  %v1664 = vlaneseq
  %v1665 = vshrl.u32 %v1664, 7
  %v1666 = vsub.s32 %v1663, %v1665
  %v1667 = vrot.slane %v1659, %v1666
  %v1669 = vunpack.c.l.s4 1966171168
  %v1670 = vunpack.c.0.s8 %v1669
  %v1671 = vlaneseq
  %v1672 = vshrl.u32 %v1671, 7
  %v1673 = vsub.s32 %v1670, %v1672
  %v1674 = vrot.slane %v1660, %v1673
  %v1675 = vlaneseq
  %v1676 = vshrl.u32 %v1675, 7
  %v1677 = vsub.s32 0, %v1676
  %v1678 = vrot.slane %v1667, %v1677
  %v1679 = vlaneseq
  %v1680 = vshrl.u32 %v1679, 7
  %v1681 = vsub.s32 0, %v1680
  %v1682 = vrot.slane %v1674, %v1681
  %v1685 = vadd.f32 %v1678, %v1552
  %v1686 = vadd.f32 %v1682, %v1553
  %v1687 = vtanh.pop %v1685
  %v1688 = vtanh.pop %v1686
  %v1689 = vmul.f32 %v1687, %v181
  %v1690 = vmul.f32 %v1688, %v181
  %v1691 = vsel %vm66, %v1689, 0.0
  %1692 = vadd.xlane.f32.xlu0 %v1691
  %v1693 = vpop.xlane.xlu0 %1692
  %v1694 = vsel %vm66, %v1690, 0.0
  %1695 = vadd.xlane.f32.xlu0 %v1694
  %v1696 = vpop.xlane.xlu0 %1695
  %v1699 = vlaneseq
  %v1700 = vshrl.u32 %v1699, 7
  %v1701 = vsub.s32 %v37, %v1700
  %v1702 = vrot.slane %v1693, %v1701
  %v1703 = vlaneseq
  %v1704 = vshrl.u32 %v1703, 7
  %v1705 = vsub.s32 %v37, %v1704
  %v1706 = vrot.slane %v1696, %v1705
  %v1707 = vsel %vm201, %v1706, %v1702
  %v1709 = vsel %vm204, %v1707, -inf
  %1710 = vmax.xlane.f32.xlu0 %v1709
  %v1711 = vpop.xlane.xlu0 %1710
  %v1713 = vlaneseq
  %v1714 = vshrl.u32 %v1713, 7
  %v1715 = vsub.s32 0, %v1714
  %v1716 = vrot.slane %v1711, %v1715
  %v1717 = vlaneseq
  %v1718 = vshrl.u32 %v1717, 7
  %v1719 = vsub.s32 1, %v1718
  %v1720 = vrot.slane %v1711, %v1719
  %v1723 = vsub.f32 %v1693, %v1716
  %v1724 = vsub.f32 %v1696, %v1720
  %v1725 = vmul.f32 %v1723, 1.442695
  %v1726 = vpow.pop %v1725
  %v1727 = vmul.f32 %v1724, 1.442695
  %v1728 = vpow.pop %v1727
  %1731 = vset.pattern.permute.xlu0 0
  %1732 = vperm.xlu0 %1731, %v1726
  %v1733 = vpop.permute.xlu0 %1732
  %1734 = vset.pattern.permute.xlu0 0
  %1735 = vperm.xlu0 %1734, %v1728
  %v1736 = vpop.permute.xlu0 %1735
  %v1737 = vlaneseq
  %v1738 = vshrl.u32 %v1737, 7
  %v1739 = vsub.s32 %v37, %v1738
  %v1740 = vrot.slane %v1733, %v1739
  %v1741 = vlaneseq
  %v1742 = vshrl.u32 %v1741, 7
  %v1743 = vsub.s32 %v37, %v1742
  %v1744 = vrot.slane %v1736, %v1743
  %v1745 = vsel %vm201, %v1744, %v1740
  %v1747 = vsel %vm204, %v1745, 0.0
  %1748 = vadd.xlane.f32.xlu0 %v1747
  %v1749 = vpop.xlane.xlu0 %1748
  %v1750 = vrcp.pop %v1749
  %v1752 = vlaneseq
  %v1753 = vshrl.u32 %v1752, 7
  %v1754 = vsub.s32 0, %v1753
  %v1755 = vrot.slane %v1750, %v1754
  %v1756 = vlaneseq
  %v1757 = vshrl.u32 %v1756, 7
  %v1758 = vsub.s32 1, %v1757
  %v1759 = vrot.slane %v1750, %v1758
  %v1762 = vmul.f32 %v1726, %v1755
  %v1763 = vmul.f32 %v1728, %v1759
  %1765 = vset.pattern.permute.xlu0 0
  %1766 = vperm.xlu0 %1765, %v1762
  %v1767 = vpop.permute.xlu0 %1766
  %1770 = vset.pattern.permute.xlu0 0
  %1771 = vperm.xlu0 %1770, %v1763
  %v1772 = vpop.permute.xlu0 %1771
  %v1774 = vmul.f32 %v1767, %v1550
  %v1775 = vmul.f32 %v1772, %v1551
  %v1776 = vsel %vm66, %v1774, 0.0
  %v1777 = vrot.slane %v1776, 4
  %v1778 = vadd.f32 %v1776, %v1777
  %v1779 = vrot.slane %v1778, 2
  %v1780 = vadd.f32 %v1778, %v1779
  %v1781 = vrot.slane %v1780, 1
  %v1782 = vadd.f32 %v1780, %v1781
  %v1783 = vsel %vm66, %v1775, 0.0
  %v1784 = vrot.slane %v1783, 4
  %v1785 = vadd.f32 %v1783, %v1784
  %v1786 = vrot.slane %v1785, 2
  %v1787 = vadd.f32 %v1785, %v1786
  %v1788 = vrot.slane %v1787, 1
  %v1789 = vadd.f32 %v1787, %v1788
  %v1792 = vsel %vm201, %v1789, %v1782
  %1793 = vrot.lane.b32.xlu0 %v1792, 16
  %v1794 = vpop.permute.xlu0 %1793
  %1796 = vrot.lane.b32.xlu0 %v1402, 80
  %v1797 = vpop.permute.xlu0 %1796
  %v1799 = vsel %vm296, %v1549, %v1794
  %v1800 = vsel %vm298, %v1799, %v1797
  %v1802 = vsel %vm300, %v1800, 0
  %1804 = vmatprep.subr.mxu0 0.0
  %1805 = vmatpush1.msra.mxu0 %v1558
  %1806 = vmatprep.subr.mxu0 0.0
  %1807 = vmatpush1.msra.mxu0 %v1559
  %1808 = vmatprep.subr.mxu0 0.0
  %1809 = vmatpush1.msra.mxu0 %v1560
  %1810 = vmatprep.subr.mxu0 0.0
  %1811 = vmatpush1.msra.mxu0 %v1561
  %1812 = vmatprep.subr.mxu0 0.0
  %1813 = vmatpush1.msra.mxu0 %v1562
  %1814 = vmatprep.subr.mxu0 0.0
  %1815 = vmatpush1.msra.mxu0 %v1563
  %1816 = vmatprep.subr.mxu0 0.0
  %1817 = vmatpush1.msra.mxu0 %v1564
  %1818 = vmatprep.subr.mxu0 0.0
  %1819 = vmatpush1.msra.mxu0 %v1565
  %1820 = vmatprep.subr.mxu0 0.0
  %1821 = vmatpush1.msra.mxu0 %v1566
  %1822 = vmatprep.subr.mxu0 0.0
  %1823 = vmatpush1.msra.mxu0 %v1567
  %1824 = vmatprep.subr.mxu0 0.0
  %1825 = vmatpush1.msra.mxu0 0.0
  %1826 = vmatprep.subr.mxu0 0.0
  %1827 = vmatpush1.msra.mxu0 0.0
  %1828 = vmatprep.subr.mxu0 0.0
  %1829 = vmatpush1.msra.mxu0 0.0
  %1830 = vmatprep.subr.mxu0 0.0
  %1831 = vmatpush1.msra.mxu0 0.0
  %1832 = vmatprep.subr.mxu0 0.0
  %1833 = vmatpush1.msra.mxu0 0.0
  %1834 = vmatprep.subr.mxu0 0.0
  %1835 = vmatpush1.msra.mxu0 0.0
  %1836 = vmatprep.subr.mxu0 0.0
  %1837 = vmatpush1.msra.mxu0 0.0
  %1838 = vmatprep.subr.mxu0 0.0
  %1839 = vmatpush1.msra.mxu0 0.0
  %1840 = vmatprep.subr.mxu0 0.0
  %1841 = vmatpush1.msra.mxu0 0.0
  %1842 = vmatprep.subr.mxu0 0.0
  %1843 = vmatpush1.msra.mxu0 0.0
  %1844 = vmatprep.subr.mxu0 0.0
  %1845 = vmatpush1.msra.mxu0 0.0
  %1846 = vmatprep.subr.mxu0 0.0
  %1847 = vmatpush1.msra.mxu0 0.0
  %1848 = vmatprep.subr.mxu0 0.0
  %1849 = vmatpush1.msra.mxu0 0.0
  %1850 = vmatprep.subr.mxu0 0.0
  %1851 = vmatpush1.msra.mxu0 0.0
  %1852 = vmatprep.subr.mxu0 0.0
  %1853 = vmatpush1.msra.mxu0 0.0
  %1854 = vmatprep.subr.mxu0 0.0
  %1855 = vmatpush1.msra.mxu0 0.0
  %1856 = vmatprep.subr.mxu0 0.0
  %1857 = vmatpush1.msra.mxu0 0.0
  %1858 = vmatprep.subr.mxu0 0.0
  %1859 = vmatpush1.msra.mxu0 0.0
  %1860 = vmatprep.subr.mxu0 0.0
  %1861 = vmatpush1.msra.mxu0 0.0
  %1862 = vmatprep.subr.mxu0 0.0
  %1863 = vmatpush1.msra.mxu0 0.0
  %1864 = vmatprep.subr.mxu0 0.0
  %1865 = vmatpush1.msra.mxu0 0.0
  %1866 = vmatprep.subr.mxu0 0.0
  %1867 = vmatpush1.msra.mxu0 0.0
  %1868 = vmatprep.mubr.f32.mxu0 0.0
  %1869 = vmatmul.mubr.f32.gmra.mrb[0].mxu0 %v1802
  %v1870 = vpop.f32.mrb[0].mxu0
  %v1871 = vadd.f32 0.0, %v1870
  %v1872 = vpop.f32.mrb[0].mxu0
  %1873 = vdwg.mxu0
  %v1874 = vxor.u32 %v1871, 2147483648
  %v1875 = vmul.f32 %v1874, 1.442695
  %v1876 = vpow.pop %v1875
  %v1877 = vadd.f32 %v1876, 1.0
  %v1878 = vrcp.pop %v1877
  %v1879 = vmul.f32 1.0, %v1878
  %v1880 = vmul.f32 %v1879, 2.0
  %v1881 = vsub.f32 %v1880, 1.0
  %v1882 = vmul.f32 %v1879, %v1396
  %1884 = vrot.lane.b32.xlu0 %v1881, 64
  %v1885 = vpop.permute.xlu0 %1884
  %v1887 = vmul.f32 %v1879, %v1885
  %1889 = vrot.lane.b32.xlu0 %v1887, 32
  %v1890 = vpop.permute.xlu0 %1889
  %v1892 = vadd.f32 %v1882, %v1890
  %v1893 = vtanh.pop %v1892
  %1895 = vrot.lane.b32.xlu0 %v1893, 64
  %v1896 = vpop.permute.xlu0 %1895
  %v1898 = vmul.f32 %v1879, %v1896
  %1900 = vrot.lane.b32.xlu0 %v1898, 32
  %v1901 = vpop.permute.xlu0 %1900
  %v1902 = vsel %vm66, %v1901, 0
  %1904 = vmatprep.subr.mxu0 0.0
  %1905 = vmatpush1.msra.mxu0 %v1568
  %1906 = vmatprep.subr.mxu0 0.0
  %1907 = vmatpush1.msra.mxu0 %v1569
  %1908 = vmatprep.subr.mxu0 0.0
  %1909 = vmatpush1.msra.mxu0 %v1570
  %1910 = vmatprep.subr.mxu0 0.0
  %1911 = vmatpush1.msra.mxu0 %v1571
  %1912 = vmatprep.subr.mxu0 0.0
  %1913 = vmatpush1.msra.mxu0 0.0
  %1914 = vmatprep.subr.mxu0 0.0
  %1915 = vmatpush1.msra.mxu0 0.0
  %1916 = vmatprep.subr.mxu0 0.0
  %1917 = vmatpush1.msra.mxu0 0.0
  %1918 = vmatprep.subr.mxu0 0.0
  %1919 = vmatpush1.msra.mxu0 0.0
  %1920 = vmatprep.subr.mxu0 0.0
  %1921 = vmatpush1.msra.mxu0 0.0
  %1922 = vmatprep.subr.mxu0 0.0
  %1923 = vmatpush1.msra.mxu0 0.0
  %1924 = vmatprep.subr.mxu0 0.0
  %1925 = vmatpush1.msra.mxu0 0.0
  %1926 = vmatprep.subr.mxu0 0.0
  %1927 = vmatpush1.msra.mxu0 0.0
  %1928 = vmatprep.subr.mxu0 0.0
  %1929 = vmatpush1.msra.mxu0 0.0
  %1930 = vmatprep.subr.mxu0 0.0
  %1931 = vmatpush1.msra.mxu0 0.0
  %1932 = vmatprep.subr.mxu0 0.0
  %1933 = vmatpush1.msra.mxu0 0.0
  %1934 = vmatprep.subr.mxu0 0.0
  %1935 = vmatpush1.msra.mxu0 0.0
  %1936 = vmatprep.subr.mxu0 0.0
  %1937 = vmatpush1.msra.mxu0 0.0
  %1938 = vmatprep.subr.mxu0 0.0
  %1939 = vmatpush1.msra.mxu0 0.0
  %1940 = vmatprep.subr.mxu0 0.0
  %1941 = vmatpush1.msra.mxu0 0.0
  %1942 = vmatprep.subr.mxu0 0.0
  %1943 = vmatpush1.msra.mxu0 0.0
  %1944 = vmatprep.subr.mxu0 0.0
  %1945 = vmatpush1.msra.mxu0 0.0
  %1946 = vmatprep.subr.mxu0 0.0
  %1947 = vmatpush1.msra.mxu0 0.0
  %1948 = vmatprep.subr.mxu0 0.0
  %1949 = vmatpush1.msra.mxu0 0.0
  %1950 = vmatprep.subr.mxu0 0.0
  %1951 = vmatpush1.msra.mxu0 0.0
  %1952 = vmatprep.subr.mxu0 0.0
  %1953 = vmatpush1.msra.mxu0 0.0
  %1954 = vmatprep.subr.mxu0 0.0
  %1955 = vmatpush1.msra.mxu0 0.0
  %1956 = vmatprep.subr.mxu0 0.0
  %1957 = vmatpush1.msra.mxu0 0.0
  %1958 = vmatprep.subr.mxu0 0.0
  %1959 = vmatpush1.msra.mxu0 0.0
  %1960 = vmatprep.subr.mxu0 0.0
  %1961 = vmatpush1.msra.mxu0 0.0
  %1962 = vmatprep.subr.mxu0 0.0
  %1963 = vmatpush1.msra.mxu0 0.0
  %1964 = vmatprep.subr.mxu0 0.0
  %1965 = vmatpush1.msra.mxu0 0.0
  %1966 = vmatprep.subr.mxu0 0.0
  %1967 = vmatpush1.msra.mxu0 0.0
  %1968 = vmatprep.mubr.f32.mxu0 0.0
  %1969 = vmatmul.mubr.f32.gmra.mrb[0].mxu0 %v1902
  %v1970 = vpop.f32.mrb[0].mxu0
  %v1971 = vadd.f32 %v407, %v1970
  %v1972 = vpop.f32.mrb[0].mxu0
  %1973 = vdwg.mxu0
  %v1974 = vsel %vm484, %v1971, -inf
  %1975 = vmax.xlane.f32.xlu0 %v1974
  %v1976 = vpop.xlane.xlu0 %1975
  %v1977 = vsub.f32 %v1971, %v1976
  %v1978 = vmul.f32 %v1977, 1.442695
  %v1979 = vpow.pop %v1978
  %v1980 = vsel %vm484, %v1979, 0.0
  %1981 = vadd.xlane.f32.xlu0 %v1980
  %v1982 = vpop.xlane.xlu0 %1981
  %v1983 = vlog2.pop %v1982
  %v1984 = vmul.f32 %v1983, 0.6931472
  %v1985 = vadd.f32 %v1984, %v1976
  %v1986 = vsub.f32 %v1971, %v1985
  %v1989 = vunpack.c.l.s4 1966171168
  %v1990 = vunpack.c.0.s8 %v1989
  %v1991 = vlaneseq
  %v1992 = vshrl.u32 %v1991, 7
  %v1993 = vsub.s32 %v1990, %v1992
  %v1994 = vrot.slane %v1986, %v1993
  %v1995 = vcombine.high %v1994, %v1994
  %v1997 = vunpack.c.l.s4 1966171168
  %v1998 = vunpack.c.0.s8 %v1997
  %v1999 = vlaneseq
  %v2000 = vshrl.u32 %v1999, 7
  %v2001 = vsub.s32 %v1998, %v2000
  %v2002 = vrot.slane %v1994, %v2001
  %v2004 = vunpack.c.l.s4 1966171168
  %v2005 = vunpack.c.0.s8 %v2004
  %v2006 = vlaneseq
  %v2007 = vshrl.u32 %v2006, 7
  %v2008 = vsub.s32 %v2005, %v2007
  %v2009 = vrot.slane %v1995, %v2008
  %2012 = vst [vmem:[%s9 + $0x3] sm:$0x1] %v2002
  %2013 = vst [vmem:[%s9 + $0x13] sm:$0x1] %v2009
  %v2014 = vlaneseq
  %v2015 = vshrl.u32 %v2014, 7
  %v2016 = vsub.s32 %v37, %v2015
  %v2017 = vrot.slane %v1767, %v2016
  %v2018 = vlaneseq
  %v2019 = vshrl.u32 %v2018, 7
  %v2020 = vsub.s32 %v37, %v2019
  %v2021 = vrot.slane %v1772, %v2020
  %2024 = vst.msk [vmem:[%s10 + $0x3] sm:$0x1] %vm535, %v2017
  %2025 = vst.msk [vmem:[%s10 + $0x13] sm:$0x1] %vm535, %v2021
  %vm2026 = vcmp.eq.f32.partialorder %v1971, %v1976
  %v2027 = vsel %vm2026, %v37, 128
  %v2028 = vsel %vm484, %v2027, 2147483647
  %v2029 = vand.u32 %v2028, 65535
  %v2030 = vshra.s32 %v2028, 16
  %v2031 = vcvt.s32.f32 %v2029
  %v2032 = vcvt.s32.f32 %v2030
  %2033 = vmin.xlane.f32.xlu0 %v2032
  %v2034 = vpop.xlane.xlu0 %2033
  %vm2035 = vcmp.eq.f32.partialorder %v2032, %v2034
  %v2036 = vsel %vm2035, %v2031, inf
  %2037 = vmin.xlane.f32.xlu0 %v2036
  %v2038 = vpop.xlane.xlu0 %2037
  %v2039 = vcvt.f32.s32 %v2038
  %v2040 = vcvt.f32.s32 %v2034
  %v2041 = vshll.u32 %v2040, 16
  %v2042 = vadd.s32 %v2041, %v2039
  %vm2043 = vcmp.eq.s32.totalorder %v37, %v2042
  %v2044 = vsel %vm2043, 1, 0
  %v2045 = vcvt.s32.f32 %v2044
  %v2046 = vld [vmem:[%s0] sm:$0xff]
  %v2047 = vld [vmem:[%s0 + $0x8] sm:$0xff]
  %v2048 = vld [vmem:[%s1] sm:$0xff]
  %v2049 = vld [vmem:[%s1 + $0x8] sm:$0xff]
  %v2050 = vld [vmem:[%s4] sm:$0xff]
  %v2051 = vld [vmem:[%s4 + $0x8] sm:$0xff]
  %v2052 = vld [vmem:[%s4 + $0x10] sm:$0xff]
  %v2053 = vld [vmem:[%s4 + $0x18] sm:$0xff]
  %v2054 = vld [vmem:[%s6] sm:$0xff]
  %v2055 = vld [vmem:[%s6 + $0x8] sm:$0xff]
  %v2056 = vld [vmem:[%s6 + $0x10] sm:$0xff]
  %v2057 = vld [vmem:[%s6 + $0x18] sm:$0xff]
  %v2058 = vld [vmem:[%s6 + $0x20] sm:$0xff]
  %v2059 = vld [vmem:[%s6 + $0x28] sm:$0xff]
  %v2060 = vld [vmem:[%s6 + $0x30] sm:$0xff]
  %v2061 = vld [vmem:[%s6 + $0x38] sm:$0xff]
  %v2062 = vld [vmem:[%s6 + $0x40] sm:$0xff]
  %v2063 = vld [vmem:[%s6 + $0x48] sm:$0xff]
  %v2064 = vld [vmem:[%s7] sm:$0xff]
  %v2065 = vld [vmem:[%s7 + $0x8] sm:$0xff]
  %v2066 = vld [vmem:[%s7 + $0x10] sm:$0xff]
  %v2067 = vld [vmem:[%s7 + $0x18] sm:$0xff]
  %2069 = vrot.lane.b32.xlu0 %v1892, 64
  %v2070 = vpop.permute.xlu0 %2069
  %v2072 = vadd.f32 %v1898, %v2070
  %2074 = vrot.lane.b32.xlu0 %v2072, 32
  %v2075 = vpop.permute.xlu0 %2074
  %v2076 = vsel %vm66, %v2075, 0
  %2078 = vmatprep.subr.mxu0 0.0
  %2079 = vmatpush1.msra.mxu0 %v2050
  %2080 = vmatprep.subr.mxu0 0.0
  %2081 = vmatpush1.msra.mxu0 %v2051
  %2082 = vmatprep.subr.mxu0 0.0
  %2083 = vmatpush1.msra.mxu0 %v2052
  %2084 = vmatprep.subr.mxu0 0.0
  %2085 = vmatpush1.msra.mxu0 %v2053
  %2086 = vmatprep.subr.mxu0 0.0
  %2087 = vmatpush1.msra.mxu0 0.0
  %2088 = vmatprep.subr.mxu0 0.0
  %2089 = vmatpush1.msra.mxu0 0.0
  %2090 = vmatprep.subr.mxu0 0.0
  %2091 = vmatpush1.msra.mxu0 0.0
  %2092 = vmatprep.subr.mxu0 0.0
  %2093 = vmatpush1.msra.mxu0 0.0
  %2094 = vmatprep.subr.mxu0 0.0
  %2095 = vmatpush1.msra.mxu0 0.0
  %2096 = vmatprep.subr.mxu0 0.0
  %2097 = vmatpush1.msra.mxu0 0.0
  %2098 = vmatprep.subr.mxu0 0.0
  %2099 = vmatpush1.msra.mxu0 0.0
  %2100 = vmatprep.subr.mxu0 0.0
  %2101 = vmatpush1.msra.mxu0 0.0
  %2102 = vmatprep.subr.mxu0 0.0
  %2103 = vmatpush1.msra.mxu0 0.0
  %2104 = vmatprep.subr.mxu0 0.0
  %2105 = vmatpush1.msra.mxu0 0.0
  %2106 = vmatprep.subr.mxu0 0.0
  %2107 = vmatpush1.msra.mxu0 0.0
  %2108 = vmatprep.subr.mxu0 0.0
  %2109 = vmatpush1.msra.mxu0 0.0
  %2110 = vmatprep.subr.mxu0 0.0
  %2111 = vmatpush1.msra.mxu0 0.0
  %2112 = vmatprep.subr.mxu0 0.0
  %2113 = vmatpush1.msra.mxu0 0.0
  %2114 = vmatprep.subr.mxu0 0.0
  %2115 = vmatpush1.msra.mxu0 0.0
  %2116 = vmatprep.subr.mxu0 0.0
  %2117 = vmatpush1.msra.mxu0 0.0
  %2118 = vmatprep.subr.mxu0 0.0
  %2119 = vmatpush1.msra.mxu0 0.0
  %2120 = vmatprep.subr.mxu0 0.0
  %2121 = vmatpush1.msra.mxu0 0.0
  %2122 = vmatprep.subr.mxu0 0.0
  %2123 = vmatpush1.msra.mxu0 0.0
  %2124 = vmatprep.subr.mxu0 0.0
  %2125 = vmatpush1.msra.mxu0 0.0
  %2126 = vmatprep.subr.mxu0 0.0
  %2127 = vmatpush1.msra.mxu0 0.0
  %2128 = vmatprep.subr.mxu0 0.0
  %2129 = vmatpush1.msra.mxu0 0.0
  %2130 = vmatprep.subr.mxu0 0.0
  %2131 = vmatpush1.msra.mxu0 0.0
  %2132 = vmatprep.subr.mxu0 0.0
  %2133 = vmatpush1.msra.mxu0 0.0
  %2134 = vmatprep.subr.mxu0 0.0
  %2135 = vmatpush1.msra.mxu0 0.0
  %2136 = vmatprep.subr.mxu0 0.0
  %2137 = vmatpush1.msra.mxu0 0.0
  %2138 = vmatprep.subr.mxu0 0.0
  %2139 = vmatpush1.msra.mxu0 0.0
  %2140 = vmatprep.subr.mxu0 0.0
  %2141 = vmatpush1.msra.mxu0 0.0
  %2142 = vmatprep.mubr.f32.mxu0 0.0
  %2143 = vmatmul.mubr.f32.gmra.mrb[0].mxu0 %v2076
  %v2144 = vpop.f32.mrb[0].mxu0
  %v2145 = vadd.f32 0.0, %v2144
  %v2146 = vpop.f32.mrb[0].mxu0
  %2147 = vdwg.mxu0
  %v2150 = vunpack.c.l.s4 1966171168
  %v2151 = vunpack.c.0.s8 %v2150
  %v2152 = vlaneseq
  %v2153 = vshrl.u32 %v2152, 7
  %v2154 = vsub.s32 %v2151, %v2153
  %v2155 = vrot.slane %v2145, %v2154
  %v2156 = vcombine.high %v2155, %v2155
  %v2158 = vunpack.c.l.s4 1966171168
  %v2159 = vunpack.c.0.s8 %v2158
  %v2160 = vlaneseq
  %v2161 = vshrl.u32 %v2160, 7
  %v2162 = vsub.s32 %v2159, %v2161
  %v2163 = vrot.slane %v2155, %v2162
  %v2165 = vunpack.c.l.s4 1966171168
  %v2166 = vunpack.c.0.s8 %v2165
  %v2167 = vlaneseq
  %v2168 = vshrl.u32 %v2167, 7
  %v2169 = vsub.s32 %v2166, %v2168
  %v2170 = vrot.slane %v2156, %v2169
  %v2171 = vlaneseq
  %v2172 = vshrl.u32 %v2171, 7
  %v2173 = vsub.s32 0, %v2172
  %v2174 = vrot.slane %v2163, %v2173
  %v2175 = vlaneseq
  %v2176 = vshrl.u32 %v2175, 7
  %v2177 = vsub.s32 0, %v2176
  %v2178 = vrot.slane %v2170, %v2177
  %v2181 = vadd.f32 %v2174, %v2048
  %v2182 = vadd.f32 %v2178, %v2049
  %v2183 = vtanh.pop %v2181
  %v2184 = vtanh.pop %v2182
  %v2185 = vmul.f32 %v2183, %v181
  %v2186 = vmul.f32 %v2184, %v181
  %v2187 = vsel %vm66, %v2185, 0.0
  %2188 = vadd.xlane.f32.xlu0 %v2187
  %v2189 = vpop.xlane.xlu0 %2188
  %v2190 = vsel %vm66, %v2186, 0.0
  %2191 = vadd.xlane.f32.xlu0 %v2190
  %v2192 = vpop.xlane.xlu0 %2191
  %v2195 = vlaneseq
  %v2196 = vshrl.u32 %v2195, 7
  %v2197 = vsub.s32 %v37, %v2196
  %v2198 = vrot.slane %v2189, %v2197
  %v2199 = vlaneseq
  %v2200 = vshrl.u32 %v2199, 7
  %v2201 = vsub.s32 %v37, %v2200
  %v2202 = vrot.slane %v2192, %v2201
  %v2203 = vsel %vm201, %v2202, %v2198
  %v2205 = vsel %vm204, %v2203, -inf
  %2206 = vmax.xlane.f32.xlu0 %v2205
  %v2207 = vpop.xlane.xlu0 %2206
  %v2209 = vlaneseq
  %v2210 = vshrl.u32 %v2209, 7
  %v2211 = vsub.s32 0, %v2210
  %v2212 = vrot.slane %v2207, %v2211
  %v2213 = vlaneseq
  %v2214 = vshrl.u32 %v2213, 7
  %v2215 = vsub.s32 1, %v2214
  %v2216 = vrot.slane %v2207, %v2215
  %v2219 = vsub.f32 %v2189, %v2212
  %v2220 = vsub.f32 %v2192, %v2216
  %v2221 = vmul.f32 %v2219, 1.442695
  %v2222 = vpow.pop %v2221
  %v2223 = vmul.f32 %v2220, 1.442695
  %v2224 = vpow.pop %v2223
  %2227 = vset.pattern.permute.xlu0 0
  %2228 = vperm.xlu0 %2227, %v2222
  %v2229 = vpop.permute.xlu0 %2228
  %2230 = vset.pattern.permute.xlu0 0
  %2231 = vperm.xlu0 %2230, %v2224
  %v2232 = vpop.permute.xlu0 %2231
  %v2233 = vlaneseq
  %v2234 = vshrl.u32 %v2233, 7
  %v2235 = vsub.s32 %v37, %v2234
  %v2236 = vrot.slane %v2229, %v2235
  %v2237 = vlaneseq
  %v2238 = vshrl.u32 %v2237, 7
  %v2239 = vsub.s32 %v37, %v2238
  %v2240 = vrot.slane %v2232, %v2239
  %v2241 = vsel %vm201, %v2240, %v2236
  %v2243 = vsel %vm204, %v2241, 0.0
  %2244 = vadd.xlane.f32.xlu0 %v2243
  %v2245 = vpop.xlane.xlu0 %2244
  %v2246 = vrcp.pop %v2245
  %v2248 = vlaneseq
  %v2249 = vshrl.u32 %v2248, 7
  %v2250 = vsub.s32 0, %v2249
  %v2251 = vrot.slane %v2246, %v2250
  %v2252 = vlaneseq
  %v2253 = vshrl.u32 %v2252, 7
  %v2254 = vsub.s32 1, %v2253
  %v2255 = vrot.slane %v2246, %v2254
  %v2258 = vmul.f32 %v2222, %v2251
  %v2259 = vmul.f32 %v2224, %v2255
  %2261 = vset.pattern.permute.xlu0 0
  %2262 = vperm.xlu0 %2261, %v2258
  %v2263 = vpop.permute.xlu0 %2262
  %2266 = vset.pattern.permute.xlu0 0
  %2267 = vperm.xlu0 %2266, %v2259
  %v2268 = vpop.permute.xlu0 %2267
  %v2270 = vmul.f32 %v2263, %v2046
  %v2271 = vmul.f32 %v2268, %v2047
  %v2272 = vsel %vm66, %v2270, 0.0
  %v2273 = vrot.slane %v2272, 4
  %v2274 = vadd.f32 %v2272, %v2273
  %v2275 = vrot.slane %v2274, 2
  %v2276 = vadd.f32 %v2274, %v2275
  %v2277 = vrot.slane %v2276, 1
  %v2278 = vadd.f32 %v2276, %v2277
  %v2279 = vsel %vm66, %v2271, 0.0
  %v2280 = vrot.slane %v2279, 4
  %v2281 = vadd.f32 %v2279, %v2280
  %v2282 = vrot.slane %v2281, 2
  %v2283 = vadd.f32 %v2281, %v2282
  %v2284 = vrot.slane %v2283, 1
  %v2285 = vadd.f32 %v2283, %v2284
  %v2288 = vsel %vm201, %v2285, %v2278
  %2289 = vrot.lane.b32.xlu0 %v2288, 16
  %v2290 = vpop.permute.xlu0 %2289
  %2292 = vrot.lane.b32.xlu0 %v1898, 80
  %v2293 = vpop.permute.xlu0 %2292
  %v2295 = vsel %vm296, %v2045, %v2290
  %v2296 = vsel %vm298, %v2295, %v2293
  %v2298 = vsel %vm300, %v2296, 0
  %2300 = vmatprep.subr.mxu0 0.0
  %2301 = vmatpush1.msra.mxu0 %v2054
  %2302 = vmatprep.subr.mxu0 0.0
  %2303 = vmatpush1.msra.mxu0 %v2055
  %2304 = vmatprep.subr.mxu0 0.0
  %2305 = vmatpush1.msra.mxu0 %v2056
  %2306 = vmatprep.subr.mxu0 0.0
  %2307 = vmatpush1.msra.mxu0 %v2057
  %2308 = vmatprep.subr.mxu0 0.0
  %2309 = vmatpush1.msra.mxu0 %v2058
  %2310 = vmatprep.subr.mxu0 0.0
  %2311 = vmatpush1.msra.mxu0 %v2059
  %2312 = vmatprep.subr.mxu0 0.0
  %2313 = vmatpush1.msra.mxu0 %v2060
  %2314 = vmatprep.subr.mxu0 0.0
  %2315 = vmatpush1.msra.mxu0 %v2061
  %2316 = vmatprep.subr.mxu0 0.0
  %2317 = vmatpush1.msra.mxu0 %v2062
  %2318 = vmatprep.subr.mxu0 0.0
  %2319 = vmatpush1.msra.mxu0 %v2063
  %2320 = vmatprep.subr.mxu0 0.0
  %2321 = vmatpush1.msra.mxu0 0.0
  %2322 = vmatprep.subr.mxu0 0.0
  %2323 = vmatpush1.msra.mxu0 0.0
  %2324 = vmatprep.subr.mxu0 0.0
  %2325 = vmatpush1.msra.mxu0 0.0
  %2326 = vmatprep.subr.mxu0 0.0
  %2327 = vmatpush1.msra.mxu0 0.0
  %2328 = vmatprep.subr.mxu0 0.0
  %2329 = vmatpush1.msra.mxu0 0.0
  %2330 = vmatprep.subr.mxu0 0.0
  %2331 = vmatpush1.msra.mxu0 0.0
  %2332 = vmatprep.subr.mxu0 0.0
  %2333 = vmatpush1.msra.mxu0 0.0
  %2334 = vmatprep.subr.mxu0 0.0
  %2335 = vmatpush1.msra.mxu0 0.0
  %2336 = vmatprep.subr.mxu0 0.0
  %2337 = vmatpush1.msra.mxu0 0.0
  %2338 = vmatprep.subr.mxu0 0.0
  %2339 = vmatpush1.msra.mxu0 0.0
  %2340 = vmatprep.subr.mxu0 0.0
  %2341 = vmatpush1.msra.mxu0 0.0
  %2342 = vmatprep.subr.mxu0 0.0
  %2343 = vmatpush1.msra.mxu0 0.0
  %2344 = vmatprep.subr.mxu0 0.0
  %2345 = vmatpush1.msra.mxu0 0.0
  %2346 = vmatprep.subr.mxu0 0.0
  %2347 = vmatpush1.msra.mxu0 0.0
  %2348 = vmatprep.subr.mxu0 0.0
  %2349 = vmatpush1.msra.mxu0 0.0
  %2350 = vmatprep.subr.mxu0 0.0
  %2351 = vmatpush1.msra.mxu0 0.0
  %2352 = vmatprep.subr.mxu0 0.0
  %2353 = vmatpush1.msra.mxu0 0.0
  %2354 = vmatprep.subr.mxu0 0.0
  %2355 = vmatpush1.msra.mxu0 0.0
  %2356 = vmatprep.subr.mxu0 0.0
  %2357 = vmatpush1.msra.mxu0 0.0
  %2358 = vmatprep.subr.mxu0 0.0
  %2359 = vmatpush1.msra.mxu0 0.0
  %2360 = vmatprep.subr.mxu0 0.0
  %2361 = vmatpush1.msra.mxu0 0.0
  %2362 = vmatprep.subr.mxu0 0.0
  %2363 = vmatpush1.msra.mxu0 0.0
  %2364 = vmatprep.mubr.f32.mxu0 0.0
  %2365 = vmatmul.mubr.f32.gmra.mrb[0].mxu0 %v2298
  %v2366 = vpop.f32.mrb[0].mxu0
  %v2367 = vadd.f32 0.0, %v2366
  %v2368 = vpop.f32.mrb[0].mxu0
  %2369 = vdwg.mxu0
  %v2370 = vxor.u32 %v2367, 2147483648
  %v2371 = vmul.f32 %v2370, 1.442695
  %v2372 = vpow.pop %v2371
  %v2373 = vadd.f32 %v2372, 1.0
  %v2374 = vrcp.pop %v2373
  %v2375 = vmul.f32 1.0, %v2374
  %v2376 = vmul.f32 %v2375, 2.0
  %v2377 = vsub.f32 %v2376, 1.0
  %v2378 = vmul.f32 %v2375, %v1892
  %2380 = vrot.lane.b32.xlu0 %v2377, 64
  %v2381 = vpop.permute.xlu0 %2380
  %v2383 = vmul.f32 %v2375, %v2381
  %2385 = vrot.lane.b32.xlu0 %v2383, 32
  %v2386 = vpop.permute.xlu0 %2385
  %v2388 = vadd.f32 %v2378, %v2386
  %v2389 = vtanh.pop %v2388
  %2391 = vrot.lane.b32.xlu0 %v2389, 64
  %v2392 = vpop.permute.xlu0 %2391
  %v2394 = vmul.f32 %v2375, %v2392
  %2396 = vrot.lane.b32.xlu0 %v2394, 32
  %v2397 = vpop.permute.xlu0 %2396
  %v2398 = vsel %vm66, %v2397, 0
  %2400 = vmatprep.subr.mxu0 0.0
  %2401 = vmatpush1.msra.mxu0 %v2064
  %2402 = vmatprep.subr.mxu0 0.0
  %2403 = vmatpush1.msra.mxu0 %v2065
  %2404 = vmatprep.subr.mxu0 0.0
  %2405 = vmatpush1.msra.mxu0 %v2066
  %2406 = vmatprep.subr.mxu0 0.0
  %2407 = vmatpush1.msra.mxu0 %v2067
  %2408 = vmatprep.subr.mxu0 0.0
  %2409 = vmatpush1.msra.mxu0 0.0
  %2410 = vmatprep.subr.mxu0 0.0
  %2411 = vmatpush1.msra.mxu0 0.0
  %2412 = vmatprep.subr.mxu0 0.0
  %2413 = vmatpush1.msra.mxu0 0.0
  %2414 = vmatprep.subr.mxu0 0.0
  %2415 = vmatpush1.msra.mxu0 0.0
  %2416 = vmatprep.subr.mxu0 0.0
  %2417 = vmatpush1.msra.mxu0 0.0
  %2418 = vmatprep.subr.mxu0 0.0
  %2419 = vmatpush1.msra.mxu0 0.0
  %2420 = vmatprep.subr.mxu0 0.0
  %2421 = vmatpush1.msra.mxu0 0.0
  %2422 = vmatprep.subr.mxu0 0.0
  %2423 = vmatpush1.msra.mxu0 0.0
  %2424 = vmatprep.subr.mxu0 0.0
  %2425 = vmatpush1.msra.mxu0 0.0
  %2426 = vmatprep.subr.mxu0 0.0
  %2427 = vmatpush1.msra.mxu0 0.0
  %2428 = vmatprep.subr.mxu0 0.0
  %2429 = vmatpush1.msra.mxu0 0.0
  %2430 = vmatprep.subr.mxu0 0.0
  %2431 = vmatpush1.msra.mxu0 0.0
  %2432 = vmatprep.subr.mxu0 0.0
  %2433 = vmatpush1.msra.mxu0 0.0
  %2434 = vmatprep.subr.mxu0 0.0
  %2435 = vmatpush1.msra.mxu0 0.0
  %2436 = vmatprep.subr.mxu0 0.0
  %2437 = vmatpush1.msra.mxu0 0.0
  %2438 = vmatprep.subr.mxu0 0.0
  %2439 = vmatpush1.msra.mxu0 0.0
  %2440 = vmatprep.subr.mxu0 0.0
  %2441 = vmatpush1.msra.mxu0 0.0
  %2442 = vmatprep.subr.mxu0 0.0
  %2443 = vmatpush1.msra.mxu0 0.0
  %2444 = vmatprep.subr.mxu0 0.0
  %2445 = vmatpush1.msra.mxu0 0.0
  %2446 = vmatprep.subr.mxu0 0.0
  %2447 = vmatpush1.msra.mxu0 0.0
  %2448 = vmatprep.subr.mxu0 0.0
  %2449 = vmatpush1.msra.mxu0 0.0
  %2450 = vmatprep.subr.mxu0 0.0
  %2451 = vmatpush1.msra.mxu0 0.0
  %2452 = vmatprep.subr.mxu0 0.0
  %2453 = vmatpush1.msra.mxu0 0.0
  %2454 = vmatprep.subr.mxu0 0.0
  %2455 = vmatpush1.msra.mxu0 0.0
  %2456 = vmatprep.subr.mxu0 0.0
  %2457 = vmatpush1.msra.mxu0 0.0
  %2458 = vmatprep.subr.mxu0 0.0
  %2459 = vmatpush1.msra.mxu0 0.0
  %2460 = vmatprep.subr.mxu0 0.0
  %2461 = vmatpush1.msra.mxu0 0.0
  %2462 = vmatprep.subr.mxu0 0.0
  %2463 = vmatpush1.msra.mxu0 0.0
  %2464 = vmatprep.mubr.f32.mxu0 0.0
  %2465 = vmatmul.mubr.f32.gmra.mrb[0].mxu0 %v2398
  %v2466 = vpop.f32.mrb[0].mxu0
  %v2467 = vadd.f32 %v407, %v2466
  %v2468 = vpop.f32.mrb[0].mxu0
  %2469 = vdwg.mxu0
  %v2470 = vsel %vm484, %v2467, -inf
  %2471 = vmax.xlane.f32.xlu0 %v2470
  %v2472 = vpop.xlane.xlu0 %2471
  %v2473 = vsub.f32 %v2467, %v2472
  %v2474 = vmul.f32 %v2473, 1.442695
  %v2475 = vpow.pop %v2474
  %v2476 = vsel %vm484, %v2475, 0.0
  %2477 = vadd.xlane.f32.xlu0 %v2476
  %v2478 = vpop.xlane.xlu0 %2477
  %v2479 = vlog2.pop %v2478
  %v2480 = vmul.f32 %v2479, 0.6931472
  %v2481 = vadd.f32 %v2480, %v2472
  %v2482 = vsub.f32 %v2467, %v2481
  %v2485 = vunpack.c.l.s4 1966171168
  %v2486 = vunpack.c.0.s8 %v2485
  %v2487 = vlaneseq
  %v2488 = vshrl.u32 %v2487, 7
  %v2489 = vsub.s32 %v2486, %v2488
  %v2490 = vrot.slane %v2482, %v2489
  %v2491 = vcombine.high %v2490, %v2490
  %v2493 = vunpack.c.l.s4 1966171168
  %v2494 = vunpack.c.0.s8 %v2493
  %v2495 = vlaneseq
  %v2496 = vshrl.u32 %v2495, 7
  %v2497 = vsub.s32 %v2494, %v2496
  %v2498 = vrot.slane %v2490, %v2497
  %v2500 = vunpack.c.l.s4 1966171168
  %v2501 = vunpack.c.0.s8 %v2500
  %v2502 = vlaneseq
  %v2503 = vshrl.u32 %v2502, 7
  %v2504 = vsub.s32 %v2501, %v2503
  %v2505 = vrot.slane %v2491, %v2504
  %2508 = vst [vmem:[%s9 + $0x4] sm:$0x1] %v2498
  %2509 = vst [vmem:[%s9 + $0x14] sm:$0x1] %v2505
  %v2510 = vlaneseq
  %v2511 = vshrl.u32 %v2510, 7
  %v2512 = vsub.s32 %v37, %v2511
  %v2513 = vrot.slane %v2263, %v2512
  %v2514 = vlaneseq
  %v2515 = vshrl.u32 %v2514, 7
  %v2516 = vsub.s32 %v37, %v2515
  %v2517 = vrot.slane %v2268, %v2516
  %2520 = vst.msk [vmem:[%s10 + $0x4] sm:$0x1] %vm535, %v2513
  %2521 = vst.msk [vmem:[%s10 + $0x14] sm:$0x1] %vm535, %v2517
  %vm2522 = vcmp.eq.f32.partialorder %v2467, %v2472
  %v2523 = vsel %vm2522, %v37, 128
  %v2524 = vsel %vm484, %v2523, 2147483647
  %v2525 = vand.u32 %v2524, 65535
  %v2526 = vshra.s32 %v2524, 16
  %v2527 = vcvt.s32.f32 %v2525
  %v2528 = vcvt.s32.f32 %v2526
  %2529 = vmin.xlane.f32.xlu0 %v2528
  %v2530 = vpop.xlane.xlu0 %2529
  %vm2531 = vcmp.eq.f32.partialorder %v2528, %v2530
  %v2532 = vsel %vm2531, %v2527, inf
  %2533 = vmin.xlane.f32.xlu0 %v2532
  %v2534 = vpop.xlane.xlu0 %2533
  %v2535 = vcvt.f32.s32 %v2534
  %v2536 = vcvt.f32.s32 %v2530
  %v2537 = vshll.u32 %v2536, 16
  %v2538 = vadd.s32 %v2537, %v2535
  %vm2539 = vcmp.eq.s32.totalorder %v37, %v2538
  %v2540 = vsel %vm2539, 1, 0
  %v2541 = vcvt.s32.f32 %v2540
  %v2542 = vld [vmem:[%s0] sm:$0xff]
  %v2543 = vld [vmem:[%s0 + $0x8] sm:$0xff]
  %v2544 = vld [vmem:[%s1] sm:$0xff]
  %v2545 = vld [vmem:[%s1 + $0x8] sm:$0xff]
  %v2546 = vld [vmem:[%s4] sm:$0xff]
  %v2547 = vld [vmem:[%s4 + $0x8] sm:$0xff]
  %v2548 = vld [vmem:[%s4 + $0x10] sm:$0xff]
  %v2549 = vld [vmem:[%s4 + $0x18] sm:$0xff]
  %v2550 = vld [vmem:[%s6] sm:$0xff]
  %v2551 = vld [vmem:[%s6 + $0x8] sm:$0xff]
  %v2552 = vld [vmem:[%s6 + $0x10] sm:$0xff]
  %v2553 = vld [vmem:[%s6 + $0x18] sm:$0xff]
  %v2554 = vld [vmem:[%s6 + $0x20] sm:$0xff]
  %v2555 = vld [vmem:[%s6 + $0x28] sm:$0xff]
  %v2556 = vld [vmem:[%s6 + $0x30] sm:$0xff]
  %v2557 = vld [vmem:[%s6 + $0x38] sm:$0xff]
  %v2558 = vld [vmem:[%s6 + $0x40] sm:$0xff]
  %v2559 = vld [vmem:[%s6 + $0x48] sm:$0xff]
  %v2560 = vld [vmem:[%s7] sm:$0xff]
  %v2561 = vld [vmem:[%s7 + $0x8] sm:$0xff]
  %v2562 = vld [vmem:[%s7 + $0x10] sm:$0xff]
  %v2563 = vld [vmem:[%s7 + $0x18] sm:$0xff]
  %2565 = vrot.lane.b32.xlu0 %v2388, 64
  %v2566 = vpop.permute.xlu0 %2565
  %v2568 = vadd.f32 %v2394, %v2566
  %2570 = vrot.lane.b32.xlu0 %v2568, 32
  %v2571 = vpop.permute.xlu0 %2570
  %v2572 = vsel %vm66, %v2571, 0
  %2574 = vmatprep.subr.mxu0 0.0
  %2575 = vmatpush1.msra.mxu0 %v2546
  %2576 = vmatprep.subr.mxu0 0.0
  %2577 = vmatpush1.msra.mxu0 %v2547
  %2578 = vmatprep.subr.mxu0 0.0
  %2579 = vmatpush1.msra.mxu0 %v2548
  %2580 = vmatprep.subr.mxu0 0.0
  %2581 = vmatpush1.msra.mxu0 %v2549
  %2582 = vmatprep.subr.mxu0 0.0
  %2583 = vmatpush1.msra.mxu0 0.0
  %2584 = vmatprep.subr.mxu0 0.0
  %2585 = vmatpush1.msra.mxu0 0.0
  %2586 = vmatprep.subr.mxu0 0.0
  %2587 = vmatpush1.msra.mxu0 0.0
  %2588 = vmatprep.subr.mxu0 0.0
  %2589 = vmatpush1.msra.mxu0 0.0
  %2590 = vmatprep.subr.mxu0 0.0
  %2591 = vmatpush1.msra.mxu0 0.0
  %2592 = vmatprep.subr.mxu0 0.0
  %2593 = vmatpush1.msra.mxu0 0.0
  %2594 = vmatprep.subr.mxu0 0.0
  %2595 = vmatpush1.msra.mxu0 0.0
  %2596 = vmatprep.subr.mxu0 0.0
  %2597 = vmatpush1.msra.mxu0 0.0
  %2598 = vmatprep.subr.mxu0 0.0
  %2599 = vmatpush1.msra.mxu0 0.0
  %2600 = vmatprep.subr.mxu0 0.0
  %2601 = vmatpush1.msra.mxu0 0.0
  %2602 = vmatprep.subr.mxu0 0.0
  %2603 = vmatpush1.msra.mxu0 0.0
  %2604 = vmatprep.subr.mxu0 0.0
  %2605 = vmatpush1.msra.mxu0 0.0
  %2606 = vmatprep.subr.mxu0 0.0
  %2607 = vmatpush1.msra.mxu0 0.0
  %2608 = vmatprep.subr.mxu0 0.0
  %2609 = vmatpush1.msra.mxu0 0.0
  %2610 = vmatprep.subr.mxu0 0.0
  %2611 = vmatpush1.msra.mxu0 0.0
  %2612 = vmatprep.subr.mxu0 0.0
  %2613 = vmatpush1.msra.mxu0 0.0
  %2614 = vmatprep.subr.mxu0 0.0
  %2615 = vmatpush1.msra.mxu0 0.0
  %2616 = vmatprep.subr.mxu0 0.0
  %2617 = vmatpush1.msra.mxu0 0.0
  %2618 = vmatprep.subr.mxu0 0.0
  %2619 = vmatpush1.msra.mxu0 0.0
  %2620 = vmatprep.subr.mxu0 0.0
  %2621 = vmatpush1.msra.mxu0 0.0
  %2622 = vmatprep.subr.mxu0 0.0
  %2623 = vmatpush1.msra.mxu0 0.0
  %2624 = vmatprep.subr.mxu0 0.0
  %2625 = vmatpush1.msra.mxu0 0.0
  %2626 = vmatprep.subr.mxu0 0.0
  %2627 = vmatpush1.msra.mxu0 0.0
  %2628 = vmatprep.subr.mxu0 0.0
  %2629 = vmatpush1.msra.mxu0 0.0
  %2630 = vmatprep.subr.mxu0 0.0
  %2631 = vmatpush1.msra.mxu0 0.0
  %2632 = vmatprep.subr.mxu0 0.0
  %2633 = vmatpush1.msra.mxu0 0.0
  %2634 = vmatprep.subr.mxu0 0.0
  %2635 = vmatpush1.msra.mxu0 0.0
  %2636 = vmatprep.subr.mxu0 0.0
  %2637 = vmatpush1.msra.mxu0 0.0
  %2638 = vmatprep.mubr.f32.mxu0 0.0
  %2639 = vmatmul.mubr.f32.gmra.mrb[0].mxu0 %v2572
  %v2640 = vpop.f32.mrb[0].mxu0
  %v2641 = vadd.f32 0.0, %v2640
  %v2642 = vpop.f32.mrb[0].mxu0
  %2643 = vdwg.mxu0
  %v2646 = vunpack.c.l.s4 1966171168
  %v2647 = vunpack.c.0.s8 %v2646
  %v2648 = vlaneseq
  %v2649 = vshrl.u32 %v2648, 7
  %v2650 = vsub.s32 %v2647, %v2649
  %v2651 = vrot.slane %v2641, %v2650
  %v2652 = vcombine.high %v2651, %v2651
  %v2654 = vunpack.c.l.s4 1966171168
  %v2655 = vunpack.c.0.s8 %v2654
  %v2656 = vlaneseq
  %v2657 = vshrl.u32 %v2656, 7
  %v2658 = vsub.s32 %v2655, %v2657
  %v2659 = vrot.slane %v2651, %v2658
  %v2661 = vunpack.c.l.s4 1966171168
  %v2662 = vunpack.c.0.s8 %v2661
  %v2663 = vlaneseq
  %v2664 = vshrl.u32 %v2663, 7
  %v2665 = vsub.s32 %v2662, %v2664
  %v2666 = vrot.slane %v2652, %v2665
  %v2667 = vlaneseq
  %v2668 = vshrl.u32 %v2667, 7
  %v2669 = vsub.s32 0, %v2668
  %v2670 = vrot.slane %v2659, %v2669
  %v2671 = vlaneseq
  %v2672 = vshrl.u32 %v2671, 7
  %v2673 = vsub.s32 0, %v2672
  %v2674 = vrot.slane %v2666, %v2673
  %v2677 = vadd.f32 %v2670, %v2544
  %v2678 = vadd.f32 %v2674, %v2545
  %v2679 = vtanh.pop %v2677
  %v2680 = vtanh.pop %v2678
  %v2681 = vmul.f32 %v2679, %v181
  %v2682 = vmul.f32 %v2680, %v181
  %v2683 = vsel %vm66, %v2681, 0.0
  %2684 = vadd.xlane.f32.xlu0 %v2683
  %v2685 = vpop.xlane.xlu0 %2684
  %v2686 = vsel %vm66, %v2682, 0.0
  %2687 = vadd.xlane.f32.xlu0 %v2686
  %v2688 = vpop.xlane.xlu0 %2687
  %v2691 = vlaneseq
  %v2692 = vshrl.u32 %v2691, 7
  %v2693 = vsub.s32 %v37, %v2692
  %v2694 = vrot.slane %v2685, %v2693
  %v2695 = vlaneseq
  %v2696 = vshrl.u32 %v2695, 7
  %v2697 = vsub.s32 %v37, %v2696
  %v2698 = vrot.slane %v2688, %v2697
  %v2699 = vsel %vm201, %v2698, %v2694
  %v2701 = vsel %vm204, %v2699, -inf
  %2702 = vmax.xlane.f32.xlu0 %v2701
  %v2703 = vpop.xlane.xlu0 %2702
  %v2705 = vlaneseq
  %v2706 = vshrl.u32 %v2705, 7
  %v2707 = vsub.s32 0, %v2706
  %v2708 = vrot.slane %v2703, %v2707
  %v2709 = vlaneseq
  %v2710 = vshrl.u32 %v2709, 7
  %v2711 = vsub.s32 1, %v2710
  %v2712 = vrot.slane %v2703, %v2711
  %v2715 = vsub.f32 %v2685, %v2708
  %v2716 = vsub.f32 %v2688, %v2712
  %v2717 = vmul.f32 %v2715, 1.442695
  %v2718 = vpow.pop %v2717
  %v2719 = vmul.f32 %v2716, 1.442695
  %v2720 = vpow.pop %v2719
  %2723 = vset.pattern.permute.xlu0 0
  %2724 = vperm.xlu0 %2723, %v2718
  %v2725 = vpop.permute.xlu0 %2724
  %2726 = vset.pattern.permute.xlu0 0
  %2727 = vperm.xlu0 %2726, %v2720
  %v2728 = vpop.permute.xlu0 %2727
  %v2729 = vlaneseq
  %v2730 = vshrl.u32 %v2729, 7
  %v2731 = vsub.s32 %v37, %v2730
  %v2732 = vrot.slane %v2725, %v2731
  %v2733 = vlaneseq
  %v2734 = vshrl.u32 %v2733, 7
  %v2735 = vsub.s32 %v37, %v2734
  %v2736 = vrot.slane %v2728, %v2735
  %v2737 = vsel %vm201, %v2736, %v2732
  %v2739 = vsel %vm204, %v2737, 0.0
  %2740 = vadd.xlane.f32.xlu0 %v2739
  %v2741 = vpop.xlane.xlu0 %2740
  %v2742 = vrcp.pop %v2741
  %v2744 = vlaneseq
  %v2745 = vshrl.u32 %v2744, 7
  %v2746 = vsub.s32 0, %v2745
  %v2747 = vrot.slane %v2742, %v2746
  %v2748 = vlaneseq
  %v2749 = vshrl.u32 %v2748, 7
  %v2750 = vsub.s32 1, %v2749
  %v2751 = vrot.slane %v2742, %v2750
  %v2754 = vmul.f32 %v2718, %v2747
  %v2755 = vmul.f32 %v2720, %v2751
  %2757 = vset.pattern.permute.xlu0 0
  %2758 = vperm.xlu0 %2757, %v2754
  %v2759 = vpop.permute.xlu0 %2758
  %2762 = vset.pattern.permute.xlu0 0
  %2763 = vperm.xlu0 %2762, %v2755
  %v2764 = vpop.permute.xlu0 %2763
  %v2766 = vmul.f32 %v2759, %v2542
  %v2767 = vmul.f32 %v2764, %v2543
  %v2768 = vsel %vm66, %v2766, 0.0
  %v2769 = vrot.slane %v2768, 4
  %v2770 = vadd.f32 %v2768, %v2769
  %v2771 = vrot.slane %v2770, 2
  %v2772 = vadd.f32 %v2770, %v2771
  %v2773 = vrot.slane %v2772, 1
  %v2774 = vadd.f32 %v2772, %v2773
  %v2775 = vsel %vm66, %v2767, 0.0
  %v2776 = vrot.slane %v2775, 4
  %v2777 = vadd.f32 %v2775, %v2776
  %v2778 = vrot.slane %v2777, 2
  %v2779 = vadd.f32 %v2777, %v2778
  %v2780 = vrot.slane %v2779, 1
  %v2781 = vadd.f32 %v2779, %v2780
  %v2784 = vsel %vm201, %v2781, %v2774
  %2785 = vrot.lane.b32.xlu0 %v2784, 16
  %v2786 = vpop.permute.xlu0 %2785
  %2788 = vrot.lane.b32.xlu0 %v2394, 80
  %v2789 = vpop.permute.xlu0 %2788
  %v2791 = vsel %vm296, %v2541, %v2786
  %v2792 = vsel %vm298, %v2791, %v2789
  %v2794 = vsel %vm300, %v2792, 0
  %2796 = vmatprep.subr.mxu0 0.0
  %2797 = vmatpush1.msra.mxu0 %v2550
  %2798 = vmatprep.subr.mxu0 0.0
  %2799 = vmatpush1.msra.mxu0 %v2551
  %2800 = vmatprep.subr.mxu0 0.0
  %2801 = vmatpush1.msra.mxu0 %v2552
  %2802 = vmatprep.subr.mxu0 0.0
  %2803 = vmatpush1.msra.mxu0 %v2553
  %2804 = vmatprep.subr.mxu0 0.0
  %2805 = vmatpush1.msra.mxu0 %v2554
  %2806 = vmatprep.subr.mxu0 0.0
  %2807 = vmatpush1.msra.mxu0 %v2555
  %2808 = vmatprep.subr.mxu0 0.0
  %2809 = vmatpush1.msra.mxu0 %v2556
  %2810 = vmatprep.subr.mxu0 0.0
  %2811 = vmatpush1.msra.mxu0 %v2557
  %2812 = vmatprep.subr.mxu0 0.0
  %2813 = vmatpush1.msra.mxu0 %v2558
  %2814 = vmatprep.subr.mxu0 0.0
  %2815 = vmatpush1.msra.mxu0 %v2559
  %2816 = vmatprep.subr.mxu0 0.0
  %2817 = vmatpush1.msra.mxu0 0.0
  %2818 = vmatprep.subr.mxu0 0.0
  %2819 = vmatpush1.msra.mxu0 0.0
  %2820 = vmatprep.subr.mxu0 0.0
  %2821 = vmatpush1.msra.mxu0 0.0
  %2822 = vmatprep.subr.mxu0 0.0
  %2823 = vmatpush1.msra.mxu0 0.0
  %2824 = vmatprep.subr.mxu0 0.0
  %2825 = vmatpush1.msra.mxu0 0.0
  %2826 = vmatprep.subr.mxu0 0.0
  %2827 = vmatpush1.msra.mxu0 0.0
  %2828 = vmatprep.subr.mxu0 0.0
  %2829 = vmatpush1.msra.mxu0 0.0
  %2830 = vmatprep.subr.mxu0 0.0
  %2831 = vmatpush1.msra.mxu0 0.0
  %2832 = vmatprep.subr.mxu0 0.0
  %2833 = vmatpush1.msra.mxu0 0.0
  %2834 = vmatprep.subr.mxu0 0.0
  %2835 = vmatpush1.msra.mxu0 0.0
  %2836 = vmatprep.subr.mxu0 0.0
  %2837 = vmatpush1.msra.mxu0 0.0
  %2838 = vmatprep.subr.mxu0 0.0
  %2839 = vmatpush1.msra.mxu0 0.0
  %2840 = vmatprep.subr.mxu0 0.0
  %2841 = vmatpush1.msra.mxu0 0.0
  %2842 = vmatprep.subr.mxu0 0.0
  %2843 = vmatpush1.msra.mxu0 0.0
  %2844 = vmatprep.subr.mxu0 0.0
  %2845 = vmatpush1.msra.mxu0 0.0
  %2846 = vmatprep.subr.mxu0 0.0
  %2847 = vmatpush1.msra.mxu0 0.0
  %2848 = vmatprep.subr.mxu0 0.0
  %2849 = vmatpush1.msra.mxu0 0.0
  %2850 = vmatprep.subr.mxu0 0.0
  %2851 = vmatpush1.msra.mxu0 0.0
  %2852 = vmatprep.subr.mxu0 0.0
  %2853 = vmatpush1.msra.mxu0 0.0
  %2854 = vmatprep.subr.mxu0 0.0
  %2855 = vmatpush1.msra.mxu0 0.0
  %2856 = vmatprep.subr.mxu0 0.0
  %2857 = vmatpush1.msra.mxu0 0.0
  %2858 = vmatprep.subr.mxu0 0.0
  %2859 = vmatpush1.msra.mxu0 0.0
  %2860 = vmatprep.mubr.f32.mxu0 0.0
  %2861 = vmatmul.mubr.f32.gmra.mrb[0].mxu0 %v2794
  %v2862 = vpop.f32.mrb[0].mxu0
  %v2863 = vadd.f32 0.0, %v2862
  %v2864 = vpop.f32.mrb[0].mxu0
  %2865 = vdwg.mxu0
  %v2866 = vxor.u32 %v2863, 2147483648
  %v2867 = vmul.f32 %v2866, 1.442695
  %v2868 = vpow.pop %v2867
  %v2869 = vadd.f32 %v2868, 1.0
  %v2870 = vrcp.pop %v2869
  %v2871 = vmul.f32 1.0, %v2870
  %v2872 = vmul.f32 %v2871, 2.0
  %v2873 = vsub.f32 %v2872, 1.0
  %v2874 = vmul.f32 %v2871, %v2388
  %2876 = vrot.lane.b32.xlu0 %v2873, 64
  %v2877 = vpop.permute.xlu0 %2876
  %v2879 = vmul.f32 %v2871, %v2877
  %2881 = vrot.lane.b32.xlu0 %v2879, 32
  %v2882 = vpop.permute.xlu0 %2881
  %v2884 = vadd.f32 %v2874, %v2882
  %v2885 = vtanh.pop %v2884
  %2887 = vrot.lane.b32.xlu0 %v2885, 64
  %v2888 = vpop.permute.xlu0 %2887
  %v2890 = vmul.f32 %v2871, %v2888
  %2892 = vrot.lane.b32.xlu0 %v2890, 32
  %v2893 = vpop.permute.xlu0 %2892
  %v2894 = vsel %vm66, %v2893, 0
  %2896 = vmatprep.subr.mxu0 0.0
  %2897 = vmatpush1.msra.mxu0 %v2560
  %2898 = vmatprep.subr.mxu0 0.0
  %2899 = vmatpush1.msra.mxu0 %v2561
  %2900 = vmatprep.subr.mxu0 0.0
  %2901 = vmatpush1.msra.mxu0 %v2562
  %2902 = vmatprep.subr.mxu0 0.0
  %2903 = vmatpush1.msra.mxu0 %v2563
  %2904 = vmatprep.subr.mxu0 0.0
  %2905 = vmatpush1.msra.mxu0 0.0
  %2906 = vmatprep.subr.mxu0 0.0
  %2907 = vmatpush1.msra.mxu0 0.0
  %2908 = vmatprep.subr.mxu0 0.0
  %2909 = vmatpush1.msra.mxu0 0.0
  %2910 = vmatprep.subr.mxu0 0.0
  %2911 = vmatpush1.msra.mxu0 0.0
  %2912 = vmatprep.subr.mxu0 0.0
  %2913 = vmatpush1.msra.mxu0 0.0
  %2914 = vmatprep.subr.mxu0 0.0
  %2915 = vmatpush1.msra.mxu0 0.0
  %2916 = vmatprep.subr.mxu0 0.0
  %2917 = vmatpush1.msra.mxu0 0.0
  %2918 = vmatprep.subr.mxu0 0.0
  %2919 = vmatpush1.msra.mxu0 0.0
  %2920 = vmatprep.subr.mxu0 0.0
  %2921 = vmatpush1.msra.mxu0 0.0
  %2922 = vmatprep.subr.mxu0 0.0
  %2923 = vmatpush1.msra.mxu0 0.0
  %2924 = vmatprep.subr.mxu0 0.0
  %2925 = vmatpush1.msra.mxu0 0.0
  %2926 = vmatprep.subr.mxu0 0.0
  %2927 = vmatpush1.msra.mxu0 0.0
  %2928 = vmatprep.subr.mxu0 0.0
  %2929 = vmatpush1.msra.mxu0 0.0
  %2930 = vmatprep.subr.mxu0 0.0
  %2931 = vmatpush1.msra.mxu0 0.0
  %2932 = vmatprep.subr.mxu0 0.0
  %2933 = vmatpush1.msra.mxu0 0.0
  %2934 = vmatprep.subr.mxu0 0.0
  %2935 = vmatpush1.msra.mxu0 0.0
  %2936 = vmatprep.subr.mxu0 0.0
  %2937 = vmatpush1.msra.mxu0 0.0
  %2938 = vmatprep.subr.mxu0 0.0
  %2939 = vmatpush1.msra.mxu0 0.0
  %2940 = vmatprep.subr.mxu0 0.0
  %2941 = vmatpush1.msra.mxu0 0.0
  %2942 = vmatprep.subr.mxu0 0.0
  %2943 = vmatpush1.msra.mxu0 0.0
  %2944 = vmatprep.subr.mxu0 0.0
  %2945 = vmatpush1.msra.mxu0 0.0
  %2946 = vmatprep.subr.mxu0 0.0
  %2947 = vmatpush1.msra.mxu0 0.0
  %2948 = vmatprep.subr.mxu0 0.0
  %2949 = vmatpush1.msra.mxu0 0.0
  %2950 = vmatprep.subr.mxu0 0.0
  %2951 = vmatpush1.msra.mxu0 0.0
  %2952 = vmatprep.subr.mxu0 0.0
  %2953 = vmatpush1.msra.mxu0 0.0
  %2954 = vmatprep.subr.mxu0 0.0
  %2955 = vmatpush1.msra.mxu0 0.0
  %2956 = vmatprep.subr.mxu0 0.0
  %2957 = vmatpush1.msra.mxu0 0.0
  %2958 = vmatprep.subr.mxu0 0.0
  %2959 = vmatpush1.msra.mxu0 0.0
  %2960 = vmatprep.mubr.f32.mxu0 0.0
  %2961 = vmatmul.mubr.f32.gmra.mrb[0].mxu0 %v2894
  %v2962 = vpop.f32.mrb[0].mxu0
  %v2963 = vadd.f32 %v407, %v2962
  %v2964 = vpop.f32.mrb[0].mxu0
  %2965 = vdwg.mxu0
  %v2966 = vsel %vm484, %v2963, -inf
  %2967 = vmax.xlane.f32.xlu0 %v2966
  %v2968 = vpop.xlane.xlu0 %2967
  %v2969 = vsub.f32 %v2963, %v2968
  %v2970 = vmul.f32 %v2969, 1.442695
  %v2971 = vpow.pop %v2970
  %v2972 = vsel %vm484, %v2971, 0.0
  %2973 = vadd.xlane.f32.xlu0 %v2972
  %v2974 = vpop.xlane.xlu0 %2973
  %v2975 = vlog2.pop %v2974
  %v2976 = vmul.f32 %v2975, 0.6931472
  %v2977 = vadd.f32 %v2976, %v2968
  %v2978 = vsub.f32 %v2963, %v2977
  %v2981 = vunpack.c.l.s4 1966171168
  %v2982 = vunpack.c.0.s8 %v2981
  %v2983 = vlaneseq
  %v2984 = vshrl.u32 %v2983, 7
  %v2985 = vsub.s32 %v2982, %v2984
  %v2986 = vrot.slane %v2978, %v2985
  %v2987 = vcombine.high %v2986, %v2986
  %v2989 = vunpack.c.l.s4 1966171168
  %v2990 = vunpack.c.0.s8 %v2989
  %v2991 = vlaneseq
  %v2992 = vshrl.u32 %v2991, 7
  %v2993 = vsub.s32 %v2990, %v2992
  %v2994 = vrot.slane %v2986, %v2993
  %v2996 = vunpack.c.l.s4 1966171168
  %v2997 = vunpack.c.0.s8 %v2996
  %v2998 = vlaneseq
  %v2999 = vshrl.u32 %v2998, 7
  %v3000 = vsub.s32 %v2997, %v2999
  %v3001 = vrot.slane %v2987, %v3000
  %3004 = vst [vmem:[%s9 + $0x5] sm:$0x1] %v2994
  %3005 = vst [vmem:[%s9 + $0x15] sm:$0x1] %v3001
  %v3006 = vlaneseq
  %v3007 = vshrl.u32 %v3006, 7
  %v3008 = vsub.s32 %v37, %v3007
  %v3009 = vrot.slane %v2759, %v3008
  %v3010 = vlaneseq
  %v3011 = vshrl.u32 %v3010, 7
  %v3012 = vsub.s32 %v37, %v3011
  %v3013 = vrot.slane %v2764, %v3012
  %3016 = vst.msk [vmem:[%s10 + $0x5] sm:$0x1] %vm535, %v3009
  %3017 = vst.msk [vmem:[%s10 + $0x15] sm:$0x1] %vm535, %v3013
  %vm3018 = vcmp.eq.f32.partialorder %v2963, %v2968
  %v3019 = vsel %vm3018, %v37, 128
  %v3020 = vsel %vm484, %v3019, 2147483647
  %v3021 = vand.u32 %v3020, 65535
  %v3022 = vshra.s32 %v3020, 16
  %v3023 = vcvt.s32.f32 %v3021
  %v3024 = vcvt.s32.f32 %v3022
  %3025 = vmin.xlane.f32.xlu0 %v3024
  %v3026 = vpop.xlane.xlu0 %3025
  %vm3027 = vcmp.eq.f32.partialorder %v3024, %v3026
  %v3028 = vsel %vm3027, %v3023, inf
  %3029 = vmin.xlane.f32.xlu0 %v3028
  %v3030 = vpop.xlane.xlu0 %3029
  %v3031 = vcvt.f32.s32 %v3030
  %v3032 = vcvt.f32.s32 %v3026
  %v3033 = vshll.u32 %v3032, 16
  %v3034 = vadd.s32 %v3033, %v3031
  %vm3035 = vcmp.eq.s32.totalorder %v37, %v3034
  %v3036 = vsel %vm3035, 1, 0
  %v3037 = vcvt.s32.f32 %v3036
  %v3038 = vld [vmem:[%s0] sm:$0xff]
  %v3039 = vld [vmem:[%s0 + $0x8] sm:$0xff]
  %v3040 = vld [vmem:[%s1] sm:$0xff]
  %v3041 = vld [vmem:[%s1 + $0x8] sm:$0xff]
  %v3042 = vld [vmem:[%s4] sm:$0xff]
  %v3043 = vld [vmem:[%s4 + $0x8] sm:$0xff]
  %v3044 = vld [vmem:[%s4 + $0x10] sm:$0xff]
  %v3045 = vld [vmem:[%s4 + $0x18] sm:$0xff]
  %v3046 = vld [vmem:[%s6] sm:$0xff]
  %v3047 = vld [vmem:[%s6 + $0x8] sm:$0xff]
  %v3048 = vld [vmem:[%s6 + $0x10] sm:$0xff]
  %v3049 = vld [vmem:[%s6 + $0x18] sm:$0xff]
  %v3050 = vld [vmem:[%s6 + $0x20] sm:$0xff]
  %v3051 = vld [vmem:[%s6 + $0x28] sm:$0xff]
  %v3052 = vld [vmem:[%s6 + $0x30] sm:$0xff]
  %v3053 = vld [vmem:[%s6 + $0x38] sm:$0xff]
  %v3054 = vld [vmem:[%s6 + $0x40] sm:$0xff]
  %v3055 = vld [vmem:[%s6 + $0x48] sm:$0xff]
  %v3056 = vld [vmem:[%s7] sm:$0xff]
  %v3057 = vld [vmem:[%s7 + $0x8] sm:$0xff]
  %v3058 = vld [vmem:[%s7 + $0x10] sm:$0xff]
  %v3059 = vld [vmem:[%s7 + $0x18] sm:$0xff]
  %3061 = vrot.lane.b32.xlu0 %v2884, 64
  %v3062 = vpop.permute.xlu0 %3061
  %v3064 = vadd.f32 %v2890, %v3062
  %3066 = vrot.lane.b32.xlu0 %v3064, 32
  %v3067 = vpop.permute.xlu0 %3066
  %v3068 = vsel %vm66, %v3067, 0
  %3070 = vmatprep.subr.mxu0 0.0
  %3071 = vmatpush1.msra.mxu0 %v3042
  %3072 = vmatprep.subr.mxu0 0.0
  %3073 = vmatpush1.msra.mxu0 %v3043
  %3074 = vmatprep.subr.mxu0 0.0
  %3075 = vmatpush1.msra.mxu0 %v3044
  %3076 = vmatprep.subr.mxu0 0.0
  %3077 = vmatpush1.msra.mxu0 %v3045
  %3078 = vmatprep.subr.mxu0 0.0
  %3079 = vmatpush1.msra.mxu0 0.0
  %3080 = vmatprep.subr.mxu0 0.0
  %3081 = vmatpush1.msra.mxu0 0.0
  %3082 = vmatprep.subr.mxu0 0.0
  %3083 = vmatpush1.msra.mxu0 0.0
  %3084 = vmatprep.subr.mxu0 0.0
  %3085 = vmatpush1.msra.mxu0 0.0
  %3086 = vmatprep.subr.mxu0 0.0
  %3087 = vmatpush1.msra.mxu0 0.0
  %3088 = vmatprep.subr.mxu0 0.0
  %3089 = vmatpush1.msra.mxu0 0.0
  %3090 = vmatprep.subr.mxu0 0.0
  %3091 = vmatpush1.msra.mxu0 0.0
  %3092 = vmatprep.subr.mxu0 0.0
  %3093 = vmatpush1.msra.mxu0 0.0
  %3094 = vmatprep.subr.mxu0 0.0
  %3095 = vmatpush1.msra.mxu0 0.0
  %3096 = vmatprep.subr.mxu0 0.0
  %3097 = vmatpush1.msra.mxu0 0.0
  %3098 = vmatprep.subr.mxu0 0.0
  %3099 = vmatpush1.msra.mxu0 0.0
  %3100 = vmatprep.subr.mxu0 0.0
  %3101 = vmatpush1.msra.mxu0 0.0
  %3102 = vmatprep.subr.mxu0 0.0
  %3103 = vmatpush1.msra.mxu0 0.0
  %3104 = vmatprep.subr.mxu0 0.0
  %3105 = vmatpush1.msra.mxu0 0.0
  %3106 = vmatprep.subr.mxu0 0.0
  %3107 = vmatpush1.msra.mxu0 0.0
  %3108 = vmatprep.subr.mxu0 0.0
  %3109 = vmatpush1.msra.mxu0 0.0
  %3110 = vmatprep.subr.mxu0 0.0
  %3111 = vmatpush1.msra.mxu0 0.0
  %3112 = vmatprep.subr.mxu0 0.0
  %3113 = vmatpush1.msra.mxu0 0.0
  %3114 = vmatprep.subr.mxu0 0.0
  %3115 = vmatpush1.msra.mxu0 0.0
  %3116 = vmatprep.subr.mxu0 0.0
  %3117 = vmatpush1.msra.mxu0 0.0
  %3118 = vmatprep.subr.mxu0 0.0
  %3119 = vmatpush1.msra.mxu0 0.0
  %3120 = vmatprep.subr.mxu0 0.0
  %3121 = vmatpush1.msra.mxu0 0.0
  %3122 = vmatprep.subr.mxu0 0.0
  %3123 = vmatpush1.msra.mxu0 0.0
  %3124 = vmatprep.subr.mxu0 0.0
  %3125 = vmatpush1.msra.mxu0 0.0
  %3126 = vmatprep.subr.mxu0 0.0
  %3127 = vmatpush1.msra.mxu0 0.0
  %3128 = vmatprep.subr.mxu0 0.0
  %3129 = vmatpush1.msra.mxu0 0.0
  %3130 = vmatprep.subr.mxu0 0.0
  %3131 = vmatpush1.msra.mxu0 0.0
  %3132 = vmatprep.subr.mxu0 0.0
  %3133 = vmatpush1.msra.mxu0 0.0
  %3134 = vmatprep.mubr.f32.mxu0 0.0
  %3135 = vmatmul.mubr.f32.gmra.mrb[0].mxu0 %v3068
  %v3136 = vpop.f32.mrb[0].mxu0
  %v3137 = vadd.f32 0.0, %v3136
  %v3138 = vpop.f32.mrb[0].mxu0
  %3139 = vdwg.mxu0
  %v3142 = vunpack.c.l.s4 1966171168
  %v3143 = vunpack.c.0.s8 %v3142
  %v3144 = vlaneseq
  %v3145 = vshrl.u32 %v3144, 7
  %v3146 = vsub.s32 %v3143, %v3145
  %v3147 = vrot.slane %v3137, %v3146
  %v3148 = vcombine.high %v3147, %v3147
  %v3150 = vunpack.c.l.s4 1966171168
  %v3151 = vunpack.c.0.s8 %v3150
  %v3152 = vlaneseq
  %v3153 = vshrl.u32 %v3152, 7
  %v3154 = vsub.s32 %v3151, %v3153
  %v3155 = vrot.slane %v3147, %v3154
  %v3157 = vunpack.c.l.s4 1966171168
  %v3158 = vunpack.c.0.s8 %v3157
  %v3159 = vlaneseq
  %v3160 = vshrl.u32 %v3159, 7
  %v3161 = vsub.s32 %v3158, %v3160
  %v3162 = vrot.slane %v3148, %v3161
  %v3163 = vlaneseq
  %v3164 = vshrl.u32 %v3163, 7
  %v3165 = vsub.s32 0, %v3164
  %v3166 = vrot.slane %v3155, %v3165
  %v3167 = vlaneseq
  %v3168 = vshrl.u32 %v3167, 7
  %v3169 = vsub.s32 0, %v3168
  %v3170 = vrot.slane %v3162, %v3169
  %v3173 = vadd.f32 %v3166, %v3040
  %v3174 = vadd.f32 %v3170, %v3041
  %v3175 = vtanh.pop %v3173
  %v3176 = vtanh.pop %v3174
  %v3177 = vmul.f32 %v3175, %v181
  %v3178 = vmul.f32 %v3176, %v181
  %v3179 = vsel %vm66, %v3177, 0.0
  %3180 = vadd.xlane.f32.xlu0 %v3179
  %v3181 = vpop.xlane.xlu0 %3180
  %v3182 = vsel %vm66, %v3178, 0.0
  %3183 = vadd.xlane.f32.xlu0 %v3182
  %v3184 = vpop.xlane.xlu0 %3183
  %v3187 = vlaneseq
  %v3188 = vshrl.u32 %v3187, 7
  %v3189 = vsub.s32 %v37, %v3188
  %v3190 = vrot.slane %v3181, %v3189
  %v3191 = vlaneseq
  %v3192 = vshrl.u32 %v3191, 7
  %v3193 = vsub.s32 %v37, %v3192
  %v3194 = vrot.slane %v3184, %v3193
  %v3195 = vsel %vm201, %v3194, %v3190
  %v3197 = vsel %vm204, %v3195, -inf
  %3198 = vmax.xlane.f32.xlu0 %v3197
  %v3199 = vpop.xlane.xlu0 %3198
  %v3201 = vlaneseq
  %v3202 = vshrl.u32 %v3201, 7
  %v3203 = vsub.s32 0, %v3202
  %v3204 = vrot.slane %v3199, %v3203
  %v3205 = vlaneseq
  %v3206 = vshrl.u32 %v3205, 7
  %v3207 = vsub.s32 1, %v3206
  %v3208 = vrot.slane %v3199, %v3207
  %v3211 = vsub.f32 %v3181, %v3204
  %v3212 = vsub.f32 %v3184, %v3208
  %v3213 = vmul.f32 %v3211, 1.442695
  %v3214 = vpow.pop %v3213
  %v3215 = vmul.f32 %v3212, 1.442695
  %v3216 = vpow.pop %v3215
  %3219 = vset.pattern.permute.xlu0 0
  %3220 = vperm.xlu0 %3219, %v3214
  %v3221 = vpop.permute.xlu0 %3220
  %3222 = vset.pattern.permute.xlu0 0
  %3223 = vperm.xlu0 %3222, %v3216
  %v3224 = vpop.permute.xlu0 %3223
  %v3225 = vlaneseq
  %v3226 = vshrl.u32 %v3225, 7
  %v3227 = vsub.s32 %v37, %v3226
  %v3228 = vrot.slane %v3221, %v3227
  %v3229 = vlaneseq
  %v3230 = vshrl.u32 %v3229, 7
  %v3231 = vsub.s32 %v37, %v3230
  %v3232 = vrot.slane %v3224, %v3231
  %v3233 = vsel %vm201, %v3232, %v3228
  %v3235 = vsel %vm204, %v3233, 0.0
  %3236 = vadd.xlane.f32.xlu0 %v3235
  %v3237 = vpop.xlane.xlu0 %3236
  %v3238 = vrcp.pop %v3237
  %v3240 = vlaneseq
  %v3241 = vshrl.u32 %v3240, 7
  %v3242 = vsub.s32 0, %v3241
  %v3243 = vrot.slane %v3238, %v3242
  %v3244 = vlaneseq
  %v3245 = vshrl.u32 %v3244, 7
  %v3246 = vsub.s32 1, %v3245
  %v3247 = vrot.slane %v3238, %v3246
  %v3250 = vmul.f32 %v3214, %v3243
  %v3251 = vmul.f32 %v3216, %v3247
  %3253 = vset.pattern.permute.xlu0 0
  %3254 = vperm.xlu0 %3253, %v3250
  %v3255 = vpop.permute.xlu0 %3254
  %3258 = vset.pattern.permute.xlu0 0
  %3259 = vperm.xlu0 %3258, %v3251
  %v3260 = vpop.permute.xlu0 %3259
  %v3262 = vmul.f32 %v3255, %v3038
  %v3263 = vmul.f32 %v3260, %v3039
  %v3264 = vsel %vm66, %v3262, 0.0
  %v3265 = vrot.slane %v3264, 4
  %v3266 = vadd.f32 %v3264, %v3265
  %v3267 = vrot.slane %v3266, 2
  %v3268 = vadd.f32 %v3266, %v3267
  %v3269 = vrot.slane %v3268, 1
  %v3270 = vadd.f32 %v3268, %v3269
  %v3271 = vsel %vm66, %v3263, 0.0
  %v3272 = vrot.slane %v3271, 4
  %v3273 = vadd.f32 %v3271, %v3272
  %v3274 = vrot.slane %v3273, 2
  %v3275 = vadd.f32 %v3273, %v3274
  %v3276 = vrot.slane %v3275, 1
  %v3277 = vadd.f32 %v3275, %v3276
  %v3280 = vsel %vm201, %v3277, %v3270
  %3281 = vrot.lane.b32.xlu0 %v3280, 16
  %v3282 = vpop.permute.xlu0 %3281
  %3284 = vrot.lane.b32.xlu0 %v2890, 80
  %v3285 = vpop.permute.xlu0 %3284
  %v3287 = vsel %vm296, %v3037, %v3282
  %v3288 = vsel %vm298, %v3287, %v3285
  %v3290 = vsel %vm300, %v3288, 0
  %3292 = vmatprep.subr.mxu0 0.0
  %3293 = vmatpush1.msra.mxu0 %v3046
  %3294 = vmatprep.subr.mxu0 0.0
  %3295 = vmatpush1.msra.mxu0 %v3047
  %3296 = vmatprep.subr.mxu0 0.0
  %3297 = vmatpush1.msra.mxu0 %v3048
  %3298 = vmatprep.subr.mxu0 0.0
  %3299 = vmatpush1.msra.mxu0 %v3049
  %3300 = vmatprep.subr.mxu0 0.0
  %3301 = vmatpush1.msra.mxu0 %v3050
  %3302 = vmatprep.subr.mxu0 0.0
  %3303 = vmatpush1.msra.mxu0 %v3051
  %3304 = vmatprep.subr.mxu0 0.0
  %3305 = vmatpush1.msra.mxu0 %v3052
  %3306 = vmatprep.subr.mxu0 0.0
  %3307 = vmatpush1.msra.mxu0 %v3053
  %3308 = vmatprep.subr.mxu0 0.0
  %3309 = vmatpush1.msra.mxu0 %v3054
  %3310 = vmatprep.subr.mxu0 0.0
  %3311 = vmatpush1.msra.mxu0 %v3055
  %3312 = vmatprep.subr.mxu0 0.0
  %3313 = vmatpush1.msra.mxu0 0.0
  %3314 = vmatprep.subr.mxu0 0.0
  %3315 = vmatpush1.msra.mxu0 0.0
  %3316 = vmatprep.subr.mxu0 0.0
  %3317 = vmatpush1.msra.mxu0 0.0
  %3318 = vmatprep.subr.mxu0 0.0
  %3319 = vmatpush1.msra.mxu0 0.0
  %3320 = vmatprep.subr.mxu0 0.0
  %3321 = vmatpush1.msra.mxu0 0.0
  %3322 = vmatprep.subr.mxu0 0.0
  %3323 = vmatpush1.msra.mxu0 0.0
  %3324 = vmatprep.subr.mxu0 0.0
  %3325 = vmatpush1.msra.mxu0 0.0
  %3326 = vmatprep.subr.mxu0 0.0
  %3327 = vmatpush1.msra.mxu0 0.0
  %3328 = vmatprep.subr.mxu0 0.0
  %3329 = vmatpush1.msra.mxu0 0.0
  %3330 = vmatprep.subr.mxu0 0.0
  %3331 = vmatpush1.msra.mxu0 0.0
  %3332 = vmatprep.subr.mxu0 0.0
  %3333 = vmatpush1.msra.mxu0 0.0
  %3334 = vmatprep.subr.mxu0 0.0
  %3335 = vmatpush1.msra.mxu0 0.0
  %3336 = vmatprep.subr.mxu0 0.0
  %3337 = vmatpush1.msra.mxu0 0.0
  %3338 = vmatprep.subr.mxu0 0.0
  %3339 = vmatpush1.msra.mxu0 0.0
  %3340 = vmatprep.subr.mxu0 0.0
  %3341 = vmatpush1.msra.mxu0 0.0
  %3342 = vmatprep.subr.mxu0 0.0
  %3343 = vmatpush1.msra.mxu0 0.0
  %3344 = vmatprep.subr.mxu0 0.0
  %3345 = vmatpush1.msra.mxu0 0.0
  %3346 = vmatprep.subr.mxu0 0.0
  %3347 = vmatpush1.msra.mxu0 0.0
  %3348 = vmatprep.subr.mxu0 0.0
  %3349 = vmatpush1.msra.mxu0 0.0
  %3350 = vmatprep.subr.mxu0 0.0
  %3351 = vmatpush1.msra.mxu0 0.0
  %3352 = vmatprep.subr.mxu0 0.0
  %3353 = vmatpush1.msra.mxu0 0.0
  %3354 = vmatprep.subr.mxu0 0.0
  %3355 = vmatpush1.msra.mxu0 0.0
  %3356 = vmatprep.mubr.f32.mxu0 0.0
  %3357 = vmatmul.mubr.f32.gmra.mrb[0].mxu0 %v3290
  %v3358 = vpop.f32.mrb[0].mxu0
  %v3359 = vadd.f32 0.0, %v3358
  %v3360 = vpop.f32.mrb[0].mxu0
  %3361 = vdwg.mxu0
  %v3362 = vxor.u32 %v3359, 2147483648
  %v3363 = vmul.f32 %v3362, 1.442695
  %v3364 = vpow.pop %v3363
  %v3365 = vadd.f32 %v3364, 1.0
  %v3366 = vrcp.pop %v3365
  %v3367 = vmul.f32 1.0, %v3366
  %v3368 = vmul.f32 %v3367, 2.0
  %v3369 = vsub.f32 %v3368, 1.0
  %v3370 = vmul.f32 %v3367, %v2884
  %3372 = vrot.lane.b32.xlu0 %v3369, 64
  %v3373 = vpop.permute.xlu0 %3372
  %v3375 = vmul.f32 %v3367, %v3373
  %3377 = vrot.lane.b32.xlu0 %v3375, 32
  %v3378 = vpop.permute.xlu0 %3377
  %v3380 = vadd.f32 %v3370, %v3378
  %v3381 = vtanh.pop %v3380
  %3383 = vrot.lane.b32.xlu0 %v3381, 64
  %v3384 = vpop.permute.xlu0 %3383
  %v3386 = vmul.f32 %v3367, %v3384
  %3388 = vrot.lane.b32.xlu0 %v3386, 32
  %v3389 = vpop.permute.xlu0 %3388
  %v3390 = vsel %vm66, %v3389, 0
  %3392 = vmatprep.subr.mxu0 0.0
  %3393 = vmatpush1.msra.mxu0 %v3056
  %3394 = vmatprep.subr.mxu0 0.0
  %3395 = vmatpush1.msra.mxu0 %v3057
  %3396 = vmatprep.subr.mxu0 0.0
  %3397 = vmatpush1.msra.mxu0 %v3058
  %3398 = vmatprep.subr.mxu0 0.0
  %3399 = vmatpush1.msra.mxu0 %v3059
  %3400 = vmatprep.subr.mxu0 0.0
  %3401 = vmatpush1.msra.mxu0 0.0
  %3402 = vmatprep.subr.mxu0 0.0
  %3403 = vmatpush1.msra.mxu0 0.0
  %3404 = vmatprep.subr.mxu0 0.0
  %3405 = vmatpush1.msra.mxu0 0.0
  %3406 = vmatprep.subr.mxu0 0.0
  %3407 = vmatpush1.msra.mxu0 0.0
  %3408 = vmatprep.subr.mxu0 0.0
  %3409 = vmatpush1.msra.mxu0 0.0
  %3410 = vmatprep.subr.mxu0 0.0
  %3411 = vmatpush1.msra.mxu0 0.0
  %3412 = vmatprep.subr.mxu0 0.0
  %3413 = vmatpush1.msra.mxu0 0.0
  %3414 = vmatprep.subr.mxu0 0.0
  %3415 = vmatpush1.msra.mxu0 0.0
  %3416 = vmatprep.subr.mxu0 0.0
  %3417 = vmatpush1.msra.mxu0 0.0
  %3418 = vmatprep.subr.mxu0 0.0
  %3419 = vmatpush1.msra.mxu0 0.0
  %3420 = vmatprep.subr.mxu0 0.0
  %3421 = vmatpush1.msra.mxu0 0.0
  %3422 = vmatprep.subr.mxu0 0.0
  %3423 = vmatpush1.msra.mxu0 0.0
  %3424 = vmatprep.subr.mxu0 0.0
  %3425 = vmatpush1.msra.mxu0 0.0
  %3426 = vmatprep.subr.mxu0 0.0
  %3427 = vmatpush1.msra.mxu0 0.0
  %3428 = vmatprep.subr.mxu0 0.0
  %3429 = vmatpush1.msra.mxu0 0.0
  %3430 = vmatprep.subr.mxu0 0.0
  %3431 = vmatpush1.msra.mxu0 0.0
  %3432 = vmatprep.subr.mxu0 0.0
  %3433 = vmatpush1.msra.mxu0 0.0
  %3434 = vmatprep.subr.mxu0 0.0
  %3435 = vmatpush1.msra.mxu0 0.0
  %3436 = vmatprep.subr.mxu0 0.0
  %3437 = vmatpush1.msra.mxu0 0.0
  %3438 = vmatprep.subr.mxu0 0.0
  %3439 = vmatpush1.msra.mxu0 0.0
  %3440 = vmatprep.subr.mxu0 0.0
  %3441 = vmatpush1.msra.mxu0 0.0
  %3442 = vmatprep.subr.mxu0 0.0
  %3443 = vmatpush1.msra.mxu0 0.0
  %3444 = vmatprep.subr.mxu0 0.0
  %3445 = vmatpush1.msra.mxu0 0.0
  %3446 = vmatprep.subr.mxu0 0.0
  %3447 = vmatpush1.msra.mxu0 0.0
  %3448 = vmatprep.subr.mxu0 0.0
  %3449 = vmatpush1.msra.mxu0 0.0
  %3450 = vmatprep.subr.mxu0 0.0
  %3451 = vmatpush1.msra.mxu0 0.0
  %3452 = vmatprep.subr.mxu0 0.0
  %3453 = vmatpush1.msra.mxu0 0.0
  %3454 = vmatprep.subr.mxu0 0.0
  %3455 = vmatpush1.msra.mxu0 0.0
  %3456 = vmatprep.mubr.f32.mxu0 0.0
  %3457 = vmatmul.mubr.f32.gmra.mrb[0].mxu0 %v3390
  %v3458 = vpop.f32.mrb[0].mxu0
  %v3459 = vadd.f32 %v407, %v3458
  %v3460 = vpop.f32.mrb[0].mxu0
  %3461 = vdwg.mxu0
  %v3462 = vsel %vm484, %v3459, -inf
  %3463 = vmax.xlane.f32.xlu0 %v3462
  %v3464 = vpop.xlane.xlu0 %3463
  %v3465 = vsub.f32 %v3459, %v3464
  %v3466 = vmul.f32 %v3465, 1.442695
  %v3467 = vpow.pop %v3466
  %v3468 = vsel %vm484, %v3467, 0.0
  %3469 = vadd.xlane.f32.xlu0 %v3468
  %v3470 = vpop.xlane.xlu0 %3469
  %v3471 = vlog2.pop %v3470
  %v3472 = vmul.f32 %v3471, 0.6931472
  %v3473 = vadd.f32 %v3472, %v3464
  %v3474 = vsub.f32 %v3459, %v3473
  %v3477 = vunpack.c.l.s4 1966171168
  %v3478 = vunpack.c.0.s8 %v3477
  %v3479 = vlaneseq
  %v3480 = vshrl.u32 %v3479, 7
  %v3481 = vsub.s32 %v3478, %v3480
  %v3482 = vrot.slane %v3474, %v3481
  %v3483 = vcombine.high %v3482, %v3482
  %v3485 = vunpack.c.l.s4 1966171168
  %v3486 = vunpack.c.0.s8 %v3485
  %v3487 = vlaneseq
  %v3488 = vshrl.u32 %v3487, 7
  %v3489 = vsub.s32 %v3486, %v3488
  %v3490 = vrot.slane %v3482, %v3489
  %v3492 = vunpack.c.l.s4 1966171168
  %v3493 = vunpack.c.0.s8 %v3492
  %v3494 = vlaneseq
  %v3495 = vshrl.u32 %v3494, 7
  %v3496 = vsub.s32 %v3493, %v3495
  %v3497 = vrot.slane %v3483, %v3496
  %3500 = vst [vmem:[%s9 + $0x6] sm:$0x1] %v3490
  %3501 = vst [vmem:[%s9 + $0x16] sm:$0x1] %v3497
  %v3502 = vlaneseq
  %v3503 = vshrl.u32 %v3502, 7
  %v3504 = vsub.s32 %v37, %v3503
  %v3505 = vrot.slane %v3255, %v3504
  %v3506 = vlaneseq
  %v3507 = vshrl.u32 %v3506, 7
  %v3508 = vsub.s32 %v37, %v3507
  %v3509 = vrot.slane %v3260, %v3508
  %3512 = vst.msk [vmem:[%s10 + $0x6] sm:$0x1] %vm535, %v3505
  %3513 = vst.msk [vmem:[%s10 + $0x16] sm:$0x1] %vm535, %v3509
  %vm3514 = vcmp.eq.f32.partialorder %v3459, %v3464
  %v3515 = vsel %vm3514, %v37, 128
  %v3516 = vsel %vm484, %v3515, 2147483647
  %v3517 = vand.u32 %v3516, 65535
  %v3518 = vshra.s32 %v3516, 16
  %v3519 = vcvt.s32.f32 %v3517
  %v3520 = vcvt.s32.f32 %v3518
  %3521 = vmin.xlane.f32.xlu0 %v3520
  %v3522 = vpop.xlane.xlu0 %3521
  %vm3523 = vcmp.eq.f32.partialorder %v3520, %v3522
  %v3524 = vsel %vm3523, %v3519, inf
  %3525 = vmin.xlane.f32.xlu0 %v3524
  %v3526 = vpop.xlane.xlu0 %3525
  %v3527 = vcvt.f32.s32 %v3526
  %v3528 = vcvt.f32.s32 %v3522
  %v3529 = vshll.u32 %v3528, 16
  %v3530 = vadd.s32 %v3529, %v3527
  %vm3531 = vcmp.eq.s32.totalorder %v37, %v3530
  %v3532 = vsel %vm3531, 1, 0
  %v3533 = vcvt.s32.f32 %v3532
  %v3534 = vld [vmem:[%s0] sm:$0xff]
  %v3535 = vld [vmem:[%s0 + $0x8] sm:$0xff]
  %v3536 = vld [vmem:[%s1] sm:$0xff]
  %v3537 = vld [vmem:[%s1 + $0x8] sm:$0xff]
  %v3538 = vld [vmem:[%s4] sm:$0xff]
  %v3539 = vld [vmem:[%s4 + $0x8] sm:$0xff]
  %v3540 = vld [vmem:[%s4 + $0x10] sm:$0xff]
  %v3541 = vld [vmem:[%s4 + $0x18] sm:$0xff]
  %v3542 = vld [vmem:[%s6] sm:$0xff]
  %v3543 = vld [vmem:[%s6 + $0x8] sm:$0xff]
  %v3544 = vld [vmem:[%s6 + $0x10] sm:$0xff]
  %v3545 = vld [vmem:[%s6 + $0x18] sm:$0xff]
  %v3546 = vld [vmem:[%s6 + $0x20] sm:$0xff]
  %v3547 = vld [vmem:[%s6 + $0x28] sm:$0xff]
  %v3548 = vld [vmem:[%s6 + $0x30] sm:$0xff]
  %v3549 = vld [vmem:[%s6 + $0x38] sm:$0xff]
  %v3550 = vld [vmem:[%s6 + $0x40] sm:$0xff]
  %v3551 = vld [vmem:[%s6 + $0x48] sm:$0xff]
  %v3552 = vld [vmem:[%s7] sm:$0xff]
  %v3553 = vld [vmem:[%s7 + $0x8] sm:$0xff]
  %v3554 = vld [vmem:[%s7 + $0x10] sm:$0xff]
  %v3555 = vld [vmem:[%s7 + $0x18] sm:$0xff]
  %3557 = vrot.lane.b32.xlu0 %v3380, 64
  %v3558 = vpop.permute.xlu0 %3557
  %v3560 = vadd.f32 %v3386, %v3558
  %3562 = vrot.lane.b32.xlu0 %v3560, 32
  %v3563 = vpop.permute.xlu0 %3562
  %v3564 = vsel %vm66, %v3563, 0
  %3566 = vmatprep.subr.mxu0 0.0
  %3567 = vmatpush1.msra.mxu0 %v3538
  %3568 = vmatprep.subr.mxu0 0.0
  %3569 = vmatpush1.msra.mxu0 %v3539
  %3570 = vmatprep.subr.mxu0 0.0
  %3571 = vmatpush1.msra.mxu0 %v3540
  %3572 = vmatprep.subr.mxu0 0.0
  %3573 = vmatpush1.msra.mxu0 %v3541
  %3574 = vmatprep.subr.mxu0 0.0
  %3575 = vmatpush1.msra.mxu0 0.0
  %3576 = vmatprep.subr.mxu0 0.0
  %3577 = vmatpush1.msra.mxu0 0.0
  %3578 = vmatprep.subr.mxu0 0.0
  %3579 = vmatpush1.msra.mxu0 0.0
  %3580 = vmatprep.subr.mxu0 0.0
  %3581 = vmatpush1.msra.mxu0 0.0
  %3582 = vmatprep.subr.mxu0 0.0
  %3583 = vmatpush1.msra.mxu0 0.0
  %3584 = vmatprep.subr.mxu0 0.0
  %3585 = vmatpush1.msra.mxu0 0.0
  %3586 = vmatprep.subr.mxu0 0.0
  %3587 = vmatpush1.msra.mxu0 0.0
  %3588 = vmatprep.subr.mxu0 0.0
  %3589 = vmatpush1.msra.mxu0 0.0
  %3590 = vmatprep.subr.mxu0 0.0
  %3591 = vmatpush1.msra.mxu0 0.0
  %3592 = vmatprep.subr.mxu0 0.0
  %3593 = vmatpush1.msra.mxu0 0.0
  %3594 = vmatprep.subr.mxu0 0.0
  %3595 = vmatpush1.msra.mxu0 0.0
  %3596 = vmatprep.subr.mxu0 0.0
  %3597 = vmatpush1.msra.mxu0 0.0
  %3598 = vmatprep.subr.mxu0 0.0
  %3599 = vmatpush1.msra.mxu0 0.0
  %3600 = vmatprep.subr.mxu0 0.0
  %3601 = vmatpush1.msra.mxu0 0.0
  %3602 = vmatprep.subr.mxu0 0.0
  %3603 = vmatpush1.msra.mxu0 0.0
  %3604 = vmatprep.subr.mxu0 0.0
  %3605 = vmatpush1.msra.mxu0 0.0
  %3606 = vmatprep.subr.mxu0 0.0
  %3607 = vmatpush1.msra.mxu0 0.0
  %3608 = vmatprep.subr.mxu0 0.0
  %3609 = vmatpush1.msra.mxu0 0.0
  %3610 = vmatprep.subr.mxu0 0.0
  %3611 = vmatpush1.msra.mxu0 0.0
  %3612 = vmatprep.subr.mxu0 0.0
  %3613 = vmatpush1.msra.mxu0 0.0
  %3614 = vmatprep.subr.mxu0 0.0
  %3615 = vmatpush1.msra.mxu0 0.0
  %3616 = vmatprep.subr.mxu0 0.0
  %3617 = vmatpush1.msra.mxu0 0.0
  %3618 = vmatprep.subr.mxu0 0.0
  %3619 = vmatpush1.msra.mxu0 0.0
  %3620 = vmatprep.subr.mxu0 0.0
  %3621 = vmatpush1.msra.mxu0 0.0
  %3622 = vmatprep.subr.mxu0 0.0
  %3623 = vmatpush1.msra.mxu0 0.0
  %3624 = vmatprep.subr.mxu0 0.0
  %3625 = vmatpush1.msra.mxu0 0.0
  %3626 = vmatprep.subr.mxu0 0.0
  %3627 = vmatpush1.msra.mxu0 0.0
  %3628 = vmatprep.subr.mxu0 0.0
  %3629 = vmatpush1.msra.mxu0 0.0
  %3630 = vmatprep.mubr.f32.mxu0 0.0
  %3631 = vmatmul.mubr.f32.gmra.mrb[0].mxu0 %v3564
  %v3632 = vpop.f32.mrb[0].mxu0
  %v3633 = vadd.f32 0.0, %v3632
  %v3634 = vpop.f32.mrb[0].mxu0
  %3635 = vdwg.mxu0
  %v3638 = vunpack.c.l.s4 1966171168
  %v3639 = vunpack.c.0.s8 %v3638
  %v3640 = vlaneseq
  %v3641 = vshrl.u32 %v3640, 7
  %v3642 = vsub.s32 %v3639, %v3641
  %v3643 = vrot.slane %v3633, %v3642
  %v3644 = vcombine.high %v3643, %v3643
  %v3646 = vunpack.c.l.s4 1966171168
  %v3647 = vunpack.c.0.s8 %v3646
  %v3648 = vlaneseq
  %v3649 = vshrl.u32 %v3648, 7
  %v3650 = vsub.s32 %v3647, %v3649
  %v3651 = vrot.slane %v3643, %v3650
  %v3653 = vunpack.c.l.s4 1966171168
  %v3654 = vunpack.c.0.s8 %v3653
  %v3655 = vlaneseq
  %v3656 = vshrl.u32 %v3655, 7
  %v3657 = vsub.s32 %v3654, %v3656
  %v3658 = vrot.slane %v3644, %v3657
  %v3659 = vlaneseq
  %v3660 = vshrl.u32 %v3659, 7
  %v3661 = vsub.s32 0, %v3660
  %v3662 = vrot.slane %v3651, %v3661
  %v3663 = vlaneseq
  %v3664 = vshrl.u32 %v3663, 7
  %v3665 = vsub.s32 0, %v3664
  %v3666 = vrot.slane %v3658, %v3665
  %v3669 = vadd.f32 %v3662, %v3536
  %v3670 = vadd.f32 %v3666, %v3537
  %v3671 = vtanh.pop %v3669
  %v3672 = vtanh.pop %v3670
  %v3673 = vmul.f32 %v3671, %v181
  %v3674 = vmul.f32 %v3672, %v181
  %v3675 = vsel %vm66, %v3673, 0.0
  %3676 = vadd.xlane.f32.xlu0 %v3675
  %v3677 = vpop.xlane.xlu0 %3676
  %v3678 = vsel %vm66, %v3674, 0.0
  %3679 = vadd.xlane.f32.xlu0 %v3678
  %v3680 = vpop.xlane.xlu0 %3679
  %v3683 = vlaneseq
  %v3684 = vshrl.u32 %v3683, 7
  %v3685 = vsub.s32 %v37, %v3684
  %v3686 = vrot.slane %v3677, %v3685
  %v3687 = vlaneseq
  %v3688 = vshrl.u32 %v3687, 7
  %v3689 = vsub.s32 %v37, %v3688
  %v3690 = vrot.slane %v3680, %v3689
  %v3691 = vsel %vm201, %v3690, %v3686
  %v3693 = vsel %vm204, %v3691, -inf
  %3694 = vmax.xlane.f32.xlu0 %v3693
  %v3695 = vpop.xlane.xlu0 %3694
  %v3697 = vlaneseq
  %v3698 = vshrl.u32 %v3697, 7
  %v3699 = vsub.s32 0, %v3698
  %v3700 = vrot.slane %v3695, %v3699
  %v3701 = vlaneseq
  %v3702 = vshrl.u32 %v3701, 7
  %v3703 = vsub.s32 1, %v3702
  %v3704 = vrot.slane %v3695, %v3703
  %v3707 = vsub.f32 %v3677, %v3700
  %v3708 = vsub.f32 %v3680, %v3704
  %v3709 = vmul.f32 %v3707, 1.442695
  %v3710 = vpow.pop %v3709
  %v3711 = vmul.f32 %v3708, 1.442695
  %v3712 = vpow.pop %v3711
  %3715 = vset.pattern.permute.xlu0 0
  %3716 = vperm.xlu0 %3715, %v3710
  %v3717 = vpop.permute.xlu0 %3716
  %3718 = vset.pattern.permute.xlu0 0
  %3719 = vperm.xlu0 %3718, %v3712
  %v3720 = vpop.permute.xlu0 %3719
  %v3721 = vlaneseq
  %v3722 = vshrl.u32 %v3721, 7
  %v3723 = vsub.s32 %v37, %v3722
  %v3724 = vrot.slane %v3717, %v3723
  %v3725 = vlaneseq
  %v3726 = vshrl.u32 %v3725, 7
  %v3727 = vsub.s32 %v37, %v3726
  %v3728 = vrot.slane %v3720, %v3727
  %v3729 = vsel %vm201, %v3728, %v3724
  %v3731 = vsel %vm204, %v3729, 0.0
  %3732 = vadd.xlane.f32.xlu0 %v3731
  %v3733 = vpop.xlane.xlu0 %3732
  %v3734 = vrcp.pop %v3733
  %v3736 = vlaneseq
  %v3737 = vshrl.u32 %v3736, 7
  %v3738 = vsub.s32 0, %v3737
  %v3739 = vrot.slane %v3734, %v3738
  %v3740 = vlaneseq
  %v3741 = vshrl.u32 %v3740, 7
  %v3742 = vsub.s32 1, %v3741
  %v3743 = vrot.slane %v3734, %v3742
  %v3746 = vmul.f32 %v3710, %v3739
  %v3747 = vmul.f32 %v3712, %v3743
  %3749 = vset.pattern.permute.xlu0 0
  %3750 = vperm.xlu0 %3749, %v3746
  %v3751 = vpop.permute.xlu0 %3750
  %3754 = vset.pattern.permute.xlu0 0
  %3755 = vperm.xlu0 %3754, %v3747
  %v3756 = vpop.permute.xlu0 %3755
  %v3758 = vmul.f32 %v3751, %v3534
  %v3759 = vmul.f32 %v3756, %v3535
  %v3760 = vsel %vm66, %v3758, 0.0
  %v3761 = vrot.slane %v3760, 4
  %v3762 = vadd.f32 %v3760, %v3761
  %v3763 = vrot.slane %v3762, 2
  %v3764 = vadd.f32 %v3762, %v3763
  %v3765 = vrot.slane %v3764, 1
  %v3766 = vadd.f32 %v3764, %v3765
  %v3767 = vsel %vm66, %v3759, 0.0
  %v3768 = vrot.slane %v3767, 4
  %v3769 = vadd.f32 %v3767, %v3768
  %v3770 = vrot.slane %v3769, 2
  %v3771 = vadd.f32 %v3769, %v3770
  %v3772 = vrot.slane %v3771, 1
  %v3773 = vadd.f32 %v3771, %v3772
  %v3776 = vsel %vm201, %v3773, %v3766
  %3777 = vrot.lane.b32.xlu0 %v3776, 16
  %v3778 = vpop.permute.xlu0 %3777
  %3780 = vrot.lane.b32.xlu0 %v3386, 80
  %v3781 = vpop.permute.xlu0 %3780
  %v3783 = vsel %vm296, %v3533, %v3778
  %v3784 = vsel %vm298, %v3783, %v3781
  %v3786 = vsel %vm300, %v3784, 0
  %3788 = vmatprep.subr.mxu0 0.0
  %3789 = vmatpush1.msra.mxu0 %v3542
  %3790 = vmatprep.subr.mxu0 0.0
  %3791 = vmatpush1.msra.mxu0 %v3543
  %3792 = vmatprep.subr.mxu0 0.0
  %3793 = vmatpush1.msra.mxu0 %v3544
  %3794 = vmatprep.subr.mxu0 0.0
  %3795 = vmatpush1.msra.mxu0 %v3545
  %3796 = vmatprep.subr.mxu0 0.0
  %3797 = vmatpush1.msra.mxu0 %v3546
  %3798 = vmatprep.subr.mxu0 0.0
  %3799 = vmatpush1.msra.mxu0 %v3547
  %3800 = vmatprep.subr.mxu0 0.0
  %3801 = vmatpush1.msra.mxu0 %v3548
  %3802 = vmatprep.subr.mxu0 0.0
  %3803 = vmatpush1.msra.mxu0 %v3549
  %3804 = vmatprep.subr.mxu0 0.0
  %3805 = vmatpush1.msra.mxu0 %v3550
  %3806 = vmatprep.subr.mxu0 0.0
  %3807 = vmatpush1.msra.mxu0 %v3551
  %3808 = vmatprep.subr.mxu0 0.0
  %3809 = vmatpush1.msra.mxu0 0.0
  %3810 = vmatprep.subr.mxu0 0.0
  %3811 = vmatpush1.msra.mxu0 0.0
  %3812 = vmatprep.subr.mxu0 0.0
  %3813 = vmatpush1.msra.mxu0 0.0
  %3814 = vmatprep.subr.mxu0 0.0
  %3815 = vmatpush1.msra.mxu0 0.0
  %3816 = vmatprep.subr.mxu0 0.0
  %3817 = vmatpush1.msra.mxu0 0.0
  %3818 = vmatprep.subr.mxu0 0.0
  %3819 = vmatpush1.msra.mxu0 0.0
  %3820 = vmatprep.subr.mxu0 0.0
  %3821 = vmatpush1.msra.mxu0 0.0
  %3822 = vmatprep.subr.mxu0 0.0
  %3823 = vmatpush1.msra.mxu0 0.0
  %3824 = vmatprep.subr.mxu0 0.0
  %3825 = vmatpush1.msra.mxu0 0.0
  %3826 = vmatprep.subr.mxu0 0.0
  %3827 = vmatpush1.msra.mxu0 0.0
  %3828 = vmatprep.subr.mxu0 0.0
  %3829 = vmatpush1.msra.mxu0 0.0
  %3830 = vmatprep.subr.mxu0 0.0
  %3831 = vmatpush1.msra.mxu0 0.0
  %3832 = vmatprep.subr.mxu0 0.0
  %3833 = vmatpush1.msra.mxu0 0.0
  %3834 = vmatprep.subr.mxu0 0.0
  %3835 = vmatpush1.msra.mxu0 0.0
  %3836 = vmatprep.subr.mxu0 0.0
  %3837 = vmatpush1.msra.mxu0 0.0
  %3838 = vmatprep.subr.mxu0 0.0
  %3839 = vmatpush1.msra.mxu0 0.0
  %3840 = vmatprep.subr.mxu0 0.0
  %3841 = vmatpush1.msra.mxu0 0.0
  %3842 = vmatprep.subr.mxu0 0.0
  %3843 = vmatpush1.msra.mxu0 0.0
  %3844 = vmatprep.subr.mxu0 0.0
  %3845 = vmatpush1.msra.mxu0 0.0
  %3846 = vmatprep.subr.mxu0 0.0
  %3847 = vmatpush1.msra.mxu0 0.0
  %3848 = vmatprep.subr.mxu0 0.0
  %3849 = vmatpush1.msra.mxu0 0.0
  %3850 = vmatprep.subr.mxu0 0.0
  %3851 = vmatpush1.msra.mxu0 0.0
  %3852 = vmatprep.mubr.f32.mxu0 0.0
  %3853 = vmatmul.mubr.f32.gmra.mrb[0].mxu0 %v3786
  %v3854 = vpop.f32.mrb[0].mxu0
  %v3855 = vadd.f32 0.0, %v3854
  %v3856 = vpop.f32.mrb[0].mxu0
  %3857 = vdwg.mxu0
  %v3858 = vxor.u32 %v3855, 2147483648
  %v3859 = vmul.f32 %v3858, 1.442695
  %v3860 = vpow.pop %v3859
  %v3861 = vadd.f32 %v3860, 1.0
  %v3862 = vrcp.pop %v3861
  %v3863 = vmul.f32 1.0, %v3862
  %v3864 = vmul.f32 %v3863, 2.0
  %v3865 = vsub.f32 %v3864, 1.0
  %v3866 = vmul.f32 %v3863, %v3380
  %3868 = vrot.lane.b32.xlu0 %v3865, 64
  %v3869 = vpop.permute.xlu0 %3868
  %v3871 = vmul.f32 %v3863, %v3869
  %3873 = vrot.lane.b32.xlu0 %v3871, 32
  %v3874 = vpop.permute.xlu0 %3873
  %v3876 = vadd.f32 %v3866, %v3874
  %v3877 = vtanh.pop %v3876
  %3879 = vrot.lane.b32.xlu0 %v3877, 64
  %v3880 = vpop.permute.xlu0 %3879
  %v3882 = vmul.f32 %v3863, %v3880
  %3884 = vrot.lane.b32.xlu0 %v3882, 32
  %v3885 = vpop.permute.xlu0 %3884
  %v3886 = vsel %vm66, %v3885, 0
  %3888 = vmatprep.subr.mxu0 0.0
  %3889 = vmatpush1.msra.mxu0 %v3552
  %3890 = vmatprep.subr.mxu0 0.0
  %3891 = vmatpush1.msra.mxu0 %v3553
  %3892 = vmatprep.subr.mxu0 0.0
  %3893 = vmatpush1.msra.mxu0 %v3554
  %3894 = vmatprep.subr.mxu0 0.0
  %3895 = vmatpush1.msra.mxu0 %v3555
  %3896 = vmatprep.subr.mxu0 0.0
  %3897 = vmatpush1.msra.mxu0 0.0
  %3898 = vmatprep.subr.mxu0 0.0
  %3899 = vmatpush1.msra.mxu0 0.0
  %3900 = vmatprep.subr.mxu0 0.0
  %3901 = vmatpush1.msra.mxu0 0.0
  %3902 = vmatprep.subr.mxu0 0.0
  %3903 = vmatpush1.msra.mxu0 0.0
  %3904 = vmatprep.subr.mxu0 0.0
  %3905 = vmatpush1.msra.mxu0 0.0
  %3906 = vmatprep.subr.mxu0 0.0
  %3907 = vmatpush1.msra.mxu0 0.0
  %3908 = vmatprep.subr.mxu0 0.0
  %3909 = vmatpush1.msra.mxu0 0.0
  %3910 = vmatprep.subr.mxu0 0.0
  %3911 = vmatpush1.msra.mxu0 0.0
  %3912 = vmatprep.subr.mxu0 0.0
  %3913 = vmatpush1.msra.mxu0 0.0
  %3914 = vmatprep.subr.mxu0 0.0
  %3915 = vmatpush1.msra.mxu0 0.0
  %3916 = vmatprep.subr.mxu0 0.0
  %3917 = vmatpush1.msra.mxu0 0.0
  %3918 = vmatprep.subr.mxu0 0.0
  %3919 = vmatpush1.msra.mxu0 0.0
  %3920 = vmatprep.subr.mxu0 0.0
  %3921 = vmatpush1.msra.mxu0 0.0
  %3922 = vmatprep.subr.mxu0 0.0
  %3923 = vmatpush1.msra.mxu0 0.0
  %3924 = vmatprep.subr.mxu0 0.0
  %3925 = vmatpush1.msra.mxu0 0.0
  %3926 = vmatprep.subr.mxu0 0.0
  %3927 = vmatpush1.msra.mxu0 0.0
  %3928 = vmatprep.subr.mxu0 0.0
  %3929 = vmatpush1.msra.mxu0 0.0
  %3930 = vmatprep.subr.mxu0 0.0
  %3931 = vmatpush1.msra.mxu0 0.0
  %3932 = vmatprep.subr.mxu0 0.0
  %3933 = vmatpush1.msra.mxu0 0.0
  %3934 = vmatprep.subr.mxu0 0.0
  %3935 = vmatpush1.msra.mxu0 0.0
  %3936 = vmatprep.subr.mxu0 0.0
  %3937 = vmatpush1.msra.mxu0 0.0
  %3938 = vmatprep.subr.mxu0 0.0
  %3939 = vmatpush1.msra.mxu0 0.0
  %3940 = vmatprep.subr.mxu0 0.0
  %3941 = vmatpush1.msra.mxu0 0.0
  %3942 = vmatprep.subr.mxu0 0.0
  %3943 = vmatpush1.msra.mxu0 0.0
  %3944 = vmatprep.subr.mxu0 0.0
  %3945 = vmatpush1.msra.mxu0 0.0
  %3946 = vmatprep.subr.mxu0 0.0
  %3947 = vmatpush1.msra.mxu0 0.0
  %3948 = vmatprep.subr.mxu0 0.0
  %3949 = vmatpush1.msra.mxu0 0.0
  %3950 = vmatprep.subr.mxu0 0.0
  %3951 = vmatpush1.msra.mxu0 0.0
  %3952 = vmatprep.mubr.f32.mxu0 0.0
  %3953 = vmatmul.mubr.f32.gmra.mrb[0].mxu0 %v3886
  %v3954 = vpop.f32.mrb[0].mxu0
  %v3955 = vadd.f32 %v407, %v3954
  %v3956 = vpop.f32.mrb[0].mxu0
  %3957 = vdwg.mxu0
  %v3958 = vsel %vm484, %v3955, -inf
  %3959 = vmax.xlane.f32.xlu0 %v3958
  %v3960 = vpop.xlane.xlu0 %3959
  %v3961 = vsub.f32 %v3955, %v3960
  %v3962 = vmul.f32 %v3961, 1.442695
  %v3963 = vpow.pop %v3962
  %v3964 = vsel %vm484, %v3963, 0.0
  %3965 = vadd.xlane.f32.xlu0 %v3964
  %v3966 = vpop.xlane.xlu0 %3965
  %v3967 = vlog2.pop %v3966
  %v3968 = vmul.f32 %v3967, 0.6931472
  %v3969 = vadd.f32 %v3968, %v3960
  %v3970 = vsub.f32 %v3955, %v3969
  %v3973 = vunpack.c.l.s4 1966171168
  %v3974 = vunpack.c.0.s8 %v3973
  %v3975 = vlaneseq
  %v3976 = vshrl.u32 %v3975, 7
  %v3977 = vsub.s32 %v3974, %v3976
  %v3978 = vrot.slane %v3970, %v3977
  %v3979 = vcombine.high %v3978, %v3978
  %v3981 = vunpack.c.l.s4 1966171168
  %v3982 = vunpack.c.0.s8 %v3981
  %v3983 = vlaneseq
  %v3984 = vshrl.u32 %v3983, 7
  %v3985 = vsub.s32 %v3982, %v3984
  %v3986 = vrot.slane %v3978, %v3985
  %v3988 = vunpack.c.l.s4 1966171168
  %v3989 = vunpack.c.0.s8 %v3988
  %v3990 = vlaneseq
  %v3991 = vshrl.u32 %v3990, 7
  %v3992 = vsub.s32 %v3989, %v3991
  %v3993 = vrot.slane %v3979, %v3992
  %3996 = vst [vmem:[%s9 + $0x7] sm:$0x1] %v3986
  %3997 = vst [vmem:[%s9 + $0x17] sm:$0x1] %v3993
  %v3998 = vlaneseq
  %v3999 = vshrl.u32 %v3998, 7
  %v4000 = vsub.s32 %v37, %v3999
  %v4001 = vrot.slane %v3751, %v4000
  %v4002 = vlaneseq
  %v4003 = vshrl.u32 %v4002, 7
  %v4004 = vsub.s32 %v37, %v4003
  %v4005 = vrot.slane %v3756, %v4004
  %4008 = vst.msk [vmem:[%s10 + $0x7] sm:$0x1] %vm535, %v4001
  %4009 = vst.msk [vmem:[%s10 + $0x17] sm:$0x1] %vm535, %v4005
  %vm4010 = vcmp.eq.f32.partialorder %v3955, %v3960
  %v4011 = vsel %vm4010, %v37, 128
  %v4012 = vsel %vm484, %v4011, 2147483647
  %v4013 = vand.u32 %v4012, 65535
  %v4014 = vshra.s32 %v4012, 16
  %v4015 = vcvt.s32.f32 %v4013
  %v4016 = vcvt.s32.f32 %v4014
  %4017 = vmin.xlane.f32.xlu0 %v4016
  %v4018 = vpop.xlane.xlu0 %4017
  %vm4019 = vcmp.eq.f32.partialorder %v4016, %v4018
  %v4020 = vsel %vm4019, %v4015, inf
  %4021 = vmin.xlane.f32.xlu0 %v4020
  %v4022 = vpop.xlane.xlu0 %4021
  %v4023 = vcvt.f32.s32 %v4022
  %v4024 = vcvt.f32.s32 %v4018
  %v4025 = vshll.u32 %v4024, 16
  %v4026 = vadd.s32 %v4025, %v4023
  %vm4027 = vcmp.eq.s32.totalorder %v37, %v4026
  %v4028 = vsel %vm4027, 1, 0
  %v4029 = vcvt.s32.f32 %v4028
  %v4030 = vld [vmem:[%s0] sm:$0xff]
  %v4031 = vld [vmem:[%s0 + $0x8] sm:$0xff]
  %v4032 = vld [vmem:[%s1] sm:$0xff]
  %v4033 = vld [vmem:[%s1 + $0x8] sm:$0xff]
  %v4034 = vld [vmem:[%s4] sm:$0xff]
  %v4035 = vld [vmem:[%s4 + $0x8] sm:$0xff]
  %v4036 = vld [vmem:[%s4 + $0x10] sm:$0xff]
  %v4037 = vld [vmem:[%s4 + $0x18] sm:$0xff]
  %v4038 = vld [vmem:[%s6] sm:$0xff]
  %v4039 = vld [vmem:[%s6 + $0x8] sm:$0xff]
  %v4040 = vld [vmem:[%s6 + $0x10] sm:$0xff]
  %v4041 = vld [vmem:[%s6 + $0x18] sm:$0xff]
  %v4042 = vld [vmem:[%s6 + $0x20] sm:$0xff]
  %v4043 = vld [vmem:[%s6 + $0x28] sm:$0xff]
  %v4044 = vld [vmem:[%s6 + $0x30] sm:$0xff]
  %v4045 = vld [vmem:[%s6 + $0x38] sm:$0xff]
  %v4046 = vld [vmem:[%s6 + $0x40] sm:$0xff]
  %v4047 = vld [vmem:[%s6 + $0x48] sm:$0xff]
  %v4048 = vld [vmem:[%s7] sm:$0xff]
  %v4049 = vld [vmem:[%s7 + $0x8] sm:$0xff]
  %v4050 = vld [vmem:[%s7 + $0x10] sm:$0xff]
  %v4051 = vld [vmem:[%s7 + $0x18] sm:$0xff]
  %4053 = vrot.lane.b32.xlu0 %v3876, 64
  %v4054 = vpop.permute.xlu0 %4053
  %v4056 = vadd.f32 %v3882, %v4054
  %4058 = vrot.lane.b32.xlu0 %v4056, 32
  %v4059 = vpop.permute.xlu0 %4058
  %v4060 = vsel %vm66, %v4059, 0
  %4062 = vmatprep.subr.mxu0 0.0
  %4063 = vmatpush1.msra.mxu0 %v4034
  %4064 = vmatprep.subr.mxu0 0.0
  %4065 = vmatpush1.msra.mxu0 %v4035
  %4066 = vmatprep.subr.mxu0 0.0
  %4067 = vmatpush1.msra.mxu0 %v4036
  %4068 = vmatprep.subr.mxu0 0.0
  %4069 = vmatpush1.msra.mxu0 %v4037
  %4070 = vmatprep.subr.mxu0 0.0
  %4071 = vmatpush1.msra.mxu0 0.0
  %4072 = vmatprep.subr.mxu0 0.0
  %4073 = vmatpush1.msra.mxu0 0.0
  %4074 = vmatprep.subr.mxu0 0.0
  %4075 = vmatpush1.msra.mxu0 0.0
  %4076 = vmatprep.subr.mxu0 0.0
  %4077 = vmatpush1.msra.mxu0 0.0
  %4078 = vmatprep.subr.mxu0 0.0
  %4079 = vmatpush1.msra.mxu0 0.0
  %4080 = vmatprep.subr.mxu0 0.0
  %4081 = vmatpush1.msra.mxu0 0.0
  %4082 = vmatprep.subr.mxu0 0.0
  %4083 = vmatpush1.msra.mxu0 0.0
  %4084 = vmatprep.subr.mxu0 0.0
  %4085 = vmatpush1.msra.mxu0 0.0
  %4086 = vmatprep.subr.mxu0 0.0
  %4087 = vmatpush1.msra.mxu0 0.0
  %4088 = vmatprep.subr.mxu0 0.0
  %4089 = vmatpush1.msra.mxu0 0.0
  %4090 = vmatprep.subr.mxu0 0.0
  %4091 = vmatpush1.msra.mxu0 0.0
  %4092 = vmatprep.subr.mxu0 0.0
  %4093 = vmatpush1.msra.mxu0 0.0
  %4094 = vmatprep.subr.mxu0 0.0
  %4095 = vmatpush1.msra.mxu0 0.0
  %4096 = vmatprep.subr.mxu0 0.0
  %4097 = vmatpush1.msra.mxu0 0.0
  %4098 = vmatprep.subr.mxu0 0.0
  %4099 = vmatpush1.msra.mxu0 0.0
  %4100 = vmatprep.subr.mxu0 0.0
  %4101 = vmatpush1.msra.mxu0 0.0
  %4102 = vmatprep.subr.mxu0 0.0
  %4103 = vmatpush1.msra.mxu0 0.0
  %4104 = vmatprep.subr.mxu0 0.0
  %4105 = vmatpush1.msra.mxu0 0.0
  %4106 = vmatprep.subr.mxu0 0.0
  %4107 = vmatpush1.msra.mxu0 0.0
  %4108 = vmatprep.subr.mxu0 0.0
  %4109 = vmatpush1.msra.mxu0 0.0
  %4110 = vmatprep.subr.mxu0 0.0
  %4111 = vmatpush1.msra.mxu0 0.0
  %4112 = vmatprep.subr.mxu0 0.0
  %4113 = vmatpush1.msra.mxu0 0.0
  %4114 = vmatprep.subr.mxu0 0.0
  %4115 = vmatpush1.msra.mxu0 0.0
  %4116 = vmatprep.subr.mxu0 0.0
  %4117 = vmatpush1.msra.mxu0 0.0
  %4118 = vmatprep.subr.mxu0 0.0
  %4119 = vmatpush1.msra.mxu0 0.0
  %4120 = vmatprep.subr.mxu0 0.0
  %4121 = vmatpush1.msra.mxu0 0.0
  %4122 = vmatprep.subr.mxu0 0.0
  %4123 = vmatpush1.msra.mxu0 0.0
  %4124 = vmatprep.subr.mxu0 0.0
  %4125 = vmatpush1.msra.mxu0 0.0
  %4126 = vmatprep.mubr.f32.mxu0 0.0
  %4127 = vmatmul.mubr.f32.gmra.mrb[0].mxu0 %v4060
  %v4128 = vpop.f32.mrb[0].mxu0
  %v4129 = vadd.f32 0.0, %v4128
  %v4130 = vpop.f32.mrb[0].mxu0
  %4131 = vdwg.mxu0
  %v4134 = vunpack.c.l.s4 1966171168
  %v4135 = vunpack.c.0.s8 %v4134
  %v4136 = vlaneseq
  %v4137 = vshrl.u32 %v4136, 7
  %v4138 = vsub.s32 %v4135, %v4137
  %v4139 = vrot.slane %v4129, %v4138
  %v4140 = vcombine.high %v4139, %v4139
  %v4142 = vunpack.c.l.s4 1966171168
  %v4143 = vunpack.c.0.s8 %v4142
  %v4144 = vlaneseq
  %v4145 = vshrl.u32 %v4144, 7
  %v4146 = vsub.s32 %v4143, %v4145
  %v4147 = vrot.slane %v4139, %v4146
  %v4149 = vunpack.c.l.s4 1966171168
  %v4150 = vunpack.c.0.s8 %v4149
  %v4151 = vlaneseq
  %v4152 = vshrl.u32 %v4151, 7
  %v4153 = vsub.s32 %v4150, %v4152
  %v4154 = vrot.slane %v4140, %v4153
  %v4155 = vlaneseq
  %v4156 = vshrl.u32 %v4155, 7
  %v4157 = vsub.s32 0, %v4156
  %v4158 = vrot.slane %v4147, %v4157
  %v4159 = vlaneseq
  %v4160 = vshrl.u32 %v4159, 7
  %v4161 = vsub.s32 0, %v4160
  %v4162 = vrot.slane %v4154, %v4161
  %v4165 = vadd.f32 %v4158, %v4032
  %v4166 = vadd.f32 %v4162, %v4033
  %v4167 = vtanh.pop %v4165
  %v4168 = vtanh.pop %v4166
  %v4169 = vmul.f32 %v4167, %v181
  %v4170 = vmul.f32 %v4168, %v181
  %v4171 = vsel %vm66, %v4169, 0.0
  %4172 = vadd.xlane.f32.xlu0 %v4171
  %v4173 = vpop.xlane.xlu0 %4172
  %v4174 = vsel %vm66, %v4170, 0.0
  %4175 = vadd.xlane.f32.xlu0 %v4174
  %v4176 = vpop.xlane.xlu0 %4175
  %v4179 = vlaneseq
  %v4180 = vshrl.u32 %v4179, 7
  %v4181 = vsub.s32 %v37, %v4180
  %v4182 = vrot.slane %v4173, %v4181
  %v4183 = vlaneseq
  %v4184 = vshrl.u32 %v4183, 7
  %v4185 = vsub.s32 %v37, %v4184
  %v4186 = vrot.slane %v4176, %v4185
  %v4187 = vsel %vm201, %v4186, %v4182
  %v4189 = vsel %vm204, %v4187, -inf
  %4190 = vmax.xlane.f32.xlu0 %v4189
  %v4191 = vpop.xlane.xlu0 %4190
  %v4193 = vlaneseq
  %v4194 = vshrl.u32 %v4193, 7
  %v4195 = vsub.s32 0, %v4194
  %v4196 = vrot.slane %v4191, %v4195
  %v4197 = vlaneseq
  %v4198 = vshrl.u32 %v4197, 7
  %v4199 = vsub.s32 1, %v4198
  %v4200 = vrot.slane %v4191, %v4199
  %v4203 = vsub.f32 %v4173, %v4196
  %v4204 = vsub.f32 %v4176, %v4200
  %v4205 = vmul.f32 %v4203, 1.442695
  %v4206 = vpow.pop %v4205
  %v4207 = vmul.f32 %v4204, 1.442695
  %v4208 = vpow.pop %v4207
  %4211 = vset.pattern.permute.xlu0 0
  %4212 = vperm.xlu0 %4211, %v4206
  %v4213 = vpop.permute.xlu0 %4212
  %4214 = vset.pattern.permute.xlu0 0
  %4215 = vperm.xlu0 %4214, %v4208
  %v4216 = vpop.permute.xlu0 %4215
  %v4217 = vlaneseq
  %v4218 = vshrl.u32 %v4217, 7
  %v4219 = vsub.s32 %v37, %v4218
  %v4220 = vrot.slane %v4213, %v4219
  %v4221 = vlaneseq
  %v4222 = vshrl.u32 %v4221, 7
  %v4223 = vsub.s32 %v37, %v4222
  %v4224 = vrot.slane %v4216, %v4223
  %v4225 = vsel %vm201, %v4224, %v4220
  %v4227 = vsel %vm204, %v4225, 0.0
  %4228 = vadd.xlane.f32.xlu0 %v4227
  %v4229 = vpop.xlane.xlu0 %4228
  %v4230 = vrcp.pop %v4229
  %v4232 = vlaneseq
  %v4233 = vshrl.u32 %v4232, 7
  %v4234 = vsub.s32 0, %v4233
  %v4235 = vrot.slane %v4230, %v4234
  %v4236 = vlaneseq
  %v4237 = vshrl.u32 %v4236, 7
  %v4238 = vsub.s32 1, %v4237
  %v4239 = vrot.slane %v4230, %v4238
  %v4242 = vmul.f32 %v4206, %v4235
  %v4243 = vmul.f32 %v4208, %v4239
  %4245 = vset.pattern.permute.xlu0 0
  %4246 = vperm.xlu0 %4245, %v4242
  %v4247 = vpop.permute.xlu0 %4246
  %4250 = vset.pattern.permute.xlu0 0
  %4251 = vperm.xlu0 %4250, %v4243
  %v4252 = vpop.permute.xlu0 %4251
  %v4254 = vmul.f32 %v4247, %v4030
  %v4255 = vmul.f32 %v4252, %v4031
  %v4256 = vsel %vm66, %v4254, 0.0
  %v4257 = vrot.slane %v4256, 4
  %v4258 = vadd.f32 %v4256, %v4257
  %v4259 = vrot.slane %v4258, 2
  %v4260 = vadd.f32 %v4258, %v4259
  %v4261 = vrot.slane %v4260, 1
  %v4262 = vadd.f32 %v4260, %v4261
  %v4263 = vsel %vm66, %v4255, 0.0
  %v4264 = vrot.slane %v4263, 4
  %v4265 = vadd.f32 %v4263, %v4264
  %v4266 = vrot.slane %v4265, 2
  %v4267 = vadd.f32 %v4265, %v4266
  %v4268 = vrot.slane %v4267, 1
  %v4269 = vadd.f32 %v4267, %v4268
  %v4272 = vsel %vm201, %v4269, %v4262
  %4273 = vrot.lane.b32.xlu0 %v4272, 16
  %v4274 = vpop.permute.xlu0 %4273
  %4276 = vrot.lane.b32.xlu0 %v3882, 80
  %v4277 = vpop.permute.xlu0 %4276
  %v4279 = vsel %vm296, %v4029, %v4274
  %v4280 = vsel %vm298, %v4279, %v4277
  %v4282 = vsel %vm300, %v4280, 0
  %4284 = vmatprep.subr.mxu0 0.0
  %4285 = vmatpush1.msra.mxu0 %v4038
  %4286 = vmatprep.subr.mxu0 0.0
  %4287 = vmatpush1.msra.mxu0 %v4039
  %4288 = vmatprep.subr.mxu0 0.0
  %4289 = vmatpush1.msra.mxu0 %v4040
  %4290 = vmatprep.subr.mxu0 0.0
  %4291 = vmatpush1.msra.mxu0 %v4041
  %4292 = vmatprep.subr.mxu0 0.0
  %4293 = vmatpush1.msra.mxu0 %v4042
  %4294 = vmatprep.subr.mxu0 0.0
  %4295 = vmatpush1.msra.mxu0 %v4043
  %4296 = vmatprep.subr.mxu0 0.0
  %4297 = vmatpush1.msra.mxu0 %v4044
  %4298 = vmatprep.subr.mxu0 0.0
  %4299 = vmatpush1.msra.mxu0 %v4045
  %4300 = vmatprep.subr.mxu0 0.0
  %4301 = vmatpush1.msra.mxu0 %v4046
  %4302 = vmatprep.subr.mxu0 0.0
  %4303 = vmatpush1.msra.mxu0 %v4047
  %4304 = vmatprep.subr.mxu0 0.0
  %4305 = vmatpush1.msra.mxu0 0.0
  %4306 = vmatprep.subr.mxu0 0.0
  %4307 = vmatpush1.msra.mxu0 0.0
  %4308 = vmatprep.subr.mxu0 0.0
  %4309 = vmatpush1.msra.mxu0 0.0
  %4310 = vmatprep.subr.mxu0 0.0
  %4311 = vmatpush1.msra.mxu0 0.0
  %4312 = vmatprep.subr.mxu0 0.0
  %4313 = vmatpush1.msra.mxu0 0.0
  %4314 = vmatprep.subr.mxu0 0.0
  %4315 = vmatpush1.msra.mxu0 0.0
  %4316 = vmatprep.subr.mxu0 0.0
  %4317 = vmatpush1.msra.mxu0 0.0
  %4318 = vmatprep.subr.mxu0 0.0
  %4319 = vmatpush1.msra.mxu0 0.0
  %4320 = vmatprep.subr.mxu0 0.0
  %4321 = vmatpush1.msra.mxu0 0.0
  %4322 = vmatprep.subr.mxu0 0.0
  %4323 = vmatpush1.msra.mxu0 0.0
  %4324 = vmatprep.subr.mxu0 0.0
  %4325 = vmatpush1.msra.mxu0 0.0
  %4326 = vmatprep.subr.mxu0 0.0
  %4327 = vmatpush1.msra.mxu0 0.0
  %4328 = vmatprep.subr.mxu0 0.0
  %4329 = vmatpush1.msra.mxu0 0.0
  %4330 = vmatprep.subr.mxu0 0.0
  %4331 = vmatpush1.msra.mxu0 0.0
  %4332 = vmatprep.subr.mxu0 0.0
  %4333 = vmatpush1.msra.mxu0 0.0
  %4334 = vmatprep.subr.mxu0 0.0
  %4335 = vmatpush1.msra.mxu0 0.0
  %4336 = vmatprep.subr.mxu0 0.0
  %4337 = vmatpush1.msra.mxu0 0.0
  %4338 = vmatprep.subr.mxu0 0.0
  %4339 = vmatpush1.msra.mxu0 0.0
  %4340 = vmatprep.subr.mxu0 0.0
  %4341 = vmatpush1.msra.mxu0 0.0
  %4342 = vmatprep.subr.mxu0 0.0
  %4343 = vmatpush1.msra.mxu0 0.0
  %4344 = vmatprep.subr.mxu0 0.0
  %4345 = vmatpush1.msra.mxu0 0.0
  %4346 = vmatprep.subr.mxu0 0.0
  %4347 = vmatpush1.msra.mxu0 0.0
  %4348 = vmatprep.mubr.f32.mxu0 0.0
  %4349 = vmatmul.mubr.f32.gmra.mrb[0].mxu0 %v4282
  %v4350 = vpop.f32.mrb[0].mxu0
  %v4351 = vadd.f32 0.0, %v4350
  %v4352 = vpop.f32.mrb[0].mxu0
  %4353 = vdwg.mxu0
  %v4354 = vxor.u32 %v4351, 2147483648
  %v4355 = vmul.f32 %v4354, 1.442695
  %v4356 = vpow.pop %v4355
  %v4357 = vadd.f32 %v4356, 1.0
  %v4358 = vrcp.pop %v4357
  %v4359 = vmul.f32 1.0, %v4358
  %v4360 = vmul.f32 %v4359, 2.0
  %v4361 = vsub.f32 %v4360, 1.0
  %v4362 = vmul.f32 %v4359, %v3876
  %4364 = vrot.lane.b32.xlu0 %v4361, 64
  %v4365 = vpop.permute.xlu0 %4364
  %v4367 = vmul.f32 %v4359, %v4365
  %4369 = vrot.lane.b32.xlu0 %v4367, 32
  %v4370 = vpop.permute.xlu0 %4369
  %v4372 = vadd.f32 %v4362, %v4370
  %v4373 = vtanh.pop %v4372
  %4375 = vrot.lane.b32.xlu0 %v4373, 64
  %v4376 = vpop.permute.xlu0 %4375
  %v4378 = vmul.f32 %v4359, %v4376
  %4380 = vrot.lane.b32.xlu0 %v4378, 32
  %v4381 = vpop.permute.xlu0 %4380
  %v4382 = vsel %vm66, %v4381, 0
  %4384 = vmatprep.subr.mxu0 0.0
  %4385 = vmatpush1.msra.mxu0 %v4048
  %4386 = vmatprep.subr.mxu0 0.0
  %4387 = vmatpush1.msra.mxu0 %v4049
  %4388 = vmatprep.subr.mxu0 0.0
  %4389 = vmatpush1.msra.mxu0 %v4050
  %4390 = vmatprep.subr.mxu0 0.0
  %4391 = vmatpush1.msra.mxu0 %v4051
  %4392 = vmatprep.subr.mxu0 0.0
  %4393 = vmatpush1.msra.mxu0 0.0
  %4394 = vmatprep.subr.mxu0 0.0
  %4395 = vmatpush1.msra.mxu0 0.0
  %4396 = vmatprep.subr.mxu0 0.0
  %4397 = vmatpush1.msra.mxu0 0.0
  %4398 = vmatprep.subr.mxu0 0.0
  %4399 = vmatpush1.msra.mxu0 0.0
  %4400 = vmatprep.subr.mxu0 0.0
  %4401 = vmatpush1.msra.mxu0 0.0
  %4402 = vmatprep.subr.mxu0 0.0
  %4403 = vmatpush1.msra.mxu0 0.0
  %4404 = vmatprep.subr.mxu0 0.0
  %4405 = vmatpush1.msra.mxu0 0.0
  %4406 = vmatprep.subr.mxu0 0.0
  %4407 = vmatpush1.msra.mxu0 0.0
  %4408 = vmatprep.subr.mxu0 0.0
  %4409 = vmatpush1.msra.mxu0 0.0
  %4410 = vmatprep.subr.mxu0 0.0
  %4411 = vmatpush1.msra.mxu0 0.0
  %4412 = vmatprep.subr.mxu0 0.0
  %4413 = vmatpush1.msra.mxu0 0.0
  %4414 = vmatprep.subr.mxu0 0.0
  %4415 = vmatpush1.msra.mxu0 0.0
  %4416 = vmatprep.subr.mxu0 0.0
  %4417 = vmatpush1.msra.mxu0 0.0
  %4418 = vmatprep.subr.mxu0 0.0
  %4419 = vmatpush1.msra.mxu0 0.0
  %4420 = vmatprep.subr.mxu0 0.0
  %4421 = vmatpush1.msra.mxu0 0.0
  %4422 = vmatprep.subr.mxu0 0.0
  %4423 = vmatpush1.msra.mxu0 0.0
  %4424 = vmatprep.subr.mxu0 0.0
  %4425 = vmatpush1.msra.mxu0 0.0
  %4426 = vmatprep.subr.mxu0 0.0
  %4427 = vmatpush1.msra.mxu0 0.0
  %4428 = vmatprep.subr.mxu0 0.0
  %4429 = vmatpush1.msra.mxu0 0.0
  %4430 = vmatprep.subr.mxu0 0.0
  %4431 = vmatpush1.msra.mxu0 0.0
  %4432 = vmatprep.subr.mxu0 0.0
  %4433 = vmatpush1.msra.mxu0 0.0
  %4434 = vmatprep.subr.mxu0 0.0
  %4435 = vmatpush1.msra.mxu0 0.0
  %4436 = vmatprep.subr.mxu0 0.0
  %4437 = vmatpush1.msra.mxu0 0.0
  %4438 = vmatprep.subr.mxu0 0.0
  %4439 = vmatpush1.msra.mxu0 0.0
  %4440 = vmatprep.subr.mxu0 0.0
  %4441 = vmatpush1.msra.mxu0 0.0
  %4442 = vmatprep.subr.mxu0 0.0
  %4443 = vmatpush1.msra.mxu0 0.0
  %4444 = vmatprep.subr.mxu0 0.0
  %4445 = vmatpush1.msra.mxu0 0.0
  %4446 = vmatprep.subr.mxu0 0.0
  %4447 = vmatpush1.msra.mxu0 0.0
  %4448 = vmatprep.mubr.f32.mxu0 0.0
  %4449 = vmatmul.mubr.f32.gmra.mrb[0].mxu0 %v4382
  %v4450 = vpop.f32.mrb[0].mxu0
  %v4451 = vadd.f32 %v407, %v4450
  %v4452 = vpop.f32.mrb[0].mxu0
  %4453 = vdwg.mxu0
  %v4454 = vsel %vm484, %v4451, -inf
  %4455 = vmax.xlane.f32.xlu0 %v4454
  %v4456 = vpop.xlane.xlu0 %4455
  %v4457 = vsub.f32 %v4451, %v4456
  %v4458 = vmul.f32 %v4457, 1.442695
  %v4459 = vpow.pop %v4458
  %v4460 = vsel %vm484, %v4459, 0.0
  %4461 = vadd.xlane.f32.xlu0 %v4460
  %v4462 = vpop.xlane.xlu0 %4461
  %v4463 = vlog2.pop %v4462
  %v4464 = vmul.f32 %v4463, 0.6931472
  %v4465 = vadd.f32 %v4464, %v4456
  %v4466 = vsub.f32 %v4451, %v4465
  %v4469 = vunpack.c.l.s4 1966171168
  %v4470 = vunpack.c.0.s8 %v4469
  %v4471 = vlaneseq
  %v4472 = vshrl.u32 %v4471, 7
  %v4473 = vsub.s32 %v4470, %v4472
  %v4474 = vrot.slane %v4466, %v4473
  %v4475 = vcombine.high %v4474, %v4474
  %v4477 = vunpack.c.l.s4 1966171168
  %v4478 = vunpack.c.0.s8 %v4477
  %v4479 = vlaneseq
  %v4480 = vshrl.u32 %v4479, 7
  %v4481 = vsub.s32 %v4478, %v4480
  %v4482 = vrot.slane %v4474, %v4481
  %v4484 = vunpack.c.l.s4 1966171168
  %v4485 = vunpack.c.0.s8 %v4484
  %v4486 = vlaneseq
  %v4487 = vshrl.u32 %v4486, 7
  %v4488 = vsub.s32 %v4485, %v4487
  %v4489 = vrot.slane %v4475, %v4488
  %4492 = vst [vmem:[%s9 + $0x8] sm:$0x1] %v4482
  %4493 = vst [vmem:[%s9 + $0x18] sm:$0x1] %v4489
  %v4494 = vlaneseq
  %v4495 = vshrl.u32 %v4494, 7
  %v4496 = vsub.s32 %v37, %v4495
  %v4497 = vrot.slane %v4247, %v4496
  %v4498 = vlaneseq
  %v4499 = vshrl.u32 %v4498, 7
  %v4500 = vsub.s32 %v37, %v4499
  %v4501 = vrot.slane %v4252, %v4500
  %4504 = vst.msk [vmem:[%s10 + $0x8] sm:$0x1] %vm535, %v4497
  %4505 = vst.msk [vmem:[%s10 + $0x18] sm:$0x1] %vm535, %v4501
  %vm4506 = vcmp.eq.f32.partialorder %v4451, %v4456
  %v4507 = vsel %vm4506, %v37, 128
  %v4508 = vsel %vm484, %v4507, 2147483647
  %v4509 = vand.u32 %v4508, 65535
  %v4510 = vshra.s32 %v4508, 16
  %v4511 = vcvt.s32.f32 %v4509
  %v4512 = vcvt.s32.f32 %v4510
  %4513 = vmin.xlane.f32.xlu0 %v4512
  %v4514 = vpop.xlane.xlu0 %4513
  %vm4515 = vcmp.eq.f32.partialorder %v4512, %v4514
  %v4516 = vsel %vm4515, %v4511, inf
  %4517 = vmin.xlane.f32.xlu0 %v4516
  %v4518 = vpop.xlane.xlu0 %4517
  %v4519 = vcvt.f32.s32 %v4518
  %v4520 = vcvt.f32.s32 %v4514
  %v4521 = vshll.u32 %v4520, 16
  %v4522 = vadd.s32 %v4521, %v4519
  %vm4523 = vcmp.eq.s32.totalorder %v37, %v4522
  %v4524 = vsel %vm4523, 1, 0
  %v4525 = vcvt.s32.f32 %v4524
  %v4526 = vld [vmem:[%s0] sm:$0xff]
  %v4527 = vld [vmem:[%s0 + $0x8] sm:$0xff]
  %v4528 = vld [vmem:[%s1] sm:$0xff]
  %v4529 = vld [vmem:[%s1 + $0x8] sm:$0xff]
  %v4530 = vld [vmem:[%s4] sm:$0xff]
  %v4531 = vld [vmem:[%s4 + $0x8] sm:$0xff]
  %v4532 = vld [vmem:[%s4 + $0x10] sm:$0xff]
  %v4533 = vld [vmem:[%s4 + $0x18] sm:$0xff]
  %v4534 = vld [vmem:[%s6] sm:$0xff]
  %v4535 = vld [vmem:[%s6 + $0x8] sm:$0xff]
  %v4536 = vld [vmem:[%s6 + $0x10] sm:$0xff]
  %v4537 = vld [vmem:[%s6 + $0x18] sm:$0xff]
  %v4538 = vld [vmem:[%s6 + $0x20] sm:$0xff]
  %v4539 = vld [vmem:[%s6 + $0x28] sm:$0xff]
  %v4540 = vld [vmem:[%s6 + $0x30] sm:$0xff]
  %v4541 = vld [vmem:[%s6 + $0x38] sm:$0xff]
  %v4542 = vld [vmem:[%s6 + $0x40] sm:$0xff]
  %v4543 = vld [vmem:[%s6 + $0x48] sm:$0xff]
  %v4544 = vld [vmem:[%s7] sm:$0xff]
  %v4545 = vld [vmem:[%s7 + $0x8] sm:$0xff]
  %v4546 = vld [vmem:[%s7 + $0x10] sm:$0xff]
  %v4547 = vld [vmem:[%s7 + $0x18] sm:$0xff]
  %4549 = vrot.lane.b32.xlu0 %v4372, 64
  %v4550 = vpop.permute.xlu0 %4549
  %v4552 = vadd.f32 %v4378, %v4550
  %4554 = vrot.lane.b32.xlu0 %v4552, 32
  %v4555 = vpop.permute.xlu0 %4554
  %v4556 = vsel %vm66, %v4555, 0
  %4558 = vmatprep.subr.mxu0 0.0
  %4559 = vmatpush1.msra.mxu0 %v4530
  %4560 = vmatprep.subr.mxu0 0.0
  %4561 = vmatpush1.msra.mxu0 %v4531
  %4562 = vmatprep.subr.mxu0 0.0
  %4563 = vmatpush1.msra.mxu0 %v4532
  %4564 = vmatprep.subr.mxu0 0.0
  %4565 = vmatpush1.msra.mxu0 %v4533
  %4566 = vmatprep.subr.mxu0 0.0
  %4567 = vmatpush1.msra.mxu0 0.0
  %4568 = vmatprep.subr.mxu0 0.0
  %4569 = vmatpush1.msra.mxu0 0.0
  %4570 = vmatprep.subr.mxu0 0.0
  %4571 = vmatpush1.msra.mxu0 0.0
  %4572 = vmatprep.subr.mxu0 0.0
  %4573 = vmatpush1.msra.mxu0 0.0
  %4574 = vmatprep.subr.mxu0 0.0
  %4575 = vmatpush1.msra.mxu0 0.0
  %4576 = vmatprep.subr.mxu0 0.0
  %4577 = vmatpush1.msra.mxu0 0.0
  %4578 = vmatprep.subr.mxu0 0.0
  %4579 = vmatpush1.msra.mxu0 0.0
  %4580 = vmatprep.subr.mxu0 0.0
  %4581 = vmatpush1.msra.mxu0 0.0
  %4582 = vmatprep.subr.mxu0 0.0
  %4583 = vmatpush1.msra.mxu0 0.0
  %4584 = vmatprep.subr.mxu0 0.0
  %4585 = vmatpush1.msra.mxu0 0.0
  %4586 = vmatprep.subr.mxu0 0.0
  %4587 = vmatpush1.msra.mxu0 0.0
  %4588 = vmatprep.subr.mxu0 0.0
  %4589 = vmatpush1.msra.mxu0 0.0
  %4590 = vmatprep.subr.mxu0 0.0
  %4591 = vmatpush1.msra.mxu0 0.0
  %4592 = vmatprep.subr.mxu0 0.0
  %4593 = vmatpush1.msra.mxu0 0.0
  %4594 = vmatprep.subr.mxu0 0.0
  %4595 = vmatpush1.msra.mxu0 0.0
  %4596 = vmatprep.subr.mxu0 0.0
  %4597 = vmatpush1.msra.mxu0 0.0
  %4598 = vmatprep.subr.mxu0 0.0
  %4599 = vmatpush1.msra.mxu0 0.0
  %4600 = vmatprep.subr.mxu0 0.0
  %4601 = vmatpush1.msra.mxu0 0.0
  %4602 = vmatprep.subr.mxu0 0.0
  %4603 = vmatpush1.msra.mxu0 0.0
  %4604 = vmatprep.subr.mxu0 0.0
  %4605 = vmatpush1.msra.mxu0 0.0
  %4606 = vmatprep.subr.mxu0 0.0
  %4607 = vmatpush1.msra.mxu0 0.0
  %4608 = vmatprep.subr.mxu0 0.0
  %4609 = vmatpush1.msra.mxu0 0.0
  %4610 = vmatprep.subr.mxu0 0.0
  %4611 = vmatpush1.msra.mxu0 0.0
  %4612 = vmatprep.subr.mxu0 0.0
  %4613 = vmatpush1.msra.mxu0 0.0
  %4614 = vmatprep.subr.mxu0 0.0
  %4615 = vmatpush1.msra.mxu0 0.0
  %4616 = vmatprep.subr.mxu0 0.0
  %4617 = vmatpush1.msra.mxu0 0.0
  %4618 = vmatprep.subr.mxu0 0.0
  %4619 = vmatpush1.msra.mxu0 0.0
  %4620 = vmatprep.subr.mxu0 0.0
  %4621 = vmatpush1.msra.mxu0 0.0
  %4622 = vmatprep.mubr.f32.mxu0 0.0
  %4623 = vmatmul.mubr.f32.gmra.mrb[0].mxu0 %v4556
  %v4624 = vpop.f32.mrb[0].mxu0
  %v4625 = vadd.f32 0.0, %v4624
  %v4626 = vpop.f32.mrb[0].mxu0
  %4627 = vdwg.mxu0
  %v4630 = vunpack.c.l.s4 1966171168
  %v4631 = vunpack.c.0.s8 %v4630
  %v4632 = vlaneseq
  %v4633 = vshrl.u32 %v4632, 7
  %v4634 = vsub.s32 %v4631, %v4633
  %v4635 = vrot.slane %v4625, %v4634
  %v4636 = vcombine.high %v4635, %v4635
  %v4638 = vunpack.c.l.s4 1966171168
  %v4639 = vunpack.c.0.s8 %v4638
  %v4640 = vlaneseq
  %v4641 = vshrl.u32 %v4640, 7
  %v4642 = vsub.s32 %v4639, %v4641
  %v4643 = vrot.slane %v4635, %v4642
  %v4645 = vunpack.c.l.s4 1966171168
  %v4646 = vunpack.c.0.s8 %v4645
  %v4647 = vlaneseq
  %v4648 = vshrl.u32 %v4647, 7
  %v4649 = vsub.s32 %v4646, %v4648
  %v4650 = vrot.slane %v4636, %v4649
  %v4651 = vlaneseq
  %v4652 = vshrl.u32 %v4651, 7
  %v4653 = vsub.s32 0, %v4652
  %v4654 = vrot.slane %v4643, %v4653
  %v4655 = vlaneseq
  %v4656 = vshrl.u32 %v4655, 7
  %v4657 = vsub.s32 0, %v4656
  %v4658 = vrot.slane %v4650, %v4657
  %v4661 = vadd.f32 %v4654, %v4528
  %v4662 = vadd.f32 %v4658, %v4529
  %v4663 = vtanh.pop %v4661
  %v4664 = vtanh.pop %v4662
  %v4665 = vmul.f32 %v4663, %v181
  %v4666 = vmul.f32 %v4664, %v181
  %v4667 = vsel %vm66, %v4665, 0.0
  %4668 = vadd.xlane.f32.xlu0 %v4667
  %v4669 = vpop.xlane.xlu0 %4668
  %v4670 = vsel %vm66, %v4666, 0.0
  %4671 = vadd.xlane.f32.xlu0 %v4670
  %v4672 = vpop.xlane.xlu0 %4671
  %v4675 = vlaneseq
  %v4676 = vshrl.u32 %v4675, 7
  %v4677 = vsub.s32 %v37, %v4676
  %v4678 = vrot.slane %v4669, %v4677
  %v4679 = vlaneseq
  %v4680 = vshrl.u32 %v4679, 7
  %v4681 = vsub.s32 %v37, %v4680
  %v4682 = vrot.slane %v4672, %v4681
  %v4683 = vsel %vm201, %v4682, %v4678
  %v4685 = vsel %vm204, %v4683, -inf
  %4686 = vmax.xlane.f32.xlu0 %v4685
  %v4687 = vpop.xlane.xlu0 %4686
  %v4689 = vlaneseq
  %v4690 = vshrl.u32 %v4689, 7
  %v4691 = vsub.s32 0, %v4690
  %v4692 = vrot.slane %v4687, %v4691
  %v4693 = vlaneseq
  %v4694 = vshrl.u32 %v4693, 7
  %v4695 = vsub.s32 1, %v4694
  %v4696 = vrot.slane %v4687, %v4695
  %v4699 = vsub.f32 %v4669, %v4692
  %v4700 = vsub.f32 %v4672, %v4696
  %v4701 = vmul.f32 %v4699, 1.442695
  %v4702 = vpow.pop %v4701
  %v4703 = vmul.f32 %v4700, 1.442695
  %v4704 = vpow.pop %v4703
  %4707 = vset.pattern.permute.xlu0 0
  %4708 = vperm.xlu0 %4707, %v4702
  %v4709 = vpop.permute.xlu0 %4708
  %4710 = vset.pattern.permute.xlu0 0
  %4711 = vperm.xlu0 %4710, %v4704
  %v4712 = vpop.permute.xlu0 %4711
  %v4713 = vlaneseq
  %v4714 = vshrl.u32 %v4713, 7
  %v4715 = vsub.s32 %v37, %v4714
  %v4716 = vrot.slane %v4709, %v4715
  %v4717 = vlaneseq
  %v4718 = vshrl.u32 %v4717, 7
  %v4719 = vsub.s32 %v37, %v4718
  %v4720 = vrot.slane %v4712, %v4719
  %v4721 = vsel %vm201, %v4720, %v4716
  %v4723 = vsel %vm204, %v4721, 0.0
  %4724 = vadd.xlane.f32.xlu0 %v4723
  %v4725 = vpop.xlane.xlu0 %4724
  %v4726 = vrcp.pop %v4725
  %v4728 = vlaneseq
  %v4729 = vshrl.u32 %v4728, 7
  %v4730 = vsub.s32 0, %v4729
  %v4731 = vrot.slane %v4726, %v4730
  %v4732 = vlaneseq
  %v4733 = vshrl.u32 %v4732, 7
  %v4734 = vsub.s32 1, %v4733
  %v4735 = vrot.slane %v4726, %v4734
  %v4738 = vmul.f32 %v4702, %v4731
  %v4739 = vmul.f32 %v4704, %v4735
  %4741 = vset.pattern.permute.xlu0 0
  %4742 = vperm.xlu0 %4741, %v4738
  %v4743 = vpop.permute.xlu0 %4742
  %4746 = vset.pattern.permute.xlu0 0
  %4747 = vperm.xlu0 %4746, %v4739
  %v4748 = vpop.permute.xlu0 %4747
  %v4750 = vmul.f32 %v4743, %v4526
  %v4751 = vmul.f32 %v4748, %v4527
  %v4752 = vsel %vm66, %v4750, 0.0
  %v4753 = vrot.slane %v4752, 4
  %v4754 = vadd.f32 %v4752, %v4753
  %v4755 = vrot.slane %v4754, 2
  %v4756 = vadd.f32 %v4754, %v4755
  %v4757 = vrot.slane %v4756, 1
  %v4758 = vadd.f32 %v4756, %v4757
  %v4759 = vsel %vm66, %v4751, 0.0
  %v4760 = vrot.slane %v4759, 4
  %v4761 = vadd.f32 %v4759, %v4760
  %v4762 = vrot.slane %v4761, 2
  %v4763 = vadd.f32 %v4761, %v4762
  %v4764 = vrot.slane %v4763, 1
  %v4765 = vadd.f32 %v4763, %v4764
  %v4768 = vsel %vm201, %v4765, %v4758
  %4769 = vrot.lane.b32.xlu0 %v4768, 16
  %v4770 = vpop.permute.xlu0 %4769
  %4772 = vrot.lane.b32.xlu0 %v4378, 80
  %v4773 = vpop.permute.xlu0 %4772
  %v4775 = vsel %vm296, %v4525, %v4770
  %v4776 = vsel %vm298, %v4775, %v4773
  %v4778 = vsel %vm300, %v4776, 0
  %4780 = vmatprep.subr.mxu0 0.0
  %4781 = vmatpush1.msra.mxu0 %v4534
  %4782 = vmatprep.subr.mxu0 0.0
  %4783 = vmatpush1.msra.mxu0 %v4535
  %4784 = vmatprep.subr.mxu0 0.0
  %4785 = vmatpush1.msra.mxu0 %v4536
  %4786 = vmatprep.subr.mxu0 0.0
  %4787 = vmatpush1.msra.mxu0 %v4537
  %4788 = vmatprep.subr.mxu0 0.0
  %4789 = vmatpush1.msra.mxu0 %v4538
  %4790 = vmatprep.subr.mxu0 0.0
  %4791 = vmatpush1.msra.mxu0 %v4539
  %4792 = vmatprep.subr.mxu0 0.0
  %4793 = vmatpush1.msra.mxu0 %v4540
  %4794 = vmatprep.subr.mxu0 0.0
  %4795 = vmatpush1.msra.mxu0 %v4541
  %4796 = vmatprep.subr.mxu0 0.0
  %4797 = vmatpush1.msra.mxu0 %v4542
  %4798 = vmatprep.subr.mxu0 0.0
  %4799 = vmatpush1.msra.mxu0 %v4543
  %4800 = vmatprep.subr.mxu0 0.0
  %4801 = vmatpush1.msra.mxu0 0.0
  %4802 = vmatprep.subr.mxu0 0.0
  %4803 = vmatpush1.msra.mxu0 0.0
  %4804 = vmatprep.subr.mxu0 0.0
  %4805 = vmatpush1.msra.mxu0 0.0
  %4806 = vmatprep.subr.mxu0 0.0
  %4807 = vmatpush1.msra.mxu0 0.0
  %4808 = vmatprep.subr.mxu0 0.0
  %4809 = vmatpush1.msra.mxu0 0.0
  %4810 = vmatprep.subr.mxu0 0.0
  %4811 = vmatpush1.msra.mxu0 0.0
  %4812 = vmatprep.subr.mxu0 0.0
  %4813 = vmatpush1.msra.mxu0 0.0
  %4814 = vmatprep.subr.mxu0 0.0
  %4815 = vmatpush1.msra.mxu0 0.0
  %4816 = vmatprep.subr.mxu0 0.0
  %4817 = vmatpush1.msra.mxu0 0.0
  %4818 = vmatprep.subr.mxu0 0.0
  %4819 = vmatpush1.msra.mxu0 0.0
  %4820 = vmatprep.subr.mxu0 0.0
  %4821 = vmatpush1.msra.mxu0 0.0
  %4822 = vmatprep.subr.mxu0 0.0
  %4823 = vmatpush1.msra.mxu0 0.0
  %4824 = vmatprep.subr.mxu0 0.0
  %4825 = vmatpush1.msra.mxu0 0.0
  %4826 = vmatprep.subr.mxu0 0.0
  %4827 = vmatpush1.msra.mxu0 0.0
  %4828 = vmatprep.subr.mxu0 0.0
  %4829 = vmatpush1.msra.mxu0 0.0
  %4830 = vmatprep.subr.mxu0 0.0
  %4831 = vmatpush1.msra.mxu0 0.0
  %4832 = vmatprep.subr.mxu0 0.0
  %4833 = vmatpush1.msra.mxu0 0.0
  %4834 = vmatprep.subr.mxu0 0.0
  %4835 = vmatpush1.msra.mxu0 0.0
  %4836 = vmatprep.subr.mxu0 0.0
  %4837 = vmatpush1.msra.mxu0 0.0
  %4838 = vmatprep.subr.mxu0 0.0
  %4839 = vmatpush1.msra.mxu0 0.0
  %4840 = vmatprep.subr.mxu0 0.0
  %4841 = vmatpush1.msra.mxu0 0.0
  %4842 = vmatprep.subr.mxu0 0.0
  %4843 = vmatpush1.msra.mxu0 0.0
  %4844 = vmatprep.mubr.f32.mxu0 0.0
  %4845 = vmatmul.mubr.f32.gmra.mrb[0].mxu0 %v4778
  %v4846 = vpop.f32.mrb[0].mxu0
  %v4847 = vadd.f32 0.0, %v4846
  %v4848 = vpop.f32.mrb[0].mxu0
  %4849 = vdwg.mxu0
  %v4850 = vxor.u32 %v4847, 2147483648
  %v4851 = vmul.f32 %v4850, 1.442695
  %v4852 = vpow.pop %v4851
  %v4853 = vadd.f32 %v4852, 1.0
  %v4854 = vrcp.pop %v4853
  %v4855 = vmul.f32 1.0, %v4854
  %v4856 = vmul.f32 %v4855, 2.0
  %v4857 = vsub.f32 %v4856, 1.0
  %v4858 = vmul.f32 %v4855, %v4372
  %4860 = vrot.lane.b32.xlu0 %v4857, 64
  %v4861 = vpop.permute.xlu0 %4860
  %v4863 = vmul.f32 %v4855, %v4861
  %4865 = vrot.lane.b32.xlu0 %v4863, 32
  %v4866 = vpop.permute.xlu0 %4865
  %v4868 = vadd.f32 %v4858, %v4866
  %v4869 = vtanh.pop %v4868
  %4871 = vrot.lane.b32.xlu0 %v4869, 64
  %v4872 = vpop.permute.xlu0 %4871
  %v4874 = vmul.f32 %v4855, %v4872
  %4876 = vrot.lane.b32.xlu0 %v4874, 32
  %v4877 = vpop.permute.xlu0 %4876
  %v4878 = vsel %vm66, %v4877, 0
  %4880 = vmatprep.subr.mxu0 0.0
  %4881 = vmatpush1.msra.mxu0 %v4544
  %4882 = vmatprep.subr.mxu0 0.0
  %4883 = vmatpush1.msra.mxu0 %v4545
  %4884 = vmatprep.subr.mxu0 0.0
  %4885 = vmatpush1.msra.mxu0 %v4546
  %4886 = vmatprep.subr.mxu0 0.0
  %4887 = vmatpush1.msra.mxu0 %v4547
  %4888 = vmatprep.subr.mxu0 0.0
  %4889 = vmatpush1.msra.mxu0 0.0
  %4890 = vmatprep.subr.mxu0 0.0
  %4891 = vmatpush1.msra.mxu0 0.0
  %4892 = vmatprep.subr.mxu0 0.0
  %4893 = vmatpush1.msra.mxu0 0.0
  %4894 = vmatprep.subr.mxu0 0.0
  %4895 = vmatpush1.msra.mxu0 0.0
  %4896 = vmatprep.subr.mxu0 0.0
  %4897 = vmatpush1.msra.mxu0 0.0
  %4898 = vmatprep.subr.mxu0 0.0
  %4899 = vmatpush1.msra.mxu0 0.0
  %4900 = vmatprep.subr.mxu0 0.0
  %4901 = vmatpush1.msra.mxu0 0.0
  %4902 = vmatprep.subr.mxu0 0.0
  %4903 = vmatpush1.msra.mxu0 0.0
  %4904 = vmatprep.subr.mxu0 0.0
  %4905 = vmatpush1.msra.mxu0 0.0
  %4906 = vmatprep.subr.mxu0 0.0
  %4907 = vmatpush1.msra.mxu0 0.0
  %4908 = vmatprep.subr.mxu0 0.0
  %4909 = vmatpush1.msra.mxu0 0.0
  %4910 = vmatprep.subr.mxu0 0.0
  %4911 = vmatpush1.msra.mxu0 0.0
  %4912 = vmatprep.subr.mxu0 0.0
  %4913 = vmatpush1.msra.mxu0 0.0
  %4914 = vmatprep.subr.mxu0 0.0
  %4915 = vmatpush1.msra.mxu0 0.0
  %4916 = vmatprep.subr.mxu0 0.0
  %4917 = vmatpush1.msra.mxu0 0.0
  %4918 = vmatprep.subr.mxu0 0.0
  %4919 = vmatpush1.msra.mxu0 0.0
  %4920 = vmatprep.subr.mxu0 0.0
  %4921 = vmatpush1.msra.mxu0 0.0
  %4922 = vmatprep.subr.mxu0 0.0
  %4923 = vmatpush1.msra.mxu0 0.0
  %4924 = vmatprep.subr.mxu0 0.0
  %4925 = vmatpush1.msra.mxu0 0.0
  %4926 = vmatprep.subr.mxu0 0.0
  %4927 = vmatpush1.msra.mxu0 0.0
  %4928 = vmatprep.subr.mxu0 0.0
  %4929 = vmatpush1.msra.mxu0 0.0
  %4930 = vmatprep.subr.mxu0 0.0
  %4931 = vmatpush1.msra.mxu0 0.0
  %4932 = vmatprep.subr.mxu0 0.0
  %4933 = vmatpush1.msra.mxu0 0.0
  %4934 = vmatprep.subr.mxu0 0.0
  %4935 = vmatpush1.msra.mxu0 0.0
  %4936 = vmatprep.subr.mxu0 0.0
  %4937 = vmatpush1.msra.mxu0 0.0
  %4938 = vmatprep.subr.mxu0 0.0
  %4939 = vmatpush1.msra.mxu0 0.0
  %4940 = vmatprep.subr.mxu0 0.0
  %4941 = vmatpush1.msra.mxu0 0.0
  %4942 = vmatprep.subr.mxu0 0.0
  %4943 = vmatpush1.msra.mxu0 0.0
  %4944 = vmatprep.mubr.f32.mxu0 0.0
  %4945 = vmatmul.mubr.f32.gmra.mrb[0].mxu0 %v4878
  %v4946 = vpop.f32.mrb[0].mxu0
  %v4947 = vadd.f32 %v407, %v4946
  %v4948 = vpop.f32.mrb[0].mxu0
  %4949 = vdwg.mxu0
  %v4950 = vsel %vm484, %v4947, -inf
  %4951 = vmax.xlane.f32.xlu0 %v4950
  %v4952 = vpop.xlane.xlu0 %4951
  %v4953 = vsub.f32 %v4947, %v4952
  %v4954 = vmul.f32 %v4953, 1.442695
  %v4955 = vpow.pop %v4954
  %v4956 = vsel %vm484, %v4955, 0.0
  %4957 = vadd.xlane.f32.xlu0 %v4956
  %v4958 = vpop.xlane.xlu0 %4957
  %v4959 = vlog2.pop %v4958
  %v4960 = vmul.f32 %v4959, 0.6931472
  %v4961 = vadd.f32 %v4960, %v4952
  %v4962 = vsub.f32 %v4947, %v4961
  %v4965 = vunpack.c.l.s4 1966171168
  %v4966 = vunpack.c.0.s8 %v4965
  %v4967 = vlaneseq
  %v4968 = vshrl.u32 %v4967, 7
  %v4969 = vsub.s32 %v4966, %v4968
  %v4970 = vrot.slane %v4962, %v4969
  %v4971 = vcombine.high %v4970, %v4970
  %v4973 = vunpack.c.l.s4 1966171168
  %v4974 = vunpack.c.0.s8 %v4973
  %v4975 = vlaneseq
  %v4976 = vshrl.u32 %v4975, 7
  %v4977 = vsub.s32 %v4974, %v4976
  %v4978 = vrot.slane %v4970, %v4977
  %v4980 = vunpack.c.l.s4 1966171168
  %v4981 = vunpack.c.0.s8 %v4980
  %v4982 = vlaneseq
  %v4983 = vshrl.u32 %v4982, 7
  %v4984 = vsub.s32 %v4981, %v4983
  %v4985 = vrot.slane %v4971, %v4984
  %4988 = vst [vmem:[%s9 + $0x9] sm:$0x1] %v4978
  %4989 = vst [vmem:[%s9 + $0x19] sm:$0x1] %v4985
  %v4990 = vlaneseq
  %v4991 = vshrl.u32 %v4990, 7
  %v4992 = vsub.s32 %v37, %v4991
  %v4993 = vrot.slane %v4743, %v4992
  %v4994 = vlaneseq
  %v4995 = vshrl.u32 %v4994, 7
  %v4996 = vsub.s32 %v37, %v4995
  %v4997 = vrot.slane %v4748, %v4996
  %5000 = vst.msk [vmem:[%s10 + $0x9] sm:$0x1] %vm535, %v4993
  %5001 = vst.msk [vmem:[%s10 + $0x19] sm:$0x1] %vm535, %v4997
  %vm5002 = vcmp.eq.f32.partialorder %v4947, %v4952
  %v5003 = vsel %vm5002, %v37, 128
  %v5004 = vsel %vm484, %v5003, 2147483647
  %v5005 = vand.u32 %v5004, 65535
  %v5006 = vshra.s32 %v5004, 16
  %v5007 = vcvt.s32.f32 %v5005
  %v5008 = vcvt.s32.f32 %v5006
  %5009 = vmin.xlane.f32.xlu0 %v5008
  %v5010 = vpop.xlane.xlu0 %5009
  %vm5011 = vcmp.eq.f32.partialorder %v5008, %v5010
  %v5012 = vsel %vm5011, %v5007, inf
  %5013 = vmin.xlane.f32.xlu0 %v5012
  %v5014 = vpop.xlane.xlu0 %5013
  %v5015 = vcvt.f32.s32 %v5014
  %v5016 = vcvt.f32.s32 %v5010
  %v5017 = vshll.u32 %v5016, 16
  %v5018 = vadd.s32 %v5017, %v5015
  %vm5019 = vcmp.eq.s32.totalorder %v37, %v5018
  %v5020 = vsel %vm5019, 1, 0
  %v5021 = vcvt.s32.f32 %v5020
  %v5022 = vld [vmem:[%s0] sm:$0xff]
  %v5023 = vld [vmem:[%s0 + $0x8] sm:$0xff]
  %v5024 = vld [vmem:[%s1] sm:$0xff]
  %v5025 = vld [vmem:[%s1 + $0x8] sm:$0xff]
  %v5026 = vld [vmem:[%s4] sm:$0xff]
  %v5027 = vld [vmem:[%s4 + $0x8] sm:$0xff]
  %v5028 = vld [vmem:[%s4 + $0x10] sm:$0xff]
  %v5029 = vld [vmem:[%s4 + $0x18] sm:$0xff]
  %v5030 = vld [vmem:[%s6] sm:$0xff]
  %v5031 = vld [vmem:[%s6 + $0x8] sm:$0xff]
  %v5032 = vld [vmem:[%s6 + $0x10] sm:$0xff]
  %v5033 = vld [vmem:[%s6 + $0x18] sm:$0xff]
  %v5034 = vld [vmem:[%s6 + $0x20] sm:$0xff]
  %v5035 = vld [vmem:[%s6 + $0x28] sm:$0xff]
  %v5036 = vld [vmem:[%s6 + $0x30] sm:$0xff]
  %v5037 = vld [vmem:[%s6 + $0x38] sm:$0xff]
  %v5038 = vld [vmem:[%s6 + $0x40] sm:$0xff]
  %v5039 = vld [vmem:[%s6 + $0x48] sm:$0xff]
  %v5040 = vld [vmem:[%s7] sm:$0xff]
  %v5041 = vld [vmem:[%s7 + $0x8] sm:$0xff]
  %v5042 = vld [vmem:[%s7 + $0x10] sm:$0xff]
  %v5043 = vld [vmem:[%s7 + $0x18] sm:$0xff]
  %5045 = vrot.lane.b32.xlu0 %v4868, 64
  %v5046 = vpop.permute.xlu0 %5045
  %v5048 = vadd.f32 %v4874, %v5046
  %5050 = vrot.lane.b32.xlu0 %v5048, 32
  %v5051 = vpop.permute.xlu0 %5050
  %v5052 = vsel %vm66, %v5051, 0
  %5054 = vmatprep.subr.mxu0 0.0
  %5055 = vmatpush1.msra.mxu0 %v5026
  %5056 = vmatprep.subr.mxu0 0.0
  %5057 = vmatpush1.msra.mxu0 %v5027
  %5058 = vmatprep.subr.mxu0 0.0
  %5059 = vmatpush1.msra.mxu0 %v5028
  %5060 = vmatprep.subr.mxu0 0.0
  %5061 = vmatpush1.msra.mxu0 %v5029
  %5062 = vmatprep.subr.mxu0 0.0
  %5063 = vmatpush1.msra.mxu0 0.0
  %5064 = vmatprep.subr.mxu0 0.0
  %5065 = vmatpush1.msra.mxu0 0.0
  %5066 = vmatprep.subr.mxu0 0.0
  %5067 = vmatpush1.msra.mxu0 0.0
  %5068 = vmatprep.subr.mxu0 0.0
  %5069 = vmatpush1.msra.mxu0 0.0
  %5070 = vmatprep.subr.mxu0 0.0
  %5071 = vmatpush1.msra.mxu0 0.0
  %5072 = vmatprep.subr.mxu0 0.0
  %5073 = vmatpush1.msra.mxu0 0.0
  %5074 = vmatprep.subr.mxu0 0.0
  %5075 = vmatpush1.msra.mxu0 0.0
  %5076 = vmatprep.subr.mxu0 0.0
  %5077 = vmatpush1.msra.mxu0 0.0
  %5078 = vmatprep.subr.mxu0 0.0
  %5079 = vmatpush1.msra.mxu0 0.0
  %5080 = vmatprep.subr.mxu0 0.0
  %5081 = vmatpush1.msra.mxu0 0.0
  %5082 = vmatprep.subr.mxu0 0.0
  %5083 = vmatpush1.msra.mxu0 0.0
  %5084 = vmatprep.subr.mxu0 0.0
  %5085 = vmatpush1.msra.mxu0 0.0
  %5086 = vmatprep.subr.mxu0 0.0
  %5087 = vmatpush1.msra.mxu0 0.0
  %5088 = vmatprep.subr.mxu0 0.0
  %5089 = vmatpush1.msra.mxu0 0.0
  %5090 = vmatprep.subr.mxu0 0.0
  %5091 = vmatpush1.msra.mxu0 0.0
  %5092 = vmatprep.subr.mxu0 0.0
  %5093 = vmatpush1.msra.mxu0 0.0
  %5094 = vmatprep.subr.mxu0 0.0
  %5095 = vmatpush1.msra.mxu0 0.0
  %5096 = vmatprep.subr.mxu0 0.0
  %5097 = vmatpush1.msra.mxu0 0.0
  %5098 = vmatprep.subr.mxu0 0.0
  %5099 = vmatpush1.msra.mxu0 0.0
  %5100 = vmatprep.subr.mxu0 0.0
  %5101 = vmatpush1.msra.mxu0 0.0
  %5102 = vmatprep.subr.mxu0 0.0
  %5103 = vmatpush1.msra.mxu0 0.0
  %5104 = vmatprep.subr.mxu0 0.0
  %5105 = vmatpush1.msra.mxu0 0.0
  %5106 = vmatprep.subr.mxu0 0.0
  %5107 = vmatpush1.msra.mxu0 0.0
  %5108 = vmatprep.subr.mxu0 0.0
  %5109 = vmatpush1.msra.mxu0 0.0
  %5110 = vmatprep.subr.mxu0 0.0
  %5111 = vmatpush1.msra.mxu0 0.0
  %5112 = vmatprep.subr.mxu0 0.0
  %5113 = vmatpush1.msra.mxu0 0.0
  %5114 = vmatprep.subr.mxu0 0.0
  %5115 = vmatpush1.msra.mxu0 0.0
  %5116 = vmatprep.subr.mxu0 0.0
  %5117 = vmatpush1.msra.mxu0 0.0
  %5118 = vmatprep.mubr.f32.mxu0 0.0
  %5119 = vmatmul.mubr.f32.gmra.mrb[0].mxu0 %v5052
  %v5120 = vpop.f32.mrb[0].mxu0
  %v5121 = vadd.f32 0.0, %v5120
  %v5122 = vpop.f32.mrb[0].mxu0
  %5123 = vdwg.mxu0
  %v5126 = vunpack.c.l.s4 1966171168
  %v5127 = vunpack.c.0.s8 %v5126
  %v5128 = vlaneseq
  %v5129 = vshrl.u32 %v5128, 7
  %v5130 = vsub.s32 %v5127, %v5129
  %v5131 = vrot.slane %v5121, %v5130
  %v5132 = vcombine.high %v5131, %v5131
  %v5134 = vunpack.c.l.s4 1966171168
  %v5135 = vunpack.c.0.s8 %v5134
  %v5136 = vlaneseq
  %v5137 = vshrl.u32 %v5136, 7
  %v5138 = vsub.s32 %v5135, %v5137
  %v5139 = vrot.slane %v5131, %v5138
  %v5141 = vunpack.c.l.s4 1966171168
  %v5142 = vunpack.c.0.s8 %v5141
  %v5143 = vlaneseq
  %v5144 = vshrl.u32 %v5143, 7
  %v5145 = vsub.s32 %v5142, %v5144
  %v5146 = vrot.slane %v5132, %v5145
  %v5147 = vlaneseq
  %v5148 = vshrl.u32 %v5147, 7
  %v5149 = vsub.s32 0, %v5148
  %v5150 = vrot.slane %v5139, %v5149
  %v5151 = vlaneseq
  %v5152 = vshrl.u32 %v5151, 7
  %v5153 = vsub.s32 0, %v5152
  %v5154 = vrot.slane %v5146, %v5153
  %v5157 = vadd.f32 %v5150, %v5024
  %v5158 = vadd.f32 %v5154, %v5025
  %v5159 = vtanh.pop %v5157
  %v5160 = vtanh.pop %v5158
  %v5161 = vmul.f32 %v5159, %v181
  %v5162 = vmul.f32 %v5160, %v181
  %v5163 = vsel %vm66, %v5161, 0.0
  %5164 = vadd.xlane.f32.xlu0 %v5163
  %v5165 = vpop.xlane.xlu0 %5164
  %v5166 = vsel %vm66, %v5162, 0.0
  %5167 = vadd.xlane.f32.xlu0 %v5166
  %v5168 = vpop.xlane.xlu0 %5167
  %v5171 = vlaneseq
  %v5172 = vshrl.u32 %v5171, 7
  %v5173 = vsub.s32 %v37, %v5172
  %v5174 = vrot.slane %v5165, %v5173
  %v5175 = vlaneseq
  %v5176 = vshrl.u32 %v5175, 7
  %v5177 = vsub.s32 %v37, %v5176
  %v5178 = vrot.slane %v5168, %v5177
  %v5179 = vsel %vm201, %v5178, %v5174
  %v5181 = vsel %vm204, %v5179, -inf
  %5182 = vmax.xlane.f32.xlu0 %v5181
  %v5183 = vpop.xlane.xlu0 %5182
  %v5185 = vlaneseq
  %v5186 = vshrl.u32 %v5185, 7
  %v5187 = vsub.s32 0, %v5186
  %v5188 = vrot.slane %v5183, %v5187
  %v5189 = vlaneseq
  %v5190 = vshrl.u32 %v5189, 7
  %v5191 = vsub.s32 1, %v5190
  %v5192 = vrot.slane %v5183, %v5191
  %v5195 = vsub.f32 %v5165, %v5188
  %v5196 = vsub.f32 %v5168, %v5192
  %v5197 = vmul.f32 %v5195, 1.442695
  %v5198 = vpow.pop %v5197
  %v5199 = vmul.f32 %v5196, 1.442695
  %v5200 = vpow.pop %v5199
  %5203 = vset.pattern.permute.xlu0 0
  %5204 = vperm.xlu0 %5203, %v5198
  %v5205 = vpop.permute.xlu0 %5204
  %5206 = vset.pattern.permute.xlu0 0
  %5207 = vperm.xlu0 %5206, %v5200
  %v5208 = vpop.permute.xlu0 %5207
  %v5209 = vlaneseq
  %v5210 = vshrl.u32 %v5209, 7
  %v5211 = vsub.s32 %v37, %v5210
  %v5212 = vrot.slane %v5205, %v5211
  %v5213 = vlaneseq
  %v5214 = vshrl.u32 %v5213, 7
  %v5215 = vsub.s32 %v37, %v5214
  %v5216 = vrot.slane %v5208, %v5215
  %v5217 = vsel %vm201, %v5216, %v5212
  %v5219 = vsel %vm204, %v5217, 0.0
  %5220 = vadd.xlane.f32.xlu0 %v5219
  %v5221 = vpop.xlane.xlu0 %5220
  %v5222 = vrcp.pop %v5221
  %v5224 = vlaneseq
  %v5225 = vshrl.u32 %v5224, 7
  %v5226 = vsub.s32 0, %v5225
  %v5227 = vrot.slane %v5222, %v5226
  %v5228 = vlaneseq
  %v5229 = vshrl.u32 %v5228, 7
  %v5230 = vsub.s32 1, %v5229
  %v5231 = vrot.slane %v5222, %v5230
  %v5234 = vmul.f32 %v5198, %v5227
  %v5235 = vmul.f32 %v5200, %v5231
  %5237 = vset.pattern.permute.xlu0 0
  %5238 = vperm.xlu0 %5237, %v5234
  %v5239 = vpop.permute.xlu0 %5238
  %5242 = vset.pattern.permute.xlu0 0
  %5243 = vperm.xlu0 %5242, %v5235
  %v5244 = vpop.permute.xlu0 %5243
  %v5246 = vmul.f32 %v5239, %v5022
  %v5247 = vmul.f32 %v5244, %v5023
  %v5248 = vsel %vm66, %v5246, 0.0
  %v5249 = vrot.slane %v5248, 4
  %v5250 = vadd.f32 %v5248, %v5249
  %v5251 = vrot.slane %v5250, 2
  %v5252 = vadd.f32 %v5250, %v5251
  %v5253 = vrot.slane %v5252, 1
  %v5254 = vadd.f32 %v5252, %v5253
  %v5255 = vsel %vm66, %v5247, 0.0
  %v5256 = vrot.slane %v5255, 4
  %v5257 = vadd.f32 %v5255, %v5256
  %v5258 = vrot.slane %v5257, 2
  %v5259 = vadd.f32 %v5257, %v5258
  %v5260 = vrot.slane %v5259, 1
  %v5261 = vadd.f32 %v5259, %v5260
  %v5264 = vsel %vm201, %v5261, %v5254
  %5265 = vrot.lane.b32.xlu0 %v5264, 16
  %v5266 = vpop.permute.xlu0 %5265
  %5268 = vrot.lane.b32.xlu0 %v4874, 80
  %v5269 = vpop.permute.xlu0 %5268
  %v5271 = vsel %vm296, %v5021, %v5266
  %v5272 = vsel %vm298, %v5271, %v5269
  %v5274 = vsel %vm300, %v5272, 0
  %5276 = vmatprep.subr.mxu0 0.0
  %5277 = vmatpush1.msra.mxu0 %v5030
  %5278 = vmatprep.subr.mxu0 0.0
  %5279 = vmatpush1.msra.mxu0 %v5031
  %5280 = vmatprep.subr.mxu0 0.0
  %5281 = vmatpush1.msra.mxu0 %v5032
  %5282 = vmatprep.subr.mxu0 0.0
  %5283 = vmatpush1.msra.mxu0 %v5033
  %5284 = vmatprep.subr.mxu0 0.0
  %5285 = vmatpush1.msra.mxu0 %v5034
  %5286 = vmatprep.subr.mxu0 0.0
  %5287 = vmatpush1.msra.mxu0 %v5035
  %5288 = vmatprep.subr.mxu0 0.0
  %5289 = vmatpush1.msra.mxu0 %v5036
  %5290 = vmatprep.subr.mxu0 0.0
  %5291 = vmatpush1.msra.mxu0 %v5037
  %5292 = vmatprep.subr.mxu0 0.0
  %5293 = vmatpush1.msra.mxu0 %v5038
  %5294 = vmatprep.subr.mxu0 0.0
  %5295 = vmatpush1.msra.mxu0 %v5039
  %5296 = vmatprep.subr.mxu0 0.0
  %5297 = vmatpush1.msra.mxu0 0.0
  %5298 = vmatprep.subr.mxu0 0.0
  %5299 = vmatpush1.msra.mxu0 0.0
  %5300 = vmatprep.subr.mxu0 0.0
  %5301 = vmatpush1.msra.mxu0 0.0
  %5302 = vmatprep.subr.mxu0 0.0
  %5303 = vmatpush1.msra.mxu0 0.0
  %5304 = vmatprep.subr.mxu0 0.0
  %5305 = vmatpush1.msra.mxu0 0.0
  %5306 = vmatprep.subr.mxu0 0.0
  %5307 = vmatpush1.msra.mxu0 0.0
  %5308 = vmatprep.subr.mxu0 0.0
  %5309 = vmatpush1.msra.mxu0 0.0
  %5310 = vmatprep.subr.mxu0 0.0
  %5311 = vmatpush1.msra.mxu0 0.0
  %5312 = vmatprep.subr.mxu0 0.0
  %5313 = vmatpush1.msra.mxu0 0.0
  %5314 = vmatprep.subr.mxu0 0.0
  %5315 = vmatpush1.msra.mxu0 0.0
  %5316 = vmatprep.subr.mxu0 0.0
  %5317 = vmatpush1.msra.mxu0 0.0
  %5318 = vmatprep.subr.mxu0 0.0
  %5319 = vmatpush1.msra.mxu0 0.0
  %5320 = vmatprep.subr.mxu0 0.0
  %5321 = vmatpush1.msra.mxu0 0.0
  %5322 = vmatprep.subr.mxu0 0.0
  %5323 = vmatpush1.msra.mxu0 0.0
  %5324 = vmatprep.subr.mxu0 0.0
  %5325 = vmatpush1.msra.mxu0 0.0
  %5326 = vmatprep.subr.mxu0 0.0
  %5327 = vmatpush1.msra.mxu0 0.0
  %5328 = vmatprep.subr.mxu0 0.0
  %5329 = vmatpush1.msra.mxu0 0.0
  %5330 = vmatprep.subr.mxu0 0.0
  %5331 = vmatpush1.msra.mxu0 0.0
  %5332 = vmatprep.subr.mxu0 0.0
  %5333 = vmatpush1.msra.mxu0 0.0
  %5334 = vmatprep.subr.mxu0 0.0
  %5335 = vmatpush1.msra.mxu0 0.0
  %5336 = vmatprep.subr.mxu0 0.0
  %5337 = vmatpush1.msra.mxu0 0.0
  %5338 = vmatprep.subr.mxu0 0.0
  %5339 = vmatpush1.msra.mxu0 0.0
  %5340 = vmatprep.mubr.f32.mxu0 0.0
  %5341 = vmatmul.mubr.f32.gmra.mrb[0].mxu0 %v5274
  %v5342 = vpop.f32.mrb[0].mxu0
  %v5343 = vadd.f32 0.0, %v5342
  %v5344 = vpop.f32.mrb[0].mxu0
  %5345 = vdwg.mxu0
  %v5346 = vxor.u32 %v5343, 2147483648
  %v5347 = vmul.f32 %v5346, 1.442695
  %v5348 = vpow.pop %v5347
  %v5349 = vadd.f32 %v5348, 1.0
  %v5350 = vrcp.pop %v5349
  %v5351 = vmul.f32 1.0, %v5350
  %v5352 = vmul.f32 %v5351, 2.0
  %v5353 = vsub.f32 %v5352, 1.0
  %v5354 = vmul.f32 %v5351, %v4868
  %5356 = vrot.lane.b32.xlu0 %v5353, 64
  %v5357 = vpop.permute.xlu0 %5356
  %v5359 = vmul.f32 %v5351, %v5357
  %5361 = vrot.lane.b32.xlu0 %v5359, 32
  %v5362 = vpop.permute.xlu0 %5361
  %v5364 = vadd.f32 %v5354, %v5362
  %v5365 = vtanh.pop %v5364
  %5367 = vrot.lane.b32.xlu0 %v5365, 64
  %v5368 = vpop.permute.xlu0 %5367
  %v5370 = vmul.f32 %v5351, %v5368
  %5372 = vrot.lane.b32.xlu0 %v5370, 32
  %v5373 = vpop.permute.xlu0 %5372
  %v5374 = vsel %vm66, %v5373, 0
  %5376 = vmatprep.subr.mxu0 0.0
  %5377 = vmatpush1.msra.mxu0 %v5040
  %5378 = vmatprep.subr.mxu0 0.0
  %5379 = vmatpush1.msra.mxu0 %v5041
  %5380 = vmatprep.subr.mxu0 0.0
  %5381 = vmatpush1.msra.mxu0 %v5042
  %5382 = vmatprep.subr.mxu0 0.0
  %5383 = vmatpush1.msra.mxu0 %v5043
  %5384 = vmatprep.subr.mxu0 0.0
  %5385 = vmatpush1.msra.mxu0 0.0
  %5386 = vmatprep.subr.mxu0 0.0
  %5387 = vmatpush1.msra.mxu0 0.0
  %5388 = vmatprep.subr.mxu0 0.0
  %5389 = vmatpush1.msra.mxu0 0.0
  %5390 = vmatprep.subr.mxu0 0.0
  %5391 = vmatpush1.msra.mxu0 0.0
  %5392 = vmatprep.subr.mxu0 0.0
  %5393 = vmatpush1.msra.mxu0 0.0
  %5394 = vmatprep.subr.mxu0 0.0
  %5395 = vmatpush1.msra.mxu0 0.0
  %5396 = vmatprep.subr.mxu0 0.0
  %5397 = vmatpush1.msra.mxu0 0.0
  %5398 = vmatprep.subr.mxu0 0.0
  %5399 = vmatpush1.msra.mxu0 0.0
  %5400 = vmatprep.subr.mxu0 0.0
  %5401 = vmatpush1.msra.mxu0 0.0
  %5402 = vmatprep.subr.mxu0 0.0
  %5403 = vmatpush1.msra.mxu0 0.0
  %5404 = vmatprep.subr.mxu0 0.0
  %5405 = vmatpush1.msra.mxu0 0.0
  %5406 = vmatprep.subr.mxu0 0.0
  %5407 = vmatpush1.msra.mxu0 0.0
  %5408 = vmatprep.subr.mxu0 0.0
  %5409 = vmatpush1.msra.mxu0 0.0
  %5410 = vmatprep.subr.mxu0 0.0
  %5411 = vmatpush1.msra.mxu0 0.0
  %5412 = vmatprep.subr.mxu0 0.0
  %5413 = vmatpush1.msra.mxu0 0.0
  %5414 = vmatprep.subr.mxu0 0.0
  %5415 = vmatpush1.msra.mxu0 0.0
  %5416 = vmatprep.subr.mxu0 0.0
  %5417 = vmatpush1.msra.mxu0 0.0
  %5418 = vmatprep.subr.mxu0 0.0
  %5419 = vmatpush1.msra.mxu0 0.0
  %5420 = vmatprep.subr.mxu0 0.0
  %5421 = vmatpush1.msra.mxu0 0.0
  %5422 = vmatprep.subr.mxu0 0.0
  %5423 = vmatpush1.msra.mxu0 0.0
  %5424 = vmatprep.subr.mxu0 0.0
  %5425 = vmatpush1.msra.mxu0 0.0
  %5426 = vmatprep.subr.mxu0 0.0
  %5427 = vmatpush1.msra.mxu0 0.0
  %5428 = vmatprep.subr.mxu0 0.0
  %5429 = vmatpush1.msra.mxu0 0.0
  %5430 = vmatprep.subr.mxu0 0.0
  %5431 = vmatpush1.msra.mxu0 0.0
  %5432 = vmatprep.subr.mxu0 0.0
  %5433 = vmatpush1.msra.mxu0 0.0
  %5434 = vmatprep.subr.mxu0 0.0
  %5435 = vmatpush1.msra.mxu0 0.0
  %5436 = vmatprep.subr.mxu0 0.0
  %5437 = vmatpush1.msra.mxu0 0.0
  %5438 = vmatprep.subr.mxu0 0.0
  %5439 = vmatpush1.msra.mxu0 0.0
  %5440 = vmatprep.mubr.f32.mxu0 0.0
  %5441 = vmatmul.mubr.f32.gmra.mrb[0].mxu0 %v5374
  %v5442 = vpop.f32.mrb[0].mxu0
  %v5443 = vadd.f32 %v407, %v5442
  %v5444 = vpop.f32.mrb[0].mxu0
  %5445 = vdwg.mxu0
  %v5446 = vsel %vm484, %v5443, -inf
  %5447 = vmax.xlane.f32.xlu0 %v5446
  %v5448 = vpop.xlane.xlu0 %5447
  %v5449 = vsub.f32 %v5443, %v5448
  %v5450 = vmul.f32 %v5449, 1.442695
  %v5451 = vpow.pop %v5450
  %v5452 = vsel %vm484, %v5451, 0.0
  %5453 = vadd.xlane.f32.xlu0 %v5452
  %v5454 = vpop.xlane.xlu0 %5453
  %v5455 = vlog2.pop %v5454
  %v5456 = vmul.f32 %v5455, 0.6931472
  %v5457 = vadd.f32 %v5456, %v5448
  %v5458 = vsub.f32 %v5443, %v5457
  %v5461 = vunpack.c.l.s4 1966171168
  %v5462 = vunpack.c.0.s8 %v5461
  %v5463 = vlaneseq
  %v5464 = vshrl.u32 %v5463, 7
  %v5465 = vsub.s32 %v5462, %v5464
  %v5466 = vrot.slane %v5458, %v5465
  %v5467 = vcombine.high %v5466, %v5466
  %v5469 = vunpack.c.l.s4 1966171168
  %v5470 = vunpack.c.0.s8 %v5469
  %v5471 = vlaneseq
  %v5472 = vshrl.u32 %v5471, 7
  %v5473 = vsub.s32 %v5470, %v5472
  %v5474 = vrot.slane %v5466, %v5473
  %v5476 = vunpack.c.l.s4 1966171168
  %v5477 = vunpack.c.0.s8 %v5476
  %v5478 = vlaneseq
  %v5479 = vshrl.u32 %v5478, 7
  %v5480 = vsub.s32 %v5477, %v5479
  %v5481 = vrot.slane %v5467, %v5480
  %5484 = vst [vmem:[%s9 + $0xa] sm:$0x1] %v5474
  %5485 = vst [vmem:[%s9 + $0x1a] sm:$0x1] %v5481
  %v5486 = vlaneseq
  %v5487 = vshrl.u32 %v5486, 7
  %v5488 = vsub.s32 %v37, %v5487
  %v5489 = vrot.slane %v5239, %v5488
  %v5490 = vlaneseq
  %v5491 = vshrl.u32 %v5490, 7
  %v5492 = vsub.s32 %v37, %v5491
  %v5493 = vrot.slane %v5244, %v5492
  %5496 = vst.msk [vmem:[%s10 + $0xa] sm:$0x1] %vm535, %v5489
  %5497 = vst.msk [vmem:[%s10 + $0x1a] sm:$0x1] %vm535, %v5493
  %vm5498 = vcmp.eq.f32.partialorder %v5443, %v5448
  %v5499 = vsel %vm5498, %v37, 128
  %v5500 = vsel %vm484, %v5499, 2147483647
  %v5501 = vand.u32 %v5500, 65535
  %v5502 = vshra.s32 %v5500, 16
  %v5503 = vcvt.s32.f32 %v5501
  %v5504 = vcvt.s32.f32 %v5502
  %5505 = vmin.xlane.f32.xlu0 %v5504
  %v5506 = vpop.xlane.xlu0 %5505
  %vm5507 = vcmp.eq.f32.partialorder %v5504, %v5506
  %v5508 = vsel %vm5507, %v5503, inf
  %5509 = vmin.xlane.f32.xlu0 %v5508
  %v5510 = vpop.xlane.xlu0 %5509
  %v5511 = vcvt.f32.s32 %v5510
  %v5512 = vcvt.f32.s32 %v5506
  %v5513 = vshll.u32 %v5512, 16
  %v5514 = vadd.s32 %v5513, %v5511
  %vm5515 = vcmp.eq.s32.totalorder %v37, %v5514
  %v5516 = vsel %vm5515, 1, 0
  %v5517 = vcvt.s32.f32 %v5516
  %v5518 = vld [vmem:[%s0] sm:$0xff]
  %v5519 = vld [vmem:[%s0 + $0x8] sm:$0xff]
  %v5520 = vld [vmem:[%s1] sm:$0xff]
  %v5521 = vld [vmem:[%s1 + $0x8] sm:$0xff]
  %v5522 = vld [vmem:[%s4] sm:$0xff]
  %v5523 = vld [vmem:[%s4 + $0x8] sm:$0xff]
  %v5524 = vld [vmem:[%s4 + $0x10] sm:$0xff]
  %v5525 = vld [vmem:[%s4 + $0x18] sm:$0xff]
  %v5526 = vld [vmem:[%s6] sm:$0xff]
  %v5527 = vld [vmem:[%s6 + $0x8] sm:$0xff]
  %v5528 = vld [vmem:[%s6 + $0x10] sm:$0xff]
  %v5529 = vld [vmem:[%s6 + $0x18] sm:$0xff]
  %v5530 = vld [vmem:[%s6 + $0x20] sm:$0xff]
  %v5531 = vld [vmem:[%s6 + $0x28] sm:$0xff]
  %v5532 = vld [vmem:[%s6 + $0x30] sm:$0xff]
  %v5533 = vld [vmem:[%s6 + $0x38] sm:$0xff]
  %v5534 = vld [vmem:[%s6 + $0x40] sm:$0xff]
  %v5535 = vld [vmem:[%s6 + $0x48] sm:$0xff]
  %v5536 = vld [vmem:[%s7] sm:$0xff]
  %v5537 = vld [vmem:[%s7 + $0x8] sm:$0xff]
  %v5538 = vld [vmem:[%s7 + $0x10] sm:$0xff]
  %v5539 = vld [vmem:[%s7 + $0x18] sm:$0xff]
  %5541 = vrot.lane.b32.xlu0 %v5364, 64
  %v5542 = vpop.permute.xlu0 %5541
  %v5544 = vadd.f32 %v5370, %v5542
  %5546 = vrot.lane.b32.xlu0 %v5544, 32
  %v5547 = vpop.permute.xlu0 %5546
  %v5548 = vsel %vm66, %v5547, 0
  %5550 = vmatprep.subr.mxu0 0.0
  %5551 = vmatpush1.msra.mxu0 %v5522
  %5552 = vmatprep.subr.mxu0 0.0
  %5553 = vmatpush1.msra.mxu0 %v5523
  %5554 = vmatprep.subr.mxu0 0.0
  %5555 = vmatpush1.msra.mxu0 %v5524
  %5556 = vmatprep.subr.mxu0 0.0
  %5557 = vmatpush1.msra.mxu0 %v5525
  %5558 = vmatprep.subr.mxu0 0.0
  %5559 = vmatpush1.msra.mxu0 0.0
  %5560 = vmatprep.subr.mxu0 0.0
  %5561 = vmatpush1.msra.mxu0 0.0
  %5562 = vmatprep.subr.mxu0 0.0
  %5563 = vmatpush1.msra.mxu0 0.0
  %5564 = vmatprep.subr.mxu0 0.0
  %5565 = vmatpush1.msra.mxu0 0.0
  %5566 = vmatprep.subr.mxu0 0.0
  %5567 = vmatpush1.msra.mxu0 0.0
  %5568 = vmatprep.subr.mxu0 0.0
  %5569 = vmatpush1.msra.mxu0 0.0
  %5570 = vmatprep.subr.mxu0 0.0
  %5571 = vmatpush1.msra.mxu0 0.0
  %5572 = vmatprep.subr.mxu0 0.0
  %5573 = vmatpush1.msra.mxu0 0.0
  %5574 = vmatprep.subr.mxu0 0.0
  %5575 = vmatpush1.msra.mxu0 0.0
  %5576 = vmatprep.subr.mxu0 0.0
  %5577 = vmatpush1.msra.mxu0 0.0
  %5578 = vmatprep.subr.mxu0 0.0
  %5579 = vmatpush1.msra.mxu0 0.0
  %5580 = vmatprep.subr.mxu0 0.0
  %5581 = vmatpush1.msra.mxu0 0.0
  %5582 = vmatprep.subr.mxu0 0.0
  %5583 = vmatpush1.msra.mxu0 0.0
  %5584 = vmatprep.subr.mxu0 0.0
  %5585 = vmatpush1.msra.mxu0 0.0
  %5586 = vmatprep.subr.mxu0 0.0
  %5587 = vmatpush1.msra.mxu0 0.0
  %5588 = vmatprep.subr.mxu0 0.0
  %5589 = vmatpush1.msra.mxu0 0.0
  %5590 = vmatprep.subr.mxu0 0.0
  %5591 = vmatpush1.msra.mxu0 0.0
  %5592 = vmatprep.subr.mxu0 0.0
  %5593 = vmatpush1.msra.mxu0 0.0
  %5594 = vmatprep.subr.mxu0 0.0
  %5595 = vmatpush1.msra.mxu0 0.0
  %5596 = vmatprep.subr.mxu0 0.0
  %5597 = vmatpush1.msra.mxu0 0.0
  %5598 = vmatprep.subr.mxu0 0.0
  %5599 = vmatpush1.msra.mxu0 0.0
  %5600 = vmatprep.subr.mxu0 0.0
  %5601 = vmatpush1.msra.mxu0 0.0
  %5602 = vmatprep.subr.mxu0 0.0
  %5603 = vmatpush1.msra.mxu0 0.0
  %5604 = vmatprep.subr.mxu0 0.0
  %5605 = vmatpush1.msra.mxu0 0.0
  %5606 = vmatprep.subr.mxu0 0.0
  %5607 = vmatpush1.msra.mxu0 0.0
  %5608 = vmatprep.subr.mxu0 0.0
  %5609 = vmatpush1.msra.mxu0 0.0
  %5610 = vmatprep.subr.mxu0 0.0
  %5611 = vmatpush1.msra.mxu0 0.0
  %5612 = vmatprep.subr.mxu0 0.0
  %5613 = vmatpush1.msra.mxu0 0.0
  %5614 = vmatprep.mubr.f32.mxu0 0.0
  %5615 = vmatmul.mubr.f32.gmra.mrb[0].mxu0 %v5548
  %v5616 = vpop.f32.mrb[0].mxu0
  %v5617 = vadd.f32 0.0, %v5616
  %v5618 = vpop.f32.mrb[0].mxu0
  %5619 = vdwg.mxu0
  %v5622 = vunpack.c.l.s4 1966171168
  %v5623 = vunpack.c.0.s8 %v5622
  %v5624 = vlaneseq
  %v5625 = vshrl.u32 %v5624, 7
  %v5626 = vsub.s32 %v5623, %v5625
  %v5627 = vrot.slane %v5617, %v5626
  %v5628 = vcombine.high %v5627, %v5627
  %v5630 = vunpack.c.l.s4 1966171168
  %v5631 = vunpack.c.0.s8 %v5630
  %v5632 = vlaneseq
  %v5633 = vshrl.u32 %v5632, 7
  %v5634 = vsub.s32 %v5631, %v5633
  %v5635 = vrot.slane %v5627, %v5634
  %v5637 = vunpack.c.l.s4 1966171168
  %v5638 = vunpack.c.0.s8 %v5637
  %v5639 = vlaneseq
  %v5640 = vshrl.u32 %v5639, 7
  %v5641 = vsub.s32 %v5638, %v5640
  %v5642 = vrot.slane %v5628, %v5641
  %v5643 = vlaneseq
  %v5644 = vshrl.u32 %v5643, 7
  %v5645 = vsub.s32 0, %v5644
  %v5646 = vrot.slane %v5635, %v5645
  %v5647 = vlaneseq
  %v5648 = vshrl.u32 %v5647, 7
  %v5649 = vsub.s32 0, %v5648
  %v5650 = vrot.slane %v5642, %v5649
  %v5653 = vadd.f32 %v5646, %v5520
  %v5654 = vadd.f32 %v5650, %v5521
  %v5655 = vtanh.pop %v5653
  %v5656 = vtanh.pop %v5654
  %v5657 = vmul.f32 %v5655, %v181
  %v5658 = vmul.f32 %v5656, %v181
  %v5659 = vsel %vm66, %v5657, 0.0
  %5660 = vadd.xlane.f32.xlu0 %v5659
  %v5661 = vpop.xlane.xlu0 %5660
  %v5662 = vsel %vm66, %v5658, 0.0
  %5663 = vadd.xlane.f32.xlu0 %v5662
  %v5664 = vpop.xlane.xlu0 %5663
  %v5667 = vlaneseq
  %v5668 = vshrl.u32 %v5667, 7
  %v5669 = vsub.s32 %v37, %v5668
  %v5670 = vrot.slane %v5661, %v5669
  %v5671 = vlaneseq
  %v5672 = vshrl.u32 %v5671, 7
  %v5673 = vsub.s32 %v37, %v5672
  %v5674 = vrot.slane %v5664, %v5673
  %v5675 = vsel %vm201, %v5674, %v5670
  %v5677 = vsel %vm204, %v5675, -inf
  %5678 = vmax.xlane.f32.xlu0 %v5677
  %v5679 = vpop.xlane.xlu0 %5678
  %v5681 = vlaneseq
  %v5682 = vshrl.u32 %v5681, 7
  %v5683 = vsub.s32 0, %v5682
  %v5684 = vrot.slane %v5679, %v5683
  %v5685 = vlaneseq
  %v5686 = vshrl.u32 %v5685, 7
  %v5687 = vsub.s32 1, %v5686
  %v5688 = vrot.slane %v5679, %v5687
  %v5691 = vsub.f32 %v5661, %v5684
  %v5692 = vsub.f32 %v5664, %v5688
  %v5693 = vmul.f32 %v5691, 1.442695
  %v5694 = vpow.pop %v5693
  %v5695 = vmul.f32 %v5692, 1.442695
  %v5696 = vpow.pop %v5695
  %5699 = vset.pattern.permute.xlu0 0
  %5700 = vperm.xlu0 %5699, %v5694
  %v5701 = vpop.permute.xlu0 %5700
  %5702 = vset.pattern.permute.xlu0 0
  %5703 = vperm.xlu0 %5702, %v5696
  %v5704 = vpop.permute.xlu0 %5703
  %v5705 = vlaneseq
  %v5706 = vshrl.u32 %v5705, 7
  %v5707 = vsub.s32 %v37, %v5706
  %v5708 = vrot.slane %v5701, %v5707
  %v5709 = vlaneseq
  %v5710 = vshrl.u32 %v5709, 7
  %v5711 = vsub.s32 %v37, %v5710
  %v5712 = vrot.slane %v5704, %v5711
  %v5713 = vsel %vm201, %v5712, %v5708
  %v5715 = vsel %vm204, %v5713, 0.0
  %5716 = vadd.xlane.f32.xlu0 %v5715
  %v5717 = vpop.xlane.xlu0 %5716
  %v5718 = vrcp.pop %v5717
  %v5720 = vlaneseq
  %v5721 = vshrl.u32 %v5720, 7
  %v5722 = vsub.s32 0, %v5721
  %v5723 = vrot.slane %v5718, %v5722
  %v5724 = vlaneseq
  %v5725 = vshrl.u32 %v5724, 7
  %v5726 = vsub.s32 1, %v5725
  %v5727 = vrot.slane %v5718, %v5726
  %v5730 = vmul.f32 %v5694, %v5723
  %v5731 = vmul.f32 %v5696, %v5727
  %5733 = vset.pattern.permute.xlu0 0
  %5734 = vperm.xlu0 %5733, %v5730
  %v5735 = vpop.permute.xlu0 %5734
  %5738 = vset.pattern.permute.xlu0 0
  %5739 = vperm.xlu0 %5738, %v5731
  %v5740 = vpop.permute.xlu0 %5739
  %v5742 = vmul.f32 %v5735, %v5518
  %v5743 = vmul.f32 %v5740, %v5519
  %v5744 = vsel %vm66, %v5742, 0.0
  %v5745 = vrot.slane %v5744, 4
  %v5746 = vadd.f32 %v5744, %v5745
  %v5747 = vrot.slane %v5746, 2
  %v5748 = vadd.f32 %v5746, %v5747
  %v5749 = vrot.slane %v5748, 1
  %v5750 = vadd.f32 %v5748, %v5749
  %v5751 = vsel %vm66, %v5743, 0.0
  %v5752 = vrot.slane %v5751, 4
  %v5753 = vadd.f32 %v5751, %v5752
  %v5754 = vrot.slane %v5753, 2
  %v5755 = vadd.f32 %v5753, %v5754
  %v5756 = vrot.slane %v5755, 1
  %v5757 = vadd.f32 %v5755, %v5756
  %v5760 = vsel %vm201, %v5757, %v5750
  %5761 = vrot.lane.b32.xlu0 %v5760, 16
  %v5762 = vpop.permute.xlu0 %5761
  %5764 = vrot.lane.b32.xlu0 %v5370, 80
  %v5765 = vpop.permute.xlu0 %5764
  %v5767 = vsel %vm296, %v5517, %v5762
  %v5768 = vsel %vm298, %v5767, %v5765
  %v5770 = vsel %vm300, %v5768, 0
  %5772 = vmatprep.subr.mxu0 0.0
  %5773 = vmatpush1.msra.mxu0 %v5526
  %5774 = vmatprep.subr.mxu0 0.0
  %5775 = vmatpush1.msra.mxu0 %v5527
  %5776 = vmatprep.subr.mxu0 0.0
  %5777 = vmatpush1.msra.mxu0 %v5528
  %5778 = vmatprep.subr.mxu0 0.0
  %5779 = vmatpush1.msra.mxu0 %v5529
  %5780 = vmatprep.subr.mxu0 0.0
  %5781 = vmatpush1.msra.mxu0 %v5530
  %5782 = vmatprep.subr.mxu0 0.0
  %5783 = vmatpush1.msra.mxu0 %v5531
  %5784 = vmatprep.subr.mxu0 0.0
  %5785 = vmatpush1.msra.mxu0 %v5532
  %5786 = vmatprep.subr.mxu0 0.0
  %5787 = vmatpush1.msra.mxu0 %v5533
  %5788 = vmatprep.subr.mxu0 0.0
  %5789 = vmatpush1.msra.mxu0 %v5534
  %5790 = vmatprep.subr.mxu0 0.0
  %5791 = vmatpush1.msra.mxu0 %v5535
  %5792 = vmatprep.subr.mxu0 0.0
  %5793 = vmatpush1.msra.mxu0 0.0
  %5794 = vmatprep.subr.mxu0 0.0
  %5795 = vmatpush1.msra.mxu0 0.0
  %5796 = vmatprep.subr.mxu0 0.0
  %5797 = vmatpush1.msra.mxu0 0.0
  %5798 = vmatprep.subr.mxu0 0.0
  %5799 = vmatpush1.msra.mxu0 0.0
  %5800 = vmatprep.subr.mxu0 0.0
  %5801 = vmatpush1.msra.mxu0 0.0
  %5802 = vmatprep.subr.mxu0 0.0
  %5803 = vmatpush1.msra.mxu0 0.0
  %5804 = vmatprep.subr.mxu0 0.0
  %5805 = vmatpush1.msra.mxu0 0.0
  %5806 = vmatprep.subr.mxu0 0.0
  %5807 = vmatpush1.msra.mxu0 0.0
  %5808 = vmatprep.subr.mxu0 0.0
  %5809 = vmatpush1.msra.mxu0 0.0
  %5810 = vmatprep.subr.mxu0 0.0
  %5811 = vmatpush1.msra.mxu0 0.0
  %5812 = vmatprep.subr.mxu0 0.0
  %5813 = vmatpush1.msra.mxu0 0.0
  %5814 = vmatprep.subr.mxu0 0.0
  %5815 = vmatpush1.msra.mxu0 0.0
  %5816 = vmatprep.subr.mxu0 0.0
  %5817 = vmatpush1.msra.mxu0 0.0
  %5818 = vmatprep.subr.mxu0 0.0
  %5819 = vmatpush1.msra.mxu0 0.0
  %5820 = vmatprep.subr.mxu0 0.0
  %5821 = vmatpush1.msra.mxu0 0.0
  %5822 = vmatprep.subr.mxu0 0.0
  %5823 = vmatpush1.msra.mxu0 0.0
  %5824 = vmatprep.subr.mxu0 0.0
  %5825 = vmatpush1.msra.mxu0 0.0
  %5826 = vmatprep.subr.mxu0 0.0
  %5827 = vmatpush1.msra.mxu0 0.0
  %5828 = vmatprep.subr.mxu0 0.0
  %5829 = vmatpush1.msra.mxu0 0.0
  %5830 = vmatprep.subr.mxu0 0.0
  %5831 = vmatpush1.msra.mxu0 0.0
  %5832 = vmatprep.subr.mxu0 0.0
  %5833 = vmatpush1.msra.mxu0 0.0
  %5834 = vmatprep.subr.mxu0 0.0
  %5835 = vmatpush1.msra.mxu0 0.0
  %5836 = vmatprep.mubr.f32.mxu0 0.0
  %5837 = vmatmul.mubr.f32.gmra.mrb[0].mxu0 %v5770
  %v5838 = vpop.f32.mrb[0].mxu0
  %v5839 = vadd.f32 0.0, %v5838
  %v5840 = vpop.f32.mrb[0].mxu0
  %5841 = vdwg.mxu0
  %v5842 = vxor.u32 %v5839, 2147483648
  %v5843 = vmul.f32 %v5842, 1.442695
  %v5844 = vpow.pop %v5843
  %v5845 = vadd.f32 %v5844, 1.0
  %v5846 = vrcp.pop %v5845
  %v5847 = vmul.f32 1.0, %v5846
  %v5848 = vmul.f32 %v5847, 2.0
  %v5849 = vsub.f32 %v5848, 1.0
  %v5850 = vmul.f32 %v5847, %v5364
  %5852 = vrot.lane.b32.xlu0 %v5849, 64
  %v5853 = vpop.permute.xlu0 %5852
  %v5855 = vmul.f32 %v5847, %v5853
  %5857 = vrot.lane.b32.xlu0 %v5855, 32
  %v5858 = vpop.permute.xlu0 %5857
  %v5860 = vadd.f32 %v5850, %v5858
  %v5861 = vtanh.pop %v5860
  %5863 = vrot.lane.b32.xlu0 %v5861, 64
  %v5864 = vpop.permute.xlu0 %5863
  %v5866 = vmul.f32 %v5847, %v5864
  %5868 = vrot.lane.b32.xlu0 %v5866, 32
  %v5869 = vpop.permute.xlu0 %5868
  %v5870 = vsel %vm66, %v5869, 0
  %5872 = vmatprep.subr.mxu0 0.0
  %5873 = vmatpush1.msra.mxu0 %v5536
  %5874 = vmatprep.subr.mxu0 0.0
  %5875 = vmatpush1.msra.mxu0 %v5537
  %5876 = vmatprep.subr.mxu0 0.0
  %5877 = vmatpush1.msra.mxu0 %v5538
  %5878 = vmatprep.subr.mxu0 0.0
  %5879 = vmatpush1.msra.mxu0 %v5539
  %5880 = vmatprep.subr.mxu0 0.0
  %5881 = vmatpush1.msra.mxu0 0.0
  %5882 = vmatprep.subr.mxu0 0.0
  %5883 = vmatpush1.msra.mxu0 0.0
  %5884 = vmatprep.subr.mxu0 0.0
  %5885 = vmatpush1.msra.mxu0 0.0
  %5886 = vmatprep.subr.mxu0 0.0
  %5887 = vmatpush1.msra.mxu0 0.0
  %5888 = vmatprep.subr.mxu0 0.0
  %5889 = vmatpush1.msra.mxu0 0.0
  %5890 = vmatprep.subr.mxu0 0.0
  %5891 = vmatpush1.msra.mxu0 0.0
  %5892 = vmatprep.subr.mxu0 0.0
  %5893 = vmatpush1.msra.mxu0 0.0
  %5894 = vmatprep.subr.mxu0 0.0
  %5895 = vmatpush1.msra.mxu0 0.0
  %5896 = vmatprep.subr.mxu0 0.0
  %5897 = vmatpush1.msra.mxu0 0.0
  %5898 = vmatprep.subr.mxu0 0.0
  %5899 = vmatpush1.msra.mxu0 0.0
  %5900 = vmatprep.subr.mxu0 0.0
  %5901 = vmatpush1.msra.mxu0 0.0
  %5902 = vmatprep.subr.mxu0 0.0
  %5903 = vmatpush1.msra.mxu0 0.0
  %5904 = vmatprep.subr.mxu0 0.0
  %5905 = vmatpush1.msra.mxu0 0.0
  %5906 = vmatprep.subr.mxu0 0.0
  %5907 = vmatpush1.msra.mxu0 0.0
  %5908 = vmatprep.subr.mxu0 0.0
  %5909 = vmatpush1.msra.mxu0 0.0
  %5910 = vmatprep.subr.mxu0 0.0
  %5911 = vmatpush1.msra.mxu0 0.0
  %5912 = vmatprep.subr.mxu0 0.0
  %5913 = vmatpush1.msra.mxu0 0.0
  %5914 = vmatprep.subr.mxu0 0.0
  %5915 = vmatpush1.msra.mxu0 0.0
  %5916 = vmatprep.subr.mxu0 0.0
  %5917 = vmatpush1.msra.mxu0 0.0
  %5918 = vmatprep.subr.mxu0 0.0
  %5919 = vmatpush1.msra.mxu0 0.0
  %5920 = vmatprep.subr.mxu0 0.0
  %5921 = vmatpush1.msra.mxu0 0.0
  %5922 = vmatprep.subr.mxu0 0.0
  %5923 = vmatpush1.msra.mxu0 0.0
  %5924 = vmatprep.subr.mxu0 0.0
  %5925 = vmatpush1.msra.mxu0 0.0
  %5926 = vmatprep.subr.mxu0 0.0
  %5927 = vmatpush1.msra.mxu0 0.0
  %5928 = vmatprep.subr.mxu0 0.0
  %5929 = vmatpush1.msra.mxu0 0.0
  %5930 = vmatprep.subr.mxu0 0.0
  %5931 = vmatpush1.msra.mxu0 0.0
  %5932 = vmatprep.subr.mxu0 0.0
  %5933 = vmatpush1.msra.mxu0 0.0
  %5934 = vmatprep.subr.mxu0 0.0
  %5935 = vmatpush1.msra.mxu0 0.0
  %5936 = vmatprep.mubr.f32.mxu0 0.0
  %5937 = vmatmul.mubr.f32.gmra.mrb[0].mxu0 %v5870
  %v5938 = vpop.f32.mrb[0].mxu0
  %v5939 = vadd.f32 %v407, %v5938
  %v5940 = vpop.f32.mrb[0].mxu0
  %5941 = vdwg.mxu0
  %v5942 = vsel %vm484, %v5939, -inf
  %5943 = vmax.xlane.f32.xlu0 %v5942
  %v5944 = vpop.xlane.xlu0 %5943
  %v5945 = vsub.f32 %v5939, %v5944
  %v5946 = vmul.f32 %v5945, 1.442695
  %v5947 = vpow.pop %v5946
  %v5948 = vsel %vm484, %v5947, 0.0
  %5949 = vadd.xlane.f32.xlu0 %v5948
  %v5950 = vpop.xlane.xlu0 %5949
  %v5951 = vlog2.pop %v5950
  %v5952 = vmul.f32 %v5951, 0.6931472
  %v5953 = vadd.f32 %v5952, %v5944
  %v5954 = vsub.f32 %v5939, %v5953
  %v5957 = vunpack.c.l.s4 1966171168
  %v5958 = vunpack.c.0.s8 %v5957
  %v5959 = vlaneseq
  %v5960 = vshrl.u32 %v5959, 7
  %v5961 = vsub.s32 %v5958, %v5960
  %v5962 = vrot.slane %v5954, %v5961
  %v5963 = vcombine.high %v5962, %v5962
  %v5965 = vunpack.c.l.s4 1966171168
  %v5966 = vunpack.c.0.s8 %v5965
  %v5967 = vlaneseq
  %v5968 = vshrl.u32 %v5967, 7
  %v5969 = vsub.s32 %v5966, %v5968
  %v5970 = vrot.slane %v5962, %v5969
  %v5972 = vunpack.c.l.s4 1966171168
  %v5973 = vunpack.c.0.s8 %v5972
  %v5974 = vlaneseq
  %v5975 = vshrl.u32 %v5974, 7
  %v5976 = vsub.s32 %v5973, %v5975
  %v5977 = vrot.slane %v5963, %v5976
  %5980 = vst [vmem:[%s9 + $0xb] sm:$0x1] %v5970
  %5981 = vst [vmem:[%s9 + $0x1b] sm:$0x1] %v5977
  %v5982 = vlaneseq
  %v5983 = vshrl.u32 %v5982, 7
  %v5984 = vsub.s32 %v37, %v5983
  %v5985 = vrot.slane %v5735, %v5984
  %v5986 = vlaneseq
  %v5987 = vshrl.u32 %v5986, 7
  %v5988 = vsub.s32 %v37, %v5987
  %v5989 = vrot.slane %v5740, %v5988
  %5992 = vst.msk [vmem:[%s10 + $0xb] sm:$0x1] %vm535, %v5985
  %5993 = vst.msk [vmem:[%s10 + $0x1b] sm:$0x1] %vm535, %v5989
  %vm5994 = vcmp.eq.f32.partialorder %v5939, %v5944
  %v5995 = vsel %vm5994, %v37, 128
  %v5996 = vsel %vm484, %v5995, 2147483647
  %v5997 = vand.u32 %v5996, 65535
  %v5998 = vshra.s32 %v5996, 16
  %v5999 = vcvt.s32.f32 %v5997
  %v6000 = vcvt.s32.f32 %v5998
  %6001 = vmin.xlane.f32.xlu0 %v6000
  %v6002 = vpop.xlane.xlu0 %6001
  %vm6003 = vcmp.eq.f32.partialorder %v6000, %v6002
  %v6004 = vsel %vm6003, %v5999, inf
  %6005 = vmin.xlane.f32.xlu0 %v6004
  %v6006 = vpop.xlane.xlu0 %6005
  %v6007 = vcvt.f32.s32 %v6006
  %v6008 = vcvt.f32.s32 %v6002
  %v6009 = vshll.u32 %v6008, 16
  %v6010 = vadd.s32 %v6009, %v6007
  %vm6011 = vcmp.eq.s32.totalorder %v37, %v6010
  %v6012 = vsel %vm6011, 1, 0
  %v6013 = vcvt.s32.f32 %v6012
  %v6014 = vld [vmem:[%s0] sm:$0xff]
  %v6015 = vld [vmem:[%s0 + $0x8] sm:$0xff]
  %v6016 = vld [vmem:[%s1] sm:$0xff]
  %v6017 = vld [vmem:[%s1 + $0x8] sm:$0xff]
  %v6018 = vld [vmem:[%s4] sm:$0xff]
  %v6019 = vld [vmem:[%s4 + $0x8] sm:$0xff]
  %v6020 = vld [vmem:[%s4 + $0x10] sm:$0xff]
  %v6021 = vld [vmem:[%s4 + $0x18] sm:$0xff]
  %v6022 = vld [vmem:[%s6] sm:$0xff]
  %v6023 = vld [vmem:[%s6 + $0x8] sm:$0xff]
  %v6024 = vld [vmem:[%s6 + $0x10] sm:$0xff]
  %v6025 = vld [vmem:[%s6 + $0x18] sm:$0xff]
  %v6026 = vld [vmem:[%s6 + $0x20] sm:$0xff]
  %v6027 = vld [vmem:[%s6 + $0x28] sm:$0xff]
  %v6028 = vld [vmem:[%s6 + $0x30] sm:$0xff]
  %v6029 = vld [vmem:[%s6 + $0x38] sm:$0xff]
  %v6030 = vld [vmem:[%s6 + $0x40] sm:$0xff]
  %v6031 = vld [vmem:[%s6 + $0x48] sm:$0xff]
  %v6032 = vld [vmem:[%s7] sm:$0xff]
  %v6033 = vld [vmem:[%s7 + $0x8] sm:$0xff]
  %v6034 = vld [vmem:[%s7 + $0x10] sm:$0xff]
  %v6035 = vld [vmem:[%s7 + $0x18] sm:$0xff]
  %6037 = vrot.lane.b32.xlu0 %v5860, 64
  %v6038 = vpop.permute.xlu0 %6037
  %v6040 = vadd.f32 %v5866, %v6038
  %6042 = vrot.lane.b32.xlu0 %v6040, 32
  %v6043 = vpop.permute.xlu0 %6042
  %v6044 = vsel %vm66, %v6043, 0
  %6046 = vmatprep.subr.mxu0 0.0
  %6047 = vmatpush1.msra.mxu0 %v6018
  %6048 = vmatprep.subr.mxu0 0.0
  %6049 = vmatpush1.msra.mxu0 %v6019
  %6050 = vmatprep.subr.mxu0 0.0
  %6051 = vmatpush1.msra.mxu0 %v6020
  %6052 = vmatprep.subr.mxu0 0.0
  %6053 = vmatpush1.msra.mxu0 %v6021
  %6054 = vmatprep.subr.mxu0 0.0
  %6055 = vmatpush1.msra.mxu0 0.0
  %6056 = vmatprep.subr.mxu0 0.0
  %6057 = vmatpush1.msra.mxu0 0.0
  %6058 = vmatprep.subr.mxu0 0.0
  %6059 = vmatpush1.msra.mxu0 0.0
  %6060 = vmatprep.subr.mxu0 0.0
  %6061 = vmatpush1.msra.mxu0 0.0
  %6062 = vmatprep.subr.mxu0 0.0
  %6063 = vmatpush1.msra.mxu0 0.0
  %6064 = vmatprep.subr.mxu0 0.0
  %6065 = vmatpush1.msra.mxu0 0.0
  %6066 = vmatprep.subr.mxu0 0.0
  %6067 = vmatpush1.msra.mxu0 0.0
  %6068 = vmatprep.subr.mxu0 0.0
  %6069 = vmatpush1.msra.mxu0 0.0
  %6070 = vmatprep.subr.mxu0 0.0
  %6071 = vmatpush1.msra.mxu0 0.0
  %6072 = vmatprep.subr.mxu0 0.0
  %6073 = vmatpush1.msra.mxu0 0.0
  %6074 = vmatprep.subr.mxu0 0.0
  %6075 = vmatpush1.msra.mxu0 0.0
  %6076 = vmatprep.subr.mxu0 0.0
  %6077 = vmatpush1.msra.mxu0 0.0
  %6078 = vmatprep.subr.mxu0 0.0
  %6079 = vmatpush1.msra.mxu0 0.0
  %6080 = vmatprep.subr.mxu0 0.0
  %6081 = vmatpush1.msra.mxu0 0.0
  %6082 = vmatprep.subr.mxu0 0.0
  %6083 = vmatpush1.msra.mxu0 0.0
  %6084 = vmatprep.subr.mxu0 0.0
  %6085 = vmatpush1.msra.mxu0 0.0
  %6086 = vmatprep.subr.mxu0 0.0
  %6087 = vmatpush1.msra.mxu0 0.0
  %6088 = vmatprep.subr.mxu0 0.0
  %6089 = vmatpush1.msra.mxu0 0.0
  %6090 = vmatprep.subr.mxu0 0.0
  %6091 = vmatpush1.msra.mxu0 0.0
  %6092 = vmatprep.subr.mxu0 0.0
  %6093 = vmatpush1.msra.mxu0 0.0
  %6094 = vmatprep.subr.mxu0 0.0
  %6095 = vmatpush1.msra.mxu0 0.0
  %6096 = vmatprep.subr.mxu0 0.0
  %6097 = vmatpush1.msra.mxu0 0.0
  %6098 = vmatprep.subr.mxu0 0.0
  %6099 = vmatpush1.msra.mxu0 0.0
  %6100 = vmatprep.subr.mxu0 0.0
  %6101 = vmatpush1.msra.mxu0 0.0
  %6102 = vmatprep.subr.mxu0 0.0
  %6103 = vmatpush1.msra.mxu0 0.0
  %6104 = vmatprep.subr.mxu0 0.0
  %6105 = vmatpush1.msra.mxu0 0.0
  %6106 = vmatprep.subr.mxu0 0.0
  %6107 = vmatpush1.msra.mxu0 0.0
  %6108 = vmatprep.subr.mxu0 0.0
  %6109 = vmatpush1.msra.mxu0 0.0
  %6110 = vmatprep.mubr.f32.mxu0 0.0
  %6111 = vmatmul.mubr.f32.gmra.mrb[0].mxu0 %v6044
  %v6112 = vpop.f32.mrb[0].mxu0
  %v6113 = vadd.f32 0.0, %v6112
  %v6114 = vpop.f32.mrb[0].mxu0
  %6115 = vdwg.mxu0
  %v6118 = vunpack.c.l.s4 1966171168
  %v6119 = vunpack.c.0.s8 %v6118
  %v6120 = vlaneseq
  %v6121 = vshrl.u32 %v6120, 7
  %v6122 = vsub.s32 %v6119, %v6121
  %v6123 = vrot.slane %v6113, %v6122
  %v6124 = vcombine.high %v6123, %v6123
  %v6126 = vunpack.c.l.s4 1966171168
  %v6127 = vunpack.c.0.s8 %v6126
  %v6128 = vlaneseq
  %v6129 = vshrl.u32 %v6128, 7
  %v6130 = vsub.s32 %v6127, %v6129
  %v6131 = vrot.slane %v6123, %v6130
  %v6133 = vunpack.c.l.s4 1966171168
  %v6134 = vunpack.c.0.s8 %v6133
  %v6135 = vlaneseq
  %v6136 = vshrl.u32 %v6135, 7
  %v6137 = vsub.s32 %v6134, %v6136
  %v6138 = vrot.slane %v6124, %v6137
  %v6139 = vlaneseq
  %v6140 = vshrl.u32 %v6139, 7
  %v6141 = vsub.s32 0, %v6140
  %v6142 = vrot.slane %v6131, %v6141
  %v6143 = vlaneseq
  %v6144 = vshrl.u32 %v6143, 7
  %v6145 = vsub.s32 0, %v6144
  %v6146 = vrot.slane %v6138, %v6145
  %v6149 = vadd.f32 %v6142, %v6016
  %v6150 = vadd.f32 %v6146, %v6017
  %v6151 = vtanh.pop %v6149
  %v6152 = vtanh.pop %v6150
  %v6153 = vmul.f32 %v6151, %v181
  %v6154 = vmul.f32 %v6152, %v181
  %v6155 = vsel %vm66, %v6153, 0.0
  %6156 = vadd.xlane.f32.xlu0 %v6155
  %v6157 = vpop.xlane.xlu0 %6156
  %v6158 = vsel %vm66, %v6154, 0.0
  %6159 = vadd.xlane.f32.xlu0 %v6158
  %v6160 = vpop.xlane.xlu0 %6159
  %v6163 = vlaneseq
  %v6164 = vshrl.u32 %v6163, 7
  %v6165 = vsub.s32 %v37, %v6164
  %v6166 = vrot.slane %v6157, %v6165
  %v6167 = vlaneseq
  %v6168 = vshrl.u32 %v6167, 7
  %v6169 = vsub.s32 %v37, %v6168
  %v6170 = vrot.slane %v6160, %v6169
  %v6171 = vsel %vm201, %v6170, %v6166
  %v6173 = vsel %vm204, %v6171, -inf
  %6174 = vmax.xlane.f32.xlu0 %v6173
  %v6175 = vpop.xlane.xlu0 %6174
  %v6177 = vlaneseq
  %v6178 = vshrl.u32 %v6177, 7
  %v6179 = vsub.s32 0, %v6178
  %v6180 = vrot.slane %v6175, %v6179
  %v6181 = vlaneseq
  %v6182 = vshrl.u32 %v6181, 7
  %v6183 = vsub.s32 1, %v6182
  %v6184 = vrot.slane %v6175, %v6183
  %v6187 = vsub.f32 %v6157, %v6180
  %v6188 = vsub.f32 %v6160, %v6184
  %v6189 = vmul.f32 %v6187, 1.442695
  %v6190 = vpow.pop %v6189
  %v6191 = vmul.f32 %v6188, 1.442695
  %v6192 = vpow.pop %v6191
  %6195 = vset.pattern.permute.xlu0 0
  %6196 = vperm.xlu0 %6195, %v6190
  %v6197 = vpop.permute.xlu0 %6196
  %6198 = vset.pattern.permute.xlu0 0
  %6199 = vperm.xlu0 %6198, %v6192
  %v6200 = vpop.permute.xlu0 %6199
  %v6201 = vlaneseq
  %v6202 = vshrl.u32 %v6201, 7
  %v6203 = vsub.s32 %v37, %v6202
  %v6204 = vrot.slane %v6197, %v6203
  %v6205 = vlaneseq
  %v6206 = vshrl.u32 %v6205, 7
  %v6207 = vsub.s32 %v37, %v6206
  %v6208 = vrot.slane %v6200, %v6207
  %v6209 = vsel %vm201, %v6208, %v6204
  %v6211 = vsel %vm204, %v6209, 0.0
  %6212 = vadd.xlane.f32.xlu0 %v6211
  %v6213 = vpop.xlane.xlu0 %6212
  %v6214 = vrcp.pop %v6213
  %v6216 = vlaneseq
  %v6217 = vshrl.u32 %v6216, 7
  %v6218 = vsub.s32 0, %v6217
  %v6219 = vrot.slane %v6214, %v6218
  %v6220 = vlaneseq
  %v6221 = vshrl.u32 %v6220, 7
  %v6222 = vsub.s32 1, %v6221
  %v6223 = vrot.slane %v6214, %v6222
  %v6226 = vmul.f32 %v6190, %v6219
  %v6227 = vmul.f32 %v6192, %v6223
  %6229 = vset.pattern.permute.xlu0 0
  %6230 = vperm.xlu0 %6229, %v6226
  %v6231 = vpop.permute.xlu0 %6230
  %6234 = vset.pattern.permute.xlu0 0
  %6235 = vperm.xlu0 %6234, %v6227
  %v6236 = vpop.permute.xlu0 %6235
  %v6238 = vmul.f32 %v6231, %v6014
  %v6239 = vmul.f32 %v6236, %v6015
  %v6240 = vsel %vm66, %v6238, 0.0
  %v6241 = vrot.slane %v6240, 4
  %v6242 = vadd.f32 %v6240, %v6241
  %v6243 = vrot.slane %v6242, 2
  %v6244 = vadd.f32 %v6242, %v6243
  %v6245 = vrot.slane %v6244, 1
  %v6246 = vadd.f32 %v6244, %v6245
  %v6247 = vsel %vm66, %v6239, 0.0
  %v6248 = vrot.slane %v6247, 4
  %v6249 = vadd.f32 %v6247, %v6248
  %v6250 = vrot.slane %v6249, 2
  %v6251 = vadd.f32 %v6249, %v6250
  %v6252 = vrot.slane %v6251, 1
  %v6253 = vadd.f32 %v6251, %v6252
  %v6256 = vsel %vm201, %v6253, %v6246
  %6257 = vrot.lane.b32.xlu0 %v6256, 16
  %v6258 = vpop.permute.xlu0 %6257
  %6260 = vrot.lane.b32.xlu0 %v5866, 80
  %v6261 = vpop.permute.xlu0 %6260
  %v6263 = vsel %vm296, %v6013, %v6258
  %v6264 = vsel %vm298, %v6263, %v6261
  %v6266 = vsel %vm300, %v6264, 0
  %6268 = vmatprep.subr.mxu0 0.0
  %6269 = vmatpush1.msra.mxu0 %v6022
  %6270 = vmatprep.subr.mxu0 0.0
  %6271 = vmatpush1.msra.mxu0 %v6023
  %6272 = vmatprep.subr.mxu0 0.0
  %6273 = vmatpush1.msra.mxu0 %v6024
  %6274 = vmatprep.subr.mxu0 0.0
  %6275 = vmatpush1.msra.mxu0 %v6025
  %6276 = vmatprep.subr.mxu0 0.0
  %6277 = vmatpush1.msra.mxu0 %v6026
  %6278 = vmatprep.subr.mxu0 0.0
  %6279 = vmatpush1.msra.mxu0 %v6027
  %6280 = vmatprep.subr.mxu0 0.0
  %6281 = vmatpush1.msra.mxu0 %v6028
  %6282 = vmatprep.subr.mxu0 0.0
  %6283 = vmatpush1.msra.mxu0 %v6029
  %6284 = vmatprep.subr.mxu0 0.0
  %6285 = vmatpush1.msra.mxu0 %v6030
  %6286 = vmatprep.subr.mxu0 0.0
  %6287 = vmatpush1.msra.mxu0 %v6031
  %6288 = vmatprep.subr.mxu0 0.0
  %6289 = vmatpush1.msra.mxu0 0.0
  %6290 = vmatprep.subr.mxu0 0.0
  %6291 = vmatpush1.msra.mxu0 0.0
  %6292 = vmatprep.subr.mxu0 0.0
  %6293 = vmatpush1.msra.mxu0 0.0
  %6294 = vmatprep.subr.mxu0 0.0
  %6295 = vmatpush1.msra.mxu0 0.0
  %6296 = vmatprep.subr.mxu0 0.0
  %6297 = vmatpush1.msra.mxu0 0.0
  %6298 = vmatprep.subr.mxu0 0.0
  %6299 = vmatpush1.msra.mxu0 0.0
  %6300 = vmatprep.subr.mxu0 0.0
  %6301 = vmatpush1.msra.mxu0 0.0
  %6302 = vmatprep.subr.mxu0 0.0
  %6303 = vmatpush1.msra.mxu0 0.0
  %6304 = vmatprep.subr.mxu0 0.0
  %6305 = vmatpush1.msra.mxu0 0.0
  %6306 = vmatprep.subr.mxu0 0.0
  %6307 = vmatpush1.msra.mxu0 0.0
  %6308 = vmatprep.subr.mxu0 0.0
  %6309 = vmatpush1.msra.mxu0 0.0
  %6310 = vmatprep.subr.mxu0 0.0
  %6311 = vmatpush1.msra.mxu0 0.0
  %6312 = vmatprep.subr.mxu0 0.0
  %6313 = vmatpush1.msra.mxu0 0.0
  %6314 = vmatprep.subr.mxu0 0.0
  %6315 = vmatpush1.msra.mxu0 0.0
  %6316 = vmatprep.subr.mxu0 0.0
  %6317 = vmatpush1.msra.mxu0 0.0
  %6318 = vmatprep.subr.mxu0 0.0
  %6319 = vmatpush1.msra.mxu0 0.0
  %6320 = vmatprep.subr.mxu0 0.0
  %6321 = vmatpush1.msra.mxu0 0.0
  %6322 = vmatprep.subr.mxu0 0.0
  %6323 = vmatpush1.msra.mxu0 0.0
  %6324 = vmatprep.subr.mxu0 0.0
  %6325 = vmatpush1.msra.mxu0 0.0
  %6326 = vmatprep.subr.mxu0 0.0
  %6327 = vmatpush1.msra.mxu0 0.0
  %6328 = vmatprep.subr.mxu0 0.0
  %6329 = vmatpush1.msra.mxu0 0.0
  %6330 = vmatprep.subr.mxu0 0.0
  %6331 = vmatpush1.msra.mxu0 0.0
  %6332 = vmatprep.mubr.f32.mxu0 0.0
  %6333 = vmatmul.mubr.f32.gmra.mrb[0].mxu0 %v6266
  %v6334 = vpop.f32.mrb[0].mxu0
  %v6335 = vadd.f32 0.0, %v6334
  %v6336 = vpop.f32.mrb[0].mxu0
  %6337 = vdwg.mxu0
  %v6338 = vxor.u32 %v6335, 2147483648
  %v6339 = vmul.f32 %v6338, 1.442695
  %v6340 = vpow.pop %v6339
  %v6341 = vadd.f32 %v6340, 1.0
  %v6342 = vrcp.pop %v6341
  %v6343 = vmul.f32 1.0, %v6342
  %v6344 = vmul.f32 %v6343, 2.0
  %v6345 = vsub.f32 %v6344, 1.0
  %v6346 = vmul.f32 %v6343, %v5860
  %6348 = vrot.lane.b32.xlu0 %v6345, 64
  %v6349 = vpop.permute.xlu0 %6348
  %v6351 = vmul.f32 %v6343, %v6349
  %6353 = vrot.lane.b32.xlu0 %v6351, 32
  %v6354 = vpop.permute.xlu0 %6353
  %v6356 = vadd.f32 %v6346, %v6354
  %v6357 = vtanh.pop %v6356
  %6359 = vrot.lane.b32.xlu0 %v6357, 64
  %v6360 = vpop.permute.xlu0 %6359
  %v6362 = vmul.f32 %v6343, %v6360
  %6364 = vrot.lane.b32.xlu0 %v6362, 32
  %v6365 = vpop.permute.xlu0 %6364
  %v6366 = vsel %vm66, %v6365, 0
  %6368 = vmatprep.subr.mxu0 0.0
  %6369 = vmatpush1.msra.mxu0 %v6032
  %6370 = vmatprep.subr.mxu0 0.0
  %6371 = vmatpush1.msra.mxu0 %v6033
  %6372 = vmatprep.subr.mxu0 0.0
  %6373 = vmatpush1.msra.mxu0 %v6034
  %6374 = vmatprep.subr.mxu0 0.0
  %6375 = vmatpush1.msra.mxu0 %v6035
  %6376 = vmatprep.subr.mxu0 0.0
  %6377 = vmatpush1.msra.mxu0 0.0
  %6378 = vmatprep.subr.mxu0 0.0
  %6379 = vmatpush1.msra.mxu0 0.0
  %6380 = vmatprep.subr.mxu0 0.0
  %6381 = vmatpush1.msra.mxu0 0.0
  %6382 = vmatprep.subr.mxu0 0.0
  %6383 = vmatpush1.msra.mxu0 0.0
  %6384 = vmatprep.subr.mxu0 0.0
  %6385 = vmatpush1.msra.mxu0 0.0
  %6386 = vmatprep.subr.mxu0 0.0
  %6387 = vmatpush1.msra.mxu0 0.0
  %6388 = vmatprep.subr.mxu0 0.0
  %6389 = vmatpush1.msra.mxu0 0.0
  %6390 = vmatprep.subr.mxu0 0.0
  %6391 = vmatpush1.msra.mxu0 0.0
  %6392 = vmatprep.subr.mxu0 0.0
  %6393 = vmatpush1.msra.mxu0 0.0
  %6394 = vmatprep.subr.mxu0 0.0
  %6395 = vmatpush1.msra.mxu0 0.0
  %6396 = vmatprep.subr.mxu0 0.0
  %6397 = vmatpush1.msra.mxu0 0.0
  %6398 = vmatprep.subr.mxu0 0.0
  %6399 = vmatpush1.msra.mxu0 0.0
  %6400 = vmatprep.subr.mxu0 0.0
  %6401 = vmatpush1.msra.mxu0 0.0
  %6402 = vmatprep.subr.mxu0 0.0
  %6403 = vmatpush1.msra.mxu0 0.0
  %6404 = vmatprep.subr.mxu0 0.0
  %6405 = vmatpush1.msra.mxu0 0.0
  %6406 = vmatprep.subr.mxu0 0.0
  %6407 = vmatpush1.msra.mxu0 0.0
  %6408 = vmatprep.subr.mxu0 0.0
  %6409 = vmatpush1.msra.mxu0 0.0
  %6410 = vmatprep.subr.mxu0 0.0
  %6411 = vmatpush1.msra.mxu0 0.0
  %6412 = vmatprep.subr.mxu0 0.0
  %6413 = vmatpush1.msra.mxu0 0.0
  %6414 = vmatprep.subr.mxu0 0.0
  %6415 = vmatpush1.msra.mxu0 0.0
  %6416 = vmatprep.subr.mxu0 0.0
  %6417 = vmatpush1.msra.mxu0 0.0
  %6418 = vmatprep.subr.mxu0 0.0
  %6419 = vmatpush1.msra.mxu0 0.0
  %6420 = vmatprep.subr.mxu0 0.0
  %6421 = vmatpush1.msra.mxu0 0.0
  %6422 = vmatprep.subr.mxu0 0.0
  %6423 = vmatpush1.msra.mxu0 0.0
  %6424 = vmatprep.subr.mxu0 0.0
  %6425 = vmatpush1.msra.mxu0 0.0
  %6426 = vmatprep.subr.mxu0 0.0
  %6427 = vmatpush1.msra.mxu0 0.0
  %6428 = vmatprep.subr.mxu0 0.0
  %6429 = vmatpush1.msra.mxu0 0.0
  %6430 = vmatprep.subr.mxu0 0.0
  %6431 = vmatpush1.msra.mxu0 0.0
  %6432 = vmatprep.mubr.f32.mxu0 0.0
  %6433 = vmatmul.mubr.f32.gmra.mrb[0].mxu0 %v6366
  %v6434 = vpop.f32.mrb[0].mxu0
  %v6435 = vadd.f32 %v407, %v6434
  %v6436 = vpop.f32.mrb[0].mxu0
  %6437 = vdwg.mxu0
  %v6438 = vsel %vm484, %v6435, -inf
  %6439 = vmax.xlane.f32.xlu0 %v6438
  %v6440 = vpop.xlane.xlu0 %6439
  %v6441 = vsub.f32 %v6435, %v6440
  %v6442 = vmul.f32 %v6441, 1.442695
  %v6443 = vpow.pop %v6442
  %v6444 = vsel %vm484, %v6443, 0.0
  %6445 = vadd.xlane.f32.xlu0 %v6444
  %v6446 = vpop.xlane.xlu0 %6445
  %v6447 = vlog2.pop %v6446
  %v6448 = vmul.f32 %v6447, 0.6931472
  %v6449 = vadd.f32 %v6448, %v6440
  %v6450 = vsub.f32 %v6435, %v6449
  %v6453 = vunpack.c.l.s4 1966171168
  %v6454 = vunpack.c.0.s8 %v6453
  %v6455 = vlaneseq
  %v6456 = vshrl.u32 %v6455, 7
  %v6457 = vsub.s32 %v6454, %v6456
  %v6458 = vrot.slane %v6450, %v6457
  %v6459 = vcombine.high %v6458, %v6458
  %v6461 = vunpack.c.l.s4 1966171168
  %v6462 = vunpack.c.0.s8 %v6461
  %v6463 = vlaneseq
  %v6464 = vshrl.u32 %v6463, 7
  %v6465 = vsub.s32 %v6462, %v6464
  %v6466 = vrot.slane %v6458, %v6465
  %v6468 = vunpack.c.l.s4 1966171168
  %v6469 = vunpack.c.0.s8 %v6468
  %v6470 = vlaneseq
  %v6471 = vshrl.u32 %v6470, 7
  %v6472 = vsub.s32 %v6469, %v6471
  %v6473 = vrot.slane %v6459, %v6472
  %6476 = vst [vmem:[%s9 + $0xc] sm:$0x1] %v6466
  %6477 = vst [vmem:[%s9 + $0x1c] sm:$0x1] %v6473
  %v6478 = vlaneseq
  %v6479 = vshrl.u32 %v6478, 7
  %v6480 = vsub.s32 %v37, %v6479
  %v6481 = vrot.slane %v6231, %v6480
  %v6482 = vlaneseq
  %v6483 = vshrl.u32 %v6482, 7
  %v6484 = vsub.s32 %v37, %v6483
  %v6485 = vrot.slane %v6236, %v6484
  %6488 = vst.msk [vmem:[%s10 + $0xc] sm:$0x1] %vm535, %v6481
  %6489 = vst.msk [vmem:[%s10 + $0x1c] sm:$0x1] %vm535, %v6485
  %vm6490 = vcmp.eq.f32.partialorder %v6435, %v6440
  %v6491 = vsel %vm6490, %v37, 128
  %v6492 = vsel %vm484, %v6491, 2147483647
  %v6493 = vand.u32 %v6492, 65535
  %v6494 = vshra.s32 %v6492, 16
  %v6495 = vcvt.s32.f32 %v6493
  %v6496 = vcvt.s32.f32 %v6494
  %6497 = vmin.xlane.f32.xlu0 %v6496
  %v6498 = vpop.xlane.xlu0 %6497
  %vm6499 = vcmp.eq.f32.partialorder %v6496, %v6498
  %v6500 = vsel %vm6499, %v6495, inf
  %6501 = vmin.xlane.f32.xlu0 %v6500
  %v6502 = vpop.xlane.xlu0 %6501
  %v6503 = vcvt.f32.s32 %v6502
  %v6504 = vcvt.f32.s32 %v6498
  %v6505 = vshll.u32 %v6504, 16
  %v6506 = vadd.s32 %v6505, %v6503
  %vm6507 = vcmp.eq.s32.totalorder %v37, %v6506
  %v6508 = vsel %vm6507, 1, 0
  %v6509 = vcvt.s32.f32 %v6508
  %v6510 = vld [vmem:[%s0] sm:$0xff]
  %v6511 = vld [vmem:[%s0 + $0x8] sm:$0xff]
  %v6512 = vld [vmem:[%s1] sm:$0xff]
  %v6513 = vld [vmem:[%s1 + $0x8] sm:$0xff]
  %v6514 = vld [vmem:[%s4] sm:$0xff]
  %v6515 = vld [vmem:[%s4 + $0x8] sm:$0xff]
  %v6516 = vld [vmem:[%s4 + $0x10] sm:$0xff]
  %v6517 = vld [vmem:[%s4 + $0x18] sm:$0xff]
  %v6518 = vld [vmem:[%s6] sm:$0xff]
  %v6519 = vld [vmem:[%s6 + $0x8] sm:$0xff]
  %v6520 = vld [vmem:[%s6 + $0x10] sm:$0xff]
  %v6521 = vld [vmem:[%s6 + $0x18] sm:$0xff]
  %v6522 = vld [vmem:[%s6 + $0x20] sm:$0xff]
  %v6523 = vld [vmem:[%s6 + $0x28] sm:$0xff]
  %v6524 = vld [vmem:[%s6 + $0x30] sm:$0xff]
  %v6525 = vld [vmem:[%s6 + $0x38] sm:$0xff]
  %v6526 = vld [vmem:[%s6 + $0x40] sm:$0xff]
  %v6527 = vld [vmem:[%s6 + $0x48] sm:$0xff]
  %v6528 = vld [vmem:[%s7] sm:$0xff]
  %v6529 = vld [vmem:[%s7 + $0x8] sm:$0xff]
  %v6530 = vld [vmem:[%s7 + $0x10] sm:$0xff]
  %v6531 = vld [vmem:[%s7 + $0x18] sm:$0xff]
  %6533 = vrot.lane.b32.xlu0 %v6356, 64
  %v6534 = vpop.permute.xlu0 %6533
  %v6536 = vadd.f32 %v6362, %v6534
  %6538 = vrot.lane.b32.xlu0 %v6536, 32
  %v6539 = vpop.permute.xlu0 %6538
  %v6540 = vsel %vm66, %v6539, 0
  %6542 = vmatprep.subr.mxu0 0.0
  %6543 = vmatpush1.msra.mxu0 %v6514
  %6544 = vmatprep.subr.mxu0 0.0
  %6545 = vmatpush1.msra.mxu0 %v6515
  %6546 = vmatprep.subr.mxu0 0.0
  %6547 = vmatpush1.msra.mxu0 %v6516
  %6548 = vmatprep.subr.mxu0 0.0
  %6549 = vmatpush1.msra.mxu0 %v6517
  %6550 = vmatprep.subr.mxu0 0.0
  %6551 = vmatpush1.msra.mxu0 0.0
  %6552 = vmatprep.subr.mxu0 0.0
  %6553 = vmatpush1.msra.mxu0 0.0
  %6554 = vmatprep.subr.mxu0 0.0
  %6555 = vmatpush1.msra.mxu0 0.0
  %6556 = vmatprep.subr.mxu0 0.0
  %6557 = vmatpush1.msra.mxu0 0.0
  %6558 = vmatprep.subr.mxu0 0.0
  %6559 = vmatpush1.msra.mxu0 0.0
  %6560 = vmatprep.subr.mxu0 0.0
  %6561 = vmatpush1.msra.mxu0 0.0
  %6562 = vmatprep.subr.mxu0 0.0
  %6563 = vmatpush1.msra.mxu0 0.0
  %6564 = vmatprep.subr.mxu0 0.0
  %6565 = vmatpush1.msra.mxu0 0.0
  %6566 = vmatprep.subr.mxu0 0.0
  %6567 = vmatpush1.msra.mxu0 0.0
  %6568 = vmatprep.subr.mxu0 0.0
  %6569 = vmatpush1.msra.mxu0 0.0
  %6570 = vmatprep.subr.mxu0 0.0
  %6571 = vmatpush1.msra.mxu0 0.0
  %6572 = vmatprep.subr.mxu0 0.0
  %6573 = vmatpush1.msra.mxu0 0.0
  %6574 = vmatprep.subr.mxu0 0.0
  %6575 = vmatpush1.msra.mxu0 0.0
  %6576 = vmatprep.subr.mxu0 0.0
  %6577 = vmatpush1.msra.mxu0 0.0
  %6578 = vmatprep.subr.mxu0 0.0
  %6579 = vmatpush1.msra.mxu0 0.0
  %6580 = vmatprep.subr.mxu0 0.0
  %6581 = vmatpush1.msra.mxu0 0.0
  %6582 = vmatprep.subr.mxu0 0.0
  %6583 = vmatpush1.msra.mxu0 0.0
  %6584 = vmatprep.subr.mxu0 0.0
  %6585 = vmatpush1.msra.mxu0 0.0
  %6586 = vmatprep.subr.mxu0 0.0
  %6587 = vmatpush1.msra.mxu0 0.0
  %6588 = vmatprep.subr.mxu0 0.0
  %6589 = vmatpush1.msra.mxu0 0.0
  %6590 = vmatprep.subr.mxu0 0.0
  %6591 = vmatpush1.msra.mxu0 0.0
  %6592 = vmatprep.subr.mxu0 0.0
  %6593 = vmatpush1.msra.mxu0 0.0
  %6594 = vmatprep.subr.mxu0 0.0
  %6595 = vmatpush1.msra.mxu0 0.0
  %6596 = vmatprep.subr.mxu0 0.0
  %6597 = vmatpush1.msra.mxu0 0.0
  %6598 = vmatprep.subr.mxu0 0.0
  %6599 = vmatpush1.msra.mxu0 0.0
  %6600 = vmatprep.subr.mxu0 0.0
  %6601 = vmatpush1.msra.mxu0 0.0
  %6602 = vmatprep.subr.mxu0 0.0
  %6603 = vmatpush1.msra.mxu0 0.0
  %6604 = vmatprep.subr.mxu0 0.0
  %6605 = vmatpush1.msra.mxu0 0.0
  %6606 = vmatprep.mubr.f32.mxu0 0.0
  %6607 = vmatmul.mubr.f32.gmra.mrb[0].mxu0 %v6540
  %v6608 = vpop.f32.mrb[0].mxu0
  %v6609 = vadd.f32 0.0, %v6608
  %v6610 = vpop.f32.mrb[0].mxu0
  %6611 = vdwg.mxu0
  %v6614 = vunpack.c.l.s4 1966171168
  %v6615 = vunpack.c.0.s8 %v6614
  %v6616 = vlaneseq
  %v6617 = vshrl.u32 %v6616, 7
  %v6618 = vsub.s32 %v6615, %v6617
  %v6619 = vrot.slane %v6609, %v6618
  %v6620 = vcombine.high %v6619, %v6619
  %v6622 = vunpack.c.l.s4 1966171168
  %v6623 = vunpack.c.0.s8 %v6622
  %v6624 = vlaneseq
  %v6625 = vshrl.u32 %v6624, 7
  %v6626 = vsub.s32 %v6623, %v6625
  %v6627 = vrot.slane %v6619, %v6626
  %v6629 = vunpack.c.l.s4 1966171168
  %v6630 = vunpack.c.0.s8 %v6629
  %v6631 = vlaneseq
  %v6632 = vshrl.u32 %v6631, 7
  %v6633 = vsub.s32 %v6630, %v6632
  %v6634 = vrot.slane %v6620, %v6633
  %v6635 = vlaneseq
  %v6636 = vshrl.u32 %v6635, 7
  %v6637 = vsub.s32 0, %v6636
  %v6638 = vrot.slane %v6627, %v6637
  %v6639 = vlaneseq
  %v6640 = vshrl.u32 %v6639, 7
  %v6641 = vsub.s32 0, %v6640
  %v6642 = vrot.slane %v6634, %v6641
  %v6645 = vadd.f32 %v6638, %v6512
  %v6646 = vadd.f32 %v6642, %v6513
  %v6647 = vtanh.pop %v6645
  %v6648 = vtanh.pop %v6646
  %v6649 = vmul.f32 %v6647, %v181
  %v6650 = vmul.f32 %v6648, %v181
  %v6651 = vsel %vm66, %v6649, 0.0
  %6652 = vadd.xlane.f32.xlu0 %v6651
  %v6653 = vpop.xlane.xlu0 %6652
  %v6654 = vsel %vm66, %v6650, 0.0
  %6655 = vadd.xlane.f32.xlu0 %v6654
  %v6656 = vpop.xlane.xlu0 %6655
  %v6659 = vlaneseq
  %v6660 = vshrl.u32 %v6659, 7
  %v6661 = vsub.s32 %v37, %v6660
  %v6662 = vrot.slane %v6653, %v6661
  %v6663 = vlaneseq
  %v6664 = vshrl.u32 %v6663, 7
  %v6665 = vsub.s32 %v37, %v6664
  %v6666 = vrot.slane %v6656, %v6665
  %v6667 = vsel %vm201, %v6666, %v6662
  %v6669 = vsel %vm204, %v6667, -inf
  %6670 = vmax.xlane.f32.xlu0 %v6669
  %v6671 = vpop.xlane.xlu0 %6670
  %v6673 = vlaneseq
  %v6674 = vshrl.u32 %v6673, 7
  %v6675 = vsub.s32 0, %v6674
  %v6676 = vrot.slane %v6671, %v6675
  %v6677 = vlaneseq
  %v6678 = vshrl.u32 %v6677, 7
  %v6679 = vsub.s32 1, %v6678
  %v6680 = vrot.slane %v6671, %v6679
  %v6683 = vsub.f32 %v6653, %v6676
  %v6684 = vsub.f32 %v6656, %v6680
  %v6685 = vmul.f32 %v6683, 1.442695
  %v6686 = vpow.pop %v6685
  %v6687 = vmul.f32 %v6684, 1.442695
  %v6688 = vpow.pop %v6687
  %6691 = vset.pattern.permute.xlu0 0
  %6692 = vperm.xlu0 %6691, %v6686
  %v6693 = vpop.permute.xlu0 %6692
  %6694 = vset.pattern.permute.xlu0 0
  %6695 = vperm.xlu0 %6694, %v6688
  %v6696 = vpop.permute.xlu0 %6695
  %v6697 = vlaneseq
  %v6698 = vshrl.u32 %v6697, 7
  %v6699 = vsub.s32 %v37, %v6698
  %v6700 = vrot.slane %v6693, %v6699
  %v6701 = vlaneseq
  %v6702 = vshrl.u32 %v6701, 7
  %v6703 = vsub.s32 %v37, %v6702
  %v6704 = vrot.slane %v6696, %v6703
  %v6705 = vsel %vm201, %v6704, %v6700
  %v6707 = vsel %vm204, %v6705, 0.0
  %6708 = vadd.xlane.f32.xlu0 %v6707
  %v6709 = vpop.xlane.xlu0 %6708
  %v6710 = vrcp.pop %v6709
  %v6712 = vlaneseq
  %v6713 = vshrl.u32 %v6712, 7
  %v6714 = vsub.s32 0, %v6713
  %v6715 = vrot.slane %v6710, %v6714
  %v6716 = vlaneseq
  %v6717 = vshrl.u32 %v6716, 7
  %v6718 = vsub.s32 1, %v6717
  %v6719 = vrot.slane %v6710, %v6718
  %v6722 = vmul.f32 %v6686, %v6715
  %v6723 = vmul.f32 %v6688, %v6719
  %6725 = vset.pattern.permute.xlu0 0
  %6726 = vperm.xlu0 %6725, %v6722
  %v6727 = vpop.permute.xlu0 %6726
  %6730 = vset.pattern.permute.xlu0 0
  %6731 = vperm.xlu0 %6730, %v6723
  %v6732 = vpop.permute.xlu0 %6731
  %v6734 = vmul.f32 %v6727, %v6510
  %v6735 = vmul.f32 %v6732, %v6511
  %v6736 = vsel %vm66, %v6734, 0.0
  %v6737 = vrot.slane %v6736, 4
  %v6738 = vadd.f32 %v6736, %v6737
  %v6739 = vrot.slane %v6738, 2
  %v6740 = vadd.f32 %v6738, %v6739
  %v6741 = vrot.slane %v6740, 1
  %v6742 = vadd.f32 %v6740, %v6741
  %v6743 = vsel %vm66, %v6735, 0.0
  %v6744 = vrot.slane %v6743, 4
  %v6745 = vadd.f32 %v6743, %v6744
  %v6746 = vrot.slane %v6745, 2
  %v6747 = vadd.f32 %v6745, %v6746
  %v6748 = vrot.slane %v6747, 1
  %v6749 = vadd.f32 %v6747, %v6748
  %v6752 = vsel %vm201, %v6749, %v6742
  %6753 = vrot.lane.b32.xlu0 %v6752, 16
  %v6754 = vpop.permute.xlu0 %6753
  %6756 = vrot.lane.b32.xlu0 %v6362, 80
  %v6757 = vpop.permute.xlu0 %6756
  %v6759 = vsel %vm296, %v6509, %v6754
  %v6760 = vsel %vm298, %v6759, %v6757
  %v6762 = vsel %vm300, %v6760, 0
  %6764 = vmatprep.subr.mxu0 0.0
  %6765 = vmatpush1.msra.mxu0 %v6518
  %6766 = vmatprep.subr.mxu0 0.0
  %6767 = vmatpush1.msra.mxu0 %v6519
  %6768 = vmatprep.subr.mxu0 0.0
  %6769 = vmatpush1.msra.mxu0 %v6520
  %6770 = vmatprep.subr.mxu0 0.0
  %6771 = vmatpush1.msra.mxu0 %v6521
  %6772 = vmatprep.subr.mxu0 0.0
  %6773 = vmatpush1.msra.mxu0 %v6522
  %6774 = vmatprep.subr.mxu0 0.0
  %6775 = vmatpush1.msra.mxu0 %v6523
  %6776 = vmatprep.subr.mxu0 0.0
  %6777 = vmatpush1.msra.mxu0 %v6524
  %6778 = vmatprep.subr.mxu0 0.0
  %6779 = vmatpush1.msra.mxu0 %v6525
  %6780 = vmatprep.subr.mxu0 0.0
  %6781 = vmatpush1.msra.mxu0 %v6526
  %6782 = vmatprep.subr.mxu0 0.0
  %6783 = vmatpush1.msra.mxu0 %v6527
  %6784 = vmatprep.subr.mxu0 0.0
  %6785 = vmatpush1.msra.mxu0 0.0
  %6786 = vmatprep.subr.mxu0 0.0
  %6787 = vmatpush1.msra.mxu0 0.0
  %6788 = vmatprep.subr.mxu0 0.0
  %6789 = vmatpush1.msra.mxu0 0.0
  %6790 = vmatprep.subr.mxu0 0.0
  %6791 = vmatpush1.msra.mxu0 0.0
  %6792 = vmatprep.subr.mxu0 0.0
  %6793 = vmatpush1.msra.mxu0 0.0
  %6794 = vmatprep.subr.mxu0 0.0
  %6795 = vmatpush1.msra.mxu0 0.0
  %6796 = vmatprep.subr.mxu0 0.0
  %6797 = vmatpush1.msra.mxu0 0.0
  %6798 = vmatprep.subr.mxu0 0.0
  %6799 = vmatpush1.msra.mxu0 0.0
  %6800 = vmatprep.subr.mxu0 0.0
  %6801 = vmatpush1.msra.mxu0 0.0
  %6802 = vmatprep.subr.mxu0 0.0
  %6803 = vmatpush1.msra.mxu0 0.0
  %6804 = vmatprep.subr.mxu0 0.0
  %6805 = vmatpush1.msra.mxu0 0.0
  %6806 = vmatprep.subr.mxu0 0.0
  %6807 = vmatpush1.msra.mxu0 0.0
  %6808 = vmatprep.subr.mxu0 0.0
  %6809 = vmatpush1.msra.mxu0 0.0
  %6810 = vmatprep.subr.mxu0 0.0
  %6811 = vmatpush1.msra.mxu0 0.0
  %6812 = vmatprep.subr.mxu0 0.0
  %6813 = vmatpush1.msra.mxu0 0.0
  %6814 = vmatprep.subr.mxu0 0.0
  %6815 = vmatpush1.msra.mxu0 0.0
  %6816 = vmatprep.subr.mxu0 0.0
  %6817 = vmatpush1.msra.mxu0 0.0
  %6818 = vmatprep.subr.mxu0 0.0
  %6819 = vmatpush1.msra.mxu0 0.0
  %6820 = vmatprep.subr.mxu0 0.0
  %6821 = vmatpush1.msra.mxu0 0.0
  %6822 = vmatprep.subr.mxu0 0.0
  %6823 = vmatpush1.msra.mxu0 0.0
  %6824 = vmatprep.subr.mxu0 0.0
  %6825 = vmatpush1.msra.mxu0 0.0
  %6826 = vmatprep.subr.mxu0 0.0
  %6827 = vmatpush1.msra.mxu0 0.0
  %6828 = vmatprep.mubr.f32.mxu0 0.0
  %6829 = vmatmul.mubr.f32.gmra.mrb[0].mxu0 %v6762
  %v6830 = vpop.f32.mrb[0].mxu0
  %v6831 = vadd.f32 0.0, %v6830
  %v6832 = vpop.f32.mrb[0].mxu0
  %6833 = vdwg.mxu0
  %v6834 = vxor.u32 %v6831, 2147483648
  %v6835 = vmul.f32 %v6834, 1.442695
  %v6836 = vpow.pop %v6835
  %v6837 = vadd.f32 %v6836, 1.0
  %v6838 = vrcp.pop %v6837
  %v6839 = vmul.f32 1.0, %v6838
  %v6840 = vmul.f32 %v6839, 2.0
  %v6841 = vsub.f32 %v6840, 1.0
  %v6842 = vmul.f32 %v6839, %v6356
  %6844 = vrot.lane.b32.xlu0 %v6841, 64
  %v6845 = vpop.permute.xlu0 %6844
  %v6847 = vmul.f32 %v6839, %v6845
  %6849 = vrot.lane.b32.xlu0 %v6847, 32
  %v6850 = vpop.permute.xlu0 %6849
  %v6852 = vadd.f32 %v6842, %v6850
  %v6853 = vtanh.pop %v6852
  %6855 = vrot.lane.b32.xlu0 %v6853, 64
  %v6856 = vpop.permute.xlu0 %6855
  %v6858 = vmul.f32 %v6839, %v6856
  %6860 = vrot.lane.b32.xlu0 %v6858, 32
  %v6861 = vpop.permute.xlu0 %6860
  %v6862 = vsel %vm66, %v6861, 0
  %6864 = vmatprep.subr.mxu0 0.0
  %6865 = vmatpush1.msra.mxu0 %v6528
  %6866 = vmatprep.subr.mxu0 0.0
  %6867 = vmatpush1.msra.mxu0 %v6529
  %6868 = vmatprep.subr.mxu0 0.0
  %6869 = vmatpush1.msra.mxu0 %v6530
  %6870 = vmatprep.subr.mxu0 0.0
  %6871 = vmatpush1.msra.mxu0 %v6531
  %6872 = vmatprep.subr.mxu0 0.0
  %6873 = vmatpush1.msra.mxu0 0.0
  %6874 = vmatprep.subr.mxu0 0.0
  %6875 = vmatpush1.msra.mxu0 0.0
  %6876 = vmatprep.subr.mxu0 0.0
  %6877 = vmatpush1.msra.mxu0 0.0
  %6878 = vmatprep.subr.mxu0 0.0
  %6879 = vmatpush1.msra.mxu0 0.0
  %6880 = vmatprep.subr.mxu0 0.0
  %6881 = vmatpush1.msra.mxu0 0.0
  %6882 = vmatprep.subr.mxu0 0.0
  %6883 = vmatpush1.msra.mxu0 0.0
  %6884 = vmatprep.subr.mxu0 0.0
  %6885 = vmatpush1.msra.mxu0 0.0
  %6886 = vmatprep.subr.mxu0 0.0
  %6887 = vmatpush1.msra.mxu0 0.0
  %6888 = vmatprep.subr.mxu0 0.0
  %6889 = vmatpush1.msra.mxu0 0.0
  %6890 = vmatprep.subr.mxu0 0.0
  %6891 = vmatpush1.msra.mxu0 0.0
  %6892 = vmatprep.subr.mxu0 0.0
  %6893 = vmatpush1.msra.mxu0 0.0
  %6894 = vmatprep.subr.mxu0 0.0
  %6895 = vmatpush1.msra.mxu0 0.0
  %6896 = vmatprep.subr.mxu0 0.0
  %6897 = vmatpush1.msra.mxu0 0.0
  %6898 = vmatprep.subr.mxu0 0.0
  %6899 = vmatpush1.msra.mxu0 0.0
  %6900 = vmatprep.subr.mxu0 0.0
  %6901 = vmatpush1.msra.mxu0 0.0
  %6902 = vmatprep.subr.mxu0 0.0
  %6903 = vmatpush1.msra.mxu0 0.0
  %6904 = vmatprep.subr.mxu0 0.0
  %6905 = vmatpush1.msra.mxu0 0.0
  %6906 = vmatprep.subr.mxu0 0.0
  %6907 = vmatpush1.msra.mxu0 0.0
  %6908 = vmatprep.subr.mxu0 0.0
  %6909 = vmatpush1.msra.mxu0 0.0
  %6910 = vmatprep.subr.mxu0 0.0
  %6911 = vmatpush1.msra.mxu0 0.0
  %6912 = vmatprep.subr.mxu0 0.0
  %6913 = vmatpush1.msra.mxu0 0.0
  %6914 = vmatprep.subr.mxu0 0.0
  %6915 = vmatpush1.msra.mxu0 0.0
  %6916 = vmatprep.subr.mxu0 0.0
  %6917 = vmatpush1.msra.mxu0 0.0
  %6918 = vmatprep.subr.mxu0 0.0
  %6919 = vmatpush1.msra.mxu0 0.0
  %6920 = vmatprep.subr.mxu0 0.0
  %6921 = vmatpush1.msra.mxu0 0.0
  %6922 = vmatprep.subr.mxu0 0.0
  %6923 = vmatpush1.msra.mxu0 0.0
  %6924 = vmatprep.subr.mxu0 0.0
  %6925 = vmatpush1.msra.mxu0 0.0
  %6926 = vmatprep.subr.mxu0 0.0
  %6927 = vmatpush1.msra.mxu0 0.0
  %6928 = vmatprep.mubr.f32.mxu0 0.0
  %6929 = vmatmul.mubr.f32.gmra.mrb[0].mxu0 %v6862
  %v6930 = vpop.f32.mrb[0].mxu0
  %v6931 = vadd.f32 %v407, %v6930
  %v6932 = vpop.f32.mrb[0].mxu0
  %6933 = vdwg.mxu0
  %v6934 = vsel %vm484, %v6931, -inf
  %6935 = vmax.xlane.f32.xlu0 %v6934
  %v6936 = vpop.xlane.xlu0 %6935
  %v6937 = vsub.f32 %v6931, %v6936
  %v6938 = vmul.f32 %v6937, 1.442695
  %v6939 = vpow.pop %v6938
  %v6940 = vsel %vm484, %v6939, 0.0
  %6941 = vadd.xlane.f32.xlu0 %v6940
  %v6942 = vpop.xlane.xlu0 %6941
  %v6943 = vlog2.pop %v6942
  %v6944 = vmul.f32 %v6943, 0.6931472
  %v6945 = vadd.f32 %v6944, %v6936
  %v6946 = vsub.f32 %v6931, %v6945
  %v6949 = vunpack.c.l.s4 1966171168
  %v6950 = vunpack.c.0.s8 %v6949
  %v6951 = vlaneseq
  %v6952 = vshrl.u32 %v6951, 7
  %v6953 = vsub.s32 %v6950, %v6952
  %v6954 = vrot.slane %v6946, %v6953
  %v6955 = vcombine.high %v6954, %v6954
  %v6957 = vunpack.c.l.s4 1966171168
  %v6958 = vunpack.c.0.s8 %v6957
  %v6959 = vlaneseq
  %v6960 = vshrl.u32 %v6959, 7
  %v6961 = vsub.s32 %v6958, %v6960
  %v6962 = vrot.slane %v6954, %v6961
  %v6964 = vunpack.c.l.s4 1966171168
  %v6965 = vunpack.c.0.s8 %v6964
  %v6966 = vlaneseq
  %v6967 = vshrl.u32 %v6966, 7
  %v6968 = vsub.s32 %v6965, %v6967
  %v6969 = vrot.slane %v6955, %v6968
  %6972 = vst [vmem:[%s9 + $0xd] sm:$0x1] %v6962
  %6973 = vst [vmem:[%s9 + $0x1d] sm:$0x1] %v6969
  %v6974 = vlaneseq
  %v6975 = vshrl.u32 %v6974, 7
  %v6976 = vsub.s32 %v37, %v6975
  %v6977 = vrot.slane %v6727, %v6976
  %v6978 = vlaneseq
  %v6979 = vshrl.u32 %v6978, 7
  %v6980 = vsub.s32 %v37, %v6979
  %v6981 = vrot.slane %v6732, %v6980
  %6984 = vst.msk [vmem:[%s10 + $0xd] sm:$0x1] %vm535, %v6977
  %6985 = vst.msk [vmem:[%s10 + $0x1d] sm:$0x1] %vm535, %v6981
  %vm6986 = vcmp.eq.f32.partialorder %v6931, %v6936
  %v6987 = vsel %vm6986, %v37, 128
  %v6988 = vsel %vm484, %v6987, 2147483647
  %v6989 = vand.u32 %v6988, 65535
  %v6990 = vshra.s32 %v6988, 16
  %v6991 = vcvt.s32.f32 %v6989
  %v6992 = vcvt.s32.f32 %v6990
  %6993 = vmin.xlane.f32.xlu0 %v6992
  %v6994 = vpop.xlane.xlu0 %6993
  %vm6995 = vcmp.eq.f32.partialorder %v6992, %v6994
  %v6996 = vsel %vm6995, %v6991, inf
  %6997 = vmin.xlane.f32.xlu0 %v6996
  %v6998 = vpop.xlane.xlu0 %6997
  %v6999 = vcvt.f32.s32 %v6998
  %v7000 = vcvt.f32.s32 %v6994
  %v7001 = vshll.u32 %v7000, 16
  %v7002 = vadd.s32 %v7001, %v6999
  %vm7003 = vcmp.eq.s32.totalorder %v37, %v7002
  %v7004 = vsel %vm7003, 1, 0
  %v7005 = vcvt.s32.f32 %v7004
  %v7006 = vld [vmem:[%s0] sm:$0xff]
  %v7007 = vld [vmem:[%s0 + $0x8] sm:$0xff]
  %v7008 = vld [vmem:[%s1] sm:$0xff]
  %v7009 = vld [vmem:[%s1 + $0x8] sm:$0xff]
  %v7010 = vld [vmem:[%s4] sm:$0xff]
  %v7011 = vld [vmem:[%s4 + $0x8] sm:$0xff]
  %v7012 = vld [vmem:[%s4 + $0x10] sm:$0xff]
  %v7013 = vld [vmem:[%s4 + $0x18] sm:$0xff]
  %v7014 = vld [vmem:[%s6] sm:$0xff]
  %v7015 = vld [vmem:[%s6 + $0x8] sm:$0xff]
  %v7016 = vld [vmem:[%s6 + $0x10] sm:$0xff]
  %v7017 = vld [vmem:[%s6 + $0x18] sm:$0xff]
  %v7018 = vld [vmem:[%s6 + $0x20] sm:$0xff]
  %v7019 = vld [vmem:[%s6 + $0x28] sm:$0xff]
  %v7020 = vld [vmem:[%s6 + $0x30] sm:$0xff]
  %v7021 = vld [vmem:[%s6 + $0x38] sm:$0xff]
  %v7022 = vld [vmem:[%s6 + $0x40] sm:$0xff]
  %v7023 = vld [vmem:[%s6 + $0x48] sm:$0xff]
  %v7024 = vld [vmem:[%s7] sm:$0xff]
  %v7025 = vld [vmem:[%s7 + $0x8] sm:$0xff]
  %v7026 = vld [vmem:[%s7 + $0x10] sm:$0xff]
  %v7027 = vld [vmem:[%s7 + $0x18] sm:$0xff]
  %7029 = vrot.lane.b32.xlu0 %v6852, 64
  %v7030 = vpop.permute.xlu0 %7029
  %v7032 = vadd.f32 %v6858, %v7030
  %7034 = vrot.lane.b32.xlu0 %v7032, 32
  %v7035 = vpop.permute.xlu0 %7034
  %v7036 = vsel %vm66, %v7035, 0
  %7038 = vmatprep.subr.mxu0 0.0
  %7039 = vmatpush1.msra.mxu0 %v7010
  %7040 = vmatprep.subr.mxu0 0.0
  %7041 = vmatpush1.msra.mxu0 %v7011
  %7042 = vmatprep.subr.mxu0 0.0
  %7043 = vmatpush1.msra.mxu0 %v7012
  %7044 = vmatprep.subr.mxu0 0.0
  %7045 = vmatpush1.msra.mxu0 %v7013
  %7046 = vmatprep.subr.mxu0 0.0
  %7047 = vmatpush1.msra.mxu0 0.0
  %7048 = vmatprep.subr.mxu0 0.0
  %7049 = vmatpush1.msra.mxu0 0.0
  %7050 = vmatprep.subr.mxu0 0.0
  %7051 = vmatpush1.msra.mxu0 0.0
  %7052 = vmatprep.subr.mxu0 0.0
  %7053 = vmatpush1.msra.mxu0 0.0
  %7054 = vmatprep.subr.mxu0 0.0
  %7055 = vmatpush1.msra.mxu0 0.0
  %7056 = vmatprep.subr.mxu0 0.0
  %7057 = vmatpush1.msra.mxu0 0.0
  %7058 = vmatprep.subr.mxu0 0.0
  %7059 = vmatpush1.msra.mxu0 0.0
  %7060 = vmatprep.subr.mxu0 0.0
  %7061 = vmatpush1.msra.mxu0 0.0
  %7062 = vmatprep.subr.mxu0 0.0
  %7063 = vmatpush1.msra.mxu0 0.0
  %7064 = vmatprep.subr.mxu0 0.0
  %7065 = vmatpush1.msra.mxu0 0.0
  %7066 = vmatprep.subr.mxu0 0.0
  %7067 = vmatpush1.msra.mxu0 0.0
  %7068 = vmatprep.subr.mxu0 0.0
  %7069 = vmatpush1.msra.mxu0 0.0
  %7070 = vmatprep.subr.mxu0 0.0
  %7071 = vmatpush1.msra.mxu0 0.0
  %7072 = vmatprep.subr.mxu0 0.0
  %7073 = vmatpush1.msra.mxu0 0.0
  %7074 = vmatprep.subr.mxu0 0.0
  %7075 = vmatpush1.msra.mxu0 0.0
  %7076 = vmatprep.subr.mxu0 0.0
  %7077 = vmatpush1.msra.mxu0 0.0
  %7078 = vmatprep.subr.mxu0 0.0
  %7079 = vmatpush1.msra.mxu0 0.0
  %7080 = vmatprep.subr.mxu0 0.0
  %7081 = vmatpush1.msra.mxu0 0.0
  %7082 = vmatprep.subr.mxu0 0.0
  %7083 = vmatpush1.msra.mxu0 0.0
  %7084 = vmatprep.subr.mxu0 0.0
  %7085 = vmatpush1.msra.mxu0 0.0
  %7086 = vmatprep.subr.mxu0 0.0
  %7087 = vmatpush1.msra.mxu0 0.0
  %7088 = vmatprep.subr.mxu0 0.0
  %7089 = vmatpush1.msra.mxu0 0.0
  %7090 = vmatprep.subr.mxu0 0.0
  %7091 = vmatpush1.msra.mxu0 0.0
  %7092 = vmatprep.subr.mxu0 0.0
  %7093 = vmatpush1.msra.mxu0 0.0
  %7094 = vmatprep.subr.mxu0 0.0
  %7095 = vmatpush1.msra.mxu0 0.0
  %7096 = vmatprep.subr.mxu0 0.0
  %7097 = vmatpush1.msra.mxu0 0.0
  %7098 = vmatprep.subr.mxu0 0.0
  %7099 = vmatpush1.msra.mxu0 0.0
  %7100 = vmatprep.subr.mxu0 0.0
  %7101 = vmatpush1.msra.mxu0 0.0
  %7102 = vmatprep.mubr.f32.mxu0 0.0
  %7103 = vmatmul.mubr.f32.gmra.mrb[0].mxu0 %v7036
  %v7104 = vpop.f32.mrb[0].mxu0
  %v7105 = vadd.f32 0.0, %v7104
  %v7106 = vpop.f32.mrb[0].mxu0
  %7107 = vdwg.mxu0
  %v7110 = vunpack.c.l.s4 1966171168
  %v7111 = vunpack.c.0.s8 %v7110
  %v7112 = vlaneseq
  %v7113 = vshrl.u32 %v7112, 7
  %v7114 = vsub.s32 %v7111, %v7113
  %v7115 = vrot.slane %v7105, %v7114
  %v7116 = vcombine.high %v7115, %v7115
  %v7118 = vunpack.c.l.s4 1966171168
  %v7119 = vunpack.c.0.s8 %v7118
  %v7120 = vlaneseq
  %v7121 = vshrl.u32 %v7120, 7
  %v7122 = vsub.s32 %v7119, %v7121
  %v7123 = vrot.slane %v7115, %v7122
  %v7125 = vunpack.c.l.s4 1966171168
  %v7126 = vunpack.c.0.s8 %v7125
  %v7127 = vlaneseq
  %v7128 = vshrl.u32 %v7127, 7
  %v7129 = vsub.s32 %v7126, %v7128
  %v7130 = vrot.slane %v7116, %v7129
  %v7131 = vlaneseq
  %v7132 = vshrl.u32 %v7131, 7
  %v7133 = vsub.s32 0, %v7132
  %v7134 = vrot.slane %v7123, %v7133
  %v7135 = vlaneseq
  %v7136 = vshrl.u32 %v7135, 7
  %v7137 = vsub.s32 0, %v7136
  %v7138 = vrot.slane %v7130, %v7137
  %v7141 = vadd.f32 %v7134, %v7008
  %v7142 = vadd.f32 %v7138, %v7009
  %v7143 = vtanh.pop %v7141
  %v7144 = vtanh.pop %v7142
  %v7145 = vmul.f32 %v7143, %v181
  %v7146 = vmul.f32 %v7144, %v181
  %v7147 = vsel %vm66, %v7145, 0.0
  %7148 = vadd.xlane.f32.xlu0 %v7147
  %v7149 = vpop.xlane.xlu0 %7148
  %v7150 = vsel %vm66, %v7146, 0.0
  %7151 = vadd.xlane.f32.xlu0 %v7150
  %v7152 = vpop.xlane.xlu0 %7151
  %v7155 = vlaneseq
  %v7156 = vshrl.u32 %v7155, 7
  %v7157 = vsub.s32 %v37, %v7156
  %v7158 = vrot.slane %v7149, %v7157
  %v7159 = vlaneseq
  %v7160 = vshrl.u32 %v7159, 7
  %v7161 = vsub.s32 %v37, %v7160
  %v7162 = vrot.slane %v7152, %v7161
  %v7163 = vsel %vm201, %v7162, %v7158
  %v7165 = vsel %vm204, %v7163, -inf
  %7166 = vmax.xlane.f32.xlu0 %v7165
  %v7167 = vpop.xlane.xlu0 %7166
  %v7169 = vlaneseq
  %v7170 = vshrl.u32 %v7169, 7
  %v7171 = vsub.s32 0, %v7170
  %v7172 = vrot.slane %v7167, %v7171
  %v7173 = vlaneseq
  %v7174 = vshrl.u32 %v7173, 7
  %v7175 = vsub.s32 1, %v7174
  %v7176 = vrot.slane %v7167, %v7175
  %v7179 = vsub.f32 %v7149, %v7172
  %v7180 = vsub.f32 %v7152, %v7176
  %v7181 = vmul.f32 %v7179, 1.442695
  %v7182 = vpow.pop %v7181
  %v7183 = vmul.f32 %v7180, 1.442695
  %v7184 = vpow.pop %v7183
  %7187 = vset.pattern.permute.xlu0 0
  %7188 = vperm.xlu0 %7187, %v7182
  %v7189 = vpop.permute.xlu0 %7188
  %7190 = vset.pattern.permute.xlu0 0
  %7191 = vperm.xlu0 %7190, %v7184
  %v7192 = vpop.permute.xlu0 %7191
  %v7193 = vlaneseq
  %v7194 = vshrl.u32 %v7193, 7
  %v7195 = vsub.s32 %v37, %v7194
  %v7196 = vrot.slane %v7189, %v7195
  %v7197 = vlaneseq
  %v7198 = vshrl.u32 %v7197, 7
  %v7199 = vsub.s32 %v37, %v7198
  %v7200 = vrot.slane %v7192, %v7199
  %v7201 = vsel %vm201, %v7200, %v7196
  %v7203 = vsel %vm204, %v7201, 0.0
  %7204 = vadd.xlane.f32.xlu0 %v7203
  %v7205 = vpop.xlane.xlu0 %7204
  %v7206 = vrcp.pop %v7205
  %v7208 = vlaneseq
  %v7209 = vshrl.u32 %v7208, 7
  %v7210 = vsub.s32 0, %v7209
  %v7211 = vrot.slane %v7206, %v7210
  %v7212 = vlaneseq
  %v7213 = vshrl.u32 %v7212, 7
  %v7214 = vsub.s32 1, %v7213
  %v7215 = vrot.slane %v7206, %v7214
  %v7218 = vmul.f32 %v7182, %v7211
  %v7219 = vmul.f32 %v7184, %v7215
  %7221 = vset.pattern.permute.xlu0 0
  %7222 = vperm.xlu0 %7221, %v7218
  %v7223 = vpop.permute.xlu0 %7222
  %7226 = vset.pattern.permute.xlu0 0
  %7227 = vperm.xlu0 %7226, %v7219
  %v7228 = vpop.permute.xlu0 %7227
  %v7230 = vmul.f32 %v7223, %v7006
  %v7231 = vmul.f32 %v7228, %v7007
  %v7232 = vsel %vm66, %v7230, 0.0
  %v7233 = vrot.slane %v7232, 4
  %v7234 = vadd.f32 %v7232, %v7233
  %v7235 = vrot.slane %v7234, 2
  %v7236 = vadd.f32 %v7234, %v7235
  %v7237 = vrot.slane %v7236, 1
  %v7238 = vadd.f32 %v7236, %v7237
  %v7239 = vsel %vm66, %v7231, 0.0
  %v7240 = vrot.slane %v7239, 4
  %v7241 = vadd.f32 %v7239, %v7240
  %v7242 = vrot.slane %v7241, 2
  %v7243 = vadd.f32 %v7241, %v7242
  %v7244 = vrot.slane %v7243, 1
  %v7245 = vadd.f32 %v7243, %v7244
  %v7248 = vsel %vm201, %v7245, %v7238
  %7249 = vrot.lane.b32.xlu0 %v7248, 16
  %v7250 = vpop.permute.xlu0 %7249
  %7252 = vrot.lane.b32.xlu0 %v6858, 80
  %v7253 = vpop.permute.xlu0 %7252
  %v7255 = vsel %vm296, %v7005, %v7250
  %v7256 = vsel %vm298, %v7255, %v7253
  %v7258 = vsel %vm300, %v7256, 0
  %7260 = vmatprep.subr.mxu0 0.0
  %7261 = vmatpush1.msra.mxu0 %v7014
  %7262 = vmatprep.subr.mxu0 0.0
  %7263 = vmatpush1.msra.mxu0 %v7015
  %7264 = vmatprep.subr.mxu0 0.0
  %7265 = vmatpush1.msra.mxu0 %v7016
  %7266 = vmatprep.subr.mxu0 0.0
  %7267 = vmatpush1.msra.mxu0 %v7017
  %7268 = vmatprep.subr.mxu0 0.0
  %7269 = vmatpush1.msra.mxu0 %v7018
  %7270 = vmatprep.subr.mxu0 0.0
  %7271 = vmatpush1.msra.mxu0 %v7019
  %7272 = vmatprep.subr.mxu0 0.0
  %7273 = vmatpush1.msra.mxu0 %v7020
  %7274 = vmatprep.subr.mxu0 0.0
  %7275 = vmatpush1.msra.mxu0 %v7021
  %7276 = vmatprep.subr.mxu0 0.0
  %7277 = vmatpush1.msra.mxu0 %v7022
  %7278 = vmatprep.subr.mxu0 0.0
  %7279 = vmatpush1.msra.mxu0 %v7023
  %7280 = vmatprep.subr.mxu0 0.0
  %7281 = vmatpush1.msra.mxu0 0.0
  %7282 = vmatprep.subr.mxu0 0.0
  %7283 = vmatpush1.msra.mxu0 0.0
  %7284 = vmatprep.subr.mxu0 0.0
  %7285 = vmatpush1.msra.mxu0 0.0
  %7286 = vmatprep.subr.mxu0 0.0
  %7287 = vmatpush1.msra.mxu0 0.0
  %7288 = vmatprep.subr.mxu0 0.0
  %7289 = vmatpush1.msra.mxu0 0.0
  %7290 = vmatprep.subr.mxu0 0.0
  %7291 = vmatpush1.msra.mxu0 0.0
  %7292 = vmatprep.subr.mxu0 0.0
  %7293 = vmatpush1.msra.mxu0 0.0
  %7294 = vmatprep.subr.mxu0 0.0
  %7295 = vmatpush1.msra.mxu0 0.0
  %7296 = vmatprep.subr.mxu0 0.0
  %7297 = vmatpush1.msra.mxu0 0.0
  %7298 = vmatprep.subr.mxu0 0.0
  %7299 = vmatpush1.msra.mxu0 0.0
  %7300 = vmatprep.subr.mxu0 0.0
  %7301 = vmatpush1.msra.mxu0 0.0
  %7302 = vmatprep.subr.mxu0 0.0
  %7303 = vmatpush1.msra.mxu0 0.0
  %7304 = vmatprep.subr.mxu0 0.0
  %7305 = vmatpush1.msra.mxu0 0.0
  %7306 = vmatprep.subr.mxu0 0.0
  %7307 = vmatpush1.msra.mxu0 0.0
  %7308 = vmatprep.subr.mxu0 0.0
  %7309 = vmatpush1.msra.mxu0 0.0
  %7310 = vmatprep.subr.mxu0 0.0
  %7311 = vmatpush1.msra.mxu0 0.0
  %7312 = vmatprep.subr.mxu0 0.0
  %7313 = vmatpush1.msra.mxu0 0.0
  %7314 = vmatprep.subr.mxu0 0.0
  %7315 = vmatpush1.msra.mxu0 0.0
  %7316 = vmatprep.subr.mxu0 0.0
  %7317 = vmatpush1.msra.mxu0 0.0
  %7318 = vmatprep.subr.mxu0 0.0
  %7319 = vmatpush1.msra.mxu0 0.0
  %7320 = vmatprep.subr.mxu0 0.0
  %7321 = vmatpush1.msra.mxu0 0.0
  %7322 = vmatprep.subr.mxu0 0.0
  %7323 = vmatpush1.msra.mxu0 0.0
  %7324 = vmatprep.mubr.f32.mxu0 0.0
  %7325 = vmatmul.mubr.f32.gmra.mrb[0].mxu0 %v7258
  %v7326 = vpop.f32.mrb[0].mxu0
  %v7327 = vadd.f32 0.0, %v7326
  %v7328 = vpop.f32.mrb[0].mxu0
  %7329 = vdwg.mxu0
  %v7330 = vxor.u32 %v7327, 2147483648
  %v7331 = vmul.f32 %v7330, 1.442695
  %v7332 = vpow.pop %v7331
  %v7333 = vadd.f32 %v7332, 1.0
  %v7334 = vrcp.pop %v7333
  %v7335 = vmul.f32 1.0, %v7334
  %v7336 = vmul.f32 %v7335, 2.0
  %v7337 = vsub.f32 %v7336, 1.0
  %v7338 = vmul.f32 %v7335, %v6852
  %7340 = vrot.lane.b32.xlu0 %v7337, 64
  %v7341 = vpop.permute.xlu0 %7340
  %v7343 = vmul.f32 %v7335, %v7341
  %7345 = vrot.lane.b32.xlu0 %v7343, 32
  %v7346 = vpop.permute.xlu0 %7345
  %v7348 = vadd.f32 %v7338, %v7346
  %v7349 = vtanh.pop %v7348
  %7351 = vrot.lane.b32.xlu0 %v7349, 64
  %v7352 = vpop.permute.xlu0 %7351
  %v7354 = vmul.f32 %v7335, %v7352
  %7356 = vrot.lane.b32.xlu0 %v7354, 32
  %v7357 = vpop.permute.xlu0 %7356
  %v7358 = vsel %vm66, %v7357, 0
  %7360 = vmatprep.subr.mxu0 0.0
  %7361 = vmatpush1.msra.mxu0 %v7024
  %7362 = vmatprep.subr.mxu0 0.0
  %7363 = vmatpush1.msra.mxu0 %v7025
  %7364 = vmatprep.subr.mxu0 0.0
  %7365 = vmatpush1.msra.mxu0 %v7026
  %7366 = vmatprep.subr.mxu0 0.0
  %7367 = vmatpush1.msra.mxu0 %v7027
  %7368 = vmatprep.subr.mxu0 0.0
  %7369 = vmatpush1.msra.mxu0 0.0
  %7370 = vmatprep.subr.mxu0 0.0
  %7371 = vmatpush1.msra.mxu0 0.0
  %7372 = vmatprep.subr.mxu0 0.0
  %7373 = vmatpush1.msra.mxu0 0.0
  %7374 = vmatprep.subr.mxu0 0.0
  %7375 = vmatpush1.msra.mxu0 0.0
  %7376 = vmatprep.subr.mxu0 0.0
  %7377 = vmatpush1.msra.mxu0 0.0
  %7378 = vmatprep.subr.mxu0 0.0
  %7379 = vmatpush1.msra.mxu0 0.0
  %7380 = vmatprep.subr.mxu0 0.0
  %7381 = vmatpush1.msra.mxu0 0.0
  %7382 = vmatprep.subr.mxu0 0.0
  %7383 = vmatpush1.msra.mxu0 0.0
  %7384 = vmatprep.subr.mxu0 0.0
  %7385 = vmatpush1.msra.mxu0 0.0
  %7386 = vmatprep.subr.mxu0 0.0
  %7387 = vmatpush1.msra.mxu0 0.0
  %7388 = vmatprep.subr.mxu0 0.0
  %7389 = vmatpush1.msra.mxu0 0.0
  %7390 = vmatprep.subr.mxu0 0.0
  %7391 = vmatpush1.msra.mxu0 0.0
  %7392 = vmatprep.subr.mxu0 0.0
  %7393 = vmatpush1.msra.mxu0 0.0
  %7394 = vmatprep.subr.mxu0 0.0
  %7395 = vmatpush1.msra.mxu0 0.0
  %7396 = vmatprep.subr.mxu0 0.0
  %7397 = vmatpush1.msra.mxu0 0.0
  %7398 = vmatprep.subr.mxu0 0.0
  %7399 = vmatpush1.msra.mxu0 0.0
  %7400 = vmatprep.subr.mxu0 0.0
  %7401 = vmatpush1.msra.mxu0 0.0
  %7402 = vmatprep.subr.mxu0 0.0
  %7403 = vmatpush1.msra.mxu0 0.0
  %7404 = vmatprep.subr.mxu0 0.0
  %7405 = vmatpush1.msra.mxu0 0.0
  %7406 = vmatprep.subr.mxu0 0.0
  %7407 = vmatpush1.msra.mxu0 0.0
  %7408 = vmatprep.subr.mxu0 0.0
  %7409 = vmatpush1.msra.mxu0 0.0
  %7410 = vmatprep.subr.mxu0 0.0
  %7411 = vmatpush1.msra.mxu0 0.0
  %7412 = vmatprep.subr.mxu0 0.0
  %7413 = vmatpush1.msra.mxu0 0.0
  %7414 = vmatprep.subr.mxu0 0.0
  %7415 = vmatpush1.msra.mxu0 0.0
  %7416 = vmatprep.subr.mxu0 0.0
  %7417 = vmatpush1.msra.mxu0 0.0
  %7418 = vmatprep.subr.mxu0 0.0
  %7419 = vmatpush1.msra.mxu0 0.0
  %7420 = vmatprep.subr.mxu0 0.0
  %7421 = vmatpush1.msra.mxu0 0.0
  %7422 = vmatprep.subr.mxu0 0.0
  %7423 = vmatpush1.msra.mxu0 0.0
  %7424 = vmatprep.mubr.f32.mxu0 0.0
  %7425 = vmatmul.mubr.f32.gmra.mrb[0].mxu0 %v7358
  %v7426 = vpop.f32.mrb[0].mxu0
  %v7427 = vadd.f32 %v407, %v7426
  %v7428 = vpop.f32.mrb[0].mxu0
  %7429 = vdwg.mxu0
  %v7430 = vsel %vm484, %v7427, -inf
  %7431 = vmax.xlane.f32.xlu0 %v7430
  %v7432 = vpop.xlane.xlu0 %7431
  %v7433 = vsub.f32 %v7427, %v7432
  %v7434 = vmul.f32 %v7433, 1.442695
  %v7435 = vpow.pop %v7434
  %v7436 = vsel %vm484, %v7435, 0.0
  %7437 = vadd.xlane.f32.xlu0 %v7436
  %v7438 = vpop.xlane.xlu0 %7437
  %v7439 = vlog2.pop %v7438
  %v7440 = vmul.f32 %v7439, 0.6931472
  %v7441 = vadd.f32 %v7440, %v7432
  %v7442 = vsub.f32 %v7427, %v7441
  %v7445 = vunpack.c.l.s4 1966171168
  %v7446 = vunpack.c.0.s8 %v7445
  %v7447 = vlaneseq
  %v7448 = vshrl.u32 %v7447, 7
  %v7449 = vsub.s32 %v7446, %v7448
  %v7450 = vrot.slane %v7442, %v7449
  %v7451 = vcombine.high %v7450, %v7450
  %v7453 = vunpack.c.l.s4 1966171168
  %v7454 = vunpack.c.0.s8 %v7453
  %v7455 = vlaneseq
  %v7456 = vshrl.u32 %v7455, 7
  %v7457 = vsub.s32 %v7454, %v7456
  %v7458 = vrot.slane %v7450, %v7457
  %v7460 = vunpack.c.l.s4 1966171168
  %v7461 = vunpack.c.0.s8 %v7460
  %v7462 = vlaneseq
  %v7463 = vshrl.u32 %v7462, 7
  %v7464 = vsub.s32 %v7461, %v7463
  %v7465 = vrot.slane %v7451, %v7464
  %7468 = vst [vmem:[%s9 + $0xe] sm:$0x1] %v7458
  %7469 = vst [vmem:[%s9 + $0x1e] sm:$0x1] %v7465
  %v7470 = vlaneseq
  %v7471 = vshrl.u32 %v7470, 7
  %v7472 = vsub.s32 %v37, %v7471
  %v7473 = vrot.slane %v7223, %v7472
  %v7474 = vlaneseq
  %v7475 = vshrl.u32 %v7474, 7
  %v7476 = vsub.s32 %v37, %v7475
  %v7477 = vrot.slane %v7228, %v7476
  %7480 = vst.msk [vmem:[%s10 + $0xe] sm:$0x1] %vm535, %v7473
  %7481 = vst.msk [vmem:[%s10 + $0x1e] sm:$0x1] %vm535, %v7477
  %vm7482 = vcmp.eq.f32.partialorder %v7427, %v7432
  %v7483 = vsel %vm7482, %v37, 128
  %v7484 = vsel %vm484, %v7483, 2147483647
  %v7485 = vand.u32 %v7484, 65535
  %v7486 = vshra.s32 %v7484, 16
  %v7487 = vcvt.s32.f32 %v7485
  %v7488 = vcvt.s32.f32 %v7486
  %7489 = vmin.xlane.f32.xlu0 %v7488
  %v7490 = vpop.xlane.xlu0 %7489
  %vm7491 = vcmp.eq.f32.partialorder %v7488, %v7490
  %v7492 = vsel %vm7491, %v7487, inf
  %7493 = vmin.xlane.f32.xlu0 %v7492
  %v7494 = vpop.xlane.xlu0 %7493
  %v7495 = vcvt.f32.s32 %v7494
  %v7496 = vcvt.f32.s32 %v7490
  %v7497 = vshll.u32 %v7496, 16
  %v7498 = vadd.s32 %v7497, %v7495
  %vm7499 = vcmp.eq.s32.totalorder %v37, %v7498
  %v7500 = vsel %vm7499, 1, 0
  %v7501 = vcvt.s32.f32 %v7500
  %v7502 = vld [vmem:[%s0] sm:$0xff]
  %v7503 = vld [vmem:[%s0 + $0x8] sm:$0xff]
  %v7504 = vld [vmem:[%s1] sm:$0xff]
  %v7505 = vld [vmem:[%s1 + $0x8] sm:$0xff]
  %v7506 = vld [vmem:[%s4] sm:$0xff]
  %v7507 = vld [vmem:[%s4 + $0x8] sm:$0xff]
  %v7508 = vld [vmem:[%s4 + $0x10] sm:$0xff]
  %v7509 = vld [vmem:[%s4 + $0x18] sm:$0xff]
  %v7510 = vld [vmem:[%s6] sm:$0xff]
  %v7511 = vld [vmem:[%s6 + $0x8] sm:$0xff]
  %v7512 = vld [vmem:[%s6 + $0x10] sm:$0xff]
  %v7513 = vld [vmem:[%s6 + $0x18] sm:$0xff]
  %v7514 = vld [vmem:[%s6 + $0x20] sm:$0xff]
  %v7515 = vld [vmem:[%s6 + $0x28] sm:$0xff]
  %v7516 = vld [vmem:[%s6 + $0x30] sm:$0xff]
  %v7517 = vld [vmem:[%s6 + $0x38] sm:$0xff]
  %v7518 = vld [vmem:[%s6 + $0x40] sm:$0xff]
  %v7519 = vld [vmem:[%s6 + $0x48] sm:$0xff]
  %v7520 = vld [vmem:[%s7] sm:$0xff]
  %v7521 = vld [vmem:[%s7 + $0x8] sm:$0xff]
  %v7522 = vld [vmem:[%s7 + $0x10] sm:$0xff]
  %v7523 = vld [vmem:[%s7 + $0x18] sm:$0xff]
  %7525 = vrot.lane.b32.xlu0 %v7348, 64
  %v7526 = vpop.permute.xlu0 %7525
  %v7528 = vadd.f32 %v7354, %v7526
  %7530 = vrot.lane.b32.xlu0 %v7528, 32
  %v7531 = vpop.permute.xlu0 %7530
  %v7532 = vsel %vm66, %v7531, 0
  %7534 = vmatprep.subr.mxu0 0.0
  %7535 = vmatpush1.msra.mxu0 %v7506
  %7536 = vmatprep.subr.mxu0 0.0
  %7537 = vmatpush1.msra.mxu0 %v7507
  %7538 = vmatprep.subr.mxu0 0.0
  %7539 = vmatpush1.msra.mxu0 %v7508
  %7540 = vmatprep.subr.mxu0 0.0
  %7541 = vmatpush1.msra.mxu0 %v7509
  %7542 = vmatprep.subr.mxu0 0.0
  %7543 = vmatpush1.msra.mxu0 0.0
  %7544 = vmatprep.subr.mxu0 0.0
  %7545 = vmatpush1.msra.mxu0 0.0
  %7546 = vmatprep.subr.mxu0 0.0
  %7547 = vmatpush1.msra.mxu0 0.0
  %7548 = vmatprep.subr.mxu0 0.0
  %7549 = vmatpush1.msra.mxu0 0.0
  %7550 = vmatprep.subr.mxu0 0.0
  %7551 = vmatpush1.msra.mxu0 0.0
  %7552 = vmatprep.subr.mxu0 0.0
  %7553 = vmatpush1.msra.mxu0 0.0
  %7554 = vmatprep.subr.mxu0 0.0
  %7555 = vmatpush1.msra.mxu0 0.0
  %7556 = vmatprep.subr.mxu0 0.0
  %7557 = vmatpush1.msra.mxu0 0.0
  %7558 = vmatprep.subr.mxu0 0.0
  %7559 = vmatpush1.msra.mxu0 0.0
  %7560 = vmatprep.subr.mxu0 0.0
  %7561 = vmatpush1.msra.mxu0 0.0
  %7562 = vmatprep.subr.mxu0 0.0
  %7563 = vmatpush1.msra.mxu0 0.0
  %7564 = vmatprep.subr.mxu0 0.0
  %7565 = vmatpush1.msra.mxu0 0.0
  %7566 = vmatprep.subr.mxu0 0.0
  %7567 = vmatpush1.msra.mxu0 0.0
  %7568 = vmatprep.subr.mxu0 0.0
  %7569 = vmatpush1.msra.mxu0 0.0
  %7570 = vmatprep.subr.mxu0 0.0
  %7571 = vmatpush1.msra.mxu0 0.0
  %7572 = vmatprep.subr.mxu0 0.0
  %7573 = vmatpush1.msra.mxu0 0.0
  %7574 = vmatprep.subr.mxu0 0.0
  %7575 = vmatpush1.msra.mxu0 0.0
  %7576 = vmatprep.subr.mxu0 0.0
  %7577 = vmatpush1.msra.mxu0 0.0
  %7578 = vmatprep.subr.mxu0 0.0
  %7579 = vmatpush1.msra.mxu0 0.0
  %7580 = vmatprep.subr.mxu0 0.0
  %7581 = vmatpush1.msra.mxu0 0.0
  %7582 = vmatprep.subr.mxu0 0.0
  %7583 = vmatpush1.msra.mxu0 0.0
  %7584 = vmatprep.subr.mxu0 0.0
  %7585 = vmatpush1.msra.mxu0 0.0
  %7586 = vmatprep.subr.mxu0 0.0
  %7587 = vmatpush1.msra.mxu0 0.0
  %7588 = vmatprep.subr.mxu0 0.0
  %7589 = vmatpush1.msra.mxu0 0.0
  %7590 = vmatprep.subr.mxu0 0.0
  %7591 = vmatpush1.msra.mxu0 0.0
  %7592 = vmatprep.subr.mxu0 0.0
  %7593 = vmatpush1.msra.mxu0 0.0
  %7594 = vmatprep.subr.mxu0 0.0
  %7595 = vmatpush1.msra.mxu0 0.0
  %7596 = vmatprep.subr.mxu0 0.0
  %7597 = vmatpush1.msra.mxu0 0.0
  %7598 = vmatprep.mubr.f32.mxu0 0.0
  %7599 = vmatmul.mubr.f32.gmra.mrb[0].mxu0 %v7532
  %v7600 = vpop.f32.mrb[0].mxu0
  %v7601 = vadd.f32 0.0, %v7600
  %v7602 = vpop.f32.mrb[0].mxu0
  %7603 = vdwg.mxu0
  %v7606 = vunpack.c.l.s4 1966171168
  %v7607 = vunpack.c.0.s8 %v7606
  %v7608 = vlaneseq
  %v7609 = vshrl.u32 %v7608, 7
  %v7610 = vsub.s32 %v7607, %v7609
  %v7611 = vrot.slane %v7601, %v7610
  %v7612 = vcombine.high %v7611, %v7611
  %v7614 = vunpack.c.l.s4 1966171168
  %v7615 = vunpack.c.0.s8 %v7614
  %v7616 = vlaneseq
  %v7617 = vshrl.u32 %v7616, 7
  %v7618 = vsub.s32 %v7615, %v7617
  %v7619 = vrot.slane %v7611, %v7618
  %v7621 = vunpack.c.l.s4 1966171168
  %v7622 = vunpack.c.0.s8 %v7621
  %v7623 = vlaneseq
  %v7624 = vshrl.u32 %v7623, 7
  %v7625 = vsub.s32 %v7622, %v7624
  %v7626 = vrot.slane %v7612, %v7625
  %v7627 = vlaneseq
  %v7628 = vshrl.u32 %v7627, 7
  %v7629 = vsub.s32 0, %v7628
  %v7630 = vrot.slane %v7619, %v7629
  %v7631 = vlaneseq
  %v7632 = vshrl.u32 %v7631, 7
  %v7633 = vsub.s32 0, %v7632
  %v7634 = vrot.slane %v7626, %v7633
  %v7637 = vadd.f32 %v7630, %v7504
  %v7638 = vadd.f32 %v7634, %v7505
  %v7639 = vtanh.pop %v7637
  %v7640 = vtanh.pop %v7638
  %v7641 = vmul.f32 %v7639, %v181
  %v7642 = vmul.f32 %v7640, %v181
  %v7643 = vsel %vm66, %v7641, 0.0
  %7644 = vadd.xlane.f32.xlu0 %v7643
  %v7645 = vpop.xlane.xlu0 %7644
  %v7646 = vsel %vm66, %v7642, 0.0
  %7647 = vadd.xlane.f32.xlu0 %v7646
  %v7648 = vpop.xlane.xlu0 %7647
  %v7651 = vlaneseq
  %v7652 = vshrl.u32 %v7651, 7
  %v7653 = vsub.s32 %v37, %v7652
  %v7654 = vrot.slane %v7645, %v7653
  %v7655 = vlaneseq
  %v7656 = vshrl.u32 %v7655, 7
  %v7657 = vsub.s32 %v37, %v7656
  %v7658 = vrot.slane %v7648, %v7657
  %v7659 = vsel %vm201, %v7658, %v7654
  %v7661 = vsel %vm204, %v7659, -inf
  %7662 = vmax.xlane.f32.xlu0 %v7661
  %v7663 = vpop.xlane.xlu0 %7662
  %v7665 = vlaneseq
  %v7666 = vshrl.u32 %v7665, 7
  %v7667 = vsub.s32 0, %v7666
  %v7668 = vrot.slane %v7663, %v7667
  %v7669 = vlaneseq
  %v7670 = vshrl.u32 %v7669, 7
  %v7671 = vsub.s32 1, %v7670
  %v7672 = vrot.slane %v7663, %v7671
  %v7675 = vsub.f32 %v7645, %v7668
  %v7676 = vsub.f32 %v7648, %v7672
  %v7677 = vmul.f32 %v7675, 1.442695
  %v7678 = vpow.pop %v7677
  %v7679 = vmul.f32 %v7676, 1.442695
  %v7680 = vpow.pop %v7679
  %7683 = vset.pattern.permute.xlu0 0
  %7684 = vperm.xlu0 %7683, %v7678
  %v7685 = vpop.permute.xlu0 %7684
  %7686 = vset.pattern.permute.xlu0 0
  %7687 = vperm.xlu0 %7686, %v7680
  %v7688 = vpop.permute.xlu0 %7687
  %v7689 = vlaneseq
  %v7690 = vshrl.u32 %v7689, 7
  %v7691 = vsub.s32 %v37, %v7690
  %v7692 = vrot.slane %v7685, %v7691
  %v7693 = vlaneseq
  %v7694 = vshrl.u32 %v7693, 7
  %v7695 = vsub.s32 %v37, %v7694
  %v7696 = vrot.slane %v7688, %v7695
  %v7697 = vsel %vm201, %v7696, %v7692
  %v7699 = vsel %vm204, %v7697, 0.0
  %7700 = vadd.xlane.f32.xlu0 %v7699
  %v7701 = vpop.xlane.xlu0 %7700
  %v7702 = vrcp.pop %v7701
  %v7704 = vlaneseq
  %v7705 = vshrl.u32 %v7704, 7
  %v7706 = vsub.s32 0, %v7705
  %v7707 = vrot.slane %v7702, %v7706
  %v7708 = vlaneseq
  %v7709 = vshrl.u32 %v7708, 7
  %v7710 = vsub.s32 1, %v7709
  %v7711 = vrot.slane %v7702, %v7710
  %v7714 = vmul.f32 %v7678, %v7707
  %v7715 = vmul.f32 %v7680, %v7711
  %7717 = vset.pattern.permute.xlu0 0
  %7718 = vperm.xlu0 %7717, %v7714
  %v7719 = vpop.permute.xlu0 %7718
  %7722 = vset.pattern.permute.xlu0 0
  %7723 = vperm.xlu0 %7722, %v7715
  %v7724 = vpop.permute.xlu0 %7723
  %v7726 = vmul.f32 %v7719, %v7502
  %v7727 = vmul.f32 %v7724, %v7503
  %v7728 = vsel %vm66, %v7726, 0.0
  %v7729 = vrot.slane %v7728, 4
  %v7730 = vadd.f32 %v7728, %v7729
  %v7731 = vrot.slane %v7730, 2
  %v7732 = vadd.f32 %v7730, %v7731
  %v7733 = vrot.slane %v7732, 1
  %v7734 = vadd.f32 %v7732, %v7733
  %v7735 = vsel %vm66, %v7727, 0.0
  %v7736 = vrot.slane %v7735, 4
  %v7737 = vadd.f32 %v7735, %v7736
  %v7738 = vrot.slane %v7737, 2
  %v7739 = vadd.f32 %v7737, %v7738
  %v7740 = vrot.slane %v7739, 1
  %v7741 = vadd.f32 %v7739, %v7740
  %v7744 = vsel %vm201, %v7741, %v7734
  %7745 = vrot.lane.b32.xlu0 %v7744, 16
  %v7746 = vpop.permute.xlu0 %7745
  %7748 = vrot.lane.b32.xlu0 %v7354, 80
  %v7749 = vpop.permute.xlu0 %7748
  %v7751 = vsel %vm296, %v7501, %v7746
  %v7752 = vsel %vm298, %v7751, %v7749
  %v7754 = vsel %vm300, %v7752, 0
  %7756 = vmatprep.subr.mxu0 0.0
  %7757 = vmatpush1.msra.mxu0 %v7510
  %7758 = vmatprep.subr.mxu0 0.0
  %7759 = vmatpush1.msra.mxu0 %v7511
  %7760 = vmatprep.subr.mxu0 0.0
  %7761 = vmatpush1.msra.mxu0 %v7512
  %7762 = vmatprep.subr.mxu0 0.0
  %7763 = vmatpush1.msra.mxu0 %v7513
  %7764 = vmatprep.subr.mxu0 0.0
  %7765 = vmatpush1.msra.mxu0 %v7514
  %7766 = vmatprep.subr.mxu0 0.0
  %7767 = vmatpush1.msra.mxu0 %v7515
  %7768 = vmatprep.subr.mxu0 0.0
  %7769 = vmatpush1.msra.mxu0 %v7516
  %7770 = vmatprep.subr.mxu0 0.0
  %7771 = vmatpush1.msra.mxu0 %v7517
  %7772 = vmatprep.subr.mxu0 0.0
  %7773 = vmatpush1.msra.mxu0 %v7518
  %7774 = vmatprep.subr.mxu0 0.0
  %7775 = vmatpush1.msra.mxu0 %v7519
  %7776 = vmatprep.subr.mxu0 0.0
  %7777 = vmatpush1.msra.mxu0 0.0
  %7778 = vmatprep.subr.mxu0 0.0
  %7779 = vmatpush1.msra.mxu0 0.0
  %7780 = vmatprep.subr.mxu0 0.0
  %7781 = vmatpush1.msra.mxu0 0.0
  %7782 = vmatprep.subr.mxu0 0.0
  %7783 = vmatpush1.msra.mxu0 0.0
  %7784 = vmatprep.subr.mxu0 0.0
  %7785 = vmatpush1.msra.mxu0 0.0
  %7786 = vmatprep.subr.mxu0 0.0
  %7787 = vmatpush1.msra.mxu0 0.0
  %7788 = vmatprep.subr.mxu0 0.0
  %7789 = vmatpush1.msra.mxu0 0.0
  %7790 = vmatprep.subr.mxu0 0.0
  %7791 = vmatpush1.msra.mxu0 0.0
  %7792 = vmatprep.subr.mxu0 0.0
  %7793 = vmatpush1.msra.mxu0 0.0
  %7794 = vmatprep.subr.mxu0 0.0
  %7795 = vmatpush1.msra.mxu0 0.0
  %7796 = vmatprep.subr.mxu0 0.0
  %7797 = vmatpush1.msra.mxu0 0.0
  %7798 = vmatprep.subr.mxu0 0.0
  %7799 = vmatpush1.msra.mxu0 0.0
  %7800 = vmatprep.subr.mxu0 0.0
  %7801 = vmatpush1.msra.mxu0 0.0
  %7802 = vmatprep.subr.mxu0 0.0
  %7803 = vmatpush1.msra.mxu0 0.0
  %7804 = vmatprep.subr.mxu0 0.0
  %7805 = vmatpush1.msra.mxu0 0.0
  %7806 = vmatprep.subr.mxu0 0.0
  %7807 = vmatpush1.msra.mxu0 0.0
  %7808 = vmatprep.subr.mxu0 0.0
  %7809 = vmatpush1.msra.mxu0 0.0
  %7810 = vmatprep.subr.mxu0 0.0
  %7811 = vmatpush1.msra.mxu0 0.0
  %7812 = vmatprep.subr.mxu0 0.0
  %7813 = vmatpush1.msra.mxu0 0.0
  %7814 = vmatprep.subr.mxu0 0.0
  %7815 = vmatpush1.msra.mxu0 0.0
  %7816 = vmatprep.subr.mxu0 0.0
  %7817 = vmatpush1.msra.mxu0 0.0
  %7818 = vmatprep.subr.mxu0 0.0
  %7819 = vmatpush1.msra.mxu0 0.0
  %7820 = vmatprep.mubr.f32.mxu0 0.0
  %7821 = vmatmul.mubr.f32.gmra.mrb[0].mxu0 %v7754
  %v7822 = vpop.f32.mrb[0].mxu0
  %v7823 = vadd.f32 0.0, %v7822
  %v7824 = vpop.f32.mrb[0].mxu0
  %7825 = vdwg.mxu0
  %v7826 = vxor.u32 %v7823, 2147483648
  %v7827 = vmul.f32 %v7826, 1.442695
  %v7828 = vpow.pop %v7827
  %v7829 = vadd.f32 %v7828, 1.0
  %v7830 = vrcp.pop %v7829
  %v7831 = vmul.f32 1.0, %v7830
  %v7832 = vmul.f32 %v7831, 2.0
  %v7833 = vsub.f32 %v7832, 1.0
  %v7834 = vmul.f32 %v7831, %v7348
  %7836 = vrot.lane.b32.xlu0 %v7833, 64
  %v7837 = vpop.permute.xlu0 %7836
  %v7839 = vmul.f32 %v7831, %v7837
  %7841 = vrot.lane.b32.xlu0 %v7839, 32
  %v7842 = vpop.permute.xlu0 %7841
  %v7844 = vadd.f32 %v7834, %v7842
  %v7845 = vtanh.pop %v7844
  %7847 = vrot.lane.b32.xlu0 %v7845, 64
  %v7848 = vpop.permute.xlu0 %7847
  %v7850 = vmul.f32 %v7831, %v7848
  %7852 = vrot.lane.b32.xlu0 %v7850, 32
  %v7853 = vpop.permute.xlu0 %7852
  %v7854 = vsel %vm66, %v7853, 0
  %7856 = vmatprep.subr.mxu0 0.0
  %7857 = vmatpush1.msra.mxu0 %v7520
  %7858 = vmatprep.subr.mxu0 0.0
  %7859 = vmatpush1.msra.mxu0 %v7521
  %7860 = vmatprep.subr.mxu0 0.0
  %7861 = vmatpush1.msra.mxu0 %v7522
  %7862 = vmatprep.subr.mxu0 0.0
  %7863 = vmatpush1.msra.mxu0 %v7523
  %7864 = vmatprep.subr.mxu0 0.0
  %7865 = vmatpush1.msra.mxu0 0.0
  %7866 = vmatprep.subr.mxu0 0.0
  %7867 = vmatpush1.msra.mxu0 0.0
  %7868 = vmatprep.subr.mxu0 0.0
  %7869 = vmatpush1.msra.mxu0 0.0
  %7870 = vmatprep.subr.mxu0 0.0
  %7871 = vmatpush1.msra.mxu0 0.0
  %7872 = vmatprep.subr.mxu0 0.0
  %7873 = vmatpush1.msra.mxu0 0.0
  %7874 = vmatprep.subr.mxu0 0.0
  %7875 = vmatpush1.msra.mxu0 0.0
  %7876 = vmatprep.subr.mxu0 0.0
  %7877 = vmatpush1.msra.mxu0 0.0
  %7878 = vmatprep.subr.mxu0 0.0
  %7879 = vmatpush1.msra.mxu0 0.0
  %7880 = vmatprep.subr.mxu0 0.0
  %7881 = vmatpush1.msra.mxu0 0.0
  %7882 = vmatprep.subr.mxu0 0.0
  %7883 = vmatpush1.msra.mxu0 0.0
  %7884 = vmatprep.subr.mxu0 0.0
  %7885 = vmatpush1.msra.mxu0 0.0
  %7886 = vmatprep.subr.mxu0 0.0
  %7887 = vmatpush1.msra.mxu0 0.0
  %7888 = vmatprep.subr.mxu0 0.0
  %7889 = vmatpush1.msra.mxu0 0.0
  %7890 = vmatprep.subr.mxu0 0.0
  %7891 = vmatpush1.msra.mxu0 0.0
  %7892 = vmatprep.subr.mxu0 0.0
  %7893 = vmatpush1.msra.mxu0 0.0
  %7894 = vmatprep.subr.mxu0 0.0
  %7895 = vmatpush1.msra.mxu0 0.0
  %7896 = vmatprep.subr.mxu0 0.0
  %7897 = vmatpush1.msra.mxu0 0.0
  %7898 = vmatprep.subr.mxu0 0.0
  %7899 = vmatpush1.msra.mxu0 0.0
  %7900 = vmatprep.subr.mxu0 0.0
  %7901 = vmatpush1.msra.mxu0 0.0
  %7902 = vmatprep.subr.mxu0 0.0
  %7903 = vmatpush1.msra.mxu0 0.0
  %7904 = vmatprep.subr.mxu0 0.0
  %7905 = vmatpush1.msra.mxu0 0.0
  %7906 = vmatprep.subr.mxu0 0.0
  %7907 = vmatpush1.msra.mxu0 0.0
  %7908 = vmatprep.subr.mxu0 0.0
  %7909 = vmatpush1.msra.mxu0 0.0
  %7910 = vmatprep.subr.mxu0 0.0
  %7911 = vmatpush1.msra.mxu0 0.0
  %7912 = vmatprep.subr.mxu0 0.0
  %7913 = vmatpush1.msra.mxu0 0.0
  %7914 = vmatprep.subr.mxu0 0.0
  %7915 = vmatpush1.msra.mxu0 0.0
  %7916 = vmatprep.subr.mxu0 0.0
  %7917 = vmatpush1.msra.mxu0 0.0
  %7918 = vmatprep.subr.mxu0 0.0
  %7919 = vmatpush1.msra.mxu0 0.0
  %7920 = vmatprep.mubr.f32.mxu0 0.0
  %7921 = vmatmul.mubr.f32.gmra.mrb[0].mxu0 %v7854
  %v7922 = vpop.f32.mrb[0].mxu0
  %v7923 = vadd.f32 %v407, %v7922
  %v7924 = vpop.f32.mrb[0].mxu0
  %7925 = vdwg.mxu0
  %v7926 = vsel %vm484, %v7923, -inf
  %7927 = vmax.xlane.f32.xlu0 %v7926
  %v7928 = vpop.xlane.xlu0 %7927
  %v7929 = vsub.f32 %v7923, %v7928
  %v7930 = vmul.f32 %v7929, 1.442695
  %v7931 = vpow.pop %v7930
  %v7932 = vsel %vm484, %v7931, 0.0
  %7933 = vadd.xlane.f32.xlu0 %v7932
  %v7934 = vpop.xlane.xlu0 %7933
  %v7935 = vlog2.pop %v7934
  %v7936 = vmul.f32 %v7935, 0.6931472
  %v7937 = vadd.f32 %v7936, %v7928
  %v7938 = vsub.f32 %v7923, %v7937
  %v7941 = vunpack.c.l.s4 1966171168
  %v7942 = vunpack.c.0.s8 %v7941
  %v7943 = vlaneseq
  %v7944 = vshrl.u32 %v7943, 7
  %v7945 = vsub.s32 %v7942, %v7944
  %v7946 = vrot.slane %v7938, %v7945
  %v7947 = vcombine.high %v7946, %v7946
  %v7949 = vunpack.c.l.s4 1966171168
  %v7950 = vunpack.c.0.s8 %v7949
  %v7951 = vlaneseq
  %v7952 = vshrl.u32 %v7951, 7
  %v7953 = vsub.s32 %v7950, %v7952
  %v7954 = vrot.slane %v7946, %v7953
  %v7956 = vunpack.c.l.s4 1966171168
  %v7957 = vunpack.c.0.s8 %v7956
  %v7958 = vlaneseq
  %v7959 = vshrl.u32 %v7958, 7
  %v7960 = vsub.s32 %v7957, %v7959
  %v7961 = vrot.slane %v7947, %v7960
  %7964 = vst [vmem:[%s9 + $0xf] sm:$0x1] %v7954
  %7965 = vst [vmem:[%s9 + $0x1f] sm:$0x1] %v7961
  %v7966 = vlaneseq
  %v7967 = vshrl.u32 %v7966, 7
  %v7968 = vsub.s32 %v37, %v7967
  %v7969 = vrot.slane %v7719, %v7968
  %v7970 = vlaneseq
  %v7971 = vshrl.u32 %v7970, 7
  %v7972 = vsub.s32 %v37, %v7971
  %v7973 = vrot.slane %v7724, %v7972
  %7976 = vst.msk [vmem:[%s10 + $0xf] sm:$0x1] %vm535, %v7969
  %7977 = vst.msk [vmem:[%s10 + $0x1f] sm:$0x1] %vm535, %v7973
  // Predicated region
  $region38: #{decoder_forward.1} parent=0 // pred_check
    _
  $region39: #{decoder_forward.1} parent=0 // pred_check_branch
    %7979 = sbr.rel (0) target = $region41
  $region40: #{decoder_forward.1} parent=0 // pred_region
    _
  $region41: #{decoder_forward.1} parent=0 // pred_fallthru
    _
  // Predicated region
  $region42: #{decoder_forward.1} parent=0 // pred_check
    _
  $region43: #{decoder_forward.1} parent=0 // pred_check_branch
    %7981 = sbr.rel (0) target = $region45
  $region44: #{decoder_forward.1} parent=0 // pred_region
    _
  $region45: #{decoder_forward.1} parent=0 // pred_fallthru
    _
  // Predicated region
  $region46: #{decoder_forward.1} parent=0 // pred_check
    _
  $region47: #{decoder_forward.1} parent=0 // pred_check_branch
    %7983 = sbr.rel (0) target = $region49
  $region48: #{decoder_forward.1} parent=0 // pred_region
    _
  $region49: #{decoder_forward.1} parent=0 // pred_fallthru
    _
  // Predicated region
  $region50: #{decoder_forward.1} parent=0 // pred_check
    _
  $region51: #{decoder_forward.1} parent=0 // pred_check_branch
    %7985 = sbr.rel (0) target = $region53
  $region52: #{decoder_forward.1} parent=0 // pred_region
    _
  $region53: #{decoder_forward.1} parent=0 // pred_fallthru
    _

</llo_original>
